<compile_context>
chip_gen: v6e
topology: v6e:2x2x1
jax: 0.10.0
libtpu: 0.0.40
codegen_flags: <defaults>
</compile_context>

<pallas_src>
import jax
import jax.numpy as jnp
from jax.experimental import pallas as pl
from jax.experimental.pallas import tpu as pltpu

IN_DIM = 1000
IN_PAD = 1024          # pad 1000 -> 1024 (multiple of 128 lanes), zero rows in W1
HID = 512
OUT_DIM = 1152         # 9 * 128 lanes
BN_EPS = 1e-5


# ----------------------------------------------------------------------------
# Pallas kernel: whole TagEncoder forward for one batch tile
# ----------------------------------------------------------------------------
def _tag_encoder_kernel(x_ref,
                        w1_ref, s1_ref, b1_ref,
                        w2_ref, s2_ref, b2_ref,
                        w3_ref, s3_ref, b3_ref,
                        w4_ref,
                        z_ref, zd_ref):
    # x_ref:  (tb, IN_PAD)   bf16 input rows (zero-padded features)
    # wN_ref: bf16 weight matrices in (in, out) layout (== W_pt.T)
    # sN/bN:  (1, out) f32 folded BatchNorm scale / shift (bias folded in)
    # z_ref / zd_ref: (tb, OUT_DIM) f32 outputs
    h = jnp.dot(x_ref[...], w1_ref[...], preferred_element_type=jnp.float32)
    h = jnp.maximum(h * s1_ref[...] + b1_ref[...], 0.0)

    h = jnp.dot(h.astype(jnp.bfloat16), w2_ref[...],
                preferred_element_type=jnp.float32)
    h = jnp.maximum(h * s2_ref[...] + b2_ref[...], 0.0)

    h = jnp.dot(h.astype(jnp.bfloat16), w3_ref[...],
                preferred_element_type=jnp.float32)
    z = jnp.maximum(h * s3_ref[...] + b3_ref[...], 0.0)

    z_ref[...] = z
    zd_ref[...] = jnp.dot(z.astype(jnp.bfloat16), w4_ref[...],
                          preferred_element_type=jnp.float32)


def _pick_tb(bsz):
    """Batch tile: sublane-aligned, dividing bsz, giving >=2 grid steps if possible."""
    if bsz % 16 == 0:
        return max(8, min(bsz // 2, 256))
    if bsz % 8 == 0:
        return 8 if bsz > 8 else bsz
    return bsz  # small/odd batch: single full-batch block


# ----------------------------------------------------------------------------
# Wrapper: pad + cast input, call the fused kernel
# ----------------------------------------------------------------------------
def tag_encoder_forward(tags, prep):
    (w1, s1, b1, w2, s2, b2, w3, s3, b3, w4) = prep
    bsz, fin = tags.shape
    x = jnp.pad(tags, ((0, 0), (0, IN_PAD - fin))).astype(jnp.bfloat16)
    tb = _pick_tb(bsz)

    z, zd = pl.pallas_call(
        _tag_encoder_kernel,
        out_shape=(jax.ShapeDtypeStruct((bsz, OUT_DIM), jnp.float32),
                   jax.ShapeDtypeStruct((bsz, OUT_DIM), jnp.float32)),
        grid_spec=pltpu.PrefetchScalarGridSpec(
            num_scalar_prefetch=0,
            grid=(bsz // tb,),
            in_specs=[
                pl.BlockSpec((tb, IN_PAD), lambda i: (i, 0)),
                pl.BlockSpec((IN_PAD, HID), lambda i: (0, 0)),
                pl.BlockSpec((1, HID), lambda i: (0, 0)),
                pl.BlockSpec((1, HID), lambda i: (0, 0)),
                pl.BlockSpec((HID, HID), lambda i: (0, 0)),
                pl.BlockSpec((1, HID), lambda i: (0, 0)),
                pl.BlockSpec((1, HID), lambda i: (0, 0)),
                pl.BlockSpec((HID, OUT_DIM), lambda i: (0, 0)),
                pl.BlockSpec((1, OUT_DIM), lambda i: (0, 0)),
                pl.BlockSpec((1, OUT_DIM), lambda i: (0, 0)),
                pl.BlockSpec((OUT_DIM, OUT_DIM), lambda i: (0, 0)),
            ],
            out_specs=[
                pl.BlockSpec((tb, OUT_DIM), lambda i: (i, 0)),
                pl.BlockSpec((tb, OUT_DIM), lambda i: (i, 0)),
            ],
        ),
        compiler_params=pltpu.CompilerParams(
            dimension_semantics=("parallel",),
            vmem_limit_bytes=32 << 20,
        ),
    )(x, w1, s1, b1, w2, s2, b2, w3, s3, b3, w4)
    return z, zd


# ----------------------------------------------------------------------------
# Parameters (deterministic synthetic init) and preparation
# ----------------------------------------------------------------------------
def init_params(key):
    """Synthetic TagEncoder params.

    Linear weights are stored as (in, out) == W_pt.T; BatchNorm1d running stats
    are folded together with the Linear bias into per-channel scale/shift.
    """
    specs = [(IN_DIM, HID), (HID, HID), (HID, OUT_DIM)]
    layers = []
    for din, dout in specs:
        key, kw, kb, kg, kbe, km, kv = jax.random.split(key, 7)
        w = 0.05 * jax.random.normal(kw, (din, dout), jnp.float32)
        bias = 0.05 * jax.random.normal(kb, (dout,), jnp.float32)
        gamma = 1.0 + 0.1 * jax.random.normal(kg, (dout,), jnp.float32)
        beta = 0.05 * jax.random.normal(kbe, (dout,), jnp.float32)
        rmean = 0.05 * jax.random.normal(km, (dout,), jnp.float32)
        rvar = 1.0 + 0.1 * jnp.abs(jax.random.normal(kv, (dout,), jnp.float32))
        scale = gamma / jnp.sqrt(rvar + BN_EPS)
        shift = beta + scale * (bias - rmean)
        layers.append((w, scale, shift))
    key, kw4 = jax.random.split(key)
    w4 = 0.05 * jax.random.normal(kw4, (OUT_DIM, OUT_DIM), jnp.float32)  # fc_tag (no bias)
    return layers, w4


def prepare_params(layers, w4):
    """Pad W1's input dim to 1024, cast weights to bf16, shape scale/shift (1, out)."""
    (w1, s1, b1), (w2, s2, b2), (w3, s3, b3) = layers
    w1p = jnp.pad(w1, ((0, IN_PAD - IN_DIM), (0, 0)))  # zero rows for padded features
    return (
        w1p.astype(jnp.bfloat16), s1.reshape(1, -1), b1.reshape(1, -1),
        w2.astype(jnp.bfloat16), s2.reshape(1, -1), b2.reshape(1, -1),
        w3.astype(jnp.bfloat16), s3.reshape(1, -1), b3.reshape(1, -1),
        w4.astype(jnp.bfloat16),
    )


# ----------------------------------------------------------------------------
# Pure-JAX f32 reference (inference-mode TagEncoder)
# ----------------------------------------------------------------------------
def tag_encoder_reference(tags, layers, w4):
    # TODO(synk): Dropout(0.25) layers are identity (eval mode); training-mode
    # RNG masking is not implemented.
    (w1, s1, b1), (w2, s2, b2), (w3, s3, b3) = layers
    h = jnp.maximum(tags @ w1 * s1 + b1, 0.0)
    h = jnp.maximum(h @ w2 * s2 + b2, 0.0)
    z = jnp.maximum(h @ w3 * s3 + b3, 0.0)
    z_d = z @ w4
    return z, z_d


if __name__ == "__main__":
    key = jax.random.PRNGKey(0)
    kt, kp = jax.random.split(key)

    B = 16  # small batch; tiles to grid=(2,) so both v7x TensorCores get work
    tags = jax.random.normal(kt, (B, IN_DIM), jnp.float32)

    layers, w4 = init_params(kp)
    prep = prepare_params(layers, w4)

    fwd = jax.jit(lambda t: tag_encoder_forward(t, prep))
    z, z_d = jax.block_until_ready(fwd(tags))

    assert z.shape == (B, OUT_DIM), z.shape
    assert z_d.shape == (B, OUT_DIM), z_d.shape
    assert bool(jnp.all(jnp.isfinite(z))) and bool(jnp.all(jnp.isfinite(z_d)))
    assert bool(jnp.all(z >= 0.0))  # ReLU output

    # Loose check against the f32 reference (kernel uses bf16 operands, f32 accum).
    z_ref, zd_ref = tag_encoder_reference(tags, layers, w4)
    err_z = float(jnp.max(jnp.abs(z - z_ref)) / (jnp.max(jnp.abs(z_ref)) + 1e-6))
    err_d = float(jnp.max(jnp.abs(z_d - zd_ref)) / (jnp.max(jnp.abs(zd_ref)) + 1e-6))
    assert err_z < 0.1 and err_d < 0.1, (err_z, err_d)

    print("KERNEL_OK")
</pallas_src>

<mosaic_0001>
module attributes {stable_mosaic.version = 11 : i64} {
  func.func @_tag_encoder_kernel(%arg0: i32, %arg1: memref<8x1024xbf16, #tpu.memory_space<vmem>>, %arg2: memref<1024x512xbf16, #tpu.memory_space<vmem>>, %arg3: memref<1x512xf32, #tpu.memory_space<vmem>>, %arg4: memref<1x512xf32, #tpu.memory_space<vmem>>, %arg5: memref<512x512xbf16, #tpu.memory_space<vmem>>, %arg6: memref<1x512xf32, #tpu.memory_space<vmem>>, %arg7: memref<1x512xf32, #tpu.memory_space<vmem>>, %arg8: memref<512x1152xbf16, #tpu.memory_space<vmem>>, %arg9: memref<1x1152xf32, #tpu.memory_space<vmem>>, %arg10: memref<1x1152xf32, #tpu.memory_space<vmem>>, %arg11: memref<1152x1152xbf16, #tpu.memory_space<vmem>>, %arg12: memref<8x1152xf32, #tpu.memory_space<vmem>>, %arg13: memref<8x1152xf32, #tpu.memory_space<vmem>>) attributes {dimension_semantics = [#tpu.dimension_semantics<parallel>], iteration_bounds = array<i64: 2>, scalar_prefetch = 0 : i64, scratch_operands = 0 : i64, tpu.core_type = #tpu.core_type<tc>, window_params = [{transform_indices = @transform_0, window_bounds = array<i64: 8, 1024>}, {pipeline_mode = #tpu.pipeline_mode<synchronous>, transform_indices = @transform_1, window_bounds = array<i64: 1024, 512>}, {pipeline_mode = #tpu.pipeline_mode<synchronous>, transform_indices = @transform_2, window_bounds = array<i64: 1, 512>}, {pipeline_mode = #tpu.pipeline_mode<synchronous>, transform_indices = @transform_3, window_bounds = array<i64: 1, 512>}, {pipeline_mode = #tpu.pipeline_mode<synchronous>, transform_indices = @transform_4, window_bounds = array<i64: 512, 512>}, {pipeline_mode = #tpu.pipeline_mode<synchronous>, transform_indices = @transform_5, window_bounds = array<i64: 1, 512>}, {pipeline_mode = #tpu.pipeline_mode<synchronous>, transform_indices = @transform_6, window_bounds = array<i64: 1, 512>}, {pipeline_mode = #tpu.pipeline_mode<synchronous>, transform_indices = @transform_7, window_bounds = array<i64: 512, 1152>}, {pipeline_mode = #tpu.pipeline_mode<synchronous>, transform_indices = @transform_8, window_bounds = array<i64: 1, 1152>}, {pipeline_mode = #tpu.pipeline_mode<synchronous>, transform_indices = @transform_9, window_bounds = array<i64: 1, 1152>}, {pipeline_mode = #tpu.pipeline_mode<synchronous>, transform_indices = @transform_10, window_bounds = array<i64: 1152, 1152>}, {transform_indices = @transform_11, window_bounds = array<i64: 8, 1152>}, {transform_indices = @transform_12, window_bounds = array<i64: 8, 1152>}]} {
    %c0 = arith.constant 0 : index
    %c0_0 = arith.constant 0 : index
    %0 = vector.load %arg1[%c0, %c0_0] : memref<8x1024xbf16, #tpu.memory_space<vmem>>, vector<8x1024xbf16>
    %c0_1 = arith.constant 0 : index
    %c0_2 = arith.constant 0 : index
    %1 = vector.load %arg2[%c0_1, %c0_2] : memref<1024x512xbf16, #tpu.memory_space<vmem>>, vector<1024x512xbf16>
    %cst = arith.constant dense<0.000000e+00> : vector<8x512xf32>
    %2 = tpu.matmul %0, %1, %cst {dimension_numbers = #tpu.dot_dimension_numbers<[1], [0], [0], [1], [0, 0, 1, 1], [], []>} : vector<8x1024xbf16>, vector<1024x512xbf16>, vector<8x512xf32> -> vector<8x512xf32>
    %c0_3 = arith.constant 0 : index
    %c0_4 = arith.constant 0 : index
    %3 = vector.load %arg3[%c0_3, %c0_4] : memref<1x512xf32, #tpu.memory_space<vmem>>, vector<1x512xf32>
    %4 = vector.broadcast %3 : vector<1x512xf32> to vector<8x512xf32>
    %5 = arith.mulf %2, %4 : vector<8x512xf32>
    %c0_5 = arith.constant 0 : index
    %c0_6 = arith.constant 0 : index
    %6 = vector.load %arg4[%c0_5, %c0_6] : memref<1x512xf32, #tpu.memory_space<vmem>>, vector<1x512xf32>
    %7 = vector.broadcast %6 : vector<1x512xf32> to vector<8x512xf32>
    %8 = arith.addf %5, %7 : vector<8x512xf32>
    %cst_7 = arith.constant 0.000000e+00 : f32
    %9 = vector.broadcast %cst_7 : f32 to vector<8x512xf32>
    %10 = arith.maximumf %8, %9 : vector<8x512xf32>
    %11 = arith.truncf %10 : vector<8x512xf32> to vector<8x512xbf16>
    %c0_8 = arith.constant 0 : index
    %c0_9 = arith.constant 0 : index
    %12 = vector.load %arg5[%c0_8, %c0_9] : memref<512x512xbf16, #tpu.memory_space<vmem>>, vector<512x512xbf16>
    %cst_10 = arith.constant dense<0.000000e+00> : vector<8x512xf32>
    %13 = tpu.matmul %11, %12, %cst_10 {dimension_numbers = #tpu.dot_dimension_numbers<[1], [0], [0], [1], [0, 0, 1, 1], [], []>} : vector<8x512xbf16>, vector<512x512xbf16>, vector<8x512xf32> -> vector<8x512xf32>
    %c0_11 = arith.constant 0 : index
    %c0_12 = arith.constant 0 : index
    %14 = vector.load %arg6[%c0_11, %c0_12] : memref<1x512xf32, #tpu.memory_space<vmem>>, vector<1x512xf32>
    %15 = vector.broadcast %14 : vector<1x512xf32> to vector<8x512xf32>
    %16 = arith.mulf %13, %15 : vector<8x512xf32>
    %c0_13 = arith.constant 0 : index
    %c0_14 = arith.constant 0 : index
    %17 = vector.load %arg7[%c0_13, %c0_14] : memref<1x512xf32, #tpu.memory_space<vmem>>, vector<1x512xf32>
    %18 = vector.broadcast %17 : vector<1x512xf32> to vector<8x512xf32>
    %19 = arith.addf %16, %18 : vector<8x512xf32>
    %cst_15 = arith.constant 0.000000e+00 : f32
    %20 = vector.broadcast %cst_15 : f32 to vector<8x512xf32>
    %21 = arith.maximumf %19, %20 : vector<8x512xf32>
    %22 = arith.truncf %21 : vector<8x512xf32> to vector<8x512xbf16>
    %c0_16 = arith.constant 0 : index
    %c0_17 = arith.constant 0 : index
    %23 = vector.load %arg8[%c0_16, %c0_17] : memref<512x1152xbf16, #tpu.memory_space<vmem>>, vector<512x1152xbf16>
    %cst_18 = arith.constant dense<0.000000e+00> : vector<8x1152xf32>
    %24 = tpu.matmul %22, %23, %cst_18 {dimension_numbers = #tpu.dot_dimension_numbers<[1], [0], [0], [1], [0, 0, 1, 1], [], []>} : vector<8x512xbf16>, vector<512x1152xbf16>, vector<8x1152xf32> -> vector<8x1152xf32>
    %c0_19 = arith.constant 0 : index
    %c0_20 = arith.constant 0 : index
    %25 = vector.load %arg9[%c0_19, %c0_20] : memref<1x1152xf32, #tpu.memory_space<vmem>>, vector<1x1152xf32>
    %26 = vector.broadcast %25 : vector<1x1152xf32> to vector<8x1152xf32>
    %27 = arith.mulf %24, %26 : vector<8x1152xf32>
    %c0_21 = arith.constant 0 : index
    %c0_22 = arith.constant 0 : index
    %28 = vector.load %arg10[%c0_21, %c0_22] : memref<1x1152xf32, #tpu.memory_space<vmem>>, vector<1x1152xf32>
    %29 = vector.broadcast %28 : vector<1x1152xf32> to vector<8x1152xf32>
    %30 = arith.addf %27, %29 : vector<8x1152xf32>
    %cst_23 = arith.constant 0.000000e+00 : f32
    %31 = vector.broadcast %cst_23 : f32 to vector<8x1152xf32>
    %32 = arith.maximumf %30, %31 : vector<8x1152xf32>
    %c0_24 = arith.constant 0 : index
    %c0_25 = arith.constant 0 : index
    %33 = vector.load %arg12[%c0_24, %c0_25] : memref<8x1152xf32, #tpu.memory_space<vmem>>, vector<8x1152xf32>
    tpu.vector_store %arg12[%c0_24, %c0_25], %32 {strides = array<i32>} : memref<8x1152xf32, #tpu.memory_space<vmem>>, vector<8x1152xf32>,
    %34 = arith.truncf %32 : vector<8x1152xf32> to vector<8x1152xbf16>
    %c0_26 = arith.constant 0 : index
    %c0_27 = arith.constant 0 : index
    %35 = vector.load %arg11[%c0_26, %c0_27] : memref<1152x1152xbf16, #tpu.memory_space<vmem>>, vector<1152x1152xbf16>
    %cst_28 = arith.constant dense<0.000000e+00> : vector<8x1152xf32>
    %36 = tpu.matmul %34, %35, %cst_28 {dimension_numbers = #tpu.dot_dimension_numbers<[1], [0], [0], [1], [0, 0, 1, 1], [], []>} : vector<8x1152xbf16>, vector<1152x1152xbf16>, vector<8x1152xf32> -> vector<8x1152xf32>
    %c0_29 = arith.constant 0 : index
    %c0_30 = arith.constant 0 : index
    %37 = vector.load %arg13[%c0_29, %c0_30] : memref<8x1152xf32, #tpu.memory_space<vmem>>, vector<8x1152xf32>
    tpu.vector_store %arg13[%c0_29, %c0_30], %36 {strides = array<i32>} : memref<8x1152xf32, #tpu.memory_space<vmem>>, vector<8x1152xf32>,
    return
  }
  func.func @transform_0(%arg0: i32) -> (i32, i32) {
    %c0_i32 = arith.constant 0 : i32
    %c0_i32_0 = arith.constant 0 : i32
    return %arg0, %c0_i32 : i32, i32
  }
  func.func @transform_1(%arg0: i32) -> (i32, i32) {
    %c0_i32 = arith.constant 0 : i32
    %c0_i32_0 = arith.constant 0 : i32
    %c0_i32_1 = arith.constant 0 : i32
    return %c0_i32, %c0_i32_0 : i32, i32
  }
  func.func @transform_2(%arg0: i32) -> (i32, i32) {
    %c0_i32 = arith.constant 0 : i32
    %c0_i32_0 = arith.constant 0 : i32
    %c0_i32_1 = arith.constant 0 : i32
    return %c0_i32, %c0_i32_0 : i32, i32
  }
  func.func @transform_3(%arg0: i32) -> (i32, i32) {
    %c0_i32 = arith.constant 0 : i32
    %c0_i32_0 = arith.constant 0 : i32
    %c0_i32_1 = arith.constant 0 : i32
    return %c0_i32, %c0_i32_0 : i32, i32
  }
  func.func @transform_4(%arg0: i32) -> (i32, i32) {
    %c0_i32 = arith.constant 0 : i32
    %c0_i32_0 = arith.constant 0 : i32
    %c0_i32_1 = arith.constant 0 : i32
    return %c0_i32, %c0_i32_0 : i32, i32
  }
  func.func @transform_5(%arg0: i32) -> (i32, i32) {
    %c0_i32 = arith.constant 0 : i32
    %c0_i32_0 = arith.constant 0 : i32
    %c0_i32_1 = arith.constant 0 : i32
    return %c0_i32, %c0_i32_0 : i32, i32
  }
  func.func @transform_6(%arg0: i32) -> (i32, i32) {
    %c0_i32 = arith.constant 0 : i32
    %c0_i32_0 = arith.constant 0 : i32
    %c0_i32_1 = arith.constant 0 : i32
    return %c0_i32, %c0_i32_0 : i32, i32
  }
  func.func @transform_7(%arg0: i32) -> (i32, i32) {
    %c0_i32 = arith.constant 0 : i32
    %c0_i32_0 = arith.constant 0 : i32
    %c0_i32_1 = arith.constant 0 : i32
    return %c0_i32, %c0_i32_0 : i32, i32
  }
  func.func @transform_8(%arg0: i32) -> (i32, i32) {
    %c0_i32 = arith.constant 0 : i32
    %c0_i32_0 = arith.constant 0 : i32
    %c0_i32_1 = arith.constant 0 : i32
    return %c0_i32, %c0_i32_0 : i32, i32
  }
  func.func @transform_9(%arg0: i32) -> (i32, i32) {
    %c0_i32 = arith.constant 0 : i32
    %c0_i32_0 = arith.constant 0 : i32
    %c0_i32_1 = arith.constant 0 : i32
    return %c0_i32, %c0_i32_0 : i32, i32
  }
  func.func @transform_10(%arg0: i32) -> (i32, i32) {
    %c0_i32 = arith.constant 0 : i32
    %c0_i32_0 = arith.constant 0 : i32
    %c0_i32_1 = arith.constant 0 : i32
    return %c0_i32, %c0_i32_0 : i32, i32
  }
  func.func @transform_11(%arg0: i32) -> (i32, i32) {
    %c0_i32 = arith.constant 0 : i32
    %c0_i32_0 = arith.constant 0 : i32
    return %arg0, %c0_i32 : i32, i32
  }
  func.func @transform_12(%arg0: i32) -> (i32, i32) {
    %c0_i32 = arith.constant 0 : i32
    %c0_i32_0 = arith.constant 0 : i32
    return %arg0, %c0_i32 : i32, i32
  }
}

</mosaic_0001>

<llo_original>
// kernel: _lambda_.1
$region0: #{_lambda_.1}
  #allocation0 [shape = 'u32[]', space=smem, size = 0x4, offset = 0x4, fixed_abs, tag = 'smem constant byte address 0x4 - core index']
  #allocation1 [shape = 'u32[144,128]{1,0:T(1,128)}', space=vmem, size = 0x12000, scoped, tag = 'internal scratch']
  %s0 = inlined_call_operand.vmem [shape: bf16[16,1024], index: 0, kind: input, shape index: {}]
  %s1 = inlined_call_operand.hbm [shape: bf16[1024,512], index: 1, kind: input, shape index: {}]
  %s2 = inlined_call_operand.hbm [shape: f32[1,512], index: 2, kind: input, shape index: {}]
  %s3 = inlined_call_operand.hbm [shape: f32[1,512], index: 3, kind: input, shape index: {}]
  %s4 = inlined_call_operand.hbm [shape: bf16[512,512], index: 4, kind: input, shape index: {}]
  %s5 = inlined_call_operand.hbm [shape: f32[1,512], index: 5, kind: input, shape index: {}]
  %s6 = inlined_call_operand.hbm [shape: f32[1,512], index: 6, kind: input, shape index: {}]
  %s7 = inlined_call_operand.hbm [shape: bf16[512,1152], index: 7, kind: input, shape index: {}]
  %s8 = inlined_call_operand.hbm [shape: f32[1,1152], index: 8, kind: input, shape index: {}]
  %s9 = inlined_call_operand.hbm [shape: f32[1,1152], index: 9, kind: input, shape index: {}]
  %s10 = inlined_call_operand.hbm [shape: bf16[1152,1152], index: 10, kind: input, shape index: {}]
  %s11 = inlined_call_operand.hbm [shape: f32[16,1152], index: 11, kind: output, shape index: {0}]
  %s12 = inlined_call_operand.hbm [shape: f32[16,1152], index: 12, kind: output, shape index: {1}]
  %13 = xla_tuple %s11, %s12
  %s14 = sld [smem:[#allocation0]]
  $region125: #{_lambda_.1} parent=0
    _
  %s16 = ssub.s32 1, %s14
  %s17 = scalar_select 0, %s16, %s14
  $region1: #{_lambda_.1} parent=0
    #allocation2 [shape = 'u8[1048576]{0}', space=vmem, size = 0x100000, scoped, tag = 'input window, operand 1, single buffered']
    #allocation3 [shape = 's32[2]{0}', space=sflag, size = 0x8, scoped, tag = 'scoped memory for _lambda_.1']
    #allocation4 [shape = 's32[2]{0}', space=sflag, size = 0x8, scoped, tag = 'scoped memory for _lambda_.1']
    #allocation5 [shape = 'u8[2048]{0}', space=vmem, size = 0x800, scoped, tag = 'input window, operand 2, single buffered']
    #allocation6 [shape = 's32[1]{0}', space=sflag, size = 0x4, scoped, tag = 'scoped memory for _lambda_.1']
    #allocation7 [shape = 'u8[2048]{0}', space=vmem, size = 0x800, scoped, tag = 'input window, operand 3, single buffered']
    #allocation8 [shape = 'u8[524288]{0}', space=vmem, size = 0x80000, scoped, tag = 'input window, operand 4, single buffered']
    #allocation9 [shape = 's32[1]{0}', space=sflag, size = 0x4, scoped, tag = 'scoped memory for _lambda_.1']
    #allocation10 [shape = 'u8[2048]{0}', space=vmem, size = 0x800, scoped, tag = 'input window, operand 5, single buffered']
    #allocation11 [shape = 'u8[2048]{0}', space=vmem, size = 0x800, scoped, tag = 'input window, operand 6, single buffered']
    #allocation12 [shape = 's32[1]{0}', space=sflag, size = 0x4, scoped, tag = 'scoped memory for _lambda_.1']
    #allocation13 [shape = 'u8[1179648]{0}', space=vmem, size = 0x120000, scoped, tag = 'input window, operand 7, single buffered']
    #allocation14 [shape = 'u8[4608]{0}', space=vmem, size = 0x1400, scoped, tag = 'input window, operand 8, single buffered']
    #allocation15 [shape = 's32[1]{0}', space=sflag, size = 0x4, scoped, tag = 'scoped memory for _lambda_.1']
    #allocation16 [shape = 'u8[4608]{0}', space=vmem, size = 0x1400, scoped, tag = 'input window, operand 9, single buffered']
    #allocation17 [shape = 'u8[2654208]{0}', space=vmem, size = 0x288000, scoped, tag = 'input window, operand 10, single buffered']
    #allocation18 [shape = 's32[1]{0}', space=sflag, size = 0x4, scoped, tag = 'scoped memory for _lambda_.1']
    #allocation19 [shape = 'u8[73728]{0}', space=vmem, size = 0x12000, scoped, tag = 'output window, operand 0']
    #allocation20 [shape = 'u8[73728]{0}', space=vmem, size = 0x12000, scoped, tag = 'output window, operand 1']
    #allocation21 [shape = 's32[2]{0}', space=sflag, size = 0x8, scoped, tag = 'scoped memory for _lambda_.1']
    %18 = vsyncpa [#allocation3], 0
    %19 = vsyncpa [#allocation6], 0
    %20 = vsyncpa [#allocation9], 0
    %21 = vsyncpa [#allocation12], 0
    %22 = vsyncpa [#allocation15], 0
    %23 = vsyncpa [#allocation18], 0
    %24 = vsyncpa [#allocation4], 0
    %s25 = scalar_lea.sflag [#allocation4], 1
    %26 = vsyncpa %s25, 0
    %27 = vsyncpa [#allocation21], 0
    %s28 = scalar_lea.sflag [#allocation21], 1
    %29 = vsyncpa %s28, 0
    loop: start=0, step=1, limit=4
    $region2: #{_lambda_.1} parent=1 // loop_pre_header
      _
    $region3: #{_lambda_.1} parent=1 // loop_header
      %s31 = sphi 0, %s35
      %p32 = scmp.ge.s32.totalorder %s31, 4
      %s41 = sphi 0, %s43
      %s44 = sphi 0, %s41
      %s45 = sphi 0, %s44
      %s61 = sphi 0, %s45
      %s65 = sphi 0, %s65
      %s67 = sphi 0, %s65
      %s68 = sphi 0, %s67
      %s82 = sphi 0, %s68
      %s86 = sphi 0, %s86
      %s88 = sphi 0, %s86
      %s89 = sphi 0, %s88
      %s103 = sphi 0, %s89
      %s107 = sphi 0, %s107
      %s109 = sphi 0, %s107
      %s110 = sphi 0, %s109
      %s124 = sphi 0, %s110
      %s128 = sphi 0, %s128
      %s130 = sphi 0, %s128
      %s131 = sphi 0, %s130
      %s145 = sphi 0, %s131
      %s149 = sphi 0, %s149
      %s151 = sphi 0, %s149
      %s152 = sphi 0, %s151
      %s166 = sphi 0, %s152
      %s170 = sphi 0, %s170
      %s172 = sphi 0, %s170
      %s173 = sphi 0, %s172
      %s187 = sphi 0, %s173
      %s191 = sphi 0, %s191
      %s193 = sphi 0, %s191
      %s194 = sphi 0, %s193
      %s208 = sphi 0, %s194
      %s212 = sphi 0, %s212
      %s214 = sphi 0, %s212
      %s215 = sphi 0, %s214
      %s229 = sphi 0, %s215
      %s233 = sphi 0, %s233
      %s235 = sphi 0, %s233
      %s236 = sphi 0, %s235
      %s250 = sphi 0, %s236
      %s254 = sphi 0, %s254
      %s256 = sphi 0, %s254
      %s257 = sphi 0, %s256
      %s271 = sphi 0, %s257
      %s277 = sphi 0, %s279
      %s280 = sphi 0, %s277
      %s281 = sphi 0, %s280
      %s297 = sphi 0, %s281
      %s303 = sphi 0, %s305
      %s306 = sphi 0, %s303
      %s307 = sphi 0, %s306
      %s323 = sphi 0, %s307
    $region4: #{_lambda_.1} parent=1 // loop_header_branch
      %34 = sbr.rel (%p32) target = $region8
    $region5: #{_lambda_.1} parent=1 // loop_body
      %s36 = ssub.s32 %s31, 1
      %s37 = ssub.s32 %s31, 2
      %s38 = sadd.s32 %s31, 1
      %s39 = ssub.s32 %s31, %s38
      %p40 = scmp.eq.s32.totalorder %s39, 0
      %s42 = sadd.s32 %s41, 1
      %s43 = scalar_select %p40, %s41, %s42
      %p46 = pneg %p40
      %p47 = scmp.eq.s32.totalorder %s31, 1
      %p48 = por %p46, %p47
      %p49 = scmp.ne.s32.totalorder %s41, %s44
      %p50 = scmp.eq.s32.totalorder %s31, 0
      %p51 = por %p49, %p50
      %p52 = scmp.ne.s32.totalorder %s41, %s44
      %p53 = scmp.eq.s32.totalorder %s36, 1
      %p54 = por %p52, %p53
      %p55 = scmp.ne.s32.totalorder %s44, %s45
      %p56 = scmp.eq.s32.totalorder %s36, 0
      %p57 = por %p55, %p56
      %p58 = scmp.ne.s32.totalorder %s44, %s45
      %p59 = scmp.eq.s32.totalorder %s37, 1
      %p60 = por %p58, %p59
      %p62 = scmp.ne.s32.totalorder %s45, %s61
      %p63 = scmp.eq.s32.totalorder %s37, 0
      %p64 = por %p62, %p63
      %s66 = sadd.s32 %s65, 1
      %p69 = scmp.eq.s32.totalorder %s31, 1
      %p70 = scmp.ne.s32.totalorder %s65, %s67
      %p71 = scmp.eq.s32.totalorder %s31, 0
      %p72 = por %p70, %p71
      %p73 = scmp.ne.s32.totalorder %s65, %s67
      %p74 = scmp.eq.s32.totalorder %s36, 1
      %p75 = por %p73, %p74
      %p76 = scmp.ne.s32.totalorder %s67, %s68
      %p77 = scmp.eq.s32.totalorder %s36, 0
      %p78 = por %p76, %p77
      %p79 = scmp.ne.s32.totalorder %s67, %s68
      %p80 = scmp.eq.s32.totalorder %s37, 1
      %p81 = por %p79, %p80
      %p83 = scmp.ne.s32.totalorder %s68, %s82
      %p84 = scmp.eq.s32.totalorder %s37, 0
      %p85 = por %p83, %p84
      %s87 = sadd.s32 %s86, 1
      %p90 = scmp.eq.s32.totalorder %s31, 1
      %p91 = scmp.ne.s32.totalorder %s86, %s88
      %p92 = scmp.eq.s32.totalorder %s31, 0
      %p93 = por %p91, %p92
      %p94 = scmp.ne.s32.totalorder %s86, %s88
      %p95 = scmp.eq.s32.totalorder %s36, 1
      %p96 = por %p94, %p95
      %p97 = scmp.ne.s32.totalorder %s88, %s89
      %p98 = scmp.eq.s32.totalorder %s36, 0
      %p99 = por %p97, %p98
      %p100 = scmp.ne.s32.totalorder %s88, %s89
      %p101 = scmp.eq.s32.totalorder %s37, 1
      %p102 = por %p100, %p101
      %p104 = scmp.ne.s32.totalorder %s89, %s103
      %p105 = scmp.eq.s32.totalorder %s37, 0
      %p106 = por %p104, %p105
      %s108 = sadd.s32 %s107, 1
      %p111 = scmp.eq.s32.totalorder %s31, 1
      %p112 = scmp.ne.s32.totalorder %s107, %s109
      %p113 = scmp.eq.s32.totalorder %s31, 0
      %p114 = por %p112, %p113
      %p115 = scmp.ne.s32.totalorder %s107, %s109
      %p116 = scmp.eq.s32.totalorder %s36, 1
      %p117 = por %p115, %p116
      %p118 = scmp.ne.s32.totalorder %s109, %s110
      %p119 = scmp.eq.s32.totalorder %s36, 0
      %p120 = por %p118, %p119
      %p121 = scmp.ne.s32.totalorder %s109, %s110
      %p122 = scmp.eq.s32.totalorder %s37, 1
      %p123 = por %p121, %p122
      %p125 = scmp.ne.s32.totalorder %s110, %s124
      %p126 = scmp.eq.s32.totalorder %s37, 0
      %p127 = por %p125, %p126
      %s129 = sadd.s32 %s128, 1
      %p132 = scmp.eq.s32.totalorder %s31, 1
      %p133 = scmp.ne.s32.totalorder %s128, %s130
      %p134 = scmp.eq.s32.totalorder %s31, 0
      %p135 = por %p133, %p134
      %p136 = scmp.ne.s32.totalorder %s128, %s130
      %p137 = scmp.eq.s32.totalorder %s36, 1
      %p138 = por %p136, %p137
      %p139 = scmp.ne.s32.totalorder %s130, %s131
      %p140 = scmp.eq.s32.totalorder %s36, 0
      %p141 = por %p139, %p140
      %p142 = scmp.ne.s32.totalorder %s130, %s131
      %p143 = scmp.eq.s32.totalorder %s37, 1
      %p144 = por %p142, %p143
      %p146 = scmp.ne.s32.totalorder %s131, %s145
      %p147 = scmp.eq.s32.totalorder %s37, 0
      %p148 = por %p146, %p147
      %s150 = sadd.s32 %s149, 1
      %p153 = scmp.eq.s32.totalorder %s31, 1
      %p154 = scmp.ne.s32.totalorder %s149, %s151
      %p155 = scmp.eq.s32.totalorder %s31, 0
      %p156 = por %p154, %p155
      %p157 = scmp.ne.s32.totalorder %s149, %s151
      %p158 = scmp.eq.s32.totalorder %s36, 1
      %p159 = por %p157, %p158
      %p160 = scmp.ne.s32.totalorder %s151, %s152
      %p161 = scmp.eq.s32.totalorder %s36, 0
      %p162 = por %p160, %p161
      %p163 = scmp.ne.s32.totalorder %s151, %s152
      %p164 = scmp.eq.s32.totalorder %s37, 1
      %p165 = por %p163, %p164
      %p167 = scmp.ne.s32.totalorder %s152, %s166
      %p168 = scmp.eq.s32.totalorder %s37, 0
      %p169 = por %p167, %p168
      %s171 = sadd.s32 %s170, 1
      %p174 = scmp.eq.s32.totalorder %s31, 1
      %p175 = scmp.ne.s32.totalorder %s170, %s172
      %p176 = scmp.eq.s32.totalorder %s31, 0
      %p177 = por %p175, %p176
      %p178 = scmp.ne.s32.totalorder %s170, %s172
      %p179 = scmp.eq.s32.totalorder %s36, 1
      %p180 = por %p178, %p179
      %p181 = scmp.ne.s32.totalorder %s172, %s173
      %p182 = scmp.eq.s32.totalorder %s36, 0
      %p183 = por %p181, %p182
      %p184 = scmp.ne.s32.totalorder %s172, %s173
      %p185 = scmp.eq.s32.totalorder %s37, 1
      %p186 = por %p184, %p185
      %p188 = scmp.ne.s32.totalorder %s173, %s187
      %p189 = scmp.eq.s32.totalorder %s37, 0
      %p190 = por %p188, %p189
      %s192 = sadd.s32 %s191, 1
      %p195 = scmp.eq.s32.totalorder %s31, 1
      %p196 = scmp.ne.s32.totalorder %s191, %s193
      %p197 = scmp.eq.s32.totalorder %s31, 0
      %p198 = por %p196, %p197
      %p199 = scmp.ne.s32.totalorder %s191, %s193
      %p200 = scmp.eq.s32.totalorder %s36, 1
      %p201 = por %p199, %p200
      %p202 = scmp.ne.s32.totalorder %s193, %s194
      %p203 = scmp.eq.s32.totalorder %s36, 0
      %p204 = por %p202, %p203
      %p205 = scmp.ne.s32.totalorder %s193, %s194
      %p206 = scmp.eq.s32.totalorder %s37, 1
      %p207 = por %p205, %p206
      %p209 = scmp.ne.s32.totalorder %s194, %s208
      %p210 = scmp.eq.s32.totalorder %s37, 0
      %p211 = por %p209, %p210
      %s213 = sadd.s32 %s212, 1
      %p216 = scmp.eq.s32.totalorder %s31, 1
      %p217 = scmp.ne.s32.totalorder %s212, %s214
      %p218 = scmp.eq.s32.totalorder %s31, 0
      %p219 = por %p217, %p218
      %p220 = scmp.ne.s32.totalorder %s212, %s214
      %p221 = scmp.eq.s32.totalorder %s36, 1
      %p222 = por %p220, %p221
      %p223 = scmp.ne.s32.totalorder %s214, %s215
      %p224 = scmp.eq.s32.totalorder %s36, 0
      %p225 = por %p223, %p224
      %p226 = scmp.ne.s32.totalorder %s214, %s215
      %p227 = scmp.eq.s32.totalorder %s37, 1
      %p228 = por %p226, %p227
      %p230 = scmp.ne.s32.totalorder %s215, %s229
      %p231 = scmp.eq.s32.totalorder %s37, 0
      %p232 = por %p230, %p231
      %s234 = sadd.s32 %s233, 1
      %p237 = scmp.eq.s32.totalorder %s31, 1
      %p238 = scmp.ne.s32.totalorder %s233, %s235
      %p239 = scmp.eq.s32.totalorder %s31, 0
      %p240 = por %p238, %p239
      %p241 = scmp.ne.s32.totalorder %s233, %s235
      %p242 = scmp.eq.s32.totalorder %s36, 1
      %p243 = por %p241, %p242
      %p244 = scmp.ne.s32.totalorder %s235, %s236
      %p245 = scmp.eq.s32.totalorder %s36, 0
      %p246 = por %p244, %p245
      %p247 = scmp.ne.s32.totalorder %s235, %s236
      %p248 = scmp.eq.s32.totalorder %s37, 1
      %p249 = por %p247, %p248
      %p251 = scmp.ne.s32.totalorder %s236, %s250
      %p252 = scmp.eq.s32.totalorder %s37, 0
      %p253 = por %p251, %p252
      %s255 = sadd.s32 %s254, 1
      %p258 = scmp.eq.s32.totalorder %s31, 1
      %p259 = scmp.ne.s32.totalorder %s254, %s256
      %p260 = scmp.eq.s32.totalorder %s31, 0
      %p261 = por %p259, %p260
      %p262 = scmp.ne.s32.totalorder %s254, %s256
      %p263 = scmp.eq.s32.totalorder %s36, 1
      %p264 = por %p262, %p263
      %p265 = scmp.ne.s32.totalorder %s256, %s257
      %p266 = scmp.eq.s32.totalorder %s36, 0
      %p267 = por %p265, %p266
      %p268 = scmp.ne.s32.totalorder %s256, %s257
      %p269 = scmp.eq.s32.totalorder %s37, 1
      %p270 = por %p268, %p269
      %p272 = scmp.ne.s32.totalorder %s257, %s271
      %p273 = scmp.eq.s32.totalorder %s37, 0
      %p274 = por %p272, %p273
      %s275 = ssub.s32 %s31, %s38
      %p276 = scmp.eq.s32.totalorder %s275, 0
      %s278 = sadd.s32 %s277, 1
      %s279 = scalar_select %p276, %s277, %s278
      %p282 = pneg %p276
      %p283 = scmp.eq.s32.totalorder %s31, 1
      %p284 = por %p282, %p283
      %p285 = scmp.ne.s32.totalorder %s277, %s280
      %p286 = scmp.eq.s32.totalorder %s31, 0
      %p287 = por %p285, %p286
      %p288 = scmp.ne.s32.totalorder %s277, %s280
      %p289 = scmp.eq.s32.totalorder %s36, 1
      %p290 = por %p288, %p289
      %p291 = scmp.ne.s32.totalorder %s280, %s281
      %p292 = scmp.eq.s32.totalorder %s36, 0
      %p293 = por %p291, %p292
      %p294 = scmp.ne.s32.totalorder %s280, %s281
      %p295 = scmp.eq.s32.totalorder %s37, 1
      %p296 = por %p294, %p295
      %p298 = scmp.ne.s32.totalorder %s281, %s297
      %p299 = scmp.eq.s32.totalorder %s37, 0
      %p300 = por %p298, %p299
      %s301 = ssub.s32 %s31, %s38
      %p302 = scmp.eq.s32.totalorder %s301, 0
      %s304 = sadd.s32 %s303, 1
      %s305 = scalar_select %p302, %s303, %s304
      %p308 = pneg %p302
      %p309 = scmp.eq.s32.totalorder %s31, 1
      %p310 = por %p308, %p309
      %p311 = scmp.ne.s32.totalorder %s303, %s306
      %p312 = scmp.eq.s32.totalorder %s31, 0
      %p313 = por %p311, %p312
      %p314 = scmp.ne.s32.totalorder %s303, %s306
      %p315 = scmp.eq.s32.totalorder %s36, 1
      %p316 = por %p314, %p315
      %p317 = scmp.ne.s32.totalorder %s306, %s307
      %p318 = scmp.eq.s32.totalorder %s36, 0
      %p319 = por %p317, %p318
      %p320 = scmp.ne.s32.totalorder %s306, %s307
      %p321 = scmp.eq.s32.totalorder %s37, 1
      %p322 = por %p320, %p321
      %p324 = scmp.ne.s32.totalorder %s307, %s323
      %p325 = scmp.eq.s32.totalorder %s37, 0
      %p326 = por %p324, %p325
      %p327 = scmp.le.s32.totalorder 1, %s31
      %p328 = scmp.lt.s32.totalorder %s31, 3
      %p329 = pnand %p327, %p328
      %p330 = pneg %p329
      // Predicated region
      $region9: #{_lambda_.1} parent=5 // pred_check
        _
      $region10: #{_lambda_.1} parent=5 // pred_check_branch
        %332 = sbr.rel (%p329) target = $region12
      $region11: #{_lambda_.1} parent=5 // pred_region
        %s333 = ssub.s32 %s31, 1
        // Predicated region
        $region13: #{_lambda_.1} parent=11 // pred_check
          %p334 = pneg %p78
        $region14: #{_lambda_.1} parent=11 // pred_check_branch
          %336 = sbr.rel (%p334) target = $region16
        $region15: #{_lambda_.1} parent=11 // pred_region
          %s338 = ssub.s32 32768, 32768
          %339 = vsyncadd [#allocation3], %s338
          %s340 = sshll.u32 [#allocation2], 4
          %s341 = int_to_ptr.vmem [resolvable:$true] %s340
          %346 = dma.hbm_to_vmem [thread:$0]  %s1, 32768, %s341, [#allocation3], 256, 256, 16
        $region16: #{_lambda_.1} parent=11 // pred_fallthru
          _
        // Predicated region
        $region17: #{_lambda_.1} parent=11 // pred_check
          %p347 = pneg %p99
        $region18: #{_lambda_.1} parent=11 // pred_check_branch
          %349 = sbr.rel (%p347) target = $region20
        $region19: #{_lambda_.1} parent=11 // pred_region
          %s351 = ssub.s32 64, 64
          %352 = vsyncadd [#allocation6], %s351
          %s354 = sshll.u32 [#allocation5], 4
          %s355 = int_to_ptr.vmem [resolvable:$true] %s354
          %357 = dma.hbm_to_vmem [thread:$0]  %s2, 64, %s355, [#allocation6]
        $region20: #{_lambda_.1} parent=11 // pred_fallthru
          _
        // Predicated region
        $region21: #{_lambda_.1} parent=11 // pred_check
          %p358 = pneg %p120
        $region22: #{_lambda_.1} parent=11 // pred_check_branch
          %360 = sbr.rel (%p358) target = $region24
        $region23: #{_lambda_.1} parent=11 // pred_region
          %s362 = ssub.s32 64, 64
          %363 = vsyncadd [#allocation6], %s362
          %s365 = sshll.u32 [#allocation7], 4
          %s366 = int_to_ptr.vmem [resolvable:$true] %s365
          %368 = dma.hbm_to_vmem [thread:$0]  %s3, 64, %s366, [#allocation6]
        $region24: #{_lambda_.1} parent=11 // pred_fallthru
          _
        // Predicated region
        $region25: #{_lambda_.1} parent=11 // pred_check
          %p369 = pneg %p141
        $region26: #{_lambda_.1} parent=11 // pred_check_branch
          %371 = sbr.rel (%p369) target = $region28
        $region27: #{_lambda_.1} parent=11 // pred_region
          %s373 = ssub.s32 16384, 16384
          %374 = vsyncadd [#allocation9], %s373
          %s375 = sshll.u32 [#allocation8], 4
          %s376 = int_to_ptr.vmem [resolvable:$true] %s375
          %381 = dma.hbm_to_vmem [thread:$0]  %s4, 16384, %s376, [#allocation9], 256, 256, 16
        $region28: #{_lambda_.1} parent=11 // pred_fallthru
          _
        // Predicated region
        $region29: #{_lambda_.1} parent=11 // pred_check
          %p382 = pneg %p162
        $region30: #{_lambda_.1} parent=11 // pred_check_branch
          %384 = sbr.rel (%p382) target = $region32
        $region31: #{_lambda_.1} parent=11 // pred_region
          %s386 = ssub.s32 64, 64
          %387 = vsyncadd [#allocation9], %s386
          %s389 = sshll.u32 [#allocation10], 4
          %s390 = int_to_ptr.vmem [resolvable:$true] %s389
          %392 = dma.hbm_to_vmem [thread:$0]  %s5, 64, %s390, [#allocation9]
        $region32: #{_lambda_.1} parent=11 // pred_fallthru
          _
        // Predicated region
        $region33: #{_lambda_.1} parent=11 // pred_check
          %p393 = pneg %p183
        $region34: #{_lambda_.1} parent=11 // pred_check_branch
          %395 = sbr.rel (%p393) target = $region36
        $region35: #{_lambda_.1} parent=11 // pred_region
          %s397 = ssub.s32 64, 64
          %398 = vsyncadd [#allocation12], %s397
          %s400 = sshll.u32 [#allocation11], 4
          %s401 = int_to_ptr.vmem [resolvable:$true] %s400
          %403 = dma.hbm_to_vmem [thread:$0]  %s6, 64, %s401, [#allocation12]
        $region36: #{_lambda_.1} parent=11 // pred_fallthru
          _
        // Predicated region
        $region37: #{_lambda_.1} parent=11 // pred_check
          %p404 = pneg %p204
        $region38: #{_lambda_.1} parent=11 // pred_check_branch
          %406 = sbr.rel (%p404) target = $region40
        $region39: #{_lambda_.1} parent=11 // pred_region
          %s408 = ssub.s32 36864, 36864
          %409 = vsyncadd [#allocation12], %s408
          %s410 = sshll.u32 [#allocation13], 4
          %s411 = int_to_ptr.vmem [resolvable:$true] %s410
          %416 = dma.hbm_to_vmem [thread:$0]  %s7, 36864, %s411, [#allocation12], 576, 576, 36
        $region40: #{_lambda_.1} parent=11 // pred_fallthru
          _
        // Predicated region
        $region41: #{_lambda_.1} parent=11 // pred_check
          %p417 = pneg %p225
        $region42: #{_lambda_.1} parent=11 // pred_check_branch
          %419 = sbr.rel (%p417) target = $region44
        $region43: #{_lambda_.1} parent=11 // pred_region
          %s421 = ssub.s32 144, 144
          %422 = vsyncadd [#allocation15], %s421
          %s424 = sshll.u32 [#allocation14], 4
          %s425 = int_to_ptr.vmem [resolvable:$true] %s424
          %427 = dma.hbm_to_vmem [thread:$0]  %s8, 144, %s425, [#allocation15]
        $region44: #{_lambda_.1} parent=11 // pred_fallthru
          _
        // Predicated region
        $region45: #{_lambda_.1} parent=11 // pred_check
          %p428 = pneg %p246
        $region46: #{_lambda_.1} parent=11 // pred_check_branch
          %430 = sbr.rel (%p428) target = $region48
        $region47: #{_lambda_.1} parent=11 // pred_region
          %s432 = ssub.s32 144, 144
          %433 = vsyncadd [#allocation15], %s432
          %s435 = sshll.u32 [#allocation16], 4
          %s436 = int_to_ptr.vmem [resolvable:$true] %s435
          %438 = dma.hbm_to_vmem [thread:$0]  %s9, 144, %s436, [#allocation15]
        $region48: #{_lambda_.1} parent=11 // pred_fallthru
          _
        // Predicated region
        $region49: #{_lambda_.1} parent=11 // pred_check
          %p439 = pneg %p267
        $region50: #{_lambda_.1} parent=11 // pred_check_branch
          %441 = sbr.rel (%p439) target = $region52
        $region51: #{_lambda_.1} parent=11 // pred_region
          %s443 = ssub.s32 82944, 82944
          %444 = vsyncadd [#allocation18], %s443
          %s445 = sshll.u32 [#allocation17], 4
          %s446 = int_to_ptr.vmem [resolvable:$true] %s445
          %451 = dma.hbm_to_vmem [thread:$0]  %s10, 82944, %s446, [#allocation18], 576, 576, 36
        $region52: #{_lambda_.1} parent=11 // pred_fallthru
          _
      $region12: #{_lambda_.1} parent=5 // pred_fallthru
        _
      %p452 = scmp.lt.s32.totalorder %s31, 2
      // Predicated region
      $region53: #{_lambda_.1} parent=5 // pred_check
        %p453 = pneg %p452
      $region54: #{_lambda_.1} parent=5 // pred_check_branch
        %455 = sbr.rel (%p453) target = $region56
      $region55: #{_lambda_.1} parent=5 // pred_region
        // Predicated region
        $region57: #{_lambda_.1} parent=55 // pred_check
          %p456 = pneg %p51
        $region58: #{_lambda_.1} parent=55 // pred_check_branch
          %458 = sbr.rel (%p456) target = $region60
        $region59: #{_lambda_.1} parent=55 // pred_region
          %p459 = scmp.lt.s32.totalorder %s31, 1
          %s460 = scalar_select %p459, %s31, 1
          %s461 = smul.addr %s460, 8
          %s462 = smul.addr %s461, 4
          %s463 = scalar_lea.vmem %s0, %s462
        $region60: #{_lambda_.1} parent=55 // pred_fallthru
          _
      $region56: #{_lambda_.1} parent=5 // pred_fallthru
        _
      %p464 = scmp.le.s32.totalorder 1, %s31
      %p465 = scmp.lt.s32.totalorder %s31, 3
      %p466 = pnand %p464, %p465
      %p467 = pneg %p466
      // Predicated region
      $region61: #{_lambda_.1} parent=5 // pred_check
        _
      $region62: #{_lambda_.1} parent=5 // pred_check_branch
        %469 = sbr.rel (%p466) target = $region64
      $region63: #{_lambda_.1} parent=5 // pred_region
        %s470 = ssub.s32 %s31, 1
        // Predicated region
        $region65: #{_lambda_.1} parent=63 // pred_check
          %p471 = pneg %p78
        $region66: #{_lambda_.1} parent=63 // pred_check_branch
          %473 = sbr.rel (%p471) target = $region68
        $region67: #{_lambda_.1} parent=63 // pred_region
          %474 = dma.done [#allocation3], 32768
        $region68: #{_lambda_.1} parent=63 // pred_fallthru
          _
        // Predicated region
        $region69: #{_lambda_.1} parent=63 // pred_check
          %p475 = pneg %p99
        $region70: #{_lambda_.1} parent=63 // pred_check_branch
          %477 = sbr.rel (%p475) target = $region72
        $region71: #{_lambda_.1} parent=63 // pred_region
          %478 = dma.done [#allocation6], 64
        $region72: #{_lambda_.1} parent=63 // pred_fallthru
          _
        // Predicated region
        $region73: #{_lambda_.1} parent=63 // pred_check
          %p479 = pneg %p120
        $region74: #{_lambda_.1} parent=63 // pred_check_branch
          %481 = sbr.rel (%p479) target = $region76
        $region75: #{_lambda_.1} parent=63 // pred_region
          %482 = dma.done [#allocation6], 64
        $region76: #{_lambda_.1} parent=63 // pred_fallthru
          _
        // Predicated region
        $region77: #{_lambda_.1} parent=63 // pred_check
          %p483 = pneg %p141
        $region78: #{_lambda_.1} parent=63 // pred_check_branch
          %485 = sbr.rel (%p483) target = $region80
        $region79: #{_lambda_.1} parent=63 // pred_region
          %486 = dma.done [#allocation9], 16384
        $region80: #{_lambda_.1} parent=63 // pred_fallthru
          _
        // Predicated region
        $region81: #{_lambda_.1} parent=63 // pred_check
          %p487 = pneg %p162
        $region82: #{_lambda_.1} parent=63 // pred_check_branch
          %489 = sbr.rel (%p487) target = $region84
        $region83: #{_lambda_.1} parent=63 // pred_region
          %490 = dma.done [#allocation9], 64
        $region84: #{_lambda_.1} parent=63 // pred_fallthru
          _
        // Predicated region
        $region85: #{_lambda_.1} parent=63 // pred_check
          %p491 = pneg %p183
        $region86: #{_lambda_.1} parent=63 // pred_check_branch
          %493 = sbr.rel (%p491) target = $region88
        $region87: #{_lambda_.1} parent=63 // pred_region
          %494 = dma.done [#allocation12], 64
        $region88: #{_lambda_.1} parent=63 // pred_fallthru
          _
        // Predicated region
        $region89: #{_lambda_.1} parent=63 // pred_check
          %p495 = pneg %p204
        $region90: #{_lambda_.1} parent=63 // pred_check_branch
          %497 = sbr.rel (%p495) target = $region92
        $region91: #{_lambda_.1} parent=63 // pred_region
          %498 = dma.done [#allocation12], 36864
        $region92: #{_lambda_.1} parent=63 // pred_fallthru
          _
        // Predicated region
        $region93: #{_lambda_.1} parent=63 // pred_check
          %p499 = pneg %p225
        $region94: #{_lambda_.1} parent=63 // pred_check_branch
          %501 = sbr.rel (%p499) target = $region96
        $region95: #{_lambda_.1} parent=63 // pred_region
          %502 = dma.done [#allocation15], 144
        $region96: #{_lambda_.1} parent=63 // pred_fallthru
          _
        // Predicated region
        $region97: #{_lambda_.1} parent=63 // pred_check
          %p503 = pneg %p246
        $region98: #{_lambda_.1} parent=63 // pred_check_branch
          %505 = sbr.rel (%p503) target = $region100
        $region99: #{_lambda_.1} parent=63 // pred_region
          %506 = dma.done [#allocation15], 144
        $region100: #{_lambda_.1} parent=63 // pred_fallthru
          _
        // Predicated region
        $region101: #{_lambda_.1} parent=63 // pred_check
          %p507 = pneg %p267
        $region102: #{_lambda_.1} parent=63 // pred_check_branch
          %509 = sbr.rel (%p507) target = $region104
        $region103: #{_lambda_.1} parent=63 // pred_region
          %510 = dma.done [#allocation18], 82944
        $region104: #{_lambda_.1} parent=63 // pred_fallthru
          _
        %p511 = scmp.lt.s32.totalorder %s36, 1
        %s512 = scalar_select %p511, %s36, 1
        %s513 = smul.addr %s512, 8
        %s514 = smul.addr %s513, 4
        %s515 = scalar_lea.vmem %s0, %s514
        %p516 = pneg %p57
        %p517 = pneg %p54
        %p518 = pneg %p78
        %p519 = pneg %p75
        %p520 = pneg %p99
        %p521 = pneg %p96
        %p522 = pneg %p120
        %p523 = pneg %p117
        %p524 = pneg %p141
        %p525 = pneg %p138
        %p526 = pneg %p162
        %p527 = pneg %p159
        %p528 = pneg %p183
        %p529 = pneg %p180
        %p530 = pneg %p204
        %p531 = pneg %p201
        %p532 = pneg %p225
        %p533 = pneg %p222
        %p534 = pneg %p246
        %p535 = pneg %p243
        %p536 = pneg %p267
        %p537 = pneg %p264
        %p538 = pneg %p293
        %p539 = pneg %p290
        %s540 = sand.u32 %s280, 1
        %s541 = scalar_lea.sflag [#allocation4], %s540
        %s542 = sand.u32 %s280, 1
        %s543 = smul.addr %s542, 72
        %s544 = scalar_lea.vmem [#allocation19], %s543
        %p545 = pneg %p319
        %p546 = pneg %p316
        %s547 = sand.u32 %s306, 1
        %s548 = scalar_lea.sflag [#allocation21], %s547
        %s549 = sand.u32 %s306, 1
        %s550 = smul.addr %s549, 72
        %s551 = scalar_lea.vmem [#allocation20], %s550
        %p552 = scmp.lt.s32.totalorder %s36, 1
        %s553 = scalar_select %p552, %s36, 1
        %s554 = smul.addr %s553, 8
        %s555 = smul.addr %s554, 4
        %s556 = scalar_lea.vmem %s0, %s555
        %v558 = vld [vmem:[%s556] sm:$0xff]
        %v559 = vld [vmem:[%s556 + $0x8] sm:$0xff]
        %v560 = vld [vmem:[%s556 + $0x10] sm:$0xff]
        %v561 = vld [vmem:[%s556 + $0x18] sm:$0xff]
        %v562 = vld [vmem:[#allocation2] sm:$0xff]
        %v563 = vld [vmem:[#allocation2 + $0x8] sm:$0xff]
        %v564 = vld [vmem:[#allocation2 + $0x10] sm:$0xff]
        %v565 = vld [vmem:[#allocation2 + $0x18] sm:$0xff]
        %v566 = vld [vmem:[#allocation2 + $0x20] sm:$0xff]
        %v567 = vld [vmem:[#allocation2 + $0x28] sm:$0xff]
        %v568 = vld [vmem:[#allocation2 + $0x30] sm:$0xff]
        %v569 = vld [vmem:[#allocation2 + $0x38] sm:$0xff]
        %v570 = vld [vmem:[#allocation2 + $0x40] sm:$0xff]
        %v571 = vld [vmem:[#allocation2 + $0x48] sm:$0xff]
        %v572 = vld [vmem:[#allocation2 + $0x50] sm:$0xff]
        %v573 = vld [vmem:[#allocation2 + $0x58] sm:$0xff]
        %v574 = vld [vmem:[#allocation2 + $0x60] sm:$0xff]
        %v575 = vld [vmem:[#allocation2 + $0x68] sm:$0xff]
        %v576 = vld [vmem:[#allocation2 + $0x70] sm:$0xff]
        %v577 = vld [vmem:[#allocation2 + $0x78] sm:$0xff]
        %v578 = vld [vmem:[#allocation2 + $0x80] sm:$0xff]
        %v579 = vld [vmem:[#allocation2 + $0x88] sm:$0xff]
        %v580 = vld [vmem:[#allocation2 + $0x90] sm:$0xff]
        %v581 = vld [vmem:[#allocation2 + $0x98] sm:$0xff]
        %v582 = vld [vmem:[#allocation2 + $0xa0] sm:$0xff]
        %v583 = vld [vmem:[#allocation2 + $0xa8] sm:$0xff]
        %v584 = vld [vmem:[#allocation2 + $0xb0] sm:$0xff]
        %v585 = vld [vmem:[#allocation2 + $0xb8] sm:$0xff]
        %v586 = vld [vmem:[#allocation2 + $0xc0] sm:$0xff]
        %v587 = vld [vmem:[#allocation2 + $0xc8] sm:$0xff]
        %v588 = vld [vmem:[#allocation2 + $0xd0] sm:$0xff]
        %v589 = vld [vmem:[#allocation2 + $0xd8] sm:$0xff]
        %v590 = vld [vmem:[#allocation2 + $0xe0] sm:$0xff]
        %v591 = vld [vmem:[#allocation2 + $0xe8] sm:$0xff]
        %v592 = vld [vmem:[#allocation2 + $0xf0] sm:$0xff]
        %v593 = vld [vmem:[#allocation2 + $0xf8] sm:$0xff]
        %v594 = vld [vmem:[#allocation2 + $0x100] sm:$0xff]
        %v595 = vld [vmem:[#allocation2 + $0x108] sm:$0xff]
        %v596 = vld [vmem:[#allocation2 + $0x110] sm:$0xff]
        %v597 = vld [vmem:[#allocation2 + $0x118] sm:$0xff]
        %v598 = vld [vmem:[#allocation2 + $0x120] sm:$0xff]
        %v599 = vld [vmem:[#allocation2 + $0x128] sm:$0xff]
        %v600 = vld [vmem:[#allocation2 + $0x130] sm:$0xff]
        %v601 = vld [vmem:[#allocation2 + $0x138] sm:$0xff]
        %v602 = vld [vmem:[#allocation2 + $0x140] sm:$0xff]
        %v603 = vld [vmem:[#allocation2 + $0x148] sm:$0xff]
        %v604 = vld [vmem:[#allocation2 + $0x150] sm:$0xff]
        %v605 = vld [vmem:[#allocation2 + $0x158] sm:$0xff]
        %v606 = vld [vmem:[#allocation2 + $0x160] sm:$0xff]
        %v607 = vld [vmem:[#allocation2 + $0x168] sm:$0xff]
        %v608 = vld [vmem:[#allocation2 + $0x170] sm:$0xff]
        %v609 = vld [vmem:[#allocation2 + $0x178] sm:$0xff]
        %v610 = vld [vmem:[#allocation2 + $0x180] sm:$0xff]
        %v611 = vld [vmem:[#allocation2 + $0x188] sm:$0xff]
        %v612 = vld [vmem:[#allocation2 + $0x190] sm:$0xff]
        %v613 = vld [vmem:[#allocation2 + $0x198] sm:$0xff]
        %v614 = vld [vmem:[#allocation2 + $0x1a0] sm:$0xff]
        %v615 = vld [vmem:[#allocation2 + $0x1a8] sm:$0xff]
        %v616 = vld [vmem:[#allocation2 + $0x1b0] sm:$0xff]
        %v617 = vld [vmem:[#allocation2 + $0x1b8] sm:$0xff]
        %v618 = vld [vmem:[#allocation2 + $0x1c0] sm:$0xff]
        %v619 = vld [vmem:[#allocation2 + $0x1c8] sm:$0xff]
        %v620 = vld [vmem:[#allocation2 + $0x1d0] sm:$0xff]
        %v621 = vld [vmem:[#allocation2 + $0x1d8] sm:$0xff]
        %v622 = vld [vmem:[#allocation2 + $0x1e0] sm:$0xff]
        %v623 = vld [vmem:[#allocation2 + $0x1e8] sm:$0xff]
        %v624 = vld [vmem:[#allocation2 + $0x1f0] sm:$0xff]
        %v625 = vld [vmem:[#allocation2 + $0x1f8] sm:$0xff]
        %v626 = vld [vmem:[#allocation2 + $0x200] sm:$0xff]
        %v627 = vld [vmem:[#allocation2 + $0x208] sm:$0xff]
        %v628 = vld [vmem:[#allocation2 + $0x210] sm:$0xff]
        %v629 = vld [vmem:[#allocation2 + $0x218] sm:$0xff]
        %v630 = vld [vmem:[#allocation2 + $0x220] sm:$0xff]
        %v631 = vld [vmem:[#allocation2 + $0x228] sm:$0xff]
        %v632 = vld [vmem:[#allocation2 + $0x230] sm:$0xff]
        %v633 = vld [vmem:[#allocation2 + $0x238] sm:$0xff]
        %v634 = vld [vmem:[#allocation2 + $0x240] sm:$0xff]
        %v635 = vld [vmem:[#allocation2 + $0x248] sm:$0xff]
        %v636 = vld [vmem:[#allocation2 + $0x250] sm:$0xff]
        %v637 = vld [vmem:[#allocation2 + $0x258] sm:$0xff]
        %v638 = vld [vmem:[#allocation2 + $0x260] sm:$0xff]
        %v639 = vld [vmem:[#allocation2 + $0x268] sm:$0xff]
        %v640 = vld [vmem:[#allocation2 + $0x270] sm:$0xff]
        %v641 = vld [vmem:[#allocation2 + $0x278] sm:$0xff]
        %v642 = vld [vmem:[#allocation2 + $0x280] sm:$0xff]
        %v643 = vld [vmem:[#allocation2 + $0x288] sm:$0xff]
        %v644 = vld [vmem:[#allocation2 + $0x290] sm:$0xff]
        %v645 = vld [vmem:[#allocation2 + $0x298] sm:$0xff]
        %v646 = vld [vmem:[#allocation2 + $0x2a0] sm:$0xff]
        %v647 = vld [vmem:[#allocation2 + $0x2a8] sm:$0xff]
        %v648 = vld [vmem:[#allocation2 + $0x2b0] sm:$0xff]
        %v649 = vld [vmem:[#allocation2 + $0x2b8] sm:$0xff]
        %v650 = vld [vmem:[#allocation2 + $0x2c0] sm:$0xff]
        %v651 = vld [vmem:[#allocation2 + $0x2c8] sm:$0xff]
        %v652 = vld [vmem:[#allocation2 + $0x2d0] sm:$0xff]
        %v653 = vld [vmem:[#allocation2 + $0x2d8] sm:$0xff]
        %v654 = vld [vmem:[#allocation2 + $0x2e0] sm:$0xff]
        %v655 = vld [vmem:[#allocation2 + $0x2e8] sm:$0xff]
        %v656 = vld [vmem:[#allocation2 + $0x2f0] sm:$0xff]
        %v657 = vld [vmem:[#allocation2 + $0x2f8] sm:$0xff]
        %v658 = vld [vmem:[#allocation2 + $0x300] sm:$0xff]
        %v659 = vld [vmem:[#allocation2 + $0x308] sm:$0xff]
        %v660 = vld [vmem:[#allocation2 + $0x310] sm:$0xff]
        %v661 = vld [vmem:[#allocation2 + $0x318] sm:$0xff]
        %v662 = vld [vmem:[#allocation2 + $0x320] sm:$0xff]
        %v663 = vld [vmem:[#allocation2 + $0x328] sm:$0xff]
        %v664 = vld [vmem:[#allocation2 + $0x330] sm:$0xff]
        %v665 = vld [vmem:[#allocation2 + $0x338] sm:$0xff]
        %v666 = vld [vmem:[#allocation2 + $0x340] sm:$0xff]
        %v667 = vld [vmem:[#allocation2 + $0x348] sm:$0xff]
        %v668 = vld [vmem:[#allocation2 + $0x350] sm:$0xff]
        %v669 = vld [vmem:[#allocation2 + $0x358] sm:$0xff]
        %v670 = vld [vmem:[#allocation2 + $0x360] sm:$0xff]
        %v671 = vld [vmem:[#allocation2 + $0x368] sm:$0xff]
        %v672 = vld [vmem:[#allocation2 + $0x370] sm:$0xff]
        %v673 = vld [vmem:[#allocation2 + $0x378] sm:$0xff]
        %v674 = vld [vmem:[#allocation2 + $0x380] sm:$0xff]
        %v675 = vld [vmem:[#allocation2 + $0x388] sm:$0xff]
        %v676 = vld [vmem:[#allocation2 + $0x390] sm:$0xff]
        %v677 = vld [vmem:[#allocation2 + $0x398] sm:$0xff]
        %v678 = vld [vmem:[#allocation2 + $0x3a0] sm:$0xff]
        %v679 = vld [vmem:[#allocation2 + $0x3a8] sm:$0xff]
        %v680 = vld [vmem:[#allocation2 + $0x3b0] sm:$0xff]
        %v681 = vld [vmem:[#allocation2 + $0x3b8] sm:$0xff]
        %v682 = vld [vmem:[#allocation2 + $0x3c0] sm:$0xff]
        %v683 = vld [vmem:[#allocation2 + $0x3c8] sm:$0xff]
        %v684 = vld [vmem:[#allocation2 + $0x3d0] sm:$0xff]
        %v685 = vld [vmem:[#allocation2 + $0x3d8] sm:$0xff]
        %v686 = vld [vmem:[#allocation2 + $0x3e0] sm:$0xff]
        %v687 = vld [vmem:[#allocation2 + $0x3e8] sm:$0xff]
        %v688 = vld [vmem:[#allocation2 + $0x3f0] sm:$0xff]
        %v689 = vld [vmem:[#allocation2 + $0x3f8] sm:$0xff]
        %v690 = vld [vmem:[#allocation2 + $0x400] sm:$0xff]
        %v691 = vld [vmem:[#allocation2 + $0x408] sm:$0xff]
        %v692 = vld [vmem:[#allocation2 + $0x410] sm:$0xff]
        %v693 = vld [vmem:[#allocation2 + $0x418] sm:$0xff]
        %v694 = vld [vmem:[#allocation2 + $0x420] sm:$0xff]
        %v695 = vld [vmem:[#allocation2 + $0x428] sm:$0xff]
        %v696 = vld [vmem:[#allocation2 + $0x430] sm:$0xff]
        %v697 = vld [vmem:[#allocation2 + $0x438] sm:$0xff]
        %v698 = vld [vmem:[#allocation2 + $0x440] sm:$0xff]
        %v699 = vld [vmem:[#allocation2 + $0x448] sm:$0xff]
        %v700 = vld [vmem:[#allocation2 + $0x450] sm:$0xff]
        %v701 = vld [vmem:[#allocation2 + $0x458] sm:$0xff]
        %v702 = vld [vmem:[#allocation2 + $0x460] sm:$0xff]
        %v703 = vld [vmem:[#allocation2 + $0x468] sm:$0xff]
        %v704 = vld [vmem:[#allocation2 + $0x470] sm:$0xff]
        %v705 = vld [vmem:[#allocation2 + $0x478] sm:$0xff]
        %v706 = vld [vmem:[#allocation2 + $0x480] sm:$0xff]
        %v707 = vld [vmem:[#allocation2 + $0x488] sm:$0xff]
        %v708 = vld [vmem:[#allocation2 + $0x490] sm:$0xff]
        %v709 = vld [vmem:[#allocation2 + $0x498] sm:$0xff]
        %v710 = vld [vmem:[#allocation2 + $0x4a0] sm:$0xff]
        %v711 = vld [vmem:[#allocation2 + $0x4a8] sm:$0xff]
        %v712 = vld [vmem:[#allocation2 + $0x4b0] sm:$0xff]
        %v713 = vld [vmem:[#allocation2 + $0x4b8] sm:$0xff]
        %v714 = vld [vmem:[#allocation2 + $0x4c0] sm:$0xff]
        %v715 = vld [vmem:[#allocation2 + $0x4c8] sm:$0xff]
        %v716 = vld [vmem:[#allocation2 + $0x4d0] sm:$0xff]
        %v717 = vld [vmem:[#allocation2 + $0x4d8] sm:$0xff]
        %v718 = vld [vmem:[#allocation2 + $0x4e0] sm:$0xff]
        %v719 = vld [vmem:[#allocation2 + $0x4e8] sm:$0xff]
        %v720 = vld [vmem:[#allocation2 + $0x4f0] sm:$0xff]
        %v721 = vld [vmem:[#allocation2 + $0x4f8] sm:$0xff]
        %v722 = vld [vmem:[#allocation2 + $0x500] sm:$0xff]
        %v723 = vld [vmem:[#allocation2 + $0x508] sm:$0xff]
        %v724 = vld [vmem:[#allocation2 + $0x510] sm:$0xff]
        %v725 = vld [vmem:[#allocation2 + $0x518] sm:$0xff]
        %v726 = vld [vmem:[#allocation2 + $0x520] sm:$0xff]
        %v727 = vld [vmem:[#allocation2 + $0x528] sm:$0xff]
        %v728 = vld [vmem:[#allocation2 + $0x530] sm:$0xff]
        %v729 = vld [vmem:[#allocation2 + $0x538] sm:$0xff]
        %v730 = vld [vmem:[#allocation2 + $0x540] sm:$0xff]
        %v731 = vld [vmem:[#allocation2 + $0x548] sm:$0xff]
        %v732 = vld [vmem:[#allocation2 + $0x550] sm:$0xff]
        %v733 = vld [vmem:[#allocation2 + $0x558] sm:$0xff]
        %v734 = vld [vmem:[#allocation2 + $0x560] sm:$0xff]
        %v735 = vld [vmem:[#allocation2 + $0x568] sm:$0xff]
        %v736 = vld [vmem:[#allocation2 + $0x570] sm:$0xff]
        %v737 = vld [vmem:[#allocation2 + $0x578] sm:$0xff]
        %v738 = vld [vmem:[#allocation2 + $0x580] sm:$0xff]
        %v739 = vld [vmem:[#allocation2 + $0x588] sm:$0xff]
        %v740 = vld [vmem:[#allocation2 + $0x590] sm:$0xff]
        %v741 = vld [vmem:[#allocation2 + $0x598] sm:$0xff]
        %v742 = vld [vmem:[#allocation2 + $0x5a0] sm:$0xff]
        %v743 = vld [vmem:[#allocation2 + $0x5a8] sm:$0xff]
        %v744 = vld [vmem:[#allocation2 + $0x5b0] sm:$0xff]
        %v745 = vld [vmem:[#allocation2 + $0x5b8] sm:$0xff]
        %v746 = vld [vmem:[#allocation2 + $0x5c0] sm:$0xff]
        %v747 = vld [vmem:[#allocation2 + $0x5c8] sm:$0xff]
        %v748 = vld [vmem:[#allocation2 + $0x5d0] sm:$0xff]
        %v749 = vld [vmem:[#allocation2 + $0x5d8] sm:$0xff]
        %v750 = vld [vmem:[#allocation2 + $0x5e0] sm:$0xff]
        %v751 = vld [vmem:[#allocation2 + $0x5e8] sm:$0xff]
        %v752 = vld [vmem:[#allocation2 + $0x5f0] sm:$0xff]
        %v753 = vld [vmem:[#allocation2 + $0x5f8] sm:$0xff]
        %v754 = vld [vmem:[#allocation2 + $0x600] sm:$0xff]
        %v755 = vld [vmem:[#allocation2 + $0x608] sm:$0xff]
        %v756 = vld [vmem:[#allocation2 + $0x610] sm:$0xff]
        %v757 = vld [vmem:[#allocation2 + $0x618] sm:$0xff]
        %v758 = vld [vmem:[#allocation2 + $0x620] sm:$0xff]
        %v759 = vld [vmem:[#allocation2 + $0x628] sm:$0xff]
        %v760 = vld [vmem:[#allocation2 + $0x630] sm:$0xff]
        %v761 = vld [vmem:[#allocation2 + $0x638] sm:$0xff]
        %v762 = vld [vmem:[#allocation2 + $0x640] sm:$0xff]
        %v763 = vld [vmem:[#allocation2 + $0x648] sm:$0xff]
        %v764 = vld [vmem:[#allocation2 + $0x650] sm:$0xff]
        %v765 = vld [vmem:[#allocation2 + $0x658] sm:$0xff]
        %v766 = vld [vmem:[#allocation2 + $0x660] sm:$0xff]
        %v767 = vld [vmem:[#allocation2 + $0x668] sm:$0xff]
        %v768 = vld [vmem:[#allocation2 + $0x670] sm:$0xff]
        %v769 = vld [vmem:[#allocation2 + $0x678] sm:$0xff]
        %v770 = vld [vmem:[#allocation2 + $0x680] sm:$0xff]
        %v771 = vld [vmem:[#allocation2 + $0x688] sm:$0xff]
        %v772 = vld [vmem:[#allocation2 + $0x690] sm:$0xff]
        %v773 = vld [vmem:[#allocation2 + $0x698] sm:$0xff]
        %v774 = vld [vmem:[#allocation2 + $0x6a0] sm:$0xff]
        %v775 = vld [vmem:[#allocation2 + $0x6a8] sm:$0xff]
        %v776 = vld [vmem:[#allocation2 + $0x6b0] sm:$0xff]
        %v777 = vld [vmem:[#allocation2 + $0x6b8] sm:$0xff]
        %v778 = vld [vmem:[#allocation2 + $0x6c0] sm:$0xff]
        %v779 = vld [vmem:[#allocation2 + $0x6c8] sm:$0xff]
        %v780 = vld [vmem:[#allocation2 + $0x6d0] sm:$0xff]
        %v781 = vld [vmem:[#allocation2 + $0x6d8] sm:$0xff]
        %v782 = vld [vmem:[#allocation2 + $0x6e0] sm:$0xff]
        %v783 = vld [vmem:[#allocation2 + $0x6e8] sm:$0xff]
        %v784 = vld [vmem:[#allocation2 + $0x6f0] sm:$0xff]
        %v785 = vld [vmem:[#allocation2 + $0x6f8] sm:$0xff]
        %v786 = vld [vmem:[#allocation2 + $0x700] sm:$0xff]
        %v787 = vld [vmem:[#allocation2 + $0x708] sm:$0xff]
        %v788 = vld [vmem:[#allocation2 + $0x710] sm:$0xff]
        %v789 = vld [vmem:[#allocation2 + $0x718] sm:$0xff]
        %v790 = vld [vmem:[#allocation2 + $0x720] sm:$0xff]
        %v791 = vld [vmem:[#allocation2 + $0x728] sm:$0xff]
        %v792 = vld [vmem:[#allocation2 + $0x730] sm:$0xff]
        %v793 = vld [vmem:[#allocation2 + $0x738] sm:$0xff]
        %v794 = vld [vmem:[#allocation2 + $0x740] sm:$0xff]
        %v795 = vld [vmem:[#allocation2 + $0x748] sm:$0xff]
        %v796 = vld [vmem:[#allocation2 + $0x750] sm:$0xff]
        %v797 = vld [vmem:[#allocation2 + $0x758] sm:$0xff]
        %v798 = vld [vmem:[#allocation2 + $0x760] sm:$0xff]
        %v799 = vld [vmem:[#allocation2 + $0x768] sm:$0xff]
        %v800 = vld [vmem:[#allocation2 + $0x770] sm:$0xff]
        %v801 = vld [vmem:[#allocation2 + $0x778] sm:$0xff]
        %v802 = vld [vmem:[#allocation2 + $0x780] sm:$0xff]
        %v803 = vld [vmem:[#allocation2 + $0x788] sm:$0xff]
        %v804 = vld [vmem:[#allocation2 + $0x790] sm:$0xff]
        %v805 = vld [vmem:[#allocation2 + $0x798] sm:$0xff]
        %v806 = vld [vmem:[#allocation2 + $0x7a0] sm:$0xff]
        %v807 = vld [vmem:[#allocation2 + $0x7a8] sm:$0xff]
        %v808 = vld [vmem:[#allocation2 + $0x7b0] sm:$0xff]
        %v809 = vld [vmem:[#allocation2 + $0x7b8] sm:$0xff]
        %v810 = vld [vmem:[#allocation2 + $0x7c0] sm:$0xff]
        %v811 = vld [vmem:[#allocation2 + $0x7c8] sm:$0xff]
        %v812 = vld [vmem:[#allocation2 + $0x7d0] sm:$0xff]
        %v813 = vld [vmem:[#allocation2 + $0x7d8] sm:$0xff]
        %v814 = vld [vmem:[#allocation2 + $0x7e0] sm:$0xff]
        %v815 = vld [vmem:[#allocation2 + $0x7e8] sm:$0xff]
        %v816 = vld [vmem:[#allocation2 + $0x7f0] sm:$0xff]
        %v817 = vld [vmem:[#allocation2 + $0x7f8] sm:$0xff]
        %v822 = vunpack.c.l.b16 %v558
        %v823 = vunpack.c.h.b16 %v558
        %v824 = vunpack.c.l.b16 %v559
        %v825 = vunpack.c.h.b16 %v559
        %v826 = vunpack.c.l.b16 %v560
        %v827 = vunpack.c.h.b16 %v560
        %v828 = vunpack.c.l.b16 %v561
        %v829 = vunpack.c.h.b16 %v561
        %v830 = vpack.c.b16 %v822, %v822
        %v831 = vpack.c.b16 %v823, %v823
        %v832 = vpack.c.b16 %v824, %v824
        %v833 = vpack.c.b16 %v825, %v825
        %v834 = vpack.c.b16 %v826, %v826
        %v835 = vpack.c.b16 %v827, %v827
        %v836 = vpack.c.b16 %v828, %v828
        %v837 = vpack.c.b16 %v829, %v829
        %v1102 = vunpack.c.l.b16 %v562
        %v1103 = vunpack.c.h.b16 %v562
        %v1104 = vunpack.c.l.b16 %v563
        %v1105 = vunpack.c.h.b16 %v563
        %v1106 = vunpack.c.l.b16 %v564
        %v1107 = vunpack.c.h.b16 %v564
        %v1108 = vunpack.c.l.b16 %v565
        %v1109 = vunpack.c.h.b16 %v565
        %v1110 = vunpack.c.l.b16 %v566
        %v1111 = vunpack.c.h.b16 %v566
        %v1112 = vunpack.c.l.b16 %v567
        %v1113 = vunpack.c.h.b16 %v567
        %v1114 = vunpack.c.l.b16 %v568
        %v1115 = vunpack.c.h.b16 %v568
        %v1116 = vunpack.c.l.b16 %v569
        %v1117 = vunpack.c.h.b16 %v569
        %v1118 = vunpack.c.l.b16 %v570
        %v1119 = vunpack.c.h.b16 %v570
        %v1120 = vunpack.c.l.b16 %v571
        %v1121 = vunpack.c.h.b16 %v571
        %v1122 = vunpack.c.l.b16 %v572
        %v1123 = vunpack.c.h.b16 %v572
        %v1124 = vunpack.c.l.b16 %v573
        %v1125 = vunpack.c.h.b16 %v573
        %v1126 = vunpack.c.l.b16 %v574
        %v1127 = vunpack.c.h.b16 %v574
        %v1128 = vunpack.c.l.b16 %v575
        %v1129 = vunpack.c.h.b16 %v575
        %v1130 = vunpack.c.l.b16 %v576
        %v1131 = vunpack.c.h.b16 %v576
        %v1132 = vunpack.c.l.b16 %v577
        %v1133 = vunpack.c.h.b16 %v577
        %v1134 = vunpack.c.l.b16 %v578
        %v1135 = vunpack.c.h.b16 %v578
        %v1136 = vunpack.c.l.b16 %v579
        %v1137 = vunpack.c.h.b16 %v579
        %v1138 = vunpack.c.l.b16 %v580
        %v1139 = vunpack.c.h.b16 %v580
        %v1140 = vunpack.c.l.b16 %v581
        %v1141 = vunpack.c.h.b16 %v581
        %v1142 = vunpack.c.l.b16 %v582
        %v1143 = vunpack.c.h.b16 %v582
        %v1144 = vunpack.c.l.b16 %v583
        %v1145 = vunpack.c.h.b16 %v583
        %v1146 = vunpack.c.l.b16 %v584
        %v1147 = vunpack.c.h.b16 %v584
        %v1148 = vunpack.c.l.b16 %v585
        %v1149 = vunpack.c.h.b16 %v585
        %v1150 = vunpack.c.l.b16 %v586
        %v1151 = vunpack.c.h.b16 %v586
        %v1152 = vunpack.c.l.b16 %v587
        %v1153 = vunpack.c.h.b16 %v587
        %v1154 = vunpack.c.l.b16 %v588
        %v1155 = vunpack.c.h.b16 %v588
        %v1156 = vunpack.c.l.b16 %v589
        %v1157 = vunpack.c.h.b16 %v589
        %v1158 = vunpack.c.l.b16 %v590
        %v1159 = vunpack.c.h.b16 %v590
        %v1160 = vunpack.c.l.b16 %v591
        %v1161 = vunpack.c.h.b16 %v591
        %v1162 = vunpack.c.l.b16 %v592
        %v1163 = vunpack.c.h.b16 %v592
        %v1164 = vunpack.c.l.b16 %v593
        %v1165 = vunpack.c.h.b16 %v593
        %v1166 = vunpack.c.l.b16 %v594
        %v1167 = vunpack.c.h.b16 %v594
        %v1168 = vunpack.c.l.b16 %v595
        %v1169 = vunpack.c.h.b16 %v595
        %v1170 = vunpack.c.l.b16 %v596
        %v1171 = vunpack.c.h.b16 %v596
        %v1172 = vunpack.c.l.b16 %v597
        %v1173 = vunpack.c.h.b16 %v597
        %v1174 = vunpack.c.l.b16 %v598
        %v1175 = vunpack.c.h.b16 %v598
        %v1176 = vunpack.c.l.b16 %v599
        %v1177 = vunpack.c.h.b16 %v599
        %v1178 = vunpack.c.l.b16 %v600
        %v1179 = vunpack.c.h.b16 %v600
        %v1180 = vunpack.c.l.b16 %v601
        %v1181 = vunpack.c.h.b16 %v601
        %v1182 = vunpack.c.l.b16 %v602
        %v1183 = vunpack.c.h.b16 %v602
        %v1184 = vunpack.c.l.b16 %v603
        %v1185 = vunpack.c.h.b16 %v603
        %v1186 = vunpack.c.l.b16 %v604
        %v1187 = vunpack.c.h.b16 %v604
        %v1188 = vunpack.c.l.b16 %v605
        %v1189 = vunpack.c.h.b16 %v605
        %v1190 = vunpack.c.l.b16 %v606
        %v1191 = vunpack.c.h.b16 %v606
        %v1192 = vunpack.c.l.b16 %v607
        %v1193 = vunpack.c.h.b16 %v607
        %v1194 = vunpack.c.l.b16 %v608
        %v1195 = vunpack.c.h.b16 %v608
        %v1196 = vunpack.c.l.b16 %v609
        %v1197 = vunpack.c.h.b16 %v609
        %v1198 = vunpack.c.l.b16 %v610
        %v1199 = vunpack.c.h.b16 %v610
        %v1200 = vunpack.c.l.b16 %v611
        %v1201 = vunpack.c.h.b16 %v611
        %v1202 = vunpack.c.l.b16 %v612
        %v1203 = vunpack.c.h.b16 %v612
        %v1204 = vunpack.c.l.b16 %v613
        %v1205 = vunpack.c.h.b16 %v613
        %v1206 = vunpack.c.l.b16 %v614
        %v1207 = vunpack.c.h.b16 %v614
        %v1208 = vunpack.c.l.b16 %v615
        %v1209 = vunpack.c.h.b16 %v615
        %v1210 = vunpack.c.l.b16 %v616
        %v1211 = vunpack.c.h.b16 %v616
        %v1212 = vunpack.c.l.b16 %v617
        %v1213 = vunpack.c.h.b16 %v617
        %v1214 = vunpack.c.l.b16 %v618
        %v1215 = vunpack.c.h.b16 %v618
        %v1216 = vunpack.c.l.b16 %v619
        %v1217 = vunpack.c.h.b16 %v619
        %v1218 = vunpack.c.l.b16 %v620
        %v1219 = vunpack.c.h.b16 %v620
        %v1220 = vunpack.c.l.b16 %v621
        %v1221 = vunpack.c.h.b16 %v621
        %v1222 = vunpack.c.l.b16 %v622
        %v1223 = vunpack.c.h.b16 %v622
        %v1224 = vunpack.c.l.b16 %v623
        %v1225 = vunpack.c.h.b16 %v623
        %v1226 = vunpack.c.l.b16 %v624
        %v1227 = vunpack.c.h.b16 %v624
        %v1228 = vunpack.c.l.b16 %v625
        %v1229 = vunpack.c.h.b16 %v625
        %v1230 = vunpack.c.l.b16 %v626
        %v1231 = vunpack.c.h.b16 %v626
        %v1232 = vunpack.c.l.b16 %v627
        %v1233 = vunpack.c.h.b16 %v627
        %v1234 = vunpack.c.l.b16 %v628
        %v1235 = vunpack.c.h.b16 %v628
        %v1236 = vunpack.c.l.b16 %v629
        %v1237 = vunpack.c.h.b16 %v629
        %v1238 = vunpack.c.l.b16 %v630
        %v1239 = vunpack.c.h.b16 %v630
        %v1240 = vunpack.c.l.b16 %v631
        %v1241 = vunpack.c.h.b16 %v631
        %v1242 = vunpack.c.l.b16 %v632
        %v1243 = vunpack.c.h.b16 %v632
        %v1244 = vunpack.c.l.b16 %v633
        %v1245 = vunpack.c.h.b16 %v633
        %v1246 = vunpack.c.l.b16 %v634
        %v1247 = vunpack.c.h.b16 %v634
        %v1248 = vunpack.c.l.b16 %v635
        %v1249 = vunpack.c.h.b16 %v635
        %v1250 = vunpack.c.l.b16 %v636
        %v1251 = vunpack.c.h.b16 %v636
        %v1252 = vunpack.c.l.b16 %v637
        %v1253 = vunpack.c.h.b16 %v637
        %v1254 = vunpack.c.l.b16 %v638
        %v1255 = vunpack.c.h.b16 %v638
        %v1256 = vunpack.c.l.b16 %v639
        %v1257 = vunpack.c.h.b16 %v639
        %v1258 = vunpack.c.l.b16 %v640
        %v1259 = vunpack.c.h.b16 %v640
        %v1260 = vunpack.c.l.b16 %v641
        %v1261 = vunpack.c.h.b16 %v641
        %v1262 = vunpack.c.l.b16 %v642
        %v1263 = vunpack.c.h.b16 %v642
        %v1264 = vunpack.c.l.b16 %v643
        %v1265 = vunpack.c.h.b16 %v643
        %v1266 = vunpack.c.l.b16 %v644
        %v1267 = vunpack.c.h.b16 %v644
        %v1268 = vunpack.c.l.b16 %v645
        %v1269 = vunpack.c.h.b16 %v645
        %v1270 = vunpack.c.l.b16 %v646
        %v1271 = vunpack.c.h.b16 %v646
        %v1272 = vunpack.c.l.b16 %v647
        %v1273 = vunpack.c.h.b16 %v647
        %v1274 = vunpack.c.l.b16 %v648
        %v1275 = vunpack.c.h.b16 %v648
        %v1276 = vunpack.c.l.b16 %v649
        %v1277 = vunpack.c.h.b16 %v649
        %v1278 = vunpack.c.l.b16 %v650
        %v1279 = vunpack.c.h.b16 %v650
        %v1280 = vunpack.c.l.b16 %v651
        %v1281 = vunpack.c.h.b16 %v651
        %v1282 = vunpack.c.l.b16 %v652
        %v1283 = vunpack.c.h.b16 %v652
        %v1284 = vunpack.c.l.b16 %v653
        %v1285 = vunpack.c.h.b16 %v653
        %v1286 = vunpack.c.l.b16 %v654
        %v1287 = vunpack.c.h.b16 %v654
        %v1288 = vunpack.c.l.b16 %v655
        %v1289 = vunpack.c.h.b16 %v655
        %v1290 = vunpack.c.l.b16 %v656
        %v1291 = vunpack.c.h.b16 %v656
        %v1292 = vunpack.c.l.b16 %v657
        %v1293 = vunpack.c.h.b16 %v657
        %v1294 = vunpack.c.l.b16 %v658
        %v1295 = vunpack.c.h.b16 %v658
        %v1296 = vunpack.c.l.b16 %v659
        %v1297 = vunpack.c.h.b16 %v659
        %v1298 = vunpack.c.l.b16 %v660
        %v1299 = vunpack.c.h.b16 %v660
        %v1300 = vunpack.c.l.b16 %v661
        %v1301 = vunpack.c.h.b16 %v661
        %v1302 = vunpack.c.l.b16 %v662
        %v1303 = vunpack.c.h.b16 %v662
        %v1304 = vunpack.c.l.b16 %v663
        %v1305 = vunpack.c.h.b16 %v663
        %v1306 = vunpack.c.l.b16 %v664
        %v1307 = vunpack.c.h.b16 %v664
        %v1308 = vunpack.c.l.b16 %v665
        %v1309 = vunpack.c.h.b16 %v665
        %v1310 = vunpack.c.l.b16 %v666
        %v1311 = vunpack.c.h.b16 %v666
        %v1312 = vunpack.c.l.b16 %v667
        %v1313 = vunpack.c.h.b16 %v667
        %v1314 = vunpack.c.l.b16 %v668
        %v1315 = vunpack.c.h.b16 %v668
        %v1316 = vunpack.c.l.b16 %v669
        %v1317 = vunpack.c.h.b16 %v669
        %v1318 = vunpack.c.l.b16 %v670
        %v1319 = vunpack.c.h.b16 %v670
        %v1320 = vunpack.c.l.b16 %v671
        %v1321 = vunpack.c.h.b16 %v671
        %v1322 = vunpack.c.l.b16 %v672
        %v1323 = vunpack.c.h.b16 %v672
        %v1324 = vunpack.c.l.b16 %v673
        %v1325 = vunpack.c.h.b16 %v673
        %v1326 = vunpack.c.l.b16 %v674
        %v1327 = vunpack.c.h.b16 %v674
        %v1328 = vunpack.c.l.b16 %v675
        %v1329 = vunpack.c.h.b16 %v675
        %v1330 = vunpack.c.l.b16 %v676
        %v1331 = vunpack.c.h.b16 %v676
        %v1332 = vunpack.c.l.b16 %v677
        %v1333 = vunpack.c.h.b16 %v677
        %v1334 = vunpack.c.l.b16 %v678
        %v1335 = vunpack.c.h.b16 %v678
        %v1336 = vunpack.c.l.b16 %v679
        %v1337 = vunpack.c.h.b16 %v679
        %v1338 = vunpack.c.l.b16 %v680
        %v1339 = vunpack.c.h.b16 %v680
        %v1340 = vunpack.c.l.b16 %v681
        %v1341 = vunpack.c.h.b16 %v681
        %v1342 = vunpack.c.l.b16 %v682
        %v1343 = vunpack.c.h.b16 %v682
        %v1344 = vunpack.c.l.b16 %v683
        %v1345 = vunpack.c.h.b16 %v683
        %v1346 = vunpack.c.l.b16 %v684
        %v1347 = vunpack.c.h.b16 %v684
        %v1348 = vunpack.c.l.b16 %v685
        %v1349 = vunpack.c.h.b16 %v685
        %v1350 = vunpack.c.l.b16 %v686
        %v1351 = vunpack.c.h.b16 %v686
        %v1352 = vunpack.c.l.b16 %v687
        %v1353 = vunpack.c.h.b16 %v687
        %v1354 = vunpack.c.l.b16 %v688
        %v1355 = vunpack.c.h.b16 %v688
        %v1356 = vunpack.c.l.b16 %v689
        %v1357 = vunpack.c.h.b16 %v689
        %v1358 = vunpack.c.l.b16 %v690
        %v1359 = vunpack.c.h.b16 %v690
        %v1360 = vunpack.c.l.b16 %v691
        %v1361 = vunpack.c.h.b16 %v691
        %v1362 = vunpack.c.l.b16 %v692
        %v1363 = vunpack.c.h.b16 %v692
        %v1364 = vunpack.c.l.b16 %v693
        %v1365 = vunpack.c.h.b16 %v693
        %v1366 = vunpack.c.l.b16 %v694
        %v1367 = vunpack.c.h.b16 %v694
        %v1368 = vunpack.c.l.b16 %v695
        %v1369 = vunpack.c.h.b16 %v695
        %v1370 = vunpack.c.l.b16 %v696
        %v1371 = vunpack.c.h.b16 %v696
        %v1372 = vunpack.c.l.b16 %v697
        %v1373 = vunpack.c.h.b16 %v697
        %v1374 = vunpack.c.l.b16 %v698
        %v1375 = vunpack.c.h.b16 %v698
        %v1376 = vunpack.c.l.b16 %v699
        %v1377 = vunpack.c.h.b16 %v699
        %v1378 = vunpack.c.l.b16 %v700
        %v1379 = vunpack.c.h.b16 %v700
        %v1380 = vunpack.c.l.b16 %v701
        %v1381 = vunpack.c.h.b16 %v701
        %v1382 = vunpack.c.l.b16 %v702
        %v1383 = vunpack.c.h.b16 %v702
        %v1384 = vunpack.c.l.b16 %v703
        %v1385 = vunpack.c.h.b16 %v703
        %v1386 = vunpack.c.l.b16 %v704
        %v1387 = vunpack.c.h.b16 %v704
        %v1388 = vunpack.c.l.b16 %v705
        %v1389 = vunpack.c.h.b16 %v705
        %v1390 = vunpack.c.l.b16 %v706
        %v1391 = vunpack.c.h.b16 %v706
        %v1392 = vunpack.c.l.b16 %v707
        %v1393 = vunpack.c.h.b16 %v707
        %v1394 = vunpack.c.l.b16 %v708
        %v1395 = vunpack.c.h.b16 %v708
        %v1396 = vunpack.c.l.b16 %v709
        %v1397 = vunpack.c.h.b16 %v709
        %v1398 = vunpack.c.l.b16 %v710
        %v1399 = vunpack.c.h.b16 %v710
        %v1400 = vunpack.c.l.b16 %v711
        %v1401 = vunpack.c.h.b16 %v711
        %v1402 = vunpack.c.l.b16 %v712
        %v1403 = vunpack.c.h.b16 %v712
        %v1404 = vunpack.c.l.b16 %v713
        %v1405 = vunpack.c.h.b16 %v713
        %v1406 = vunpack.c.l.b16 %v714
        %v1407 = vunpack.c.h.b16 %v714
        %v1408 = vunpack.c.l.b16 %v715
        %v1409 = vunpack.c.h.b16 %v715
        %v1410 = vunpack.c.l.b16 %v716
        %v1411 = vunpack.c.h.b16 %v716
        %v1412 = vunpack.c.l.b16 %v717
        %v1413 = vunpack.c.h.b16 %v717
        %v1414 = vunpack.c.l.b16 %v718
        %v1415 = vunpack.c.h.b16 %v718
        %v1416 = vunpack.c.l.b16 %v719
        %v1417 = vunpack.c.h.b16 %v719
        %v1418 = vunpack.c.l.b16 %v720
        %v1419 = vunpack.c.h.b16 %v720
        %v1420 = vunpack.c.l.b16 %v721
        %v1421 = vunpack.c.h.b16 %v721
        %v1422 = vunpack.c.l.b16 %v722
        %v1423 = vunpack.c.h.b16 %v722
        %v1424 = vunpack.c.l.b16 %v723
        %v1425 = vunpack.c.h.b16 %v723
        %v1426 = vunpack.c.l.b16 %v724
        %v1427 = vunpack.c.h.b16 %v724
        %v1428 = vunpack.c.l.b16 %v725
        %v1429 = vunpack.c.h.b16 %v725
        %v1430 = vunpack.c.l.b16 %v726
        %v1431 = vunpack.c.h.b16 %v726
        %v1432 = vunpack.c.l.b16 %v727
        %v1433 = vunpack.c.h.b16 %v727
        %v1434 = vunpack.c.l.b16 %v728
        %v1435 = vunpack.c.h.b16 %v728
        %v1436 = vunpack.c.l.b16 %v729
        %v1437 = vunpack.c.h.b16 %v729
        %v1438 = vunpack.c.l.b16 %v730
        %v1439 = vunpack.c.h.b16 %v730
        %v1440 = vunpack.c.l.b16 %v731
        %v1441 = vunpack.c.h.b16 %v731
        %v1442 = vunpack.c.l.b16 %v732
        %v1443 = vunpack.c.h.b16 %v732
        %v1444 = vunpack.c.l.b16 %v733
        %v1445 = vunpack.c.h.b16 %v733
        %v1446 = vunpack.c.l.b16 %v734
        %v1447 = vunpack.c.h.b16 %v734
        %v1448 = vunpack.c.l.b16 %v735
        %v1449 = vunpack.c.h.b16 %v735
        %v1450 = vunpack.c.l.b16 %v736
        %v1451 = vunpack.c.h.b16 %v736
        %v1452 = vunpack.c.l.b16 %v737
        %v1453 = vunpack.c.h.b16 %v737
        %v1454 = vunpack.c.l.b16 %v738
        %v1455 = vunpack.c.h.b16 %v738
        %v1456 = vunpack.c.l.b16 %v739
        %v1457 = vunpack.c.h.b16 %v739
        %v1458 = vunpack.c.l.b16 %v740
        %v1459 = vunpack.c.h.b16 %v740
        %v1460 = vunpack.c.l.b16 %v741
        %v1461 = vunpack.c.h.b16 %v741
        %v1462 = vunpack.c.l.b16 %v742
        %v1463 = vunpack.c.h.b16 %v742
        %v1464 = vunpack.c.l.b16 %v743
        %v1465 = vunpack.c.h.b16 %v743
        %v1466 = vunpack.c.l.b16 %v744
        %v1467 = vunpack.c.h.b16 %v744
        %v1468 = vunpack.c.l.b16 %v745
        %v1469 = vunpack.c.h.b16 %v745
        %v1470 = vunpack.c.l.b16 %v746
        %v1471 = vunpack.c.h.b16 %v746
        %v1472 = vunpack.c.l.b16 %v747
        %v1473 = vunpack.c.h.b16 %v747
        %v1474 = vunpack.c.l.b16 %v748
        %v1475 = vunpack.c.h.b16 %v748
        %v1476 = vunpack.c.l.b16 %v749
        %v1477 = vunpack.c.h.b16 %v749
        %v1478 = vunpack.c.l.b16 %v750
        %v1479 = vunpack.c.h.b16 %v750
        %v1480 = vunpack.c.l.b16 %v751
        %v1481 = vunpack.c.h.b16 %v751
        %v1482 = vunpack.c.l.b16 %v752
        %v1483 = vunpack.c.h.b16 %v752
        %v1484 = vunpack.c.l.b16 %v753
        %v1485 = vunpack.c.h.b16 %v753
        %v1486 = vunpack.c.l.b16 %v754
        %v1487 = vunpack.c.h.b16 %v754
        %v1488 = vunpack.c.l.b16 %v755
        %v1489 = vunpack.c.h.b16 %v755
        %v1490 = vunpack.c.l.b16 %v756
        %v1491 = vunpack.c.h.b16 %v756
        %v1492 = vunpack.c.l.b16 %v757
        %v1493 = vunpack.c.h.b16 %v757
        %v1494 = vunpack.c.l.b16 %v758
        %v1495 = vunpack.c.h.b16 %v758
        %v1496 = vunpack.c.l.b16 %v759
        %v1497 = vunpack.c.h.b16 %v759
        %v1498 = vunpack.c.l.b16 %v760
        %v1499 = vunpack.c.h.b16 %v760
        %v1500 = vunpack.c.l.b16 %v761
        %v1501 = vunpack.c.h.b16 %v761
        %v1502 = vunpack.c.l.b16 %v762
        %v1503 = vunpack.c.h.b16 %v762
        %v1504 = vunpack.c.l.b16 %v763
        %v1505 = vunpack.c.h.b16 %v763
        %v1506 = vunpack.c.l.b16 %v764
        %v1507 = vunpack.c.h.b16 %v764
        %v1508 = vunpack.c.l.b16 %v765
        %v1509 = vunpack.c.h.b16 %v765
        %v1510 = vunpack.c.l.b16 %v766
        %v1511 = vunpack.c.h.b16 %v766
        %v1512 = vunpack.c.l.b16 %v767
        %v1513 = vunpack.c.h.b16 %v767
        %v1514 = vunpack.c.l.b16 %v768
        %v1515 = vunpack.c.h.b16 %v768
        %v1516 = vunpack.c.l.b16 %v769
        %v1517 = vunpack.c.h.b16 %v769
        %v1518 = vunpack.c.l.b16 %v770
        %v1519 = vunpack.c.h.b16 %v770
        %v1520 = vunpack.c.l.b16 %v771
        %v1521 = vunpack.c.h.b16 %v771
        %v1522 = vunpack.c.l.b16 %v772
        %v1523 = vunpack.c.h.b16 %v772
        %v1524 = vunpack.c.l.b16 %v773
        %v1525 = vunpack.c.h.b16 %v773
        %v1526 = vunpack.c.l.b16 %v774
        %v1527 = vunpack.c.h.b16 %v774
        %v1528 = vunpack.c.l.b16 %v775
        %v1529 = vunpack.c.h.b16 %v775
        %v1530 = vunpack.c.l.b16 %v776
        %v1531 = vunpack.c.h.b16 %v776
        %v1532 = vunpack.c.l.b16 %v777
        %v1533 = vunpack.c.h.b16 %v777
        %v1534 = vunpack.c.l.b16 %v778
        %v1535 = vunpack.c.h.b16 %v778
        %v1536 = vunpack.c.l.b16 %v779
        %v1537 = vunpack.c.h.b16 %v779
        %v1538 = vunpack.c.l.b16 %v780
        %v1539 = vunpack.c.h.b16 %v780
        %v1540 = vunpack.c.l.b16 %v781
        %v1541 = vunpack.c.h.b16 %v781
        %v1542 = vunpack.c.l.b16 %v782
        %v1543 = vunpack.c.h.b16 %v782
        %v1544 = vunpack.c.l.b16 %v783
        %v1545 = vunpack.c.h.b16 %v783
        %v1546 = vunpack.c.l.b16 %v784
        %v1547 = vunpack.c.h.b16 %v784
        %v1548 = vunpack.c.l.b16 %v785
        %v1549 = vunpack.c.h.b16 %v785
        %v1550 = vunpack.c.l.b16 %v786
        %v1551 = vunpack.c.h.b16 %v786
        %v1552 = vunpack.c.l.b16 %v787
        %v1553 = vunpack.c.h.b16 %v787
        %v1554 = vunpack.c.l.b16 %v788
        %v1555 = vunpack.c.h.b16 %v788
        %v1556 = vunpack.c.l.b16 %v789
        %v1557 = vunpack.c.h.b16 %v789
        %v1558 = vunpack.c.l.b16 %v790
        %v1559 = vunpack.c.h.b16 %v790
        %v1560 = vunpack.c.l.b16 %v791
        %v1561 = vunpack.c.h.b16 %v791
        %v1562 = vunpack.c.l.b16 %v792
        %v1563 = vunpack.c.h.b16 %v792
        %v1564 = vunpack.c.l.b16 %v793
        %v1565 = vunpack.c.h.b16 %v793
        %v1566 = vunpack.c.l.b16 %v794
        %v1567 = vunpack.c.h.b16 %v794
        %v1568 = vunpack.c.l.b16 %v795
        %v1569 = vunpack.c.h.b16 %v795
        %v1570 = vunpack.c.l.b16 %v796
        %v1571 = vunpack.c.h.b16 %v796
        %v1572 = vunpack.c.l.b16 %v797
        %v1573 = vunpack.c.h.b16 %v797
        %v1574 = vunpack.c.l.b16 %v798
        %v1575 = vunpack.c.h.b16 %v798
        %v1576 = vunpack.c.l.b16 %v799
        %v1577 = vunpack.c.h.b16 %v799
        %v1578 = vunpack.c.l.b16 %v800
        %v1579 = vunpack.c.h.b16 %v800
        %v1580 = vunpack.c.l.b16 %v801
        %v1581 = vunpack.c.h.b16 %v801
        %v1582 = vunpack.c.l.b16 %v802
        %v1583 = vunpack.c.h.b16 %v802
        %v1584 = vunpack.c.l.b16 %v803
        %v1585 = vunpack.c.h.b16 %v803
        %v1586 = vunpack.c.l.b16 %v804
        %v1587 = vunpack.c.h.b16 %v804
        %v1588 = vunpack.c.l.b16 %v805
        %v1589 = vunpack.c.h.b16 %v805
        %v1590 = vunpack.c.l.b16 %v806
        %v1591 = vunpack.c.h.b16 %v806
        %v1592 = vunpack.c.l.b16 %v807
        %v1593 = vunpack.c.h.b16 %v807
        %v1594 = vunpack.c.l.b16 %v808
        %v1595 = vunpack.c.h.b16 %v808
        %v1596 = vunpack.c.l.b16 %v809
        %v1597 = vunpack.c.h.b16 %v809
        %v1598 = vunpack.c.l.b16 %v810
        %v1599 = vunpack.c.h.b16 %v810
        %v1600 = vunpack.c.l.b16 %v811
        %v1601 = vunpack.c.h.b16 %v811
        %v1602 = vunpack.c.l.b16 %v812
        %v1603 = vunpack.c.h.b16 %v812
        %v1604 = vunpack.c.l.b16 %v813
        %v1605 = vunpack.c.h.b16 %v813
        %v1606 = vunpack.c.l.b16 %v814
        %v1607 = vunpack.c.h.b16 %v814
        %v1608 = vunpack.c.l.b16 %v815
        %v1609 = vunpack.c.h.b16 %v815
        %v1610 = vunpack.c.l.b16 %v816
        %v1611 = vunpack.c.h.b16 %v816
        %v1612 = vunpack.c.l.b16 %v817
        %v1613 = vunpack.c.h.b16 %v817
        %v1614 = vpack.c.b16 %v1106, %v1102
        %v1615 = vpack.c.b16 %v1107, %v1103
        %v1616 = vpack.c.b16 %v1108, %v1104
        %v1617 = vpack.c.b16 %v1109, %v1105
        %v1618 = vpack.c.b16 %v1114, %v1110
        %v1619 = vpack.c.b16 %v1115, %v1111
        %v1620 = vpack.c.b16 %v1116, %v1112
        %v1621 = vpack.c.b16 %v1117, %v1113
        %v1622 = vpack.c.b16 %v1122, %v1118
        %v1623 = vpack.c.b16 %v1123, %v1119
        %v1624 = vpack.c.b16 %v1124, %v1120
        %v1625 = vpack.c.b16 %v1125, %v1121
        %v1626 = vpack.c.b16 %v1130, %v1126
        %v1627 = vpack.c.b16 %v1131, %v1127
        %v1628 = vpack.c.b16 %v1132, %v1128
        %v1629 = vpack.c.b16 %v1133, %v1129
        %v1630 = vpack.c.b16 %v1138, %v1134
        %v1631 = vpack.c.b16 %v1139, %v1135
        %v1632 = vpack.c.b16 %v1140, %v1136
        %v1633 = vpack.c.b16 %v1141, %v1137
        %v1634 = vpack.c.b16 %v1146, %v1142
        %v1635 = vpack.c.b16 %v1147, %v1143
        %v1636 = vpack.c.b16 %v1148, %v1144
        %v1637 = vpack.c.b16 %v1149, %v1145
        %v1638 = vpack.c.b16 %v1154, %v1150
        %v1639 = vpack.c.b16 %v1155, %v1151
        %v1640 = vpack.c.b16 %v1156, %v1152
        %v1641 = vpack.c.b16 %v1157, %v1153
        %v1642 = vpack.c.b16 %v1162, %v1158
        %v1643 = vpack.c.b16 %v1163, %v1159
        %v1644 = vpack.c.b16 %v1164, %v1160
        %v1645 = vpack.c.b16 %v1165, %v1161
        %v1646 = vpack.c.b16 %v1170, %v1166
        %v1647 = vpack.c.b16 %v1171, %v1167
        %v1648 = vpack.c.b16 %v1172, %v1168
        %v1649 = vpack.c.b16 %v1173, %v1169
        %v1650 = vpack.c.b16 %v1178, %v1174
        %v1651 = vpack.c.b16 %v1179, %v1175
        %v1652 = vpack.c.b16 %v1180, %v1176
        %v1653 = vpack.c.b16 %v1181, %v1177
        %v1654 = vpack.c.b16 %v1186, %v1182
        %v1655 = vpack.c.b16 %v1187, %v1183
        %v1656 = vpack.c.b16 %v1188, %v1184
        %v1657 = vpack.c.b16 %v1189, %v1185
        %v1658 = vpack.c.b16 %v1194, %v1190
        %v1659 = vpack.c.b16 %v1195, %v1191
        %v1660 = vpack.c.b16 %v1196, %v1192
        %v1661 = vpack.c.b16 %v1197, %v1193
        %v1662 = vpack.c.b16 %v1202, %v1198
        %v1663 = vpack.c.b16 %v1203, %v1199
        %v1664 = vpack.c.b16 %v1204, %v1200
        %v1665 = vpack.c.b16 %v1205, %v1201
        %v1666 = vpack.c.b16 %v1210, %v1206
        %v1667 = vpack.c.b16 %v1211, %v1207
        %v1668 = vpack.c.b16 %v1212, %v1208
        %v1669 = vpack.c.b16 %v1213, %v1209
        %v1670 = vpack.c.b16 %v1218, %v1214
        %v1671 = vpack.c.b16 %v1219, %v1215
        %v1672 = vpack.c.b16 %v1220, %v1216
        %v1673 = vpack.c.b16 %v1221, %v1217
        %v1674 = vpack.c.b16 %v1226, %v1222
        %v1675 = vpack.c.b16 %v1227, %v1223
        %v1676 = vpack.c.b16 %v1228, %v1224
        %v1677 = vpack.c.b16 %v1229, %v1225
        %v1678 = vpack.c.b16 %v1234, %v1230
        %v1679 = vpack.c.b16 %v1235, %v1231
        %v1680 = vpack.c.b16 %v1236, %v1232
        %v1681 = vpack.c.b16 %v1237, %v1233
        %v1682 = vpack.c.b16 %v1242, %v1238
        %v1683 = vpack.c.b16 %v1243, %v1239
        %v1684 = vpack.c.b16 %v1244, %v1240
        %v1685 = vpack.c.b16 %v1245, %v1241
        %v1686 = vpack.c.b16 %v1250, %v1246
        %v1687 = vpack.c.b16 %v1251, %v1247
        %v1688 = vpack.c.b16 %v1252, %v1248
        %v1689 = vpack.c.b16 %v1253, %v1249
        %v1690 = vpack.c.b16 %v1258, %v1254
        %v1691 = vpack.c.b16 %v1259, %v1255
        %v1692 = vpack.c.b16 %v1260, %v1256
        %v1693 = vpack.c.b16 %v1261, %v1257
        %v1694 = vpack.c.b16 %v1266, %v1262
        %v1695 = vpack.c.b16 %v1267, %v1263
        %v1696 = vpack.c.b16 %v1268, %v1264
        %v1697 = vpack.c.b16 %v1269, %v1265
        %v1698 = vpack.c.b16 %v1274, %v1270
        %v1699 = vpack.c.b16 %v1275, %v1271
        %v1700 = vpack.c.b16 %v1276, %v1272
        %v1701 = vpack.c.b16 %v1277, %v1273
        %v1702 = vpack.c.b16 %v1282, %v1278
        %v1703 = vpack.c.b16 %v1283, %v1279
        %v1704 = vpack.c.b16 %v1284, %v1280
        %v1705 = vpack.c.b16 %v1285, %v1281
        %v1706 = vpack.c.b16 %v1290, %v1286
        %v1707 = vpack.c.b16 %v1291, %v1287
        %v1708 = vpack.c.b16 %v1292, %v1288
        %v1709 = vpack.c.b16 %v1293, %v1289
        %v1710 = vpack.c.b16 %v1298, %v1294
        %v1711 = vpack.c.b16 %v1299, %v1295
        %v1712 = vpack.c.b16 %v1300, %v1296
        %v1713 = vpack.c.b16 %v1301, %v1297
        %v1714 = vpack.c.b16 %v1306, %v1302
        %v1715 = vpack.c.b16 %v1307, %v1303
        %v1716 = vpack.c.b16 %v1308, %v1304
        %v1717 = vpack.c.b16 %v1309, %v1305
        %v1718 = vpack.c.b16 %v1314, %v1310
        %v1719 = vpack.c.b16 %v1315, %v1311
        %v1720 = vpack.c.b16 %v1316, %v1312
        %v1721 = vpack.c.b16 %v1317, %v1313
        %v1722 = vpack.c.b16 %v1322, %v1318
        %v1723 = vpack.c.b16 %v1323, %v1319
        %v1724 = vpack.c.b16 %v1324, %v1320
        %v1725 = vpack.c.b16 %v1325, %v1321
        %v1726 = vpack.c.b16 %v1330, %v1326
        %v1727 = vpack.c.b16 %v1331, %v1327
        %v1728 = vpack.c.b16 %v1332, %v1328
        %v1729 = vpack.c.b16 %v1333, %v1329
        %v1730 = vpack.c.b16 %v1338, %v1334
        %v1731 = vpack.c.b16 %v1339, %v1335
        %v1732 = vpack.c.b16 %v1340, %v1336
        %v1733 = vpack.c.b16 %v1341, %v1337
        %v1734 = vpack.c.b16 %v1346, %v1342
        %v1735 = vpack.c.b16 %v1347, %v1343
        %v1736 = vpack.c.b16 %v1348, %v1344
        %v1737 = vpack.c.b16 %v1349, %v1345
        %v1738 = vpack.c.b16 %v1354, %v1350
        %v1739 = vpack.c.b16 %v1355, %v1351
        %v1740 = vpack.c.b16 %v1356, %v1352
        %v1741 = vpack.c.b16 %v1357, %v1353
        %v1742 = vpack.c.b16 %v1362, %v1358
        %v1743 = vpack.c.b16 %v1363, %v1359
        %v1744 = vpack.c.b16 %v1364, %v1360
        %v1745 = vpack.c.b16 %v1365, %v1361
        %v1746 = vpack.c.b16 %v1370, %v1366
        %v1747 = vpack.c.b16 %v1371, %v1367
        %v1748 = vpack.c.b16 %v1372, %v1368
        %v1749 = vpack.c.b16 %v1373, %v1369
        %v1750 = vpack.c.b16 %v1378, %v1374
        %v1751 = vpack.c.b16 %v1379, %v1375
        %v1752 = vpack.c.b16 %v1380, %v1376
        %v1753 = vpack.c.b16 %v1381, %v1377
        %v1754 = vpack.c.b16 %v1386, %v1382
        %v1755 = vpack.c.b16 %v1387, %v1383
        %v1756 = vpack.c.b16 %v1388, %v1384
        %v1757 = vpack.c.b16 %v1389, %v1385
        %v1758 = vpack.c.b16 %v1394, %v1390
        %v1759 = vpack.c.b16 %v1395, %v1391
        %v1760 = vpack.c.b16 %v1396, %v1392
        %v1761 = vpack.c.b16 %v1397, %v1393
        %v1762 = vpack.c.b16 %v1402, %v1398
        %v1763 = vpack.c.b16 %v1403, %v1399
        %v1764 = vpack.c.b16 %v1404, %v1400
        %v1765 = vpack.c.b16 %v1405, %v1401
        %v1766 = vpack.c.b16 %v1410, %v1406
        %v1767 = vpack.c.b16 %v1411, %v1407
        %v1768 = vpack.c.b16 %v1412, %v1408
        %v1769 = vpack.c.b16 %v1413, %v1409
        %v1770 = vpack.c.b16 %v1418, %v1414
        %v1771 = vpack.c.b16 %v1419, %v1415
        %v1772 = vpack.c.b16 %v1420, %v1416
        %v1773 = vpack.c.b16 %v1421, %v1417
        %v1774 = vpack.c.b16 %v1426, %v1422
        %v1775 = vpack.c.b16 %v1427, %v1423
        %v1776 = vpack.c.b16 %v1428, %v1424
        %v1777 = vpack.c.b16 %v1429, %v1425
        %v1778 = vpack.c.b16 %v1434, %v1430
        %v1779 = vpack.c.b16 %v1435, %v1431
        %v1780 = vpack.c.b16 %v1436, %v1432
        %v1781 = vpack.c.b16 %v1437, %v1433
        %v1782 = vpack.c.b16 %v1442, %v1438
        %v1783 = vpack.c.b16 %v1443, %v1439
        %v1784 = vpack.c.b16 %v1444, %v1440
        %v1785 = vpack.c.b16 %v1445, %v1441
        %v1786 = vpack.c.b16 %v1450, %v1446
        %v1787 = vpack.c.b16 %v1451, %v1447
        %v1788 = vpack.c.b16 %v1452, %v1448
        %v1789 = vpack.c.b16 %v1453, %v1449
        %v1790 = vpack.c.b16 %v1458, %v1454
        %v1791 = vpack.c.b16 %v1459, %v1455
        %v1792 = vpack.c.b16 %v1460, %v1456
        %v1793 = vpack.c.b16 %v1461, %v1457
        %v1794 = vpack.c.b16 %v1466, %v1462
        %v1795 = vpack.c.b16 %v1467, %v1463
        %v1796 = vpack.c.b16 %v1468, %v1464
        %v1797 = vpack.c.b16 %v1469, %v1465
        %v1798 = vpack.c.b16 %v1474, %v1470
        %v1799 = vpack.c.b16 %v1475, %v1471
        %v1800 = vpack.c.b16 %v1476, %v1472
        %v1801 = vpack.c.b16 %v1477, %v1473
        %v1802 = vpack.c.b16 %v1482, %v1478
        %v1803 = vpack.c.b16 %v1483, %v1479
        %v1804 = vpack.c.b16 %v1484, %v1480
        %v1805 = vpack.c.b16 %v1485, %v1481
        %v1806 = vpack.c.b16 %v1490, %v1486
        %v1807 = vpack.c.b16 %v1491, %v1487
        %v1808 = vpack.c.b16 %v1492, %v1488
        %v1809 = vpack.c.b16 %v1493, %v1489
        %v1810 = vpack.c.b16 %v1498, %v1494
        %v1811 = vpack.c.b16 %v1499, %v1495
        %v1812 = vpack.c.b16 %v1500, %v1496
        %v1813 = vpack.c.b16 %v1501, %v1497
        %v1814 = vpack.c.b16 %v1506, %v1502
        %v1815 = vpack.c.b16 %v1507, %v1503
        %v1816 = vpack.c.b16 %v1508, %v1504
        %v1817 = vpack.c.b16 %v1509, %v1505
        %v1818 = vpack.c.b16 %v1514, %v1510
        %v1819 = vpack.c.b16 %v1515, %v1511
        %v1820 = vpack.c.b16 %v1516, %v1512
        %v1821 = vpack.c.b16 %v1517, %v1513
        %v1822 = vpack.c.b16 %v1522, %v1518
        %v1823 = vpack.c.b16 %v1523, %v1519
        %v1824 = vpack.c.b16 %v1524, %v1520
        %v1825 = vpack.c.b16 %v1525, %v1521
        %v1826 = vpack.c.b16 %v1530, %v1526
        %v1827 = vpack.c.b16 %v1531, %v1527
        %v1828 = vpack.c.b16 %v1532, %v1528
        %v1829 = vpack.c.b16 %v1533, %v1529
        %v1830 = vpack.c.b16 %v1538, %v1534
        %v1831 = vpack.c.b16 %v1539, %v1535
        %v1832 = vpack.c.b16 %v1540, %v1536
        %v1833 = vpack.c.b16 %v1541, %v1537
        %v1834 = vpack.c.b16 %v1546, %v1542
        %v1835 = vpack.c.b16 %v1547, %v1543
        %v1836 = vpack.c.b16 %v1548, %v1544
        %v1837 = vpack.c.b16 %v1549, %v1545
        %v1838 = vpack.c.b16 %v1554, %v1550
        %v1839 = vpack.c.b16 %v1555, %v1551
        %v1840 = vpack.c.b16 %v1556, %v1552
        %v1841 = vpack.c.b16 %v1557, %v1553
        %v1842 = vpack.c.b16 %v1562, %v1558
        %v1843 = vpack.c.b16 %v1563, %v1559
        %v1844 = vpack.c.b16 %v1564, %v1560
        %v1845 = vpack.c.b16 %v1565, %v1561
        %v1846 = vpack.c.b16 %v1570, %v1566
        %v1847 = vpack.c.b16 %v1571, %v1567
        %v1848 = vpack.c.b16 %v1572, %v1568
        %v1849 = vpack.c.b16 %v1573, %v1569
        %v1850 = vpack.c.b16 %v1578, %v1574
        %v1851 = vpack.c.b16 %v1579, %v1575
        %v1852 = vpack.c.b16 %v1580, %v1576
        %v1853 = vpack.c.b16 %v1581, %v1577
        %v1854 = vpack.c.b16 %v1586, %v1582
        %v1855 = vpack.c.b16 %v1587, %v1583
        %v1856 = vpack.c.b16 %v1588, %v1584
        %v1857 = vpack.c.b16 %v1589, %v1585
        %v1858 = vpack.c.b16 %v1594, %v1590
        %v1859 = vpack.c.b16 %v1595, %v1591
        %v1860 = vpack.c.b16 %v1596, %v1592
        %v1861 = vpack.c.b16 %v1597, %v1593
        %v1862 = vpack.c.b16 %v1602, %v1598
        %v1863 = vpack.c.b16 %v1603, %v1599
        %v1864 = vpack.c.b16 %v1604, %v1600
        %v1865 = vpack.c.b16 %v1605, %v1601
        %v1866 = vpack.c.b16 %v1610, %v1606
        %v1867 = vpack.c.b16 %v1611, %v1607
        %v1868 = vpack.c.b16 %v1612, %v1608
        %v1869 = vpack.c.b16 %v1613, %v1609
        %2126 = vmatprep.subr.bf16.mxu0 %v1643
        %2127 = vmatpush1.bf16.msra.mxu0 %v1642
        %2128 = vmatprep.subr.bf16.mxu0 %v1639
        %2129 = vmatpush1.bf16.msra.mxu0 %v1638
        %2130 = vmatprep.subr.bf16.mxu0 %v1635
        %2131 = vmatpush1.bf16.msra.mxu0 %v1634
        %2132 = vmatprep.subr.bf16.mxu0 %v1631
        %2133 = vmatpush1.bf16.msra.mxu0 %v1630
        %2134 = vmatprep.subr.bf16.mxu0 %v1627
        %2135 = vmatpush1.bf16.msra.mxu0 %v1626
        %2136 = vmatprep.subr.bf16.mxu0 %v1623
        %2137 = vmatpush1.bf16.msra.mxu0 %v1622
        %2138 = vmatprep.subr.bf16.mxu0 %v1619
        %2139 = vmatpush1.bf16.msra.mxu0 %v1618
        %2140 = vmatprep.subr.bf16.mxu0 %v1615
        %2141 = vmatpush1.bf16.msra.mxu0 %v1614
        %2142 = vmatprep.subr.bf16.mxu0 %v1675
        %2143 = vmatpush2.bf16.msra.mxu0 %v1674
        %2144 = vmatprep.subr.bf16.mxu0 %v1671
        %2145 = vmatpush2.bf16.msra.mxu0 %v1670
        %2146 = vmatprep.subr.bf16.mxu0 %v1667
        %2147 = vmatpush2.bf16.msra.mxu0 %v1666
        %2148 = vmatprep.subr.bf16.mxu0 %v1663
        %2149 = vmatpush2.bf16.msra.mxu0 %v1662
        %2150 = vmatprep.subr.bf16.mxu0 %v1659
        %2151 = vmatpush2.bf16.msra.mxu0 %v1658
        %2152 = vmatprep.subr.bf16.mxu0 %v1655
        %2153 = vmatpush2.bf16.msra.mxu0 %v1654
        %2154 = vmatprep.subr.bf16.mxu0 %v1651
        %2155 = vmatpush2.bf16.msra.mxu0 %v1650
        %2156 = vmatprep.subr.bf16.mxu0 %v1647
        %2157 = vmatpush2.bf16.msra.mxu0 %v1646
        %2158 = vmatprep.mubr.bf16.mxu0 %v831
        %2159 = vmatmul.mubr.bf16.gmra.mxu0 %v830
        %v2160 = vpop.f32.mrf.mxu0
        %v2161 = vadd.f32 0.0, %v2160
        %v2162 = vpop.f32.mrf.mxu0
        %v2163 = vadd.f32 0.0, %v2162
        %v2164 = vpop.f32.mrf.mxu0
        %v2165 = vpop.f32.mrf.mxu0
        %2166 = vdwg.mxu0
        %2167 = vmatprep.subr.bf16.mxu0 %v1707
        %2168 = vmatpush1.bf16.msra.mxu0 %v1706
        %2169 = vmatprep.subr.bf16.mxu0 %v1703
        %2170 = vmatpush1.bf16.msra.mxu0 %v1702
        %2171 = vmatprep.subr.bf16.mxu0 %v1699
        %2172 = vmatpush1.bf16.msra.mxu0 %v1698
        %2173 = vmatprep.subr.bf16.mxu0 %v1695
        %2174 = vmatpush1.bf16.msra.mxu0 %v1694
        %2175 = vmatprep.subr.bf16.mxu0 %v1691
        %2176 = vmatpush1.bf16.msra.mxu0 %v1690
        %2177 = vmatprep.subr.bf16.mxu0 %v1687
        %2178 = vmatpush1.bf16.msra.mxu0 %v1686
        %2179 = vmatprep.subr.bf16.mxu0 %v1683
        %2180 = vmatpush1.bf16.msra.mxu0 %v1682
        %2181 = vmatprep.subr.bf16.mxu0 %v1679
        %2182 = vmatpush1.bf16.msra.mxu0 %v1678
        %2183 = vmatprep.subr.bf16.mxu0 %v1739
        %2184 = vmatpush2.bf16.msra.mxu0 %v1738
        %2185 = vmatprep.subr.bf16.mxu0 %v1735
        %2186 = vmatpush2.bf16.msra.mxu0 %v1734
        %2187 = vmatprep.subr.bf16.mxu0 %v1731
        %2188 = vmatpush2.bf16.msra.mxu0 %v1730
        %2189 = vmatprep.subr.bf16.mxu0 %v1727
        %2190 = vmatpush2.bf16.msra.mxu0 %v1726
        %2191 = vmatprep.subr.bf16.mxu0 %v1723
        %2192 = vmatpush2.bf16.msra.mxu0 %v1722
        %2193 = vmatprep.subr.bf16.mxu0 %v1719
        %2194 = vmatpush2.bf16.msra.mxu0 %v1718
        %2195 = vmatprep.subr.bf16.mxu0 %v1715
        %2196 = vmatpush2.bf16.msra.mxu0 %v1714
        %2197 = vmatprep.subr.bf16.mxu0 %v1711
        %2198 = vmatpush2.bf16.msra.mxu0 %v1710
        %2199 = vmatprep.mubr.bf16.mxu0 %v833
        %2200 = vmatmul.mubr.bf16.gmra.mxu0 %v832
        %v2201 = vpop.f32.mrf.mxu0
        %v2202 = vadd.f32 %v2161, %v2201
        %v2203 = vpop.f32.mrf.mxu0
        %v2204 = vadd.f32 %v2163, %v2203
        %v2205 = vpop.f32.mrf.mxu0
        %v2206 = vpop.f32.mrf.mxu0
        %2207 = vdwg.mxu0
        %2208 = vmatprep.subr.bf16.mxu0 %v1771
        %2209 = vmatpush1.bf16.msra.mxu0 %v1770
        %2210 = vmatprep.subr.bf16.mxu0 %v1767
        %2211 = vmatpush1.bf16.msra.mxu0 %v1766
        %2212 = vmatprep.subr.bf16.mxu0 %v1763
        %2213 = vmatpush1.bf16.msra.mxu0 %v1762
        %2214 = vmatprep.subr.bf16.mxu0 %v1759
        %2215 = vmatpush1.bf16.msra.mxu0 %v1758
        %2216 = vmatprep.subr.bf16.mxu0 %v1755
        %2217 = vmatpush1.bf16.msra.mxu0 %v1754
        %2218 = vmatprep.subr.bf16.mxu0 %v1751
        %2219 = vmatpush1.bf16.msra.mxu0 %v1750
        %2220 = vmatprep.subr.bf16.mxu0 %v1747
        %2221 = vmatpush1.bf16.msra.mxu0 %v1746
        %2222 = vmatprep.subr.bf16.mxu0 %v1743
        %2223 = vmatpush1.bf16.msra.mxu0 %v1742
        %2224 = vmatprep.subr.bf16.mxu0 %v1803
        %2225 = vmatpush2.bf16.msra.mxu0 %v1802
        %2226 = vmatprep.subr.bf16.mxu0 %v1799
        %2227 = vmatpush2.bf16.msra.mxu0 %v1798
        %2228 = vmatprep.subr.bf16.mxu0 %v1795
        %2229 = vmatpush2.bf16.msra.mxu0 %v1794
        %2230 = vmatprep.subr.bf16.mxu0 %v1791
        %2231 = vmatpush2.bf16.msra.mxu0 %v1790
        %2232 = vmatprep.subr.bf16.mxu0 %v1787
        %2233 = vmatpush2.bf16.msra.mxu0 %v1786
        %2234 = vmatprep.subr.bf16.mxu0 %v1783
        %2235 = vmatpush2.bf16.msra.mxu0 %v1782
        %2236 = vmatprep.subr.bf16.mxu0 %v1779
        %2237 = vmatpush2.bf16.msra.mxu0 %v1778
        %2238 = vmatprep.subr.bf16.mxu0 %v1775
        %2239 = vmatpush2.bf16.msra.mxu0 %v1774
        %2240 = vmatprep.mubr.bf16.mxu0 %v835
        %2241 = vmatmul.mubr.bf16.gmra.mxu0 %v834
        %v2242 = vpop.f32.mrf.mxu0
        %v2243 = vadd.f32 %v2202, %v2242
        %v2244 = vpop.f32.mrf.mxu0
        %v2245 = vadd.f32 %v2204, %v2244
        %v2246 = vpop.f32.mrf.mxu0
        %v2247 = vpop.f32.mrf.mxu0
        %2248 = vdwg.mxu0
        %2249 = vmatprep.subr.bf16.mxu0 %v1835
        %2250 = vmatpush1.bf16.msra.mxu0 %v1834
        %2251 = vmatprep.subr.bf16.mxu0 %v1831
        %2252 = vmatpush1.bf16.msra.mxu0 %v1830
        %2253 = vmatprep.subr.bf16.mxu0 %v1827
        %2254 = vmatpush1.bf16.msra.mxu0 %v1826
        %2255 = vmatprep.subr.bf16.mxu0 %v1823
        %2256 = vmatpush1.bf16.msra.mxu0 %v1822
        %2257 = vmatprep.subr.bf16.mxu0 %v1819
        %2258 = vmatpush1.bf16.msra.mxu0 %v1818
        %2259 = vmatprep.subr.bf16.mxu0 %v1815
        %2260 = vmatpush1.bf16.msra.mxu0 %v1814
        %2261 = vmatprep.subr.bf16.mxu0 %v1811
        %2262 = vmatpush1.bf16.msra.mxu0 %v1810
        %2263 = vmatprep.subr.bf16.mxu0 %v1807
        %2264 = vmatpush1.bf16.msra.mxu0 %v1806
        %2265 = vmatprep.subr.bf16.mxu0 %v1867
        %2266 = vmatpush2.bf16.msra.mxu0 %v1866
        %2267 = vmatprep.subr.bf16.mxu0 %v1863
        %2268 = vmatpush2.bf16.msra.mxu0 %v1862
        %2269 = vmatprep.subr.bf16.mxu0 %v1859
        %2270 = vmatpush2.bf16.msra.mxu0 %v1858
        %2271 = vmatprep.subr.bf16.mxu0 %v1855
        %2272 = vmatpush2.bf16.msra.mxu0 %v1854
        %2273 = vmatprep.subr.bf16.mxu0 %v1851
        %2274 = vmatpush2.bf16.msra.mxu0 %v1850
        %2275 = vmatprep.subr.bf16.mxu0 %v1847
        %2276 = vmatpush2.bf16.msra.mxu0 %v1846
        %2277 = vmatprep.subr.bf16.mxu0 %v1843
        %2278 = vmatpush2.bf16.msra.mxu0 %v1842
        %2279 = vmatprep.subr.bf16.mxu0 %v1839
        %2280 = vmatpush2.bf16.msra.mxu0 %v1838
        %2281 = vmatprep.mubr.bf16.mxu0 %v837
        %2282 = vmatmul.mubr.bf16.gmra.mxu0 %v836
        %v2283 = vpop.f32.mrf.mxu0
        %v2284 = vadd.f32 %v2243, %v2283
        %v2285 = vpop.f32.mrf.mxu0
        %v2286 = vadd.f32 %v2245, %v2285
        %v2287 = vpop.f32.mrf.mxu0
        %v2288 = vpop.f32.mrf.mxu0
        %2289 = vdwg.mxu0
        %2290 = vmatprep.subr.bf16.mxu0 %v1645
        %2291 = vmatpush1.bf16.msra.mxu0 %v1644
        %2292 = vmatprep.subr.bf16.mxu0 %v1641
        %2293 = vmatpush1.bf16.msra.mxu0 %v1640
        %2294 = vmatprep.subr.bf16.mxu0 %v1637
        %2295 = vmatpush1.bf16.msra.mxu0 %v1636
        %2296 = vmatprep.subr.bf16.mxu0 %v1633
        %2297 = vmatpush1.bf16.msra.mxu0 %v1632
        %2298 = vmatprep.subr.bf16.mxu0 %v1629
        %2299 = vmatpush1.bf16.msra.mxu0 %v1628
        %2300 = vmatprep.subr.bf16.mxu0 %v1625
        %2301 = vmatpush1.bf16.msra.mxu0 %v1624
        %2302 = vmatprep.subr.bf16.mxu0 %v1621
        %2303 = vmatpush1.bf16.msra.mxu0 %v1620
        %2304 = vmatprep.subr.bf16.mxu0 %v1617
        %2305 = vmatpush1.bf16.msra.mxu0 %v1616
        %2306 = vmatprep.subr.bf16.mxu0 %v1677
        %2307 = vmatpush2.bf16.msra.mxu0 %v1676
        %2308 = vmatprep.subr.bf16.mxu0 %v1673
        %2309 = vmatpush2.bf16.msra.mxu0 %v1672
        %2310 = vmatprep.subr.bf16.mxu0 %v1669
        %2311 = vmatpush2.bf16.msra.mxu0 %v1668
        %2312 = vmatprep.subr.bf16.mxu0 %v1665
        %2313 = vmatpush2.bf16.msra.mxu0 %v1664
        %2314 = vmatprep.subr.bf16.mxu0 %v1661
        %2315 = vmatpush2.bf16.msra.mxu0 %v1660
        %2316 = vmatprep.subr.bf16.mxu0 %v1657
        %2317 = vmatpush2.bf16.msra.mxu0 %v1656
        %2318 = vmatprep.subr.bf16.mxu0 %v1653
        %2319 = vmatpush2.bf16.msra.mxu0 %v1652
        %2320 = vmatprep.subr.bf16.mxu0 %v1649
        %2321 = vmatpush2.bf16.msra.mxu0 %v1648
        %2322 = vmatprep.mubr.bf16.mxu0 %v831
        %2323 = vmatmul.mubr.bf16.gmra.mxu0 %v830
        %v2324 = vpop.f32.mrf.mxu0
        %v2325 = vadd.f32 0.0, %v2324
        %v2326 = vpop.f32.mrf.mxu0
        %v2327 = vadd.f32 0.0, %v2326
        %v2328 = vpop.f32.mrf.mxu0
        %v2329 = vpop.f32.mrf.mxu0
        %2330 = vdwg.mxu0
        %2331 = vmatprep.subr.bf16.mxu0 %v1709
        %2332 = vmatpush1.bf16.msra.mxu0 %v1708
        %2333 = vmatprep.subr.bf16.mxu0 %v1705
        %2334 = vmatpush1.bf16.msra.mxu0 %v1704
        %2335 = vmatprep.subr.bf16.mxu0 %v1701
        %2336 = vmatpush1.bf16.msra.mxu0 %v1700
        %2337 = vmatprep.subr.bf16.mxu0 %v1697
        %2338 = vmatpush1.bf16.msra.mxu0 %v1696
        %2339 = vmatprep.subr.bf16.mxu0 %v1693
        %2340 = vmatpush1.bf16.msra.mxu0 %v1692
        %2341 = vmatprep.subr.bf16.mxu0 %v1689
        %2342 = vmatpush1.bf16.msra.mxu0 %v1688
        %2343 = vmatprep.subr.bf16.mxu0 %v1685
        %2344 = vmatpush1.bf16.msra.mxu0 %v1684
        %2345 = vmatprep.subr.bf16.mxu0 %v1681
        %2346 = vmatpush1.bf16.msra.mxu0 %v1680
        %2347 = vmatprep.subr.bf16.mxu0 %v1741
        %2348 = vmatpush2.bf16.msra.mxu0 %v1740
        %2349 = vmatprep.subr.bf16.mxu0 %v1737
        %2350 = vmatpush2.bf16.msra.mxu0 %v1736
        %2351 = vmatprep.subr.bf16.mxu0 %v1733
        %2352 = vmatpush2.bf16.msra.mxu0 %v1732
        %2353 = vmatprep.subr.bf16.mxu0 %v1729
        %2354 = vmatpush2.bf16.msra.mxu0 %v1728
        %2355 = vmatprep.subr.bf16.mxu0 %v1725
        %2356 = vmatpush2.bf16.msra.mxu0 %v1724
        %2357 = vmatprep.subr.bf16.mxu0 %v1721
        %2358 = vmatpush2.bf16.msra.mxu0 %v1720
        %2359 = vmatprep.subr.bf16.mxu0 %v1717
        %2360 = vmatpush2.bf16.msra.mxu0 %v1716
        %2361 = vmatprep.subr.bf16.mxu0 %v1713
        %2362 = vmatpush2.bf16.msra.mxu0 %v1712
        %2363 = vmatprep.mubr.bf16.mxu0 %v833
        %2364 = vmatmul.mubr.bf16.gmra.mxu0 %v832
        %v2365 = vpop.f32.mrf.mxu0
        %v2366 = vadd.f32 %v2325, %v2365
        %v2367 = vpop.f32.mrf.mxu0
        %v2368 = vadd.f32 %v2327, %v2367
        %v2369 = vpop.f32.mrf.mxu0
        %v2370 = vpop.f32.mrf.mxu0
        %2371 = vdwg.mxu0
        %2372 = vmatprep.subr.bf16.mxu0 %v1773
        %2373 = vmatpush1.bf16.msra.mxu0 %v1772
        %2374 = vmatprep.subr.bf16.mxu0 %v1769
        %2375 = vmatpush1.bf16.msra.mxu0 %v1768
        %2376 = vmatprep.subr.bf16.mxu0 %v1765
        %2377 = vmatpush1.bf16.msra.mxu0 %v1764
        %2378 = vmatprep.subr.bf16.mxu0 %v1761
        %2379 = vmatpush1.bf16.msra.mxu0 %v1760
        %2380 = vmatprep.subr.bf16.mxu0 %v1757
        %2381 = vmatpush1.bf16.msra.mxu0 %v1756
        %2382 = vmatprep.subr.bf16.mxu0 %v1753
        %2383 = vmatpush1.bf16.msra.mxu0 %v1752
        %2384 = vmatprep.subr.bf16.mxu0 %v1749
        %2385 = vmatpush1.bf16.msra.mxu0 %v1748
        %2386 = vmatprep.subr.bf16.mxu0 %v1745
        %2387 = vmatpush1.bf16.msra.mxu0 %v1744
        %2388 = vmatprep.subr.bf16.mxu0 %v1805
        %2389 = vmatpush2.bf16.msra.mxu0 %v1804
        %2390 = vmatprep.subr.bf16.mxu0 %v1801
        %2391 = vmatpush2.bf16.msra.mxu0 %v1800
        %2392 = vmatprep.subr.bf16.mxu0 %v1797
        %2393 = vmatpush2.bf16.msra.mxu0 %v1796
        %2394 = vmatprep.subr.bf16.mxu0 %v1793
        %2395 = vmatpush2.bf16.msra.mxu0 %v1792
        %2396 = vmatprep.subr.bf16.mxu0 %v1789
        %2397 = vmatpush2.bf16.msra.mxu0 %v1788
        %2398 = vmatprep.subr.bf16.mxu0 %v1785
        %2399 = vmatpush2.bf16.msra.mxu0 %v1784
        %2400 = vmatprep.subr.bf16.mxu0 %v1781
        %2401 = vmatpush2.bf16.msra.mxu0 %v1780
        %2402 = vmatprep.subr.bf16.mxu0 %v1777
        %2403 = vmatpush2.bf16.msra.mxu0 %v1776
        %2404 = vmatprep.mubr.bf16.mxu0 %v835
        %2405 = vmatmul.mubr.bf16.gmra.mxu0 %v834
        %v2406 = vpop.f32.mrf.mxu0
        %v2407 = vadd.f32 %v2366, %v2406
        %v2408 = vpop.f32.mrf.mxu0
        %v2409 = vadd.f32 %v2368, %v2408
        %v2410 = vpop.f32.mrf.mxu0
        %v2411 = vpop.f32.mrf.mxu0
        %2412 = vdwg.mxu0
        %2413 = vmatprep.subr.bf16.mxu0 %v1837
        %2414 = vmatpush1.bf16.msra.mxu0 %v1836
        %2415 = vmatprep.subr.bf16.mxu0 %v1833
        %2416 = vmatpush1.bf16.msra.mxu0 %v1832
        %2417 = vmatprep.subr.bf16.mxu0 %v1829
        %2418 = vmatpush1.bf16.msra.mxu0 %v1828
        %2419 = vmatprep.subr.bf16.mxu0 %v1825
        %2420 = vmatpush1.bf16.msra.mxu0 %v1824
        %2421 = vmatprep.subr.bf16.mxu0 %v1821
        %2422 = vmatpush1.bf16.msra.mxu0 %v1820
        %2423 = vmatprep.subr.bf16.mxu0 %v1817
        %2424 = vmatpush1.bf16.msra.mxu0 %v1816
        %2425 = vmatprep.subr.bf16.mxu0 %v1813
        %2426 = vmatpush1.bf16.msra.mxu0 %v1812
        %2427 = vmatprep.subr.bf16.mxu0 %v1809
        %2428 = vmatpush1.bf16.msra.mxu0 %v1808
        %2429 = vmatprep.subr.bf16.mxu0 %v1869
        %2430 = vmatpush2.bf16.msra.mxu0 %v1868
        %2431 = vmatprep.subr.bf16.mxu0 %v1865
        %2432 = vmatpush2.bf16.msra.mxu0 %v1864
        %2433 = vmatprep.subr.bf16.mxu0 %v1861
        %2434 = vmatpush2.bf16.msra.mxu0 %v1860
        %2435 = vmatprep.subr.bf16.mxu0 %v1857
        %2436 = vmatpush2.bf16.msra.mxu0 %v1856
        %2437 = vmatprep.subr.bf16.mxu0 %v1853
        %2438 = vmatpush2.bf16.msra.mxu0 %v1852
        %2439 = vmatprep.subr.bf16.mxu0 %v1849
        %2440 = vmatpush2.bf16.msra.mxu0 %v1848
        %2441 = vmatprep.subr.bf16.mxu0 %v1845
        %2442 = vmatpush2.bf16.msra.mxu0 %v1844
        %2443 = vmatprep.subr.bf16.mxu0 %v1841
        %2444 = vmatpush2.bf16.msra.mxu0 %v1840
        %2445 = vmatprep.mubr.bf16.mxu0 %v837
        %2446 = vmatmul.mubr.bf16.gmra.mxu0 %v836
        %v2447 = vpop.f32.mrf.mxu0
        %v2448 = vadd.f32 %v2407, %v2447
        %v2449 = vpop.f32.mrf.mxu0
        %v2450 = vadd.f32 %v2409, %v2449
        %v2451 = vpop.f32.mrf.mxu0
        %v2452 = vpop.f32.mrf.mxu0
        %2453 = vdwg.mxu0
        %v2454 = vld [vmem:[#allocation5] sm:$0xf]
        %v2456 = vlaneseq
        %v2457 = vshrl.u32 %v2456, 7
        %v2458 = vsub.s32 0, %v2457
        %v2459 = vrot.slane %v2454, %v2458
        %v2460 = vlaneseq
        %v2461 = vshrl.u32 %v2460, 7
        %v2462 = vsub.s32 1, %v2461
        %v2463 = vrot.slane %v2454, %v2462
        %v2464 = vlaneseq
        %v2465 = vshrl.u32 %v2464, 7
        %v2466 = vsub.s32 2, %v2465
        %v2467 = vrot.slane %v2454, %v2466
        %v2468 = vlaneseq
        %v2469 = vshrl.u32 %v2468, 7
        %v2470 = vsub.s32 3, %v2469
        %v2471 = vrot.slane %v2454, %v2470
        %v2476 = vmul.f32 %v2284, %v2459
        %v2477 = vmul.f32 %v2286, %v2463
        %v2478 = vmul.f32 %v2448, %v2467
        %v2479 = vmul.f32 %v2450, %v2471
        %v2480 = vld [vmem:[#allocation7] sm:$0xf]
        %v2482 = vlaneseq
        %v2483 = vshrl.u32 %v2482, 7
        %v2484 = vsub.s32 0, %v2483
        %v2485 = vrot.slane %v2480, %v2484
        %v2486 = vlaneseq
        %v2487 = vshrl.u32 %v2486, 7
        %v2488 = vsub.s32 1, %v2487
        %v2489 = vrot.slane %v2480, %v2488
        %v2490 = vlaneseq
        %v2491 = vshrl.u32 %v2490, 7
        %v2492 = vsub.s32 2, %v2491
        %v2493 = vrot.slane %v2480, %v2492
        %v2494 = vlaneseq
        %v2495 = vshrl.u32 %v2494, 7
        %v2496 = vsub.s32 3, %v2495
        %v2497 = vrot.slane %v2480, %v2496
        %v2502 = vadd.f32 %v2476, %v2485
        %v2503 = vadd.f32 %v2477, %v2489
        %v2504 = vadd.f32 %v2478, %v2493
        %v2505 = vadd.f32 %v2479, %v2497
        %v2506 = vmax.f32 %v2502, 0.0
        %v2507 = vmax.f32 %v2503, 0.0
        %v2508 = vmax.f32 %v2504, 0.0
        %v2509 = vmax.f32 %v2505, 0.0
        %v2510 = vpack.c.bf16 %v2506, %v2506
        %v2511 = vpack.c.bf16 %v2507, %v2507
        %v2512 = vpack.c.bf16 %v2508, %v2508
        %v2513 = vpack.c.bf16 %v2509, %v2509
        %v2514 = vld [vmem:[#allocation8] sm:$0xff]
        %v2515 = vld [vmem:[#allocation8 + $0x8] sm:$0xff]
        %v2516 = vld [vmem:[#allocation8 + $0x10] sm:$0xff]
        %v2517 = vld [vmem:[#allocation8 + $0x18] sm:$0xff]
        %v2518 = vld [vmem:[#allocation8 + $0x20] sm:$0xff]
        %v2519 = vld [vmem:[#allocation8 + $0x28] sm:$0xff]
        %v2520 = vld [vmem:[#allocation8 + $0x30] sm:$0xff]
        %v2521 = vld [vmem:[#allocation8 + $0x38] sm:$0xff]
        %v2522 = vld [vmem:[#allocation8 + $0x40] sm:$0xff]
        %v2523 = vld [vmem:[#allocation8 + $0x48] sm:$0xff]
        %v2524 = vld [vmem:[#allocation8 + $0x50] sm:$0xff]
        %v2525 = vld [vmem:[#allocation8 + $0x58] sm:$0xff]
        %v2526 = vld [vmem:[#allocation8 + $0x60] sm:$0xff]
        %v2527 = vld [vmem:[#allocation8 + $0x68] sm:$0xff]
        %v2528 = vld [vmem:[#allocation8 + $0x70] sm:$0xff]
        %v2529 = vld [vmem:[#allocation8 + $0x78] sm:$0xff]
        %v2530 = vld [vmem:[#allocation8 + $0x80] sm:$0xff]
        %v2531 = vld [vmem:[#allocation8 + $0x88] sm:$0xff]
        %v2532 = vld [vmem:[#allocation8 + $0x90] sm:$0xff]
        %v2533 = vld [vmem:[#allocation8 + $0x98] sm:$0xff]
        %v2534 = vld [vmem:[#allocation8 + $0xa0] sm:$0xff]
        %v2535 = vld [vmem:[#allocation8 + $0xa8] sm:$0xff]
        %v2536 = vld [vmem:[#allocation8 + $0xb0] sm:$0xff]
        %v2537 = vld [vmem:[#allocation8 + $0xb8] sm:$0xff]
        %v2538 = vld [vmem:[#allocation8 + $0xc0] sm:$0xff]
        %v2539 = vld [vmem:[#allocation8 + $0xc8] sm:$0xff]
        %v2540 = vld [vmem:[#allocation8 + $0xd0] sm:$0xff]
        %v2541 = vld [vmem:[#allocation8 + $0xd8] sm:$0xff]
        %v2542 = vld [vmem:[#allocation8 + $0xe0] sm:$0xff]
        %v2543 = vld [vmem:[#allocation8 + $0xe8] sm:$0xff]
        %v2544 = vld [vmem:[#allocation8 + $0xf0] sm:$0xff]
        %v2545 = vld [vmem:[#allocation8 + $0xf8] sm:$0xff]
        %v2546 = vld [vmem:[#allocation8 + $0x100] sm:$0xff]
        %v2547 = vld [vmem:[#allocation8 + $0x108] sm:$0xff]
        %v2548 = vld [vmem:[#allocation8 + $0x110] sm:$0xff]
        %v2549 = vld [vmem:[#allocation8 + $0x118] sm:$0xff]
        %v2550 = vld [vmem:[#allocation8 + $0x120] sm:$0xff]
        %v2551 = vld [vmem:[#allocation8 + $0x128] sm:$0xff]
        %v2552 = vld [vmem:[#allocation8 + $0x130] sm:$0xff]
        %v2553 = vld [vmem:[#allocation8 + $0x138] sm:$0xff]
        %v2554 = vld [vmem:[#allocation8 + $0x140] sm:$0xff]
        %v2555 = vld [vmem:[#allocation8 + $0x148] sm:$0xff]
        %v2556 = vld [vmem:[#allocation8 + $0x150] sm:$0xff]
        %v2557 = vld [vmem:[#allocation8 + $0x158] sm:$0xff]
        %v2558 = vld [vmem:[#allocation8 + $0x160] sm:$0xff]
        %v2559 = vld [vmem:[#allocation8 + $0x168] sm:$0xff]
        %v2560 = vld [vmem:[#allocation8 + $0x170] sm:$0xff]
        %v2561 = vld [vmem:[#allocation8 + $0x178] sm:$0xff]
        %v2562 = vld [vmem:[#allocation8 + $0x180] sm:$0xff]
        %v2563 = vld [vmem:[#allocation8 + $0x188] sm:$0xff]
        %v2564 = vld [vmem:[#allocation8 + $0x190] sm:$0xff]
        %v2565 = vld [vmem:[#allocation8 + $0x198] sm:$0xff]
        %v2566 = vld [vmem:[#allocation8 + $0x1a0] sm:$0xff]
        %v2567 = vld [vmem:[#allocation8 + $0x1a8] sm:$0xff]
        %v2568 = vld [vmem:[#allocation8 + $0x1b0] sm:$0xff]
        %v2569 = vld [vmem:[#allocation8 + $0x1b8] sm:$0xff]
        %v2570 = vld [vmem:[#allocation8 + $0x1c0] sm:$0xff]
        %v2571 = vld [vmem:[#allocation8 + $0x1c8] sm:$0xff]
        %v2572 = vld [vmem:[#allocation8 + $0x1d0] sm:$0xff]
        %v2573 = vld [vmem:[#allocation8 + $0x1d8] sm:$0xff]
        %v2574 = vld [vmem:[#allocation8 + $0x1e0] sm:$0xff]
        %v2575 = vld [vmem:[#allocation8 + $0x1e8] sm:$0xff]
        %v2576 = vld [vmem:[#allocation8 + $0x1f0] sm:$0xff]
        %v2577 = vld [vmem:[#allocation8 + $0x1f8] sm:$0xff]
        %v2578 = vld [vmem:[#allocation8 + $0x200] sm:$0xff]
        %v2579 = vld [vmem:[#allocation8 + $0x208] sm:$0xff]
        %v2580 = vld [vmem:[#allocation8 + $0x210] sm:$0xff]
        %v2581 = vld [vmem:[#allocation8 + $0x218] sm:$0xff]
        %v2582 = vld [vmem:[#allocation8 + $0x220] sm:$0xff]
        %v2583 = vld [vmem:[#allocation8 + $0x228] sm:$0xff]
        %v2584 = vld [vmem:[#allocation8 + $0x230] sm:$0xff]
        %v2585 = vld [vmem:[#allocation8 + $0x238] sm:$0xff]
        %v2586 = vld [vmem:[#allocation8 + $0x240] sm:$0xff]
        %v2587 = vld [vmem:[#allocation8 + $0x248] sm:$0xff]
        %v2588 = vld [vmem:[#allocation8 + $0x250] sm:$0xff]
        %v2589 = vld [vmem:[#allocation8 + $0x258] sm:$0xff]
        %v2590 = vld [vmem:[#allocation8 + $0x260] sm:$0xff]
        %v2591 = vld [vmem:[#allocation8 + $0x268] sm:$0xff]
        %v2592 = vld [vmem:[#allocation8 + $0x270] sm:$0xff]
        %v2593 = vld [vmem:[#allocation8 + $0x278] sm:$0xff]
        %v2594 = vld [vmem:[#allocation8 + $0x280] sm:$0xff]
        %v2595 = vld [vmem:[#allocation8 + $0x288] sm:$0xff]
        %v2596 = vld [vmem:[#allocation8 + $0x290] sm:$0xff]
        %v2597 = vld [vmem:[#allocation8 + $0x298] sm:$0xff]
        %v2598 = vld [vmem:[#allocation8 + $0x2a0] sm:$0xff]
        %v2599 = vld [vmem:[#allocation8 + $0x2a8] sm:$0xff]
        %v2600 = vld [vmem:[#allocation8 + $0x2b0] sm:$0xff]
        %v2601 = vld [vmem:[#allocation8 + $0x2b8] sm:$0xff]
        %v2602 = vld [vmem:[#allocation8 + $0x2c0] sm:$0xff]
        %v2603 = vld [vmem:[#allocation8 + $0x2c8] sm:$0xff]
        %v2604 = vld [vmem:[#allocation8 + $0x2d0] sm:$0xff]
        %v2605 = vld [vmem:[#allocation8 + $0x2d8] sm:$0xff]
        %v2606 = vld [vmem:[#allocation8 + $0x2e0] sm:$0xff]
        %v2607 = vld [vmem:[#allocation8 + $0x2e8] sm:$0xff]
        %v2608 = vld [vmem:[#allocation8 + $0x2f0] sm:$0xff]
        %v2609 = vld [vmem:[#allocation8 + $0x2f8] sm:$0xff]
        %v2610 = vld [vmem:[#allocation8 + $0x300] sm:$0xff]
        %v2611 = vld [vmem:[#allocation8 + $0x308] sm:$0xff]
        %v2612 = vld [vmem:[#allocation8 + $0x310] sm:$0xff]
        %v2613 = vld [vmem:[#allocation8 + $0x318] sm:$0xff]
        %v2614 = vld [vmem:[#allocation8 + $0x320] sm:$0xff]
        %v2615 = vld [vmem:[#allocation8 + $0x328] sm:$0xff]
        %v2616 = vld [vmem:[#allocation8 + $0x330] sm:$0xff]
        %v2617 = vld [vmem:[#allocation8 + $0x338] sm:$0xff]
        %v2618 = vld [vmem:[#allocation8 + $0x340] sm:$0xff]
        %v2619 = vld [vmem:[#allocation8 + $0x348] sm:$0xff]
        %v2620 = vld [vmem:[#allocation8 + $0x350] sm:$0xff]
        %v2621 = vld [vmem:[#allocation8 + $0x358] sm:$0xff]
        %v2622 = vld [vmem:[#allocation8 + $0x360] sm:$0xff]
        %v2623 = vld [vmem:[#allocation8 + $0x368] sm:$0xff]
        %v2624 = vld [vmem:[#allocation8 + $0x370] sm:$0xff]
        %v2625 = vld [vmem:[#allocation8 + $0x378] sm:$0xff]
        %v2626 = vld [vmem:[#allocation8 + $0x380] sm:$0xff]
        %v2627 = vld [vmem:[#allocation8 + $0x388] sm:$0xff]
        %v2628 = vld [vmem:[#allocation8 + $0x390] sm:$0xff]
        %v2629 = vld [vmem:[#allocation8 + $0x398] sm:$0xff]
        %v2630 = vld [vmem:[#allocation8 + $0x3a0] sm:$0xff]
        %v2631 = vld [vmem:[#allocation8 + $0x3a8] sm:$0xff]
        %v2632 = vld [vmem:[#allocation8 + $0x3b0] sm:$0xff]
        %v2633 = vld [vmem:[#allocation8 + $0x3b8] sm:$0xff]
        %v2634 = vld [vmem:[#allocation8 + $0x3c0] sm:$0xff]
        %v2635 = vld [vmem:[#allocation8 + $0x3c8] sm:$0xff]
        %v2636 = vld [vmem:[#allocation8 + $0x3d0] sm:$0xff]
        %v2637 = vld [vmem:[#allocation8 + $0x3d8] sm:$0xff]
        %v2638 = vld [vmem:[#allocation8 + $0x3e0] sm:$0xff]
        %v2639 = vld [vmem:[#allocation8 + $0x3e8] sm:$0xff]
        %v2640 = vld [vmem:[#allocation8 + $0x3f0] sm:$0xff]
        %v2641 = vld [vmem:[#allocation8 + $0x3f8] sm:$0xff]
        %v2770 = vunpack.c.l.b16 %v2514
        %v2771 = vunpack.c.h.b16 %v2514
        %v2772 = vunpack.c.l.b16 %v2515
        %v2773 = vunpack.c.h.b16 %v2515
        %v2774 = vunpack.c.l.b16 %v2516
        %v2775 = vunpack.c.h.b16 %v2516
        %v2776 = vunpack.c.l.b16 %v2517
        %v2777 = vunpack.c.h.b16 %v2517
        %v2778 = vunpack.c.l.b16 %v2518
        %v2779 = vunpack.c.h.b16 %v2518
        %v2780 = vunpack.c.l.b16 %v2519
        %v2781 = vunpack.c.h.b16 %v2519
        %v2782 = vunpack.c.l.b16 %v2520
        %v2783 = vunpack.c.h.b16 %v2520
        %v2784 = vunpack.c.l.b16 %v2521
        %v2785 = vunpack.c.h.b16 %v2521
        %v2786 = vunpack.c.l.b16 %v2522
        %v2787 = vunpack.c.h.b16 %v2522
        %v2788 = vunpack.c.l.b16 %v2523
        %v2789 = vunpack.c.h.b16 %v2523
        %v2790 = vunpack.c.l.b16 %v2524
        %v2791 = vunpack.c.h.b16 %v2524
        %v2792 = vunpack.c.l.b16 %v2525
        %v2793 = vunpack.c.h.b16 %v2525
        %v2794 = vunpack.c.l.b16 %v2526
        %v2795 = vunpack.c.h.b16 %v2526
        %v2796 = vunpack.c.l.b16 %v2527
        %v2797 = vunpack.c.h.b16 %v2527
        %v2798 = vunpack.c.l.b16 %v2528
        %v2799 = vunpack.c.h.b16 %v2528
        %v2800 = vunpack.c.l.b16 %v2529
        %v2801 = vunpack.c.h.b16 %v2529
        %v2802 = vunpack.c.l.b16 %v2530
        %v2803 = vunpack.c.h.b16 %v2530
        %v2804 = vunpack.c.l.b16 %v2531
        %v2805 = vunpack.c.h.b16 %v2531
        %v2806 = vunpack.c.l.b16 %v2532
        %v2807 = vunpack.c.h.b16 %v2532
        %v2808 = vunpack.c.l.b16 %v2533
        %v2809 = vunpack.c.h.b16 %v2533
        %v2810 = vunpack.c.l.b16 %v2534
        %v2811 = vunpack.c.h.b16 %v2534
        %v2812 = vunpack.c.l.b16 %v2535
        %v2813 = vunpack.c.h.b16 %v2535
        %v2814 = vunpack.c.l.b16 %v2536
        %v2815 = vunpack.c.h.b16 %v2536
        %v2816 = vunpack.c.l.b16 %v2537
        %v2817 = vunpack.c.h.b16 %v2537
        %v2818 = vunpack.c.l.b16 %v2538
        %v2819 = vunpack.c.h.b16 %v2538
        %v2820 = vunpack.c.l.b16 %v2539
        %v2821 = vunpack.c.h.b16 %v2539
        %v2822 = vunpack.c.l.b16 %v2540
        %v2823 = vunpack.c.h.b16 %v2540
        %v2824 = vunpack.c.l.b16 %v2541
        %v2825 = vunpack.c.h.b16 %v2541
        %v2826 = vunpack.c.l.b16 %v2542
        %v2827 = vunpack.c.h.b16 %v2542
        %v2828 = vunpack.c.l.b16 %v2543
        %v2829 = vunpack.c.h.b16 %v2543
        %v2830 = vunpack.c.l.b16 %v2544
        %v2831 = vunpack.c.h.b16 %v2544
        %v2832 = vunpack.c.l.b16 %v2545
        %v2833 = vunpack.c.h.b16 %v2545
        %v2834 = vunpack.c.l.b16 %v2546
        %v2835 = vunpack.c.h.b16 %v2546
        %v2836 = vunpack.c.l.b16 %v2547
        %v2837 = vunpack.c.h.b16 %v2547
        %v2838 = vunpack.c.l.b16 %v2548
        %v2839 = vunpack.c.h.b16 %v2548
        %v2840 = vunpack.c.l.b16 %v2549
        %v2841 = vunpack.c.h.b16 %v2549
        %v2842 = vunpack.c.l.b16 %v2550
        %v2843 = vunpack.c.h.b16 %v2550
        %v2844 = vunpack.c.l.b16 %v2551
        %v2845 = vunpack.c.h.b16 %v2551
        %v2846 = vunpack.c.l.b16 %v2552
        %v2847 = vunpack.c.h.b16 %v2552
        %v2848 = vunpack.c.l.b16 %v2553
        %v2849 = vunpack.c.h.b16 %v2553
        %v2850 = vunpack.c.l.b16 %v2554
        %v2851 = vunpack.c.h.b16 %v2554
        %v2852 = vunpack.c.l.b16 %v2555
        %v2853 = vunpack.c.h.b16 %v2555
        %v2854 = vunpack.c.l.b16 %v2556
        %v2855 = vunpack.c.h.b16 %v2556
        %v2856 = vunpack.c.l.b16 %v2557
        %v2857 = vunpack.c.h.b16 %v2557
        %v2858 = vunpack.c.l.b16 %v2558
        %v2859 = vunpack.c.h.b16 %v2558
        %v2860 = vunpack.c.l.b16 %v2559
        %v2861 = vunpack.c.h.b16 %v2559
        %v2862 = vunpack.c.l.b16 %v2560
        %v2863 = vunpack.c.h.b16 %v2560
        %v2864 = vunpack.c.l.b16 %v2561
        %v2865 = vunpack.c.h.b16 %v2561
        %v2866 = vunpack.c.l.b16 %v2562
        %v2867 = vunpack.c.h.b16 %v2562
        %v2868 = vunpack.c.l.b16 %v2563
        %v2869 = vunpack.c.h.b16 %v2563
        %v2870 = vunpack.c.l.b16 %v2564
        %v2871 = vunpack.c.h.b16 %v2564
        %v2872 = vunpack.c.l.b16 %v2565
        %v2873 = vunpack.c.h.b16 %v2565
        %v2874 = vunpack.c.l.b16 %v2566
        %v2875 = vunpack.c.h.b16 %v2566
        %v2876 = vunpack.c.l.b16 %v2567
        %v2877 = vunpack.c.h.b16 %v2567
        %v2878 = vunpack.c.l.b16 %v2568
        %v2879 = vunpack.c.h.b16 %v2568
        %v2880 = vunpack.c.l.b16 %v2569
        %v2881 = vunpack.c.h.b16 %v2569
        %v2882 = vunpack.c.l.b16 %v2570
        %v2883 = vunpack.c.h.b16 %v2570
        %v2884 = vunpack.c.l.b16 %v2571
        %v2885 = vunpack.c.h.b16 %v2571
        %v2886 = vunpack.c.l.b16 %v2572
        %v2887 = vunpack.c.h.b16 %v2572
        %v2888 = vunpack.c.l.b16 %v2573
        %v2889 = vunpack.c.h.b16 %v2573
        %v2890 = vunpack.c.l.b16 %v2574
        %v2891 = vunpack.c.h.b16 %v2574
        %v2892 = vunpack.c.l.b16 %v2575
        %v2893 = vunpack.c.h.b16 %v2575
        %v2894 = vunpack.c.l.b16 %v2576
        %v2895 = vunpack.c.h.b16 %v2576
        %v2896 = vunpack.c.l.b16 %v2577
        %v2897 = vunpack.c.h.b16 %v2577
        %v2898 = vunpack.c.l.b16 %v2578
        %v2899 = vunpack.c.h.b16 %v2578
        %v2900 = vunpack.c.l.b16 %v2579
        %v2901 = vunpack.c.h.b16 %v2579
        %v2902 = vunpack.c.l.b16 %v2580
        %v2903 = vunpack.c.h.b16 %v2580
        %v2904 = vunpack.c.l.b16 %v2581
        %v2905 = vunpack.c.h.b16 %v2581
        %v2906 = vunpack.c.l.b16 %v2582
        %v2907 = vunpack.c.h.b16 %v2582
        %v2908 = vunpack.c.l.b16 %v2583
        %v2909 = vunpack.c.h.b16 %v2583
        %v2910 = vunpack.c.l.b16 %v2584
        %v2911 = vunpack.c.h.b16 %v2584
        %v2912 = vunpack.c.l.b16 %v2585
        %v2913 = vunpack.c.h.b16 %v2585
        %v2914 = vunpack.c.l.b16 %v2586
        %v2915 = vunpack.c.h.b16 %v2586
        %v2916 = vunpack.c.l.b16 %v2587
        %v2917 = vunpack.c.h.b16 %v2587
        %v2918 = vunpack.c.l.b16 %v2588
        %v2919 = vunpack.c.h.b16 %v2588
        %v2920 = vunpack.c.l.b16 %v2589
        %v2921 = vunpack.c.h.b16 %v2589
        %v2922 = vunpack.c.l.b16 %v2590
        %v2923 = vunpack.c.h.b16 %v2590
        %v2924 = vunpack.c.l.b16 %v2591
        %v2925 = vunpack.c.h.b16 %v2591
        %v2926 = vunpack.c.l.b16 %v2592
        %v2927 = vunpack.c.h.b16 %v2592
        %v2928 = vunpack.c.l.b16 %v2593
        %v2929 = vunpack.c.h.b16 %v2593
        %v2930 = vunpack.c.l.b16 %v2594
        %v2931 = vunpack.c.h.b16 %v2594
        %v2932 = vunpack.c.l.b16 %v2595
        %v2933 = vunpack.c.h.b16 %v2595
        %v2934 = vunpack.c.l.b16 %v2596
        %v2935 = vunpack.c.h.b16 %v2596
        %v2936 = vunpack.c.l.b16 %v2597
        %v2937 = vunpack.c.h.b16 %v2597
        %v2938 = vunpack.c.l.b16 %v2598
        %v2939 = vunpack.c.h.b16 %v2598
        %v2940 = vunpack.c.l.b16 %v2599
        %v2941 = vunpack.c.h.b16 %v2599
        %v2942 = vunpack.c.l.b16 %v2600
        %v2943 = vunpack.c.h.b16 %v2600
        %v2944 = vunpack.c.l.b16 %v2601
        %v2945 = vunpack.c.h.b16 %v2601
        %v2946 = vunpack.c.l.b16 %v2602
        %v2947 = vunpack.c.h.b16 %v2602
        %v2948 = vunpack.c.l.b16 %v2603
        %v2949 = vunpack.c.h.b16 %v2603
        %v2950 = vunpack.c.l.b16 %v2604
        %v2951 = vunpack.c.h.b16 %v2604
        %v2952 = vunpack.c.l.b16 %v2605
        %v2953 = vunpack.c.h.b16 %v2605
        %v2954 = vunpack.c.l.b16 %v2606
        %v2955 = vunpack.c.h.b16 %v2606
        %v2956 = vunpack.c.l.b16 %v2607
        %v2957 = vunpack.c.h.b16 %v2607
        %v2958 = vunpack.c.l.b16 %v2608
        %v2959 = vunpack.c.h.b16 %v2608
        %v2960 = vunpack.c.l.b16 %v2609
        %v2961 = vunpack.c.h.b16 %v2609
        %v2962 = vunpack.c.l.b16 %v2610
        %v2963 = vunpack.c.h.b16 %v2610
        %v2964 = vunpack.c.l.b16 %v2611
        %v2965 = vunpack.c.h.b16 %v2611
        %v2966 = vunpack.c.l.b16 %v2612
        %v2967 = vunpack.c.h.b16 %v2612
        %v2968 = vunpack.c.l.b16 %v2613
        %v2969 = vunpack.c.h.b16 %v2613
        %v2970 = vunpack.c.l.b16 %v2614
        %v2971 = vunpack.c.h.b16 %v2614
        %v2972 = vunpack.c.l.b16 %v2615
        %v2973 = vunpack.c.h.b16 %v2615
        %v2974 = vunpack.c.l.b16 %v2616
        %v2975 = vunpack.c.h.b16 %v2616
        %v2976 = vunpack.c.l.b16 %v2617
        %v2977 = vunpack.c.h.b16 %v2617
        %v2978 = vunpack.c.l.b16 %v2618
        %v2979 = vunpack.c.h.b16 %v2618
        %v2980 = vunpack.c.l.b16 %v2619
        %v2981 = vunpack.c.h.b16 %v2619
        %v2982 = vunpack.c.l.b16 %v2620
        %v2983 = vunpack.c.h.b16 %v2620
        %v2984 = vunpack.c.l.b16 %v2621
        %v2985 = vunpack.c.h.b16 %v2621
        %v2986 = vunpack.c.l.b16 %v2622
        %v2987 = vunpack.c.h.b16 %v2622
        %v2988 = vunpack.c.l.b16 %v2623
        %v2989 = vunpack.c.h.b16 %v2623
        %v2990 = vunpack.c.l.b16 %v2624
        %v2991 = vunpack.c.h.b16 %v2624
        %v2992 = vunpack.c.l.b16 %v2625
        %v2993 = vunpack.c.h.b16 %v2625
        %v2994 = vunpack.c.l.b16 %v2626
        %v2995 = vunpack.c.h.b16 %v2626
        %v2996 = vunpack.c.l.b16 %v2627
        %v2997 = vunpack.c.h.b16 %v2627
        %v2998 = vunpack.c.l.b16 %v2628
        %v2999 = vunpack.c.h.b16 %v2628
        %v3000 = vunpack.c.l.b16 %v2629
        %v3001 = vunpack.c.h.b16 %v2629
        %v3002 = vunpack.c.l.b16 %v2630
        %v3003 = vunpack.c.h.b16 %v2630
        %v3004 = vunpack.c.l.b16 %v2631
        %v3005 = vunpack.c.h.b16 %v2631
        %v3006 = vunpack.c.l.b16 %v2632
        %v3007 = vunpack.c.h.b16 %v2632
        %v3008 = vunpack.c.l.b16 %v2633
        %v3009 = vunpack.c.h.b16 %v2633
        %v3010 = vunpack.c.l.b16 %v2634
        %v3011 = vunpack.c.h.b16 %v2634
        %v3012 = vunpack.c.l.b16 %v2635
        %v3013 = vunpack.c.h.b16 %v2635
        %v3014 = vunpack.c.l.b16 %v2636
        %v3015 = vunpack.c.h.b16 %v2636
        %v3016 = vunpack.c.l.b16 %v2637
        %v3017 = vunpack.c.h.b16 %v2637
        %v3018 = vunpack.c.l.b16 %v2638
        %v3019 = vunpack.c.h.b16 %v2638
        %v3020 = vunpack.c.l.b16 %v2639
        %v3021 = vunpack.c.h.b16 %v2639
        %v3022 = vunpack.c.l.b16 %v2640
        %v3023 = vunpack.c.h.b16 %v2640
        %v3024 = vunpack.c.l.b16 %v2641
        %v3025 = vunpack.c.h.b16 %v2641
        %v3026 = vpack.c.b16 %v2774, %v2770
        %v3027 = vpack.c.b16 %v2775, %v2771
        %v3028 = vpack.c.b16 %v2776, %v2772
        %v3029 = vpack.c.b16 %v2777, %v2773
        %v3030 = vpack.c.b16 %v2782, %v2778
        %v3031 = vpack.c.b16 %v2783, %v2779
        %v3032 = vpack.c.b16 %v2784, %v2780
        %v3033 = vpack.c.b16 %v2785, %v2781
        %v3034 = vpack.c.b16 %v2790, %v2786
        %v3035 = vpack.c.b16 %v2791, %v2787
        %v3036 = vpack.c.b16 %v2792, %v2788
        %v3037 = vpack.c.b16 %v2793, %v2789
        %v3038 = vpack.c.b16 %v2798, %v2794
        %v3039 = vpack.c.b16 %v2799, %v2795
        %v3040 = vpack.c.b16 %v2800, %v2796
        %v3041 = vpack.c.b16 %v2801, %v2797
        %v3042 = vpack.c.b16 %v2806, %v2802
        %v3043 = vpack.c.b16 %v2807, %v2803
        %v3044 = vpack.c.b16 %v2808, %v2804
        %v3045 = vpack.c.b16 %v2809, %v2805
        %v3046 = vpack.c.b16 %v2814, %v2810
        %v3047 = vpack.c.b16 %v2815, %v2811
        %v3048 = vpack.c.b16 %v2816, %v2812
        %v3049 = vpack.c.b16 %v2817, %v2813
        %v3050 = vpack.c.b16 %v2822, %v2818
        %v3051 = vpack.c.b16 %v2823, %v2819
        %v3052 = vpack.c.b16 %v2824, %v2820
        %v3053 = vpack.c.b16 %v2825, %v2821
        %v3054 = vpack.c.b16 %v2830, %v2826
        %v3055 = vpack.c.b16 %v2831, %v2827
        %v3056 = vpack.c.b16 %v2832, %v2828
        %v3057 = vpack.c.b16 %v2833, %v2829
        %v3058 = vpack.c.b16 %v2838, %v2834
        %v3059 = vpack.c.b16 %v2839, %v2835
        %v3060 = vpack.c.b16 %v2840, %v2836
        %v3061 = vpack.c.b16 %v2841, %v2837
        %v3062 = vpack.c.b16 %v2846, %v2842
        %v3063 = vpack.c.b16 %v2847, %v2843
        %v3064 = vpack.c.b16 %v2848, %v2844
        %v3065 = vpack.c.b16 %v2849, %v2845
        %v3066 = vpack.c.b16 %v2854, %v2850
        %v3067 = vpack.c.b16 %v2855, %v2851
        %v3068 = vpack.c.b16 %v2856, %v2852
        %v3069 = vpack.c.b16 %v2857, %v2853
        %v3070 = vpack.c.b16 %v2862, %v2858
        %v3071 = vpack.c.b16 %v2863, %v2859
        %v3072 = vpack.c.b16 %v2864, %v2860
        %v3073 = vpack.c.b16 %v2865, %v2861
        %v3074 = vpack.c.b16 %v2870, %v2866
        %v3075 = vpack.c.b16 %v2871, %v2867
        %v3076 = vpack.c.b16 %v2872, %v2868
        %v3077 = vpack.c.b16 %v2873, %v2869
        %v3078 = vpack.c.b16 %v2878, %v2874
        %v3079 = vpack.c.b16 %v2879, %v2875
        %v3080 = vpack.c.b16 %v2880, %v2876
        %v3081 = vpack.c.b16 %v2881, %v2877
        %v3082 = vpack.c.b16 %v2886, %v2882
        %v3083 = vpack.c.b16 %v2887, %v2883
        %v3084 = vpack.c.b16 %v2888, %v2884
        %v3085 = vpack.c.b16 %v2889, %v2885
        %v3086 = vpack.c.b16 %v2894, %v2890
        %v3087 = vpack.c.b16 %v2895, %v2891
        %v3088 = vpack.c.b16 %v2896, %v2892
        %v3089 = vpack.c.b16 %v2897, %v2893
        %v3090 = vpack.c.b16 %v2902, %v2898
        %v3091 = vpack.c.b16 %v2903, %v2899
        %v3092 = vpack.c.b16 %v2904, %v2900
        %v3093 = vpack.c.b16 %v2905, %v2901
        %v3094 = vpack.c.b16 %v2910, %v2906
        %v3095 = vpack.c.b16 %v2911, %v2907
        %v3096 = vpack.c.b16 %v2912, %v2908
        %v3097 = vpack.c.b16 %v2913, %v2909
        %v3098 = vpack.c.b16 %v2918, %v2914
        %v3099 = vpack.c.b16 %v2919, %v2915
        %v3100 = vpack.c.b16 %v2920, %v2916
        %v3101 = vpack.c.b16 %v2921, %v2917
        %v3102 = vpack.c.b16 %v2926, %v2922
        %v3103 = vpack.c.b16 %v2927, %v2923
        %v3104 = vpack.c.b16 %v2928, %v2924
        %v3105 = vpack.c.b16 %v2929, %v2925
        %v3106 = vpack.c.b16 %v2934, %v2930
        %v3107 = vpack.c.b16 %v2935, %v2931
        %v3108 = vpack.c.b16 %v2936, %v2932
        %v3109 = vpack.c.b16 %v2937, %v2933
        %v3110 = vpack.c.b16 %v2942, %v2938
        %v3111 = vpack.c.b16 %v2943, %v2939
        %v3112 = vpack.c.b16 %v2944, %v2940
        %v3113 = vpack.c.b16 %v2945, %v2941
        %v3114 = vpack.c.b16 %v2950, %v2946
        %v3115 = vpack.c.b16 %v2951, %v2947
        %v3116 = vpack.c.b16 %v2952, %v2948
        %v3117 = vpack.c.b16 %v2953, %v2949
        %v3118 = vpack.c.b16 %v2958, %v2954
        %v3119 = vpack.c.b16 %v2959, %v2955
        %v3120 = vpack.c.b16 %v2960, %v2956
        %v3121 = vpack.c.b16 %v2961, %v2957
        %v3122 = vpack.c.b16 %v2966, %v2962
        %v3123 = vpack.c.b16 %v2967, %v2963
        %v3124 = vpack.c.b16 %v2968, %v2964
        %v3125 = vpack.c.b16 %v2969, %v2965
        %v3126 = vpack.c.b16 %v2974, %v2970
        %v3127 = vpack.c.b16 %v2975, %v2971
        %v3128 = vpack.c.b16 %v2976, %v2972
        %v3129 = vpack.c.b16 %v2977, %v2973
        %v3130 = vpack.c.b16 %v2982, %v2978
        %v3131 = vpack.c.b16 %v2983, %v2979
        %v3132 = vpack.c.b16 %v2984, %v2980
        %v3133 = vpack.c.b16 %v2985, %v2981
        %v3134 = vpack.c.b16 %v2990, %v2986
        %v3135 = vpack.c.b16 %v2991, %v2987
        %v3136 = vpack.c.b16 %v2992, %v2988
        %v3137 = vpack.c.b16 %v2993, %v2989
        %v3138 = vpack.c.b16 %v2998, %v2994
        %v3139 = vpack.c.b16 %v2999, %v2995
        %v3140 = vpack.c.b16 %v3000, %v2996
        %v3141 = vpack.c.b16 %v3001, %v2997
        %v3142 = vpack.c.b16 %v3006, %v3002
        %v3143 = vpack.c.b16 %v3007, %v3003
        %v3144 = vpack.c.b16 %v3008, %v3004
        %v3145 = vpack.c.b16 %v3009, %v3005
        %v3146 = vpack.c.b16 %v3014, %v3010
        %v3147 = vpack.c.b16 %v3015, %v3011
        %v3148 = vpack.c.b16 %v3016, %v3012
        %v3149 = vpack.c.b16 %v3017, %v3013
        %v3150 = vpack.c.b16 %v3022, %v3018
        %v3151 = vpack.c.b16 %v3023, %v3019
        %v3152 = vpack.c.b16 %v3024, %v3020
        %v3153 = vpack.c.b16 %v3025, %v3021
        %3282 = vmatprep.subr.bf16.mxu0 %v3055
        %3283 = vmatpush1.bf16.msra.mxu0 %v3054
        %3284 = vmatprep.subr.bf16.mxu0 %v3051
        %3285 = vmatpush1.bf16.msra.mxu0 %v3050
        %3286 = vmatprep.subr.bf16.mxu0 %v3047
        %3287 = vmatpush1.bf16.msra.mxu0 %v3046
        %3288 = vmatprep.subr.bf16.mxu0 %v3043
        %3289 = vmatpush1.bf16.msra.mxu0 %v3042
        %3290 = vmatprep.subr.bf16.mxu0 %v3039
        %3291 = vmatpush1.bf16.msra.mxu0 %v3038
        %3292 = vmatprep.subr.bf16.mxu0 %v3035
        %3293 = vmatpush1.bf16.msra.mxu0 %v3034
        %3294 = vmatprep.subr.bf16.mxu0 %v3031
        %3295 = vmatpush1.bf16.msra.mxu0 %v3030
        %3296 = vmatprep.subr.bf16.mxu0 %v3027
        %3297 = vmatpush1.bf16.msra.mxu0 %v3026
        %3298 = vmatprep.subr.bf16.mxu0 %v3087
        %3299 = vmatpush2.bf16.msra.mxu0 %v3086
        %3300 = vmatprep.subr.bf16.mxu0 %v3083
        %3301 = vmatpush2.bf16.msra.mxu0 %v3082
        %3302 = vmatprep.subr.bf16.mxu0 %v3079
        %3303 = vmatpush2.bf16.msra.mxu0 %v3078
        %3304 = vmatprep.subr.bf16.mxu0 %v3075
        %3305 = vmatpush2.bf16.msra.mxu0 %v3074
        %3306 = vmatprep.subr.bf16.mxu0 %v3071
        %3307 = vmatpush2.bf16.msra.mxu0 %v3070
        %3308 = vmatprep.subr.bf16.mxu0 %v3067
        %3309 = vmatpush2.bf16.msra.mxu0 %v3066
        %3310 = vmatprep.subr.bf16.mxu0 %v3063
        %3311 = vmatpush2.bf16.msra.mxu0 %v3062
        %3312 = vmatprep.subr.bf16.mxu0 %v3059
        %3313 = vmatpush2.bf16.msra.mxu0 %v3058
        %3314 = vmatprep.mubr.bf16.mxu0 %v2511
        %3315 = vmatmul.mubr.bf16.gmra.mxu0 %v2510
        %v3316 = vpop.f32.mrf.mxu0
        %v3317 = vadd.f32 0.0, %v3316
        %v3318 = vpop.f32.mrf.mxu0
        %v3319 = vadd.f32 0.0, %v3318
        %v3320 = vpop.f32.mrf.mxu0
        %v3321 = vpop.f32.mrf.mxu0
        %3322 = vdwg.mxu0
        %3323 = vmatprep.subr.bf16.mxu0 %v3119
        %3324 = vmatpush1.bf16.msra.mxu0 %v3118
        %3325 = vmatprep.subr.bf16.mxu0 %v3115
        %3326 = vmatpush1.bf16.msra.mxu0 %v3114
        %3327 = vmatprep.subr.bf16.mxu0 %v3111
        %3328 = vmatpush1.bf16.msra.mxu0 %v3110
        %3329 = vmatprep.subr.bf16.mxu0 %v3107
        %3330 = vmatpush1.bf16.msra.mxu0 %v3106
        %3331 = vmatprep.subr.bf16.mxu0 %v3103
        %3332 = vmatpush1.bf16.msra.mxu0 %v3102
        %3333 = vmatprep.subr.bf16.mxu0 %v3099
        %3334 = vmatpush1.bf16.msra.mxu0 %v3098
        %3335 = vmatprep.subr.bf16.mxu0 %v3095
        %3336 = vmatpush1.bf16.msra.mxu0 %v3094
        %3337 = vmatprep.subr.bf16.mxu0 %v3091
        %3338 = vmatpush1.bf16.msra.mxu0 %v3090
        %3339 = vmatprep.subr.bf16.mxu0 %v3151
        %3340 = vmatpush2.bf16.msra.mxu0 %v3150
        %3341 = vmatprep.subr.bf16.mxu0 %v3147
        %3342 = vmatpush2.bf16.msra.mxu0 %v3146
        %3343 = vmatprep.subr.bf16.mxu0 %v3143
        %3344 = vmatpush2.bf16.msra.mxu0 %v3142
        %3345 = vmatprep.subr.bf16.mxu0 %v3139
        %3346 = vmatpush2.bf16.msra.mxu0 %v3138
        %3347 = vmatprep.subr.bf16.mxu0 %v3135
        %3348 = vmatpush2.bf16.msra.mxu0 %v3134
        %3349 = vmatprep.subr.bf16.mxu0 %v3131
        %3350 = vmatpush2.bf16.msra.mxu0 %v3130
        %3351 = vmatprep.subr.bf16.mxu0 %v3127
        %3352 = vmatpush2.bf16.msra.mxu0 %v3126
        %3353 = vmatprep.subr.bf16.mxu0 %v3123
        %3354 = vmatpush2.bf16.msra.mxu0 %v3122
        %3355 = vmatprep.mubr.bf16.mxu0 %v2513
        %3356 = vmatmul.mubr.bf16.gmra.mxu0 %v2512
        %v3357 = vpop.f32.mrf.mxu0
        %v3358 = vadd.f32 %v3317, %v3357
        %v3359 = vpop.f32.mrf.mxu0
        %v3360 = vadd.f32 %v3319, %v3359
        %v3361 = vpop.f32.mrf.mxu0
        %v3362 = vpop.f32.mrf.mxu0
        %3363 = vdwg.mxu0
        %3364 = vmatprep.subr.bf16.mxu0 %v3057
        %3365 = vmatpush1.bf16.msra.mxu0 %v3056
        %3366 = vmatprep.subr.bf16.mxu0 %v3053
        %3367 = vmatpush1.bf16.msra.mxu0 %v3052
        %3368 = vmatprep.subr.bf16.mxu0 %v3049
        %3369 = vmatpush1.bf16.msra.mxu0 %v3048
        %3370 = vmatprep.subr.bf16.mxu0 %v3045
        %3371 = vmatpush1.bf16.msra.mxu0 %v3044
        %3372 = vmatprep.subr.bf16.mxu0 %v3041
        %3373 = vmatpush1.bf16.msra.mxu0 %v3040
        %3374 = vmatprep.subr.bf16.mxu0 %v3037
        %3375 = vmatpush1.bf16.msra.mxu0 %v3036
        %3376 = vmatprep.subr.bf16.mxu0 %v3033
        %3377 = vmatpush1.bf16.msra.mxu0 %v3032
        %3378 = vmatprep.subr.bf16.mxu0 %v3029
        %3379 = vmatpush1.bf16.msra.mxu0 %v3028
        %3380 = vmatprep.subr.bf16.mxu0 %v3089
        %3381 = vmatpush2.bf16.msra.mxu0 %v3088
        %3382 = vmatprep.subr.bf16.mxu0 %v3085
        %3383 = vmatpush2.bf16.msra.mxu0 %v3084
        %3384 = vmatprep.subr.bf16.mxu0 %v3081
        %3385 = vmatpush2.bf16.msra.mxu0 %v3080
        %3386 = vmatprep.subr.bf16.mxu0 %v3077
        %3387 = vmatpush2.bf16.msra.mxu0 %v3076
        %3388 = vmatprep.subr.bf16.mxu0 %v3073
        %3389 = vmatpush2.bf16.msra.mxu0 %v3072
        %3390 = vmatprep.subr.bf16.mxu0 %v3069
        %3391 = vmatpush2.bf16.msra.mxu0 %v3068
        %3392 = vmatprep.subr.bf16.mxu0 %v3065
        %3393 = vmatpush2.bf16.msra.mxu0 %v3064
        %3394 = vmatprep.subr.bf16.mxu0 %v3061
        %3395 = vmatpush2.bf16.msra.mxu0 %v3060
        %3396 = vmatprep.mubr.bf16.mxu0 %v2511
        %3397 = vmatmul.mubr.bf16.gmra.mxu0 %v2510
        %v3398 = vpop.f32.mrf.mxu0
        %v3399 = vadd.f32 0.0, %v3398
        %v3400 = vpop.f32.mrf.mxu0
        %v3401 = vadd.f32 0.0, %v3400
        %v3402 = vpop.f32.mrf.mxu0
        %v3403 = vpop.f32.mrf.mxu0
        %3404 = vdwg.mxu0
        %3405 = vmatprep.subr.bf16.mxu0 %v3121
        %3406 = vmatpush1.bf16.msra.mxu0 %v3120
        %3407 = vmatprep.subr.bf16.mxu0 %v3117
        %3408 = vmatpush1.bf16.msra.mxu0 %v3116
        %3409 = vmatprep.subr.bf16.mxu0 %v3113
        %3410 = vmatpush1.bf16.msra.mxu0 %v3112
        %3411 = vmatprep.subr.bf16.mxu0 %v3109
        %3412 = vmatpush1.bf16.msra.mxu0 %v3108
        %3413 = vmatprep.subr.bf16.mxu0 %v3105
        %3414 = vmatpush1.bf16.msra.mxu0 %v3104
        %3415 = vmatprep.subr.bf16.mxu0 %v3101
        %3416 = vmatpush1.bf16.msra.mxu0 %v3100
        %3417 = vmatprep.subr.bf16.mxu0 %v3097
        %3418 = vmatpush1.bf16.msra.mxu0 %v3096
        %3419 = vmatprep.subr.bf16.mxu0 %v3093
        %3420 = vmatpush1.bf16.msra.mxu0 %v3092
        %3421 = vmatprep.subr.bf16.mxu0 %v3153
        %3422 = vmatpush2.bf16.msra.mxu0 %v3152
        %3423 = vmatprep.subr.bf16.mxu0 %v3149
        %3424 = vmatpush2.bf16.msra.mxu0 %v3148
        %3425 = vmatprep.subr.bf16.mxu0 %v3145
        %3426 = vmatpush2.bf16.msra.mxu0 %v3144
        %3427 = vmatprep.subr.bf16.mxu0 %v3141
        %3428 = vmatpush2.bf16.msra.mxu0 %v3140
        %3429 = vmatprep.subr.bf16.mxu0 %v3137
        %3430 = vmatpush2.bf16.msra.mxu0 %v3136
        %3431 = vmatprep.subr.bf16.mxu0 %v3133
        %3432 = vmatpush2.bf16.msra.mxu0 %v3132
        %3433 = vmatprep.subr.bf16.mxu0 %v3129
        %3434 = vmatpush2.bf16.msra.mxu0 %v3128
        %3435 = vmatprep.subr.bf16.mxu0 %v3125
        %3436 = vmatpush2.bf16.msra.mxu0 %v3124
        %3437 = vmatprep.mubr.bf16.mxu0 %v2513
        %3438 = vmatmul.mubr.bf16.gmra.mxu0 %v2512
        %v3439 = vpop.f32.mrf.mxu0
        %v3440 = vadd.f32 %v3399, %v3439
        %v3441 = vpop.f32.mrf.mxu0
        %v3442 = vadd.f32 %v3401, %v3441
        %v3443 = vpop.f32.mrf.mxu0
        %v3444 = vpop.f32.mrf.mxu0
        %3445 = vdwg.mxu0
        %v3446 = vld [vmem:[#allocation10] sm:$0xf]
        %v3448 = vlaneseq
        %v3449 = vshrl.u32 %v3448, 7
        %v3450 = vsub.s32 0, %v3449
        %v3451 = vrot.slane %v3446, %v3450
        %v3452 = vlaneseq
        %v3453 = vshrl.u32 %v3452, 7
        %v3454 = vsub.s32 1, %v3453
        %v3455 = vrot.slane %v3446, %v3454
        %v3456 = vlaneseq
        %v3457 = vshrl.u32 %v3456, 7
        %v3458 = vsub.s32 2, %v3457
        %v3459 = vrot.slane %v3446, %v3458
        %v3460 = vlaneseq
        %v3461 = vshrl.u32 %v3460, 7
        %v3462 = vsub.s32 3, %v3461
        %v3463 = vrot.slane %v3446, %v3462
        %v3468 = vmul.f32 %v3358, %v3451
        %v3469 = vmul.f32 %v3360, %v3455
        %v3470 = vmul.f32 %v3440, %v3459
        %v3471 = vmul.f32 %v3442, %v3463
        %v3472 = vld [vmem:[#allocation11] sm:$0xf]
        %v3474 = vlaneseq
        %v3475 = vshrl.u32 %v3474, 7
        %v3476 = vsub.s32 0, %v3475
        %v3477 = vrot.slane %v3472, %v3476
        %v3478 = vlaneseq
        %v3479 = vshrl.u32 %v3478, 7
        %v3480 = vsub.s32 1, %v3479
        %v3481 = vrot.slane %v3472, %v3480
        %v3482 = vlaneseq
        %v3483 = vshrl.u32 %v3482, 7
        %v3484 = vsub.s32 2, %v3483
        %v3485 = vrot.slane %v3472, %v3484
        %v3486 = vlaneseq
        %v3487 = vshrl.u32 %v3486, 7
        %v3488 = vsub.s32 3, %v3487
        %v3489 = vrot.slane %v3472, %v3488
        %v3494 = vadd.f32 %v3468, %v3477
        %v3495 = vadd.f32 %v3469, %v3481
        %v3496 = vadd.f32 %v3470, %v3485
        %v3497 = vadd.f32 %v3471, %v3489
        %v3498 = vmax.f32 %v3494, 0.0
        %v3499 = vmax.f32 %v3495, 0.0
        %v3500 = vmax.f32 %v3496, 0.0
        %v3501 = vmax.f32 %v3497, 0.0
        %v3502 = vpack.c.bf16 %v3498, %v3498
        %v3503 = vpack.c.bf16 %v3499, %v3499
        %v3504 = vpack.c.bf16 %v3500, %v3500
        %v3505 = vpack.c.bf16 %v3501, %v3501
        %v3506 = vld [vmem:[#allocation13] sm:$0xff]
        %v3507 = vld [vmem:[#allocation13 + $0x8] sm:$0xff]
        %v3508 = vld [vmem:[#allocation13 + $0x10] sm:$0xff]
        %v3509 = vld [vmem:[#allocation13 + $0x18] sm:$0xff]
        %v3510 = vld [vmem:[#allocation13 + $0x20] sm:$0xf]
        %v3511 = vld [vmem:[#allocation13 + $0x24] sm:$0xff]
        %v3512 = vld [vmem:[#allocation13 + $0x2c] sm:$0xff]
        %v3513 = vld [vmem:[#allocation13 + $0x34] sm:$0xff]
        %v3514 = vld [vmem:[#allocation13 + $0x3c] sm:$0xff]
        %v3515 = vld [vmem:[#allocation13 + $0x44] sm:$0xf]
        %v3516 = vld [vmem:[#allocation13 + $0x48] sm:$0xff]
        %v3517 = vld [vmem:[#allocation13 + $0x50] sm:$0xff]
        %v3518 = vld [vmem:[#allocation13 + $0x58] sm:$0xff]
        %v3519 = vld [vmem:[#allocation13 + $0x60] sm:$0xff]
        %v3520 = vld [vmem:[#allocation13 + $0x68] sm:$0xf]
        %v3521 = vld [vmem:[#allocation13 + $0x6c] sm:$0xff]
        %v3522 = vld [vmem:[#allocation13 + $0x74] sm:$0xff]
        %v3523 = vld [vmem:[#allocation13 + $0x7c] sm:$0xff]
        %v3524 = vld [vmem:[#allocation13 + $0x84] sm:$0xff]
        %v3525 = vld [vmem:[#allocation13 + $0x8c] sm:$0xf]
        %v3526 = vld [vmem:[#allocation13 + $0x90] sm:$0xff]
        %v3527 = vld [vmem:[#allocation13 + $0x98] sm:$0xff]
        %v3528 = vld [vmem:[#allocation13 + $0xa0] sm:$0xff]
        %v3529 = vld [vmem:[#allocation13 + $0xa8] sm:$0xff]
        %v3530 = vld [vmem:[#allocation13 + $0xb0] sm:$0xf]
        %v3531 = vld [vmem:[#allocation13 + $0xb4] sm:$0xff]
        %v3532 = vld [vmem:[#allocation13 + $0xbc] sm:$0xff]
        %v3533 = vld [vmem:[#allocation13 + $0xc4] sm:$0xff]
        %v3534 = vld [vmem:[#allocation13 + $0xcc] sm:$0xff]
        %v3535 = vld [vmem:[#allocation13 + $0xd4] sm:$0xf]
        %v3536 = vld [vmem:[#allocation13 + $0xd8] sm:$0xff]
        %v3537 = vld [vmem:[#allocation13 + $0xe0] sm:$0xff]
        %v3538 = vld [vmem:[#allocation13 + $0xe8] sm:$0xff]
        %v3539 = vld [vmem:[#allocation13 + $0xf0] sm:$0xff]
        %v3540 = vld [vmem:[#allocation13 + $0xf8] sm:$0xf]
        %v3541 = vld [vmem:[#allocation13 + $0xfc] sm:$0xff]
        %v3542 = vld [vmem:[#allocation13 + $0x104] sm:$0xff]
        %v3543 = vld [vmem:[#allocation13 + $0x10c] sm:$0xff]
        %v3544 = vld [vmem:[#allocation13 + $0x114] sm:$0xff]
        %v3545 = vld [vmem:[#allocation13 + $0x11c] sm:$0xf]
        %v3546 = vld [vmem:[#allocation13 + $0x120] sm:$0xff]
        %v3547 = vld [vmem:[#allocation13 + $0x128] sm:$0xff]
        %v3548 = vld [vmem:[#allocation13 + $0x130] sm:$0xff]
        %v3549 = vld [vmem:[#allocation13 + $0x138] sm:$0xff]
        %v3550 = vld [vmem:[#allocation13 + $0x140] sm:$0xf]
        %v3551 = vld [vmem:[#allocation13 + $0x144] sm:$0xff]
        %v3552 = vld [vmem:[#allocation13 + $0x14c] sm:$0xff]
        %v3553 = vld [vmem:[#allocation13 + $0x154] sm:$0xff]
        %v3554 = vld [vmem:[#allocation13 + $0x15c] sm:$0xff]
        %v3555 = vld [vmem:[#allocation13 + $0x164] sm:$0xf]
        %v3556 = vld [vmem:[#allocation13 + $0x168] sm:$0xff]
        %v3557 = vld [vmem:[#allocation13 + $0x170] sm:$0xff]
        %v3558 = vld [vmem:[#allocation13 + $0x178] sm:$0xff]
        %v3559 = vld [vmem:[#allocation13 + $0x180] sm:$0xff]
        %v3560 = vld [vmem:[#allocation13 + $0x188] sm:$0xf]
        %v3561 = vld [vmem:[#allocation13 + $0x18c] sm:$0xff]
        %v3562 = vld [vmem:[#allocation13 + $0x194] sm:$0xff]
        %v3563 = vld [vmem:[#allocation13 + $0x19c] sm:$0xff]
        %v3564 = vld [vmem:[#allocation13 + $0x1a4] sm:$0xff]
        %v3565 = vld [vmem:[#allocation13 + $0x1ac] sm:$0xf]
        %v3566 = vld [vmem:[#allocation13 + $0x1b0] sm:$0xff]
        %v3567 = vld [vmem:[#allocation13 + $0x1b8] sm:$0xff]
        %v3568 = vld [vmem:[#allocation13 + $0x1c0] sm:$0xff]
        %v3569 = vld [vmem:[#allocation13 + $0x1c8] sm:$0xff]
        %v3570 = vld [vmem:[#allocation13 + $0x1d0] sm:$0xf]
        %v3571 = vld [vmem:[#allocation13 + $0x1d4] sm:$0xff]
        %v3572 = vld [vmem:[#allocation13 + $0x1dc] sm:$0xff]
        %v3573 = vld [vmem:[#allocation13 + $0x1e4] sm:$0xff]
        %v3574 = vld [vmem:[#allocation13 + $0x1ec] sm:$0xff]
        %v3575 = vld [vmem:[#allocation13 + $0x1f4] sm:$0xf]
        %v3576 = vld [vmem:[#allocation13 + $0x1f8] sm:$0xff]
        %v3577 = vld [vmem:[#allocation13 + $0x200] sm:$0xff]
        %v3578 = vld [vmem:[#allocation13 + $0x208] sm:$0xff]
        %v3579 = vld [vmem:[#allocation13 + $0x210] sm:$0xff]
        %v3580 = vld [vmem:[#allocation13 + $0x218] sm:$0xf]
        %v3581 = vld [vmem:[#allocation13 + $0x21c] sm:$0xff]
        %v3582 = vld [vmem:[#allocation13 + $0x224] sm:$0xff]
        %v3583 = vld [vmem:[#allocation13 + $0x22c] sm:$0xff]
        %v3584 = vld [vmem:[#allocation13 + $0x234] sm:$0xff]
        %v3585 = vld [vmem:[#allocation13 + $0x23c] sm:$0xf]
        %v3586 = vld [vmem:[#allocation13 + $0x240] sm:$0xff]
        %v3587 = vld [vmem:[#allocation13 + $0x248] sm:$0xff]
        %v3588 = vld [vmem:[#allocation13 + $0x250] sm:$0xff]
        %v3589 = vld [vmem:[#allocation13 + $0x258] sm:$0xff]
        %v3590 = vld [vmem:[#allocation13 + $0x260] sm:$0xf]
        %v3591 = vld [vmem:[#allocation13 + $0x264] sm:$0xff]
        %v3592 = vld [vmem:[#allocation13 + $0x26c] sm:$0xff]
        %v3593 = vld [vmem:[#allocation13 + $0x274] sm:$0xff]
        %v3594 = vld [vmem:[#allocation13 + $0x27c] sm:$0xff]
        %v3595 = vld [vmem:[#allocation13 + $0x284] sm:$0xf]
        %v3596 = vld [vmem:[#allocation13 + $0x288] sm:$0xff]
        %v3597 = vld [vmem:[#allocation13 + $0x290] sm:$0xff]
        %v3598 = vld [vmem:[#allocation13 + $0x298] sm:$0xff]
        %v3599 = vld [vmem:[#allocation13 + $0x2a0] sm:$0xff]
        %v3600 = vld [vmem:[#allocation13 + $0x2a8] sm:$0xf]
        %v3601 = vld [vmem:[#allocation13 + $0x2ac] sm:$0xff]
        %v3602 = vld [vmem:[#allocation13 + $0x2b4] sm:$0xff]
        %v3603 = vld [vmem:[#allocation13 + $0x2bc] sm:$0xff]
        %v3604 = vld [vmem:[#allocation13 + $0x2c4] sm:$0xff]
        %v3605 = vld [vmem:[#allocation13 + $0x2cc] sm:$0xf]
        %v3606 = vld [vmem:[#allocation13 + $0x2d0] sm:$0xff]
        %v3607 = vld [vmem:[#allocation13 + $0x2d8] sm:$0xff]
        %v3608 = vld [vmem:[#allocation13 + $0x2e0] sm:$0xff]
        %v3609 = vld [vmem:[#allocation13 + $0x2e8] sm:$0xff]
        %v3610 = vld [vmem:[#allocation13 + $0x2f0] sm:$0xf]
        %v3611 = vld [vmem:[#allocation13 + $0x2f4] sm:$0xff]
        %v3612 = vld [vmem:[#allocation13 + $0x2fc] sm:$0xff]
        %v3613 = vld [vmem:[#allocation13 + $0x304] sm:$0xff]
        %v3614 = vld [vmem:[#allocation13 + $0x30c] sm:$0xff]
        %v3615 = vld [vmem:[#allocation13 + $0x314] sm:$0xf]
        %v3616 = vld [vmem:[#allocation13 + $0x318] sm:$0xff]
        %v3617 = vld [vmem:[#allocation13 + $0x320] sm:$0xff]
        %v3618 = vld [vmem:[#allocation13 + $0x328] sm:$0xff]
        %v3619 = vld [vmem:[#allocation13 + $0x330] sm:$0xff]
        %v3620 = vld [vmem:[#allocation13 + $0x338] sm:$0xf]
        %v3621 = vld [vmem:[#allocation13 + $0x33c] sm:$0xff]
        %v3622 = vld [vmem:[#allocation13 + $0x344] sm:$0xff]
        %v3623 = vld [vmem:[#allocation13 + $0x34c] sm:$0xff]
        %v3624 = vld [vmem:[#allocation13 + $0x354] sm:$0xff]
        %v3625 = vld [vmem:[#allocation13 + $0x35c] sm:$0xf]
        %v3626 = vld [vmem:[#allocation13 + $0x360] sm:$0xff]
        %v3627 = vld [vmem:[#allocation13 + $0x368] sm:$0xff]
        %v3628 = vld [vmem:[#allocation13 + $0x370] sm:$0xff]
        %v3629 = vld [vmem:[#allocation13 + $0x378] sm:$0xff]
        %v3630 = vld [vmem:[#allocation13 + $0x380] sm:$0xf]
        %v3631 = vld [vmem:[#allocation13 + $0x384] sm:$0xff]
        %v3632 = vld [vmem:[#allocation13 + $0x38c] sm:$0xff]
        %v3633 = vld [vmem:[#allocation13 + $0x394] sm:$0xff]
        %v3634 = vld [vmem:[#allocation13 + $0x39c] sm:$0xff]
        %v3635 = vld [vmem:[#allocation13 + $0x3a4] sm:$0xf]
        %v3636 = vld [vmem:[#allocation13 + $0x3a8] sm:$0xff]
        %v3637 = vld [vmem:[#allocation13 + $0x3b0] sm:$0xff]
        %v3638 = vld [vmem:[#allocation13 + $0x3b8] sm:$0xff]
        %v3639 = vld [vmem:[#allocation13 + $0x3c0] sm:$0xff]
        %v3640 = vld [vmem:[#allocation13 + $0x3c8] sm:$0xf]
        %v3641 = vld [vmem:[#allocation13 + $0x3cc] sm:$0xff]
        %v3642 = vld [vmem:[#allocation13 + $0x3d4] sm:$0xff]
        %v3643 = vld [vmem:[#allocation13 + $0x3dc] sm:$0xff]
        %v3644 = vld [vmem:[#allocation13 + $0x3e4] sm:$0xff]
        %v3645 = vld [vmem:[#allocation13 + $0x3ec] sm:$0xf]
        %v3646 = vld [vmem:[#allocation13 + $0x3f0] sm:$0xff]
        %v3647 = vld [vmem:[#allocation13 + $0x3f8] sm:$0xff]
        %v3648 = vld [vmem:[#allocation13 + $0x400] sm:$0xff]
        %v3649 = vld [vmem:[#allocation13 + $0x408] sm:$0xff]
        %v3650 = vld [vmem:[#allocation13 + $0x410] sm:$0xf]
        %v3651 = vld [vmem:[#allocation13 + $0x414] sm:$0xff]
        %v3652 = vld [vmem:[#allocation13 + $0x41c] sm:$0xff]
        %v3653 = vld [vmem:[#allocation13 + $0x424] sm:$0xff]
        %v3654 = vld [vmem:[#allocation13 + $0x42c] sm:$0xff]
        %v3655 = vld [vmem:[#allocation13 + $0x434] sm:$0xf]
        %v3656 = vld [vmem:[#allocation13 + $0x438] sm:$0xff]
        %v3657 = vld [vmem:[#allocation13 + $0x440] sm:$0xff]
        %v3658 = vld [vmem:[#allocation13 + $0x448] sm:$0xff]
        %v3659 = vld [vmem:[#allocation13 + $0x450] sm:$0xff]
        %v3660 = vld [vmem:[#allocation13 + $0x458] sm:$0xf]
        %v3661 = vld [vmem:[#allocation13 + $0x45c] sm:$0xff]
        %v3662 = vld [vmem:[#allocation13 + $0x464] sm:$0xff]
        %v3663 = vld [vmem:[#allocation13 + $0x46c] sm:$0xff]
        %v3664 = vld [vmem:[#allocation13 + $0x474] sm:$0xff]
        %v3665 = vld [vmem:[#allocation13 + $0x47c] sm:$0xf]
        %v3666 = vld [vmem:[#allocation13 + $0x480] sm:$0xff]
        %v3667 = vld [vmem:[#allocation13 + $0x488] sm:$0xff]
        %v3668 = vld [vmem:[#allocation13 + $0x490] sm:$0xff]
        %v3669 = vld [vmem:[#allocation13 + $0x498] sm:$0xff]
        %v3670 = vld [vmem:[#allocation13 + $0x4a0] sm:$0xf]
        %v3671 = vld [vmem:[#allocation13 + $0x4a4] sm:$0xff]
        %v3672 = vld [vmem:[#allocation13 + $0x4ac] sm:$0xff]
        %v3673 = vld [vmem:[#allocation13 + $0x4b4] sm:$0xff]
        %v3674 = vld [vmem:[#allocation13 + $0x4bc] sm:$0xff]
        %v3675 = vld [vmem:[#allocation13 + $0x4c4] sm:$0xf]
        %v3676 = vld [vmem:[#allocation13 + $0x4c8] sm:$0xff]
        %v3677 = vld [vmem:[#allocation13 + $0x4d0] sm:$0xff]
        %v3678 = vld [vmem:[#allocation13 + $0x4d8] sm:$0xff]
        %v3679 = vld [vmem:[#allocation13 + $0x4e0] sm:$0xff]
        %v3680 = vld [vmem:[#allocation13 + $0x4e8] sm:$0xf]
        %v3681 = vld [vmem:[#allocation13 + $0x4ec] sm:$0xff]
        %v3682 = vld [vmem:[#allocation13 + $0x4f4] sm:$0xff]
        %v3683 = vld [vmem:[#allocation13 + $0x4fc] sm:$0xff]
        %v3684 = vld [vmem:[#allocation13 + $0x504] sm:$0xff]
        %v3685 = vld [vmem:[#allocation13 + $0x50c] sm:$0xf]
        %v3686 = vld [vmem:[#allocation13 + $0x510] sm:$0xff]
        %v3687 = vld [vmem:[#allocation13 + $0x518] sm:$0xff]
        %v3688 = vld [vmem:[#allocation13 + $0x520] sm:$0xff]
        %v3689 = vld [vmem:[#allocation13 + $0x528] sm:$0xff]
        %v3690 = vld [vmem:[#allocation13 + $0x530] sm:$0xf]
        %v3691 = vld [vmem:[#allocation13 + $0x534] sm:$0xff]
        %v3692 = vld [vmem:[#allocation13 + $0x53c] sm:$0xff]
        %v3693 = vld [vmem:[#allocation13 + $0x544] sm:$0xff]
        %v3694 = vld [vmem:[#allocation13 + $0x54c] sm:$0xff]
        %v3695 = vld [vmem:[#allocation13 + $0x554] sm:$0xf]
        %v3696 = vld [vmem:[#allocation13 + $0x558] sm:$0xff]
        %v3697 = vld [vmem:[#allocation13 + $0x560] sm:$0xff]
        %v3698 = vld [vmem:[#allocation13 + $0x568] sm:$0xff]
        %v3699 = vld [vmem:[#allocation13 + $0x570] sm:$0xff]
        %v3700 = vld [vmem:[#allocation13 + $0x578] sm:$0xf]
        %v3701 = vld [vmem:[#allocation13 + $0x57c] sm:$0xff]
        %v3702 = vld [vmem:[#allocation13 + $0x584] sm:$0xff]
        %v3703 = vld [vmem:[#allocation13 + $0x58c] sm:$0xff]
        %v3704 = vld [vmem:[#allocation13 + $0x594] sm:$0xff]
        %v3705 = vld [vmem:[#allocation13 + $0x59c] sm:$0xf]
        %v3706 = vld [vmem:[#allocation13 + $0x5a0] sm:$0xff]
        %v3707 = vld [vmem:[#allocation13 + $0x5a8] sm:$0xff]
        %v3708 = vld [vmem:[#allocation13 + $0x5b0] sm:$0xff]
        %v3709 = vld [vmem:[#allocation13 + $0x5b8] sm:$0xff]
        %v3710 = vld [vmem:[#allocation13 + $0x5c0] sm:$0xf]
        %v3711 = vld [vmem:[#allocation13 + $0x5c4] sm:$0xff]
        %v3712 = vld [vmem:[#allocation13 + $0x5cc] sm:$0xff]
        %v3713 = vld [vmem:[#allocation13 + $0x5d4] sm:$0xff]
        %v3714 = vld [vmem:[#allocation13 + $0x5dc] sm:$0xff]
        %v3715 = vld [vmem:[#allocation13 + $0x5e4] sm:$0xf]
        %v3716 = vld [vmem:[#allocation13 + $0x5e8] sm:$0xff]
        %v3717 = vld [vmem:[#allocation13 + $0x5f0] sm:$0xff]
        %v3718 = vld [vmem:[#allocation13 + $0x5f8] sm:$0xff]
        %v3719 = vld [vmem:[#allocation13 + $0x600] sm:$0xff]
        %v3720 = vld [vmem:[#allocation13 + $0x608] sm:$0xf]
        %v3721 = vld [vmem:[#allocation13 + $0x60c] sm:$0xff]
        %v3722 = vld [vmem:[#allocation13 + $0x614] sm:$0xff]
        %v3723 = vld [vmem:[#allocation13 + $0x61c] sm:$0xff]
        %v3724 = vld [vmem:[#allocation13 + $0x624] sm:$0xff]
        %v3725 = vld [vmem:[#allocation13 + $0x62c] sm:$0xf]
        %v3726 = vld [vmem:[#allocation13 + $0x630] sm:$0xff]
        %v3727 = vld [vmem:[#allocation13 + $0x638] sm:$0xff]
        %v3728 = vld [vmem:[#allocation13 + $0x640] sm:$0xff]
        %v3729 = vld [vmem:[#allocation13 + $0x648] sm:$0xff]
        %v3730 = vld [vmem:[#allocation13 + $0x650] sm:$0xf]
        %v3731 = vld [vmem:[#allocation13 + $0x654] sm:$0xff]
        %v3732 = vld [vmem:[#allocation13 + $0x65c] sm:$0xff]
        %v3733 = vld [vmem:[#allocation13 + $0x664] sm:$0xff]
        %v3734 = vld [vmem:[#allocation13 + $0x66c] sm:$0xff]
        %v3735 = vld [vmem:[#allocation13 + $0x674] sm:$0xf]
        %v3736 = vld [vmem:[#allocation13 + $0x678] sm:$0xff]
        %v3737 = vld [vmem:[#allocation13 + $0x680] sm:$0xff]
        %v3738 = vld [vmem:[#allocation13 + $0x688] sm:$0xff]
        %v3739 = vld [vmem:[#allocation13 + $0x690] sm:$0xff]
        %v3740 = vld [vmem:[#allocation13 + $0x698] sm:$0xf]
        %v3741 = vld [vmem:[#allocation13 + $0x69c] sm:$0xff]
        %v3742 = vld [vmem:[#allocation13 + $0x6a4] sm:$0xff]
        %v3743 = vld [vmem:[#allocation13 + $0x6ac] sm:$0xff]
        %v3744 = vld [vmem:[#allocation13 + $0x6b4] sm:$0xff]
        %v3745 = vld [vmem:[#allocation13 + $0x6bc] sm:$0xf]
        %v3746 = vld [vmem:[#allocation13 + $0x6c0] sm:$0xff]
        %v3747 = vld [vmem:[#allocation13 + $0x6c8] sm:$0xff]
        %v3748 = vld [vmem:[#allocation13 + $0x6d0] sm:$0xff]
        %v3749 = vld [vmem:[#allocation13 + $0x6d8] sm:$0xff]
        %v3750 = vld [vmem:[#allocation13 + $0x6e0] sm:$0xf]
        %v3751 = vld [vmem:[#allocation13 + $0x6e4] sm:$0xff]
        %v3752 = vld [vmem:[#allocation13 + $0x6ec] sm:$0xff]
        %v3753 = vld [vmem:[#allocation13 + $0x6f4] sm:$0xff]
        %v3754 = vld [vmem:[#allocation13 + $0x6fc] sm:$0xff]
        %v3755 = vld [vmem:[#allocation13 + $0x704] sm:$0xf]
        %v3756 = vld [vmem:[#allocation13 + $0x708] sm:$0xff]
        %v3757 = vld [vmem:[#allocation13 + $0x710] sm:$0xff]
        %v3758 = vld [vmem:[#allocation13 + $0x718] sm:$0xff]
        %v3759 = vld [vmem:[#allocation13 + $0x720] sm:$0xff]
        %v3760 = vld [vmem:[#allocation13 + $0x728] sm:$0xf]
        %v3761 = vld [vmem:[#allocation13 + $0x72c] sm:$0xff]
        %v3762 = vld [vmem:[#allocation13 + $0x734] sm:$0xff]
        %v3763 = vld [vmem:[#allocation13 + $0x73c] sm:$0xff]
        %v3764 = vld [vmem:[#allocation13 + $0x744] sm:$0xff]
        %v3765 = vld [vmem:[#allocation13 + $0x74c] sm:$0xf]
        %v3766 = vld [vmem:[#allocation13 + $0x750] sm:$0xff]
        %v3767 = vld [vmem:[#allocation13 + $0x758] sm:$0xff]
        %v3768 = vld [vmem:[#allocation13 + $0x760] sm:$0xff]
        %v3769 = vld [vmem:[#allocation13 + $0x768] sm:$0xff]
        %v3770 = vld [vmem:[#allocation13 + $0x770] sm:$0xf]
        %v3771 = vld [vmem:[#allocation13 + $0x774] sm:$0xff]
        %v3772 = vld [vmem:[#allocation13 + $0x77c] sm:$0xff]
        %v3773 = vld [vmem:[#allocation13 + $0x784] sm:$0xff]
        %v3774 = vld [vmem:[#allocation13 + $0x78c] sm:$0xff]
        %v3775 = vld [vmem:[#allocation13 + $0x794] sm:$0xf]
        %v3776 = vld [vmem:[#allocation13 + $0x798] sm:$0xff]
        %v3777 = vld [vmem:[#allocation13 + $0x7a0] sm:$0xff]
        %v3778 = vld [vmem:[#allocation13 + $0x7a8] sm:$0xff]
        %v3779 = vld [vmem:[#allocation13 + $0x7b0] sm:$0xff]
        %v3780 = vld [vmem:[#allocation13 + $0x7b8] sm:$0xf]
        %v3781 = vld [vmem:[#allocation13 + $0x7bc] sm:$0xff]
        %v3782 = vld [vmem:[#allocation13 + $0x7c4] sm:$0xff]
        %v3783 = vld [vmem:[#allocation13 + $0x7cc] sm:$0xff]
        %v3784 = vld [vmem:[#allocation13 + $0x7d4] sm:$0xff]
        %v3785 = vld [vmem:[#allocation13 + $0x7dc] sm:$0xf]
        %v3786 = vld [vmem:[#allocation13 + $0x7e0] sm:$0xff]
        %v3787 = vld [vmem:[#allocation13 + $0x7e8] sm:$0xff]
        %v3788 = vld [vmem:[#allocation13 + $0x7f0] sm:$0xff]
        %v3789 = vld [vmem:[#allocation13 + $0x7f8] sm:$0xff]
        %v3790 = vld [vmem:[#allocation13 + $0x800] sm:$0xf]
        %v3791 = vld [vmem:[#allocation13 + $0x804] sm:$0xff]
        %v3792 = vld [vmem:[#allocation13 + $0x80c] sm:$0xff]
        %v3793 = vld [vmem:[#allocation13 + $0x814] sm:$0xff]
        %v3794 = vld [vmem:[#allocation13 + $0x81c] sm:$0xff]
        %v3795 = vld [vmem:[#allocation13 + $0x824] sm:$0xf]
        %v3796 = vld [vmem:[#allocation13 + $0x828] sm:$0xff]
        %v3797 = vld [vmem:[#allocation13 + $0x830] sm:$0xff]
        %v3798 = vld [vmem:[#allocation13 + $0x838] sm:$0xff]
        %v3799 = vld [vmem:[#allocation13 + $0x840] sm:$0xff]
        %v3800 = vld [vmem:[#allocation13 + $0x848] sm:$0xf]
        %v3801 = vld [vmem:[#allocation13 + $0x84c] sm:$0xff]
        %v3802 = vld [vmem:[#allocation13 + $0x854] sm:$0xff]
        %v3803 = vld [vmem:[#allocation13 + $0x85c] sm:$0xff]
        %v3804 = vld [vmem:[#allocation13 + $0x864] sm:$0xff]
        %v3805 = vld [vmem:[#allocation13 + $0x86c] sm:$0xf]
        %v3806 = vld [vmem:[#allocation13 + $0x870] sm:$0xff]
        %v3807 = vld [vmem:[#allocation13 + $0x878] sm:$0xff]
        %v3808 = vld [vmem:[#allocation13 + $0x880] sm:$0xff]
        %v3809 = vld [vmem:[#allocation13 + $0x888] sm:$0xff]
        %v3810 = vld [vmem:[#allocation13 + $0x890] sm:$0xf]
        %v3811 = vld [vmem:[#allocation13 + $0x894] sm:$0xff]
        %v3812 = vld [vmem:[#allocation13 + $0x89c] sm:$0xff]
        %v3813 = vld [vmem:[#allocation13 + $0x8a4] sm:$0xff]
        %v3814 = vld [vmem:[#allocation13 + $0x8ac] sm:$0xff]
        %v3815 = vld [vmem:[#allocation13 + $0x8b4] sm:$0xf]
        %v3816 = vld [vmem:[#allocation13 + $0x8b8] sm:$0xff]
        %v3817 = vld [vmem:[#allocation13 + $0x8c0] sm:$0xff]
        %v3818 = vld [vmem:[#allocation13 + $0x8c8] sm:$0xff]
        %v3819 = vld [vmem:[#allocation13 + $0x8d0] sm:$0xff]
        %v3820 = vld [vmem:[#allocation13 + $0x8d8] sm:$0xf]
        %v3821 = vld [vmem:[#allocation13 + $0x8dc] sm:$0xff]
        %v3822 = vld [vmem:[#allocation13 + $0x8e4] sm:$0xff]
        %v3823 = vld [vmem:[#allocation13 + $0x8ec] sm:$0xff]
        %v3824 = vld [vmem:[#allocation13 + $0x8f4] sm:$0xff]
        %v3825 = vld [vmem:[#allocation13 + $0x8fc] sm:$0xf]
        %v4146 = vunpack.c.l.b16 %v3506
        %v4147 = vunpack.c.h.b16 %v3506
        %v4148 = vunpack.c.l.b16 %v3507
        %v4149 = vunpack.c.h.b16 %v3507
        %v4150 = vunpack.c.l.b16 %v3508
        %v4151 = vunpack.c.h.b16 %v3508
        %v4152 = vunpack.c.l.b16 %v3509
        %v4153 = vunpack.c.h.b16 %v3509
        %v4154 = vunpack.c.l.b16 %v3510
        %v4155 = vunpack.c.l.b16 %v3511
        %v4156 = vunpack.c.h.b16 %v3511
        %v4157 = vunpack.c.l.b16 %v3512
        %v4158 = vunpack.c.h.b16 %v3512
        %v4159 = vunpack.c.l.b16 %v3513
        %v4160 = vunpack.c.h.b16 %v3513
        %v4161 = vunpack.c.l.b16 %v3514
        %v4162 = vunpack.c.h.b16 %v3514
        %v4163 = vunpack.c.l.b16 %v3515
        %v4164 = vunpack.c.l.b16 %v3516
        %v4165 = vunpack.c.h.b16 %v3516
        %v4166 = vunpack.c.l.b16 %v3517
        %v4167 = vunpack.c.h.b16 %v3517
        %v4168 = vunpack.c.l.b16 %v3518
        %v4169 = vunpack.c.h.b16 %v3518
        %v4170 = vunpack.c.l.b16 %v3519
        %v4171 = vunpack.c.h.b16 %v3519
        %v4172 = vunpack.c.l.b16 %v3520
        %v4173 = vunpack.c.l.b16 %v3521
        %v4174 = vunpack.c.h.b16 %v3521
        %v4175 = vunpack.c.l.b16 %v3522
        %v4176 = vunpack.c.h.b16 %v3522
        %v4177 = vunpack.c.l.b16 %v3523
        %v4178 = vunpack.c.h.b16 %v3523
        %v4179 = vunpack.c.l.b16 %v3524
        %v4180 = vunpack.c.h.b16 %v3524
        %v4181 = vunpack.c.l.b16 %v3525
        %v4182 = vunpack.c.l.b16 %v3526
        %v4183 = vunpack.c.h.b16 %v3526
        %v4184 = vunpack.c.l.b16 %v3527
        %v4185 = vunpack.c.h.b16 %v3527
        %v4186 = vunpack.c.l.b16 %v3528
        %v4187 = vunpack.c.h.b16 %v3528
        %v4188 = vunpack.c.l.b16 %v3529
        %v4189 = vunpack.c.h.b16 %v3529
        %v4190 = vunpack.c.l.b16 %v3530
        %v4191 = vunpack.c.l.b16 %v3531
        %v4192 = vunpack.c.h.b16 %v3531
        %v4193 = vunpack.c.l.b16 %v3532
        %v4194 = vunpack.c.h.b16 %v3532
        %v4195 = vunpack.c.l.b16 %v3533
        %v4196 = vunpack.c.h.b16 %v3533
        %v4197 = vunpack.c.l.b16 %v3534
        %v4198 = vunpack.c.h.b16 %v3534
        %v4199 = vunpack.c.l.b16 %v3535
        %v4200 = vunpack.c.l.b16 %v3536
        %v4201 = vunpack.c.h.b16 %v3536
        %v4202 = vunpack.c.l.b16 %v3537
        %v4203 = vunpack.c.h.b16 %v3537
        %v4204 = vunpack.c.l.b16 %v3538
        %v4205 = vunpack.c.h.b16 %v3538
        %v4206 = vunpack.c.l.b16 %v3539
        %v4207 = vunpack.c.h.b16 %v3539
        %v4208 = vunpack.c.l.b16 %v3540
        %v4209 = vunpack.c.l.b16 %v3541
        %v4210 = vunpack.c.h.b16 %v3541
        %v4211 = vunpack.c.l.b16 %v3542
        %v4212 = vunpack.c.h.b16 %v3542
        %v4213 = vunpack.c.l.b16 %v3543
        %v4214 = vunpack.c.h.b16 %v3543
        %v4215 = vunpack.c.l.b16 %v3544
        %v4216 = vunpack.c.h.b16 %v3544
        %v4217 = vunpack.c.l.b16 %v3545
        %v4218 = vunpack.c.l.b16 %v3546
        %v4219 = vunpack.c.h.b16 %v3546
        %v4220 = vunpack.c.l.b16 %v3547
        %v4221 = vunpack.c.h.b16 %v3547
        %v4222 = vunpack.c.l.b16 %v3548
        %v4223 = vunpack.c.h.b16 %v3548
        %v4224 = vunpack.c.l.b16 %v3549
        %v4225 = vunpack.c.h.b16 %v3549
        %v4226 = vunpack.c.l.b16 %v3550
        %v4227 = vunpack.c.l.b16 %v3551
        %v4228 = vunpack.c.h.b16 %v3551
        %v4229 = vunpack.c.l.b16 %v3552
        %v4230 = vunpack.c.h.b16 %v3552
        %v4231 = vunpack.c.l.b16 %v3553
        %v4232 = vunpack.c.h.b16 %v3553
        %v4233 = vunpack.c.l.b16 %v3554
        %v4234 = vunpack.c.h.b16 %v3554
        %v4235 = vunpack.c.l.b16 %v3555
        %v4236 = vunpack.c.l.b16 %v3556
        %v4237 = vunpack.c.h.b16 %v3556
        %v4238 = vunpack.c.l.b16 %v3557
        %v4239 = vunpack.c.h.b16 %v3557
        %v4240 = vunpack.c.l.b16 %v3558
        %v4241 = vunpack.c.h.b16 %v3558
        %v4242 = vunpack.c.l.b16 %v3559
        %v4243 = vunpack.c.h.b16 %v3559
        %v4244 = vunpack.c.l.b16 %v3560
        %v4245 = vunpack.c.l.b16 %v3561
        %v4246 = vunpack.c.h.b16 %v3561
        %v4247 = vunpack.c.l.b16 %v3562
        %v4248 = vunpack.c.h.b16 %v3562
        %v4249 = vunpack.c.l.b16 %v3563
        %v4250 = vunpack.c.h.b16 %v3563
        %v4251 = vunpack.c.l.b16 %v3564
        %v4252 = vunpack.c.h.b16 %v3564
        %v4253 = vunpack.c.l.b16 %v3565
        %v4254 = vunpack.c.l.b16 %v3566
        %v4255 = vunpack.c.h.b16 %v3566
        %v4256 = vunpack.c.l.b16 %v3567
        %v4257 = vunpack.c.h.b16 %v3567
        %v4258 = vunpack.c.l.b16 %v3568
        %v4259 = vunpack.c.h.b16 %v3568
        %v4260 = vunpack.c.l.b16 %v3569
        %v4261 = vunpack.c.h.b16 %v3569
        %v4262 = vunpack.c.l.b16 %v3570
        %v4263 = vunpack.c.l.b16 %v3571
        %v4264 = vunpack.c.h.b16 %v3571
        %v4265 = vunpack.c.l.b16 %v3572
        %v4266 = vunpack.c.h.b16 %v3572
        %v4267 = vunpack.c.l.b16 %v3573
        %v4268 = vunpack.c.h.b16 %v3573
        %v4269 = vunpack.c.l.b16 %v3574
        %v4270 = vunpack.c.h.b16 %v3574
        %v4271 = vunpack.c.l.b16 %v3575
        %v4272 = vunpack.c.l.b16 %v3576
        %v4273 = vunpack.c.h.b16 %v3576
        %v4274 = vunpack.c.l.b16 %v3577
        %v4275 = vunpack.c.h.b16 %v3577
        %v4276 = vunpack.c.l.b16 %v3578
        %v4277 = vunpack.c.h.b16 %v3578
        %v4278 = vunpack.c.l.b16 %v3579
        %v4279 = vunpack.c.h.b16 %v3579
        %v4280 = vunpack.c.l.b16 %v3580
        %v4281 = vunpack.c.l.b16 %v3581
        %v4282 = vunpack.c.h.b16 %v3581
        %v4283 = vunpack.c.l.b16 %v3582
        %v4284 = vunpack.c.h.b16 %v3582
        %v4285 = vunpack.c.l.b16 %v3583
        %v4286 = vunpack.c.h.b16 %v3583
        %v4287 = vunpack.c.l.b16 %v3584
        %v4288 = vunpack.c.h.b16 %v3584
        %v4289 = vunpack.c.l.b16 %v3585
        %v4290 = vunpack.c.l.b16 %v3586
        %v4291 = vunpack.c.h.b16 %v3586
        %v4292 = vunpack.c.l.b16 %v3587
        %v4293 = vunpack.c.h.b16 %v3587
        %v4294 = vunpack.c.l.b16 %v3588
        %v4295 = vunpack.c.h.b16 %v3588
        %v4296 = vunpack.c.l.b16 %v3589
        %v4297 = vunpack.c.h.b16 %v3589
        %v4298 = vunpack.c.l.b16 %v3590
        %v4299 = vunpack.c.l.b16 %v3591
        %v4300 = vunpack.c.h.b16 %v3591
        %v4301 = vunpack.c.l.b16 %v3592
        %v4302 = vunpack.c.h.b16 %v3592
        %v4303 = vunpack.c.l.b16 %v3593
        %v4304 = vunpack.c.h.b16 %v3593
        %v4305 = vunpack.c.l.b16 %v3594
        %v4306 = vunpack.c.h.b16 %v3594
        %v4307 = vunpack.c.l.b16 %v3595
        %v4308 = vunpack.c.l.b16 %v3596
        %v4309 = vunpack.c.h.b16 %v3596
        %v4310 = vunpack.c.l.b16 %v3597
        %v4311 = vunpack.c.h.b16 %v3597
        %v4312 = vunpack.c.l.b16 %v3598
        %v4313 = vunpack.c.h.b16 %v3598
        %v4314 = vunpack.c.l.b16 %v3599
        %v4315 = vunpack.c.h.b16 %v3599
        %v4316 = vunpack.c.l.b16 %v3600
        %v4317 = vunpack.c.l.b16 %v3601
        %v4318 = vunpack.c.h.b16 %v3601
        %v4319 = vunpack.c.l.b16 %v3602
        %v4320 = vunpack.c.h.b16 %v3602
        %v4321 = vunpack.c.l.b16 %v3603
        %v4322 = vunpack.c.h.b16 %v3603
        %v4323 = vunpack.c.l.b16 %v3604
        %v4324 = vunpack.c.h.b16 %v3604
        %v4325 = vunpack.c.l.b16 %v3605
        %v4326 = vunpack.c.l.b16 %v3606
        %v4327 = vunpack.c.h.b16 %v3606
        %v4328 = vunpack.c.l.b16 %v3607
        %v4329 = vunpack.c.h.b16 %v3607
        %v4330 = vunpack.c.l.b16 %v3608
        %v4331 = vunpack.c.h.b16 %v3608
        %v4332 = vunpack.c.l.b16 %v3609
        %v4333 = vunpack.c.h.b16 %v3609
        %v4334 = vunpack.c.l.b16 %v3610
        %v4335 = vunpack.c.l.b16 %v3611
        %v4336 = vunpack.c.h.b16 %v3611
        %v4337 = vunpack.c.l.b16 %v3612
        %v4338 = vunpack.c.h.b16 %v3612
        %v4339 = vunpack.c.l.b16 %v3613
        %v4340 = vunpack.c.h.b16 %v3613
        %v4341 = vunpack.c.l.b16 %v3614
        %v4342 = vunpack.c.h.b16 %v3614
        %v4343 = vunpack.c.l.b16 %v3615
        %v4344 = vunpack.c.l.b16 %v3616
        %v4345 = vunpack.c.h.b16 %v3616
        %v4346 = vunpack.c.l.b16 %v3617
        %v4347 = vunpack.c.h.b16 %v3617
        %v4348 = vunpack.c.l.b16 %v3618
        %v4349 = vunpack.c.h.b16 %v3618
        %v4350 = vunpack.c.l.b16 %v3619
        %v4351 = vunpack.c.h.b16 %v3619
        %v4352 = vunpack.c.l.b16 %v3620
        %v4353 = vunpack.c.l.b16 %v3621
        %v4354 = vunpack.c.h.b16 %v3621
        %v4355 = vunpack.c.l.b16 %v3622
        %v4356 = vunpack.c.h.b16 %v3622
        %v4357 = vunpack.c.l.b16 %v3623
        %v4358 = vunpack.c.h.b16 %v3623
        %v4359 = vunpack.c.l.b16 %v3624
        %v4360 = vunpack.c.h.b16 %v3624
        %v4361 = vunpack.c.l.b16 %v3625
        %v4362 = vunpack.c.l.b16 %v3626
        %v4363 = vunpack.c.h.b16 %v3626
        %v4364 = vunpack.c.l.b16 %v3627
        %v4365 = vunpack.c.h.b16 %v3627
        %v4366 = vunpack.c.l.b16 %v3628
        %v4367 = vunpack.c.h.b16 %v3628
        %v4368 = vunpack.c.l.b16 %v3629
        %v4369 = vunpack.c.h.b16 %v3629
        %v4370 = vunpack.c.l.b16 %v3630
        %v4371 = vunpack.c.l.b16 %v3631
        %v4372 = vunpack.c.h.b16 %v3631
        %v4373 = vunpack.c.l.b16 %v3632
        %v4374 = vunpack.c.h.b16 %v3632
        %v4375 = vunpack.c.l.b16 %v3633
        %v4376 = vunpack.c.h.b16 %v3633
        %v4377 = vunpack.c.l.b16 %v3634
        %v4378 = vunpack.c.h.b16 %v3634
        %v4379 = vunpack.c.l.b16 %v3635
        %v4380 = vunpack.c.l.b16 %v3636
        %v4381 = vunpack.c.h.b16 %v3636
        %v4382 = vunpack.c.l.b16 %v3637
        %v4383 = vunpack.c.h.b16 %v3637
        %v4384 = vunpack.c.l.b16 %v3638
        %v4385 = vunpack.c.h.b16 %v3638
        %v4386 = vunpack.c.l.b16 %v3639
        %v4387 = vunpack.c.h.b16 %v3639
        %v4388 = vunpack.c.l.b16 %v3640
        %v4389 = vunpack.c.l.b16 %v3641
        %v4390 = vunpack.c.h.b16 %v3641
        %v4391 = vunpack.c.l.b16 %v3642
        %v4392 = vunpack.c.h.b16 %v3642
        %v4393 = vunpack.c.l.b16 %v3643
        %v4394 = vunpack.c.h.b16 %v3643
        %v4395 = vunpack.c.l.b16 %v3644
        %v4396 = vunpack.c.h.b16 %v3644
        %v4397 = vunpack.c.l.b16 %v3645
        %v4398 = vunpack.c.l.b16 %v3646
        %v4399 = vunpack.c.h.b16 %v3646
        %v4400 = vunpack.c.l.b16 %v3647
        %v4401 = vunpack.c.h.b16 %v3647
        %v4402 = vunpack.c.l.b16 %v3648
        %v4403 = vunpack.c.h.b16 %v3648
        %v4404 = vunpack.c.l.b16 %v3649
        %v4405 = vunpack.c.h.b16 %v3649
        %v4406 = vunpack.c.l.b16 %v3650
        %v4407 = vunpack.c.l.b16 %v3651
        %v4408 = vunpack.c.h.b16 %v3651
        %v4409 = vunpack.c.l.b16 %v3652
        %v4410 = vunpack.c.h.b16 %v3652
        %v4411 = vunpack.c.l.b16 %v3653
        %v4412 = vunpack.c.h.b16 %v3653
        %v4413 = vunpack.c.l.b16 %v3654
        %v4414 = vunpack.c.h.b16 %v3654
        %v4415 = vunpack.c.l.b16 %v3655
        %v4416 = vunpack.c.l.b16 %v3656
        %v4417 = vunpack.c.h.b16 %v3656
        %v4418 = vunpack.c.l.b16 %v3657
        %v4419 = vunpack.c.h.b16 %v3657
        %v4420 = vunpack.c.l.b16 %v3658
        %v4421 = vunpack.c.h.b16 %v3658
        %v4422 = vunpack.c.l.b16 %v3659
        %v4423 = vunpack.c.h.b16 %v3659
        %v4424 = vunpack.c.l.b16 %v3660
        %v4425 = vunpack.c.l.b16 %v3661
        %v4426 = vunpack.c.h.b16 %v3661
        %v4427 = vunpack.c.l.b16 %v3662
        %v4428 = vunpack.c.h.b16 %v3662
        %v4429 = vunpack.c.l.b16 %v3663
        %v4430 = vunpack.c.h.b16 %v3663
        %v4431 = vunpack.c.l.b16 %v3664
        %v4432 = vunpack.c.h.b16 %v3664
        %v4433 = vunpack.c.l.b16 %v3665
        %v4434 = vunpack.c.l.b16 %v3666
        %v4435 = vunpack.c.h.b16 %v3666
        %v4436 = vunpack.c.l.b16 %v3667
        %v4437 = vunpack.c.h.b16 %v3667
        %v4438 = vunpack.c.l.b16 %v3668
        %v4439 = vunpack.c.h.b16 %v3668
        %v4440 = vunpack.c.l.b16 %v3669
        %v4441 = vunpack.c.h.b16 %v3669
        %v4442 = vunpack.c.l.b16 %v3670
        %v4443 = vunpack.c.l.b16 %v3671
        %v4444 = vunpack.c.h.b16 %v3671
        %v4445 = vunpack.c.l.b16 %v3672
        %v4446 = vunpack.c.h.b16 %v3672
        %v4447 = vunpack.c.l.b16 %v3673
        %v4448 = vunpack.c.h.b16 %v3673
        %v4449 = vunpack.c.l.b16 %v3674
        %v4450 = vunpack.c.h.b16 %v3674
        %v4451 = vunpack.c.l.b16 %v3675
        %v4452 = vunpack.c.l.b16 %v3676
        %v4453 = vunpack.c.h.b16 %v3676
        %v4454 = vunpack.c.l.b16 %v3677
        %v4455 = vunpack.c.h.b16 %v3677
        %v4456 = vunpack.c.l.b16 %v3678
        %v4457 = vunpack.c.h.b16 %v3678
        %v4458 = vunpack.c.l.b16 %v3679
        %v4459 = vunpack.c.h.b16 %v3679
        %v4460 = vunpack.c.l.b16 %v3680
        %v4461 = vunpack.c.l.b16 %v3681
        %v4462 = vunpack.c.h.b16 %v3681
        %v4463 = vunpack.c.l.b16 %v3682
        %v4464 = vunpack.c.h.b16 %v3682
        %v4465 = vunpack.c.l.b16 %v3683
        %v4466 = vunpack.c.h.b16 %v3683
        %v4467 = vunpack.c.l.b16 %v3684
        %v4468 = vunpack.c.h.b16 %v3684
        %v4469 = vunpack.c.l.b16 %v3685
        %v4470 = vunpack.c.l.b16 %v3686
        %v4471 = vunpack.c.h.b16 %v3686
        %v4472 = vunpack.c.l.b16 %v3687
        %v4473 = vunpack.c.h.b16 %v3687
        %v4474 = vunpack.c.l.b16 %v3688
        %v4475 = vunpack.c.h.b16 %v3688
        %v4476 = vunpack.c.l.b16 %v3689
        %v4477 = vunpack.c.h.b16 %v3689
        %v4478 = vunpack.c.l.b16 %v3690
        %v4479 = vunpack.c.l.b16 %v3691
        %v4480 = vunpack.c.h.b16 %v3691
        %v4481 = vunpack.c.l.b16 %v3692
        %v4482 = vunpack.c.h.b16 %v3692
        %v4483 = vunpack.c.l.b16 %v3693
        %v4484 = vunpack.c.h.b16 %v3693
        %v4485 = vunpack.c.l.b16 %v3694
        %v4486 = vunpack.c.h.b16 %v3694
        %v4487 = vunpack.c.l.b16 %v3695
        %v4488 = vunpack.c.l.b16 %v3696
        %v4489 = vunpack.c.h.b16 %v3696
        %v4490 = vunpack.c.l.b16 %v3697
        %v4491 = vunpack.c.h.b16 %v3697
        %v4492 = vunpack.c.l.b16 %v3698
        %v4493 = vunpack.c.h.b16 %v3698
        %v4494 = vunpack.c.l.b16 %v3699
        %v4495 = vunpack.c.h.b16 %v3699
        %v4496 = vunpack.c.l.b16 %v3700
        %v4497 = vunpack.c.l.b16 %v3701
        %v4498 = vunpack.c.h.b16 %v3701
        %v4499 = vunpack.c.l.b16 %v3702
        %v4500 = vunpack.c.h.b16 %v3702
        %v4501 = vunpack.c.l.b16 %v3703
        %v4502 = vunpack.c.h.b16 %v3703
        %v4503 = vunpack.c.l.b16 %v3704
        %v4504 = vunpack.c.h.b16 %v3704
        %v4505 = vunpack.c.l.b16 %v3705
        %v4506 = vunpack.c.l.b16 %v3706
        %v4507 = vunpack.c.h.b16 %v3706
        %v4508 = vunpack.c.l.b16 %v3707
        %v4509 = vunpack.c.h.b16 %v3707
        %v4510 = vunpack.c.l.b16 %v3708
        %v4511 = vunpack.c.h.b16 %v3708
        %v4512 = vunpack.c.l.b16 %v3709
        %v4513 = vunpack.c.h.b16 %v3709
        %v4514 = vunpack.c.l.b16 %v3710
        %v4515 = vunpack.c.l.b16 %v3711
        %v4516 = vunpack.c.h.b16 %v3711
        %v4517 = vunpack.c.l.b16 %v3712
        %v4518 = vunpack.c.h.b16 %v3712
        %v4519 = vunpack.c.l.b16 %v3713
        %v4520 = vunpack.c.h.b16 %v3713
        %v4521 = vunpack.c.l.b16 %v3714
        %v4522 = vunpack.c.h.b16 %v3714
        %v4523 = vunpack.c.l.b16 %v3715
        %v4524 = vunpack.c.l.b16 %v3716
        %v4525 = vunpack.c.h.b16 %v3716
        %v4526 = vunpack.c.l.b16 %v3717
        %v4527 = vunpack.c.h.b16 %v3717
        %v4528 = vunpack.c.l.b16 %v3718
        %v4529 = vunpack.c.h.b16 %v3718
        %v4530 = vunpack.c.l.b16 %v3719
        %v4531 = vunpack.c.h.b16 %v3719
        %v4532 = vunpack.c.l.b16 %v3720
        %v4533 = vunpack.c.l.b16 %v3721
        %v4534 = vunpack.c.h.b16 %v3721
        %v4535 = vunpack.c.l.b16 %v3722
        %v4536 = vunpack.c.h.b16 %v3722
        %v4537 = vunpack.c.l.b16 %v3723
        %v4538 = vunpack.c.h.b16 %v3723
        %v4539 = vunpack.c.l.b16 %v3724
        %v4540 = vunpack.c.h.b16 %v3724
        %v4541 = vunpack.c.l.b16 %v3725
        %v4542 = vunpack.c.l.b16 %v3726
        %v4543 = vunpack.c.h.b16 %v3726
        %v4544 = vunpack.c.l.b16 %v3727
        %v4545 = vunpack.c.h.b16 %v3727
        %v4546 = vunpack.c.l.b16 %v3728
        %v4547 = vunpack.c.h.b16 %v3728
        %v4548 = vunpack.c.l.b16 %v3729
        %v4549 = vunpack.c.h.b16 %v3729
        %v4550 = vunpack.c.l.b16 %v3730
        %v4551 = vunpack.c.l.b16 %v3731
        %v4552 = vunpack.c.h.b16 %v3731
        %v4553 = vunpack.c.l.b16 %v3732
        %v4554 = vunpack.c.h.b16 %v3732
        %v4555 = vunpack.c.l.b16 %v3733
        %v4556 = vunpack.c.h.b16 %v3733
        %v4557 = vunpack.c.l.b16 %v3734
        %v4558 = vunpack.c.h.b16 %v3734
        %v4559 = vunpack.c.l.b16 %v3735
        %v4560 = vunpack.c.l.b16 %v3736
        %v4561 = vunpack.c.h.b16 %v3736
        %v4562 = vunpack.c.l.b16 %v3737
        %v4563 = vunpack.c.h.b16 %v3737
        %v4564 = vunpack.c.l.b16 %v3738
        %v4565 = vunpack.c.h.b16 %v3738
        %v4566 = vunpack.c.l.b16 %v3739
        %v4567 = vunpack.c.h.b16 %v3739
        %v4568 = vunpack.c.l.b16 %v3740
        %v4569 = vunpack.c.l.b16 %v3741
        %v4570 = vunpack.c.h.b16 %v3741
        %v4571 = vunpack.c.l.b16 %v3742
        %v4572 = vunpack.c.h.b16 %v3742
        %v4573 = vunpack.c.l.b16 %v3743
        %v4574 = vunpack.c.h.b16 %v3743
        %v4575 = vunpack.c.l.b16 %v3744
        %v4576 = vunpack.c.h.b16 %v3744
        %v4577 = vunpack.c.l.b16 %v3745
        %v4578 = vunpack.c.l.b16 %v3746
        %v4579 = vunpack.c.h.b16 %v3746
        %v4580 = vunpack.c.l.b16 %v3747
        %v4581 = vunpack.c.h.b16 %v3747
        %v4582 = vunpack.c.l.b16 %v3748
        %v4583 = vunpack.c.h.b16 %v3748
        %v4584 = vunpack.c.l.b16 %v3749
        %v4585 = vunpack.c.h.b16 %v3749
        %v4586 = vunpack.c.l.b16 %v3750
        %v4587 = vunpack.c.l.b16 %v3751
        %v4588 = vunpack.c.h.b16 %v3751
        %v4589 = vunpack.c.l.b16 %v3752
        %v4590 = vunpack.c.h.b16 %v3752
        %v4591 = vunpack.c.l.b16 %v3753
        %v4592 = vunpack.c.h.b16 %v3753
        %v4593 = vunpack.c.l.b16 %v3754
        %v4594 = vunpack.c.h.b16 %v3754
        %v4595 = vunpack.c.l.b16 %v3755
        %v4596 = vunpack.c.l.b16 %v3756
        %v4597 = vunpack.c.h.b16 %v3756
        %v4598 = vunpack.c.l.b16 %v3757
        %v4599 = vunpack.c.h.b16 %v3757
        %v4600 = vunpack.c.l.b16 %v3758
        %v4601 = vunpack.c.h.b16 %v3758
        %v4602 = vunpack.c.l.b16 %v3759
        %v4603 = vunpack.c.h.b16 %v3759
        %v4604 = vunpack.c.l.b16 %v3760
        %v4605 = vunpack.c.l.b16 %v3761
        %v4606 = vunpack.c.h.b16 %v3761
        %v4607 = vunpack.c.l.b16 %v3762
        %v4608 = vunpack.c.h.b16 %v3762
        %v4609 = vunpack.c.l.b16 %v3763
        %v4610 = vunpack.c.h.b16 %v3763
        %v4611 = vunpack.c.l.b16 %v3764
        %v4612 = vunpack.c.h.b16 %v3764
        %v4613 = vunpack.c.l.b16 %v3765
        %v4614 = vunpack.c.l.b16 %v3766
        %v4615 = vunpack.c.h.b16 %v3766
        %v4616 = vunpack.c.l.b16 %v3767
        %v4617 = vunpack.c.h.b16 %v3767
        %v4618 = vunpack.c.l.b16 %v3768
        %v4619 = vunpack.c.h.b16 %v3768
        %v4620 = vunpack.c.l.b16 %v3769
        %v4621 = vunpack.c.h.b16 %v3769
        %v4622 = vunpack.c.l.b16 %v3770
        %v4623 = vunpack.c.l.b16 %v3771
        %v4624 = vunpack.c.h.b16 %v3771
        %v4625 = vunpack.c.l.b16 %v3772
        %v4626 = vunpack.c.h.b16 %v3772
        %v4627 = vunpack.c.l.b16 %v3773
        %v4628 = vunpack.c.h.b16 %v3773
        %v4629 = vunpack.c.l.b16 %v3774
        %v4630 = vunpack.c.h.b16 %v3774
        %v4631 = vunpack.c.l.b16 %v3775
        %v4632 = vunpack.c.l.b16 %v3776
        %v4633 = vunpack.c.h.b16 %v3776
        %v4634 = vunpack.c.l.b16 %v3777
        %v4635 = vunpack.c.h.b16 %v3777
        %v4636 = vunpack.c.l.b16 %v3778
        %v4637 = vunpack.c.h.b16 %v3778
        %v4638 = vunpack.c.l.b16 %v3779
        %v4639 = vunpack.c.h.b16 %v3779
        %v4640 = vunpack.c.l.b16 %v3780
        %v4641 = vunpack.c.l.b16 %v3781
        %v4642 = vunpack.c.h.b16 %v3781
        %v4643 = vunpack.c.l.b16 %v3782
        %v4644 = vunpack.c.h.b16 %v3782
        %v4645 = vunpack.c.l.b16 %v3783
        %v4646 = vunpack.c.h.b16 %v3783
        %v4647 = vunpack.c.l.b16 %v3784
        %v4648 = vunpack.c.h.b16 %v3784
        %v4649 = vunpack.c.l.b16 %v3785
        %v4650 = vunpack.c.l.b16 %v3786
        %v4651 = vunpack.c.h.b16 %v3786
        %v4652 = vunpack.c.l.b16 %v3787
        %v4653 = vunpack.c.h.b16 %v3787
        %v4654 = vunpack.c.l.b16 %v3788
        %v4655 = vunpack.c.h.b16 %v3788
        %v4656 = vunpack.c.l.b16 %v3789
        %v4657 = vunpack.c.h.b16 %v3789
        %v4658 = vunpack.c.l.b16 %v3790
        %v4659 = vunpack.c.l.b16 %v3791
        %v4660 = vunpack.c.h.b16 %v3791
        %v4661 = vunpack.c.l.b16 %v3792
        %v4662 = vunpack.c.h.b16 %v3792
        %v4663 = vunpack.c.l.b16 %v3793
        %v4664 = vunpack.c.h.b16 %v3793
        %v4665 = vunpack.c.l.b16 %v3794
        %v4666 = vunpack.c.h.b16 %v3794
        %v4667 = vunpack.c.l.b16 %v3795
        %v4668 = vunpack.c.l.b16 %v3796
        %v4669 = vunpack.c.h.b16 %v3796
        %v4670 = vunpack.c.l.b16 %v3797
        %v4671 = vunpack.c.h.b16 %v3797
        %v4672 = vunpack.c.l.b16 %v3798
        %v4673 = vunpack.c.h.b16 %v3798
        %v4674 = vunpack.c.l.b16 %v3799
        %v4675 = vunpack.c.h.b16 %v3799
        %v4676 = vunpack.c.l.b16 %v3800
        %v4677 = vunpack.c.l.b16 %v3801
        %v4678 = vunpack.c.h.b16 %v3801
        %v4679 = vunpack.c.l.b16 %v3802
        %v4680 = vunpack.c.h.b16 %v3802
        %v4681 = vunpack.c.l.b16 %v3803
        %v4682 = vunpack.c.h.b16 %v3803
        %v4683 = vunpack.c.l.b16 %v3804
        %v4684 = vunpack.c.h.b16 %v3804
        %v4685 = vunpack.c.l.b16 %v3805
        %v4686 = vunpack.c.l.b16 %v3806
        %v4687 = vunpack.c.h.b16 %v3806
        %v4688 = vunpack.c.l.b16 %v3807
        %v4689 = vunpack.c.h.b16 %v3807
        %v4690 = vunpack.c.l.b16 %v3808
        %v4691 = vunpack.c.h.b16 %v3808
        %v4692 = vunpack.c.l.b16 %v3809
        %v4693 = vunpack.c.h.b16 %v3809
        %v4694 = vunpack.c.l.b16 %v3810
        %v4695 = vunpack.c.l.b16 %v3811
        %v4696 = vunpack.c.h.b16 %v3811
        %v4697 = vunpack.c.l.b16 %v3812
        %v4698 = vunpack.c.h.b16 %v3812
        %v4699 = vunpack.c.l.b16 %v3813
        %v4700 = vunpack.c.h.b16 %v3813
        %v4701 = vunpack.c.l.b16 %v3814
        %v4702 = vunpack.c.h.b16 %v3814
        %v4703 = vunpack.c.l.b16 %v3815
        %v4704 = vunpack.c.l.b16 %v3816
        %v4705 = vunpack.c.h.b16 %v3816
        %v4706 = vunpack.c.l.b16 %v3817
        %v4707 = vunpack.c.h.b16 %v3817
        %v4708 = vunpack.c.l.b16 %v3818
        %v4709 = vunpack.c.h.b16 %v3818
        %v4710 = vunpack.c.l.b16 %v3819
        %v4711 = vunpack.c.h.b16 %v3819
        %v4712 = vunpack.c.l.b16 %v3820
        %v4713 = vunpack.c.l.b16 %v3821
        %v4714 = vunpack.c.h.b16 %v3821
        %v4715 = vunpack.c.l.b16 %v3822
        %v4716 = vunpack.c.h.b16 %v3822
        %v4717 = vunpack.c.l.b16 %v3823
        %v4718 = vunpack.c.h.b16 %v3823
        %v4719 = vunpack.c.l.b16 %v3824
        %v4720 = vunpack.c.h.b16 %v3824
        %v4721 = vunpack.c.l.b16 %v3825
        %v4722 = vpack.c.b16 %v4155, %v4146
        %v4723 = vpack.c.b16 %v4156, %v4147
        %v4724 = vpack.c.b16 %v4157, %v4148
        %v4725 = vpack.c.b16 %v4158, %v4149
        %v4726 = vpack.c.b16 %v4159, %v4150
        %v4727 = vpack.c.b16 %v4160, %v4151
        %v4728 = vpack.c.b16 %v4161, %v4152
        %v4729 = vpack.c.b16 %v4162, %v4153
        %v4730 = vpack.c.b16 %v4163, %v4154
        %v4731 = vpack.c.b16 %v4173, %v4164
        %v4732 = vpack.c.b16 %v4174, %v4165
        %v4733 = vpack.c.b16 %v4175, %v4166
        %v4734 = vpack.c.b16 %v4176, %v4167
        %v4735 = vpack.c.b16 %v4177, %v4168
        %v4736 = vpack.c.b16 %v4178, %v4169
        %v4737 = vpack.c.b16 %v4179, %v4170
        %v4738 = vpack.c.b16 %v4180, %v4171
        %v4739 = vpack.c.b16 %v4181, %v4172
        %v4740 = vpack.c.b16 %v4191, %v4182
        %v4741 = vpack.c.b16 %v4192, %v4183
        %v4742 = vpack.c.b16 %v4193, %v4184
        %v4743 = vpack.c.b16 %v4194, %v4185
        %v4744 = vpack.c.b16 %v4195, %v4186
        %v4745 = vpack.c.b16 %v4196, %v4187
        %v4746 = vpack.c.b16 %v4197, %v4188
        %v4747 = vpack.c.b16 %v4198, %v4189
        %v4748 = vpack.c.b16 %v4199, %v4190
        %v4749 = vpack.c.b16 %v4209, %v4200
        %v4750 = vpack.c.b16 %v4210, %v4201
        %v4751 = vpack.c.b16 %v4211, %v4202
        %v4752 = vpack.c.b16 %v4212, %v4203
        %v4753 = vpack.c.b16 %v4213, %v4204
        %v4754 = vpack.c.b16 %v4214, %v4205
        %v4755 = vpack.c.b16 %v4215, %v4206
        %v4756 = vpack.c.b16 %v4216, %v4207
        %v4757 = vpack.c.b16 %v4217, %v4208
        %v4758 = vpack.c.b16 %v4227, %v4218
        %v4759 = vpack.c.b16 %v4228, %v4219
        %v4760 = vpack.c.b16 %v4229, %v4220
        %v4761 = vpack.c.b16 %v4230, %v4221
        %v4762 = vpack.c.b16 %v4231, %v4222
        %v4763 = vpack.c.b16 %v4232, %v4223
        %v4764 = vpack.c.b16 %v4233, %v4224
        %v4765 = vpack.c.b16 %v4234, %v4225
        %v4766 = vpack.c.b16 %v4235, %v4226
        %v4767 = vpack.c.b16 %v4245, %v4236
        %v4768 = vpack.c.b16 %v4246, %v4237
        %v4769 = vpack.c.b16 %v4247, %v4238
        %v4770 = vpack.c.b16 %v4248, %v4239
        %v4771 = vpack.c.b16 %v4249, %v4240
        %v4772 = vpack.c.b16 %v4250, %v4241
        %v4773 = vpack.c.b16 %v4251, %v4242
        %v4774 = vpack.c.b16 %v4252, %v4243
        %v4775 = vpack.c.b16 %v4253, %v4244
        %v4776 = vpack.c.b16 %v4263, %v4254
        %v4777 = vpack.c.b16 %v4264, %v4255
        %v4778 = vpack.c.b16 %v4265, %v4256
        %v4779 = vpack.c.b16 %v4266, %v4257
        %v4780 = vpack.c.b16 %v4267, %v4258
        %v4781 = vpack.c.b16 %v4268, %v4259
        %v4782 = vpack.c.b16 %v4269, %v4260
        %v4783 = vpack.c.b16 %v4270, %v4261
        %v4784 = vpack.c.b16 %v4271, %v4262
        %v4785 = vpack.c.b16 %v4281, %v4272
        %v4786 = vpack.c.b16 %v4282, %v4273
        %v4787 = vpack.c.b16 %v4283, %v4274
        %v4788 = vpack.c.b16 %v4284, %v4275
        %v4789 = vpack.c.b16 %v4285, %v4276
        %v4790 = vpack.c.b16 %v4286, %v4277
        %v4791 = vpack.c.b16 %v4287, %v4278
        %v4792 = vpack.c.b16 %v4288, %v4279
        %v4793 = vpack.c.b16 %v4289, %v4280
        %v4794 = vpack.c.b16 %v4299, %v4290
        %v4795 = vpack.c.b16 %v4300, %v4291
        %v4796 = vpack.c.b16 %v4301, %v4292
        %v4797 = vpack.c.b16 %v4302, %v4293
        %v4798 = vpack.c.b16 %v4303, %v4294
        %v4799 = vpack.c.b16 %v4304, %v4295
        %v4800 = vpack.c.b16 %v4305, %v4296
        %v4801 = vpack.c.b16 %v4306, %v4297
        %v4802 = vpack.c.b16 %v4307, %v4298
        %v4803 = vpack.c.b16 %v4317, %v4308
        %v4804 = vpack.c.b16 %v4318, %v4309
        %v4805 = vpack.c.b16 %v4319, %v4310
        %v4806 = vpack.c.b16 %v4320, %v4311
        %v4807 = vpack.c.b16 %v4321, %v4312
        %v4808 = vpack.c.b16 %v4322, %v4313
        %v4809 = vpack.c.b16 %v4323, %v4314
        %v4810 = vpack.c.b16 %v4324, %v4315
        %v4811 = vpack.c.b16 %v4325, %v4316
        %v4812 = vpack.c.b16 %v4335, %v4326
        %v4813 = vpack.c.b16 %v4336, %v4327
        %v4814 = vpack.c.b16 %v4337, %v4328
        %v4815 = vpack.c.b16 %v4338, %v4329
        %v4816 = vpack.c.b16 %v4339, %v4330
        %v4817 = vpack.c.b16 %v4340, %v4331
        %v4818 = vpack.c.b16 %v4341, %v4332
        %v4819 = vpack.c.b16 %v4342, %v4333
        %v4820 = vpack.c.b16 %v4343, %v4334
        %v4821 = vpack.c.b16 %v4353, %v4344
        %v4822 = vpack.c.b16 %v4354, %v4345
        %v4823 = vpack.c.b16 %v4355, %v4346
        %v4824 = vpack.c.b16 %v4356, %v4347
        %v4825 = vpack.c.b16 %v4357, %v4348
        %v4826 = vpack.c.b16 %v4358, %v4349
        %v4827 = vpack.c.b16 %v4359, %v4350
        %v4828 = vpack.c.b16 %v4360, %v4351
        %v4829 = vpack.c.b16 %v4361, %v4352
        %v4830 = vpack.c.b16 %v4371, %v4362
        %v4831 = vpack.c.b16 %v4372, %v4363
        %v4832 = vpack.c.b16 %v4373, %v4364
        %v4833 = vpack.c.b16 %v4374, %v4365
        %v4834 = vpack.c.b16 %v4375, %v4366
        %v4835 = vpack.c.b16 %v4376, %v4367
        %v4836 = vpack.c.b16 %v4377, %v4368
        %v4837 = vpack.c.b16 %v4378, %v4369
        %v4838 = vpack.c.b16 %v4379, %v4370
        %v4839 = vpack.c.b16 %v4389, %v4380
        %v4840 = vpack.c.b16 %v4390, %v4381
        %v4841 = vpack.c.b16 %v4391, %v4382
        %v4842 = vpack.c.b16 %v4392, %v4383
        %v4843 = vpack.c.b16 %v4393, %v4384
        %v4844 = vpack.c.b16 %v4394, %v4385
        %v4845 = vpack.c.b16 %v4395, %v4386
        %v4846 = vpack.c.b16 %v4396, %v4387
        %v4847 = vpack.c.b16 %v4397, %v4388
        %v4848 = vpack.c.b16 %v4407, %v4398
        %v4849 = vpack.c.b16 %v4408, %v4399
        %v4850 = vpack.c.b16 %v4409, %v4400
        %v4851 = vpack.c.b16 %v4410, %v4401
        %v4852 = vpack.c.b16 %v4411, %v4402
        %v4853 = vpack.c.b16 %v4412, %v4403
        %v4854 = vpack.c.b16 %v4413, %v4404
        %v4855 = vpack.c.b16 %v4414, %v4405
        %v4856 = vpack.c.b16 %v4415, %v4406
        %v4857 = vpack.c.b16 %v4425, %v4416
        %v4858 = vpack.c.b16 %v4426, %v4417
        %v4859 = vpack.c.b16 %v4427, %v4418
        %v4860 = vpack.c.b16 %v4428, %v4419
        %v4861 = vpack.c.b16 %v4429, %v4420
        %v4862 = vpack.c.b16 %v4430, %v4421
        %v4863 = vpack.c.b16 %v4431, %v4422
        %v4864 = vpack.c.b16 %v4432, %v4423
        %v4865 = vpack.c.b16 %v4433, %v4424
        %v4866 = vpack.c.b16 %v4443, %v4434
        %v4867 = vpack.c.b16 %v4444, %v4435
        %v4868 = vpack.c.b16 %v4445, %v4436
        %v4869 = vpack.c.b16 %v4446, %v4437
        %v4870 = vpack.c.b16 %v4447, %v4438
        %v4871 = vpack.c.b16 %v4448, %v4439
        %v4872 = vpack.c.b16 %v4449, %v4440
        %v4873 = vpack.c.b16 %v4450, %v4441
        %v4874 = vpack.c.b16 %v4451, %v4442
        %v4875 = vpack.c.b16 %v4461, %v4452
        %v4876 = vpack.c.b16 %v4462, %v4453
        %v4877 = vpack.c.b16 %v4463, %v4454
        %v4878 = vpack.c.b16 %v4464, %v4455
        %v4879 = vpack.c.b16 %v4465, %v4456
        %v4880 = vpack.c.b16 %v4466, %v4457
        %v4881 = vpack.c.b16 %v4467, %v4458
        %v4882 = vpack.c.b16 %v4468, %v4459
        %v4883 = vpack.c.b16 %v4469, %v4460
        %v4884 = vpack.c.b16 %v4479, %v4470
        %v4885 = vpack.c.b16 %v4480, %v4471
        %v4886 = vpack.c.b16 %v4481, %v4472
        %v4887 = vpack.c.b16 %v4482, %v4473
        %v4888 = vpack.c.b16 %v4483, %v4474
        %v4889 = vpack.c.b16 %v4484, %v4475
        %v4890 = vpack.c.b16 %v4485, %v4476
        %v4891 = vpack.c.b16 %v4486, %v4477
        %v4892 = vpack.c.b16 %v4487, %v4478
        %v4893 = vpack.c.b16 %v4497, %v4488
        %v4894 = vpack.c.b16 %v4498, %v4489
        %v4895 = vpack.c.b16 %v4499, %v4490
        %v4896 = vpack.c.b16 %v4500, %v4491
        %v4897 = vpack.c.b16 %v4501, %v4492
        %v4898 = vpack.c.b16 %v4502, %v4493
        %v4899 = vpack.c.b16 %v4503, %v4494
        %v4900 = vpack.c.b16 %v4504, %v4495
        %v4901 = vpack.c.b16 %v4505, %v4496
        %v4902 = vpack.c.b16 %v4515, %v4506
        %v4903 = vpack.c.b16 %v4516, %v4507
        %v4904 = vpack.c.b16 %v4517, %v4508
        %v4905 = vpack.c.b16 %v4518, %v4509
        %v4906 = vpack.c.b16 %v4519, %v4510
        %v4907 = vpack.c.b16 %v4520, %v4511
        %v4908 = vpack.c.b16 %v4521, %v4512
        %v4909 = vpack.c.b16 %v4522, %v4513
        %v4910 = vpack.c.b16 %v4523, %v4514
        %v4911 = vpack.c.b16 %v4533, %v4524
        %v4912 = vpack.c.b16 %v4534, %v4525
        %v4913 = vpack.c.b16 %v4535, %v4526
        %v4914 = vpack.c.b16 %v4536, %v4527
        %v4915 = vpack.c.b16 %v4537, %v4528
        %v4916 = vpack.c.b16 %v4538, %v4529
        %v4917 = vpack.c.b16 %v4539, %v4530
        %v4918 = vpack.c.b16 %v4540, %v4531
        %v4919 = vpack.c.b16 %v4541, %v4532
        %v4920 = vpack.c.b16 %v4551, %v4542
        %v4921 = vpack.c.b16 %v4552, %v4543
        %v4922 = vpack.c.b16 %v4553, %v4544
        %v4923 = vpack.c.b16 %v4554, %v4545
        %v4924 = vpack.c.b16 %v4555, %v4546
        %v4925 = vpack.c.b16 %v4556, %v4547
        %v4926 = vpack.c.b16 %v4557, %v4548
        %v4927 = vpack.c.b16 %v4558, %v4549
        %v4928 = vpack.c.b16 %v4559, %v4550
        %v4929 = vpack.c.b16 %v4569, %v4560
        %v4930 = vpack.c.b16 %v4570, %v4561
        %v4931 = vpack.c.b16 %v4571, %v4562
        %v4932 = vpack.c.b16 %v4572, %v4563
        %v4933 = vpack.c.b16 %v4573, %v4564
        %v4934 = vpack.c.b16 %v4574, %v4565
        %v4935 = vpack.c.b16 %v4575, %v4566
        %v4936 = vpack.c.b16 %v4576, %v4567
        %v4937 = vpack.c.b16 %v4577, %v4568
        %v4938 = vpack.c.b16 %v4587, %v4578
        %v4939 = vpack.c.b16 %v4588, %v4579
        %v4940 = vpack.c.b16 %v4589, %v4580
        %v4941 = vpack.c.b16 %v4590, %v4581
        %v4942 = vpack.c.b16 %v4591, %v4582
        %v4943 = vpack.c.b16 %v4592, %v4583
        %v4944 = vpack.c.b16 %v4593, %v4584
        %v4945 = vpack.c.b16 %v4594, %v4585
        %v4946 = vpack.c.b16 %v4595, %v4586
        %v4947 = vpack.c.b16 %v4605, %v4596
        %v4948 = vpack.c.b16 %v4606, %v4597
        %v4949 = vpack.c.b16 %v4607, %v4598
        %v4950 = vpack.c.b16 %v4608, %v4599
        %v4951 = vpack.c.b16 %v4609, %v4600
        %v4952 = vpack.c.b16 %v4610, %v4601
        %v4953 = vpack.c.b16 %v4611, %v4602
        %v4954 = vpack.c.b16 %v4612, %v4603
        %v4955 = vpack.c.b16 %v4613, %v4604
        %v4956 = vpack.c.b16 %v4623, %v4614
        %v4957 = vpack.c.b16 %v4624, %v4615
        %v4958 = vpack.c.b16 %v4625, %v4616
        %v4959 = vpack.c.b16 %v4626, %v4617
        %v4960 = vpack.c.b16 %v4627, %v4618
        %v4961 = vpack.c.b16 %v4628, %v4619
        %v4962 = vpack.c.b16 %v4629, %v4620
        %v4963 = vpack.c.b16 %v4630, %v4621
        %v4964 = vpack.c.b16 %v4631, %v4622
        %v4965 = vpack.c.b16 %v4641, %v4632
        %v4966 = vpack.c.b16 %v4642, %v4633
        %v4967 = vpack.c.b16 %v4643, %v4634
        %v4968 = vpack.c.b16 %v4644, %v4635
        %v4969 = vpack.c.b16 %v4645, %v4636
        %v4970 = vpack.c.b16 %v4646, %v4637
        %v4971 = vpack.c.b16 %v4647, %v4638
        %v4972 = vpack.c.b16 %v4648, %v4639
        %v4973 = vpack.c.b16 %v4649, %v4640
        %v4974 = vpack.c.b16 %v4659, %v4650
        %v4975 = vpack.c.b16 %v4660, %v4651
        %v4976 = vpack.c.b16 %v4661, %v4652
        %v4977 = vpack.c.b16 %v4662, %v4653
        %v4978 = vpack.c.b16 %v4663, %v4654
        %v4979 = vpack.c.b16 %v4664, %v4655
        %v4980 = vpack.c.b16 %v4665, %v4656
        %v4981 = vpack.c.b16 %v4666, %v4657
        %v4982 = vpack.c.b16 %v4667, %v4658
        %v4983 = vpack.c.b16 %v4677, %v4668
        %v4984 = vpack.c.b16 %v4678, %v4669
        %v4985 = vpack.c.b16 %v4679, %v4670
        %v4986 = vpack.c.b16 %v4680, %v4671
        %v4987 = vpack.c.b16 %v4681, %v4672
        %v4988 = vpack.c.b16 %v4682, %v4673
        %v4989 = vpack.c.b16 %v4683, %v4674
        %v4990 = vpack.c.b16 %v4684, %v4675
        %v4991 = vpack.c.b16 %v4685, %v4676
        %v4992 = vpack.c.b16 %v4695, %v4686
        %v4993 = vpack.c.b16 %v4696, %v4687
        %v4994 = vpack.c.b16 %v4697, %v4688
        %v4995 = vpack.c.b16 %v4698, %v4689
        %v4996 = vpack.c.b16 %v4699, %v4690
        %v4997 = vpack.c.b16 %v4700, %v4691
        %v4998 = vpack.c.b16 %v4701, %v4692
        %v4999 = vpack.c.b16 %v4702, %v4693
        %v5000 = vpack.c.b16 %v4703, %v4694
        %v5001 = vpack.c.b16 %v4713, %v4704
        %v5002 = vpack.c.b16 %v4714, %v4705
        %v5003 = vpack.c.b16 %v4715, %v4706
        %v5004 = vpack.c.b16 %v4716, %v4707
        %v5005 = vpack.c.b16 %v4717, %v4708
        %v5006 = vpack.c.b16 %v4718, %v4709
        %v5007 = vpack.c.b16 %v4719, %v4710
        %v5008 = vpack.c.b16 %v4720, %v4711
        %v5009 = vpack.c.b16 %v4721, %v4712
        %5298 = vmatprep.subr.bf16.mxu0 %v4786
        %5299 = vmatpush1.bf16.msra.mxu0 %v4785
        %5300 = vmatprep.subr.bf16.mxu0 %v4777
        %5301 = vmatpush1.bf16.msra.mxu0 %v4776
        %5302 = vmatprep.subr.bf16.mxu0 %v4768
        %5303 = vmatpush1.bf16.msra.mxu0 %v4767
        %5304 = vmatprep.subr.bf16.mxu0 %v4759
        %5305 = vmatpush1.bf16.msra.mxu0 %v4758
        %5306 = vmatprep.subr.bf16.mxu0 %v4750
        %5307 = vmatpush1.bf16.msra.mxu0 %v4749
        %5308 = vmatprep.subr.bf16.mxu0 %v4741
        %5309 = vmatpush1.bf16.msra.mxu0 %v4740
        %5310 = vmatprep.subr.bf16.mxu0 %v4732
        %5311 = vmatpush1.bf16.msra.mxu0 %v4731
        %5312 = vmatprep.subr.bf16.mxu0 %v4723
        %5313 = vmatpush1.bf16.msra.mxu0 %v4722
        %5314 = vmatprep.subr.bf16.mxu0 %v4858
        %5315 = vmatpush2.bf16.msra.mxu0 %v4857
        %5316 = vmatprep.subr.bf16.mxu0 %v4849
        %5317 = vmatpush2.bf16.msra.mxu0 %v4848
        %5318 = vmatprep.subr.bf16.mxu0 %v4840
        %5319 = vmatpush2.bf16.msra.mxu0 %v4839
        %5320 = vmatprep.subr.bf16.mxu0 %v4831
        %5321 = vmatpush2.bf16.msra.mxu0 %v4830
        %5322 = vmatprep.subr.bf16.mxu0 %v4822
        %5323 = vmatpush2.bf16.msra.mxu0 %v4821
        %5324 = vmatprep.subr.bf16.mxu0 %v4813
        %5325 = vmatpush2.bf16.msra.mxu0 %v4812
        %5326 = vmatprep.subr.bf16.mxu0 %v4804
        %5327 = vmatpush2.bf16.msra.mxu0 %v4803
        %5328 = vmatprep.subr.bf16.mxu0 %v4795
        %5329 = vmatpush2.bf16.msra.mxu0 %v4794
        %5330 = vmatprep.mubr.bf16.mxu0 %v3503
        %5331 = vmatmul.mubr.bf16.gmra.mxu0 %v3502
        %v5332 = vpop.f32.mrf.mxu0
        %v5333 = vadd.f32 0.0, %v5332
        %v5334 = vpop.f32.mrf.mxu0
        %v5335 = vadd.f32 0.0, %v5334
        %v5336 = vpop.f32.mrf.mxu0
        %v5337 = vpop.f32.mrf.mxu0
        %5338 = vdwg.mxu0
        %5339 = vmatprep.subr.bf16.mxu0 %v4930
        %5340 = vmatpush1.bf16.msra.mxu0 %v4929
        %5341 = vmatprep.subr.bf16.mxu0 %v4921
        %5342 = vmatpush1.bf16.msra.mxu0 %v4920
        %5343 = vmatprep.subr.bf16.mxu0 %v4912
        %5344 = vmatpush1.bf16.msra.mxu0 %v4911
        %5345 = vmatprep.subr.bf16.mxu0 %v4903
        %5346 = vmatpush1.bf16.msra.mxu0 %v4902
        %5347 = vmatprep.subr.bf16.mxu0 %v4894
        %5348 = vmatpush1.bf16.msra.mxu0 %v4893
        %5349 = vmatprep.subr.bf16.mxu0 %v4885
        %5350 = vmatpush1.bf16.msra.mxu0 %v4884
        %5351 = vmatprep.subr.bf16.mxu0 %v4876
        %5352 = vmatpush1.bf16.msra.mxu0 %v4875
        %5353 = vmatprep.subr.bf16.mxu0 %v4867
        %5354 = vmatpush1.bf16.msra.mxu0 %v4866
        %5355 = vmatprep.subr.bf16.mxu0 %v5002
        %5356 = vmatpush2.bf16.msra.mxu0 %v5001
        %5357 = vmatprep.subr.bf16.mxu0 %v4993
        %5358 = vmatpush2.bf16.msra.mxu0 %v4992
        %5359 = vmatprep.subr.bf16.mxu0 %v4984
        %5360 = vmatpush2.bf16.msra.mxu0 %v4983
        %5361 = vmatprep.subr.bf16.mxu0 %v4975
        %5362 = vmatpush2.bf16.msra.mxu0 %v4974
        %5363 = vmatprep.subr.bf16.mxu0 %v4966
        %5364 = vmatpush2.bf16.msra.mxu0 %v4965
        %5365 = vmatprep.subr.bf16.mxu0 %v4957
        %5366 = vmatpush2.bf16.msra.mxu0 %v4956
        %5367 = vmatprep.subr.bf16.mxu0 %v4948
        %5368 = vmatpush2.bf16.msra.mxu0 %v4947
        %5369 = vmatprep.subr.bf16.mxu0 %v4939
        %5370 = vmatpush2.bf16.msra.mxu0 %v4938
        %5371 = vmatprep.mubr.bf16.mxu0 %v3505
        %5372 = vmatmul.mubr.bf16.gmra.mxu0 %v3504
        %v5373 = vpop.f32.mrf.mxu0
        %v5374 = vadd.f32 %v5333, %v5373
        %v5375 = vpop.f32.mrf.mxu0
        %v5376 = vadd.f32 %v5335, %v5375
        %v5377 = vpop.f32.mrf.mxu0
        %v5378 = vpop.f32.mrf.mxu0
        %5379 = vdwg.mxu0
        %5380 = vmatprep.subr.bf16.mxu0 %v4788
        %5381 = vmatpush1.bf16.msra.mxu0 %v4787
        %5382 = vmatprep.subr.bf16.mxu0 %v4779
        %5383 = vmatpush1.bf16.msra.mxu0 %v4778
        %5384 = vmatprep.subr.bf16.mxu0 %v4770
        %5385 = vmatpush1.bf16.msra.mxu0 %v4769
        %5386 = vmatprep.subr.bf16.mxu0 %v4761
        %5387 = vmatpush1.bf16.msra.mxu0 %v4760
        %5388 = vmatprep.subr.bf16.mxu0 %v4752
        %5389 = vmatpush1.bf16.msra.mxu0 %v4751
        %5390 = vmatprep.subr.bf16.mxu0 %v4743
        %5391 = vmatpush1.bf16.msra.mxu0 %v4742
        %5392 = vmatprep.subr.bf16.mxu0 %v4734
        %5393 = vmatpush1.bf16.msra.mxu0 %v4733
        %5394 = vmatprep.subr.bf16.mxu0 %v4725
        %5395 = vmatpush1.bf16.msra.mxu0 %v4724
        %5396 = vmatprep.subr.bf16.mxu0 %v4860
        %5397 = vmatpush2.bf16.msra.mxu0 %v4859
        %5398 = vmatprep.subr.bf16.mxu0 %v4851
        %5399 = vmatpush2.bf16.msra.mxu0 %v4850
        %5400 = vmatprep.subr.bf16.mxu0 %v4842
        %5401 = vmatpush2.bf16.msra.mxu0 %v4841
        %5402 = vmatprep.subr.bf16.mxu0 %v4833
        %5403 = vmatpush2.bf16.msra.mxu0 %v4832
        %5404 = vmatprep.subr.bf16.mxu0 %v4824
        %5405 = vmatpush2.bf16.msra.mxu0 %v4823
        %5406 = vmatprep.subr.bf16.mxu0 %v4815
        %5407 = vmatpush2.bf16.msra.mxu0 %v4814
        %5408 = vmatprep.subr.bf16.mxu0 %v4806
        %5409 = vmatpush2.bf16.msra.mxu0 %v4805
        %5410 = vmatprep.subr.bf16.mxu0 %v4797
        %5411 = vmatpush2.bf16.msra.mxu0 %v4796
        %5412 = vmatprep.mubr.bf16.mxu0 %v3503
        %5413 = vmatmul.mubr.bf16.gmra.mxu0 %v3502
        %v5414 = vpop.f32.mrf.mxu0
        %v5415 = vadd.f32 0.0, %v5414
        %v5416 = vpop.f32.mrf.mxu0
        %v5417 = vadd.f32 0.0, %v5416
        %v5418 = vpop.f32.mrf.mxu0
        %v5419 = vpop.f32.mrf.mxu0
        %5420 = vdwg.mxu0
        %5421 = vmatprep.subr.bf16.mxu0 %v4932
        %5422 = vmatpush1.bf16.msra.mxu0 %v4931
        %5423 = vmatprep.subr.bf16.mxu0 %v4923
        %5424 = vmatpush1.bf16.msra.mxu0 %v4922
        %5425 = vmatprep.subr.bf16.mxu0 %v4914
        %5426 = vmatpush1.bf16.msra.mxu0 %v4913
        %5427 = vmatprep.subr.bf16.mxu0 %v4905
        %5428 = vmatpush1.bf16.msra.mxu0 %v4904
        %5429 = vmatprep.subr.bf16.mxu0 %v4896
        %5430 = vmatpush1.bf16.msra.mxu0 %v4895
        %5431 = vmatprep.subr.bf16.mxu0 %v4887
        %5432 = vmatpush1.bf16.msra.mxu0 %v4886
        %5433 = vmatprep.subr.bf16.mxu0 %v4878
        %5434 = vmatpush1.bf16.msra.mxu0 %v4877
        %5435 = vmatprep.subr.bf16.mxu0 %v4869
        %5436 = vmatpush1.bf16.msra.mxu0 %v4868
        %5437 = vmatprep.subr.bf16.mxu0 %v5004
        %5438 = vmatpush2.bf16.msra.mxu0 %v5003
        %5439 = vmatprep.subr.bf16.mxu0 %v4995
        %5440 = vmatpush2.bf16.msra.mxu0 %v4994
        %5441 = vmatprep.subr.bf16.mxu0 %v4986
        %5442 = vmatpush2.bf16.msra.mxu0 %v4985
        %5443 = vmatprep.subr.bf16.mxu0 %v4977
        %5444 = vmatpush2.bf16.msra.mxu0 %v4976
        %5445 = vmatprep.subr.bf16.mxu0 %v4968
        %5446 = vmatpush2.bf16.msra.mxu0 %v4967
        %5447 = vmatprep.subr.bf16.mxu0 %v4959
        %5448 = vmatpush2.bf16.msra.mxu0 %v4958
        %5449 = vmatprep.subr.bf16.mxu0 %v4950
        %5450 = vmatpush2.bf16.msra.mxu0 %v4949
        %5451 = vmatprep.subr.bf16.mxu0 %v4941
        %5452 = vmatpush2.bf16.msra.mxu0 %v4940
        %5453 = vmatprep.mubr.bf16.mxu0 %v3505
        %5454 = vmatmul.mubr.bf16.gmra.mxu0 %v3504
        %v5455 = vpop.f32.mrf.mxu0
        %v5456 = vadd.f32 %v5415, %v5455
        %v5457 = vpop.f32.mrf.mxu0
        %v5458 = vadd.f32 %v5417, %v5457
        %v5459 = vpop.f32.mrf.mxu0
        %v5460 = vpop.f32.mrf.mxu0
        %5461 = vdwg.mxu0
        %5462 = vmatprep.subr.bf16.mxu0 %v4790
        %5463 = vmatpush1.bf16.msra.mxu0 %v4789
        %5464 = vmatprep.subr.bf16.mxu0 %v4781
        %5465 = vmatpush1.bf16.msra.mxu0 %v4780
        %5466 = vmatprep.subr.bf16.mxu0 %v4772
        %5467 = vmatpush1.bf16.msra.mxu0 %v4771
        %5468 = vmatprep.subr.bf16.mxu0 %v4763
        %5469 = vmatpush1.bf16.msra.mxu0 %v4762
        %5470 = vmatprep.subr.bf16.mxu0 %v4754
        %5471 = vmatpush1.bf16.msra.mxu0 %v4753
        %5472 = vmatprep.subr.bf16.mxu0 %v4745
        %5473 = vmatpush1.bf16.msra.mxu0 %v4744
        %5474 = vmatprep.subr.bf16.mxu0 %v4736
        %5475 = vmatpush1.bf16.msra.mxu0 %v4735
        %5476 = vmatprep.subr.bf16.mxu0 %v4727
        %5477 = vmatpush1.bf16.msra.mxu0 %v4726
        %5478 = vmatprep.subr.bf16.mxu0 %v4862
        %5479 = vmatpush2.bf16.msra.mxu0 %v4861
        %5480 = vmatprep.subr.bf16.mxu0 %v4853
        %5481 = vmatpush2.bf16.msra.mxu0 %v4852
        %5482 = vmatprep.subr.bf16.mxu0 %v4844
        %5483 = vmatpush2.bf16.msra.mxu0 %v4843
        %5484 = vmatprep.subr.bf16.mxu0 %v4835
        %5485 = vmatpush2.bf16.msra.mxu0 %v4834
        %5486 = vmatprep.subr.bf16.mxu0 %v4826
        %5487 = vmatpush2.bf16.msra.mxu0 %v4825
        %5488 = vmatprep.subr.bf16.mxu0 %v4817
        %5489 = vmatpush2.bf16.msra.mxu0 %v4816
        %5490 = vmatprep.subr.bf16.mxu0 %v4808
        %5491 = vmatpush2.bf16.msra.mxu0 %v4807
        %5492 = vmatprep.subr.bf16.mxu0 %v4799
        %5493 = vmatpush2.bf16.msra.mxu0 %v4798
        %5494 = vmatprep.mubr.bf16.mxu0 %v3503
        %5495 = vmatmul.mubr.bf16.gmra.mxu0 %v3502
        %v5496 = vpop.f32.mrf.mxu0
        %v5497 = vadd.f32 0.0, %v5496
        %v5498 = vpop.f32.mrf.mxu0
        %v5499 = vadd.f32 0.0, %v5498
        %v5500 = vpop.f32.mrf.mxu0
        %v5501 = vpop.f32.mrf.mxu0
        %5502 = vdwg.mxu0
        %5503 = vmatprep.subr.bf16.mxu0 %v4934
        %5504 = vmatpush1.bf16.msra.mxu0 %v4933
        %5505 = vmatprep.subr.bf16.mxu0 %v4925
        %5506 = vmatpush1.bf16.msra.mxu0 %v4924
        %5507 = vmatprep.subr.bf16.mxu0 %v4916
        %5508 = vmatpush1.bf16.msra.mxu0 %v4915
        %5509 = vmatprep.subr.bf16.mxu0 %v4907
        %5510 = vmatpush1.bf16.msra.mxu0 %v4906
        %5511 = vmatprep.subr.bf16.mxu0 %v4898
        %5512 = vmatpush1.bf16.msra.mxu0 %v4897
        %5513 = vmatprep.subr.bf16.mxu0 %v4889
        %5514 = vmatpush1.bf16.msra.mxu0 %v4888
        %5515 = vmatprep.subr.bf16.mxu0 %v4880
        %5516 = vmatpush1.bf16.msra.mxu0 %v4879
        %5517 = vmatprep.subr.bf16.mxu0 %v4871
        %5518 = vmatpush1.bf16.msra.mxu0 %v4870
        %5519 = vmatprep.subr.bf16.mxu0 %v5006
        %5520 = vmatpush2.bf16.msra.mxu0 %v5005
        %5521 = vmatprep.subr.bf16.mxu0 %v4997
        %5522 = vmatpush2.bf16.msra.mxu0 %v4996
        %5523 = vmatprep.subr.bf16.mxu0 %v4988
        %5524 = vmatpush2.bf16.msra.mxu0 %v4987
        %5525 = vmatprep.subr.bf16.mxu0 %v4979
        %5526 = vmatpush2.bf16.msra.mxu0 %v4978
        %5527 = vmatprep.subr.bf16.mxu0 %v4970
        %5528 = vmatpush2.bf16.msra.mxu0 %v4969
        %5529 = vmatprep.subr.bf16.mxu0 %v4961
        %5530 = vmatpush2.bf16.msra.mxu0 %v4960
        %5531 = vmatprep.subr.bf16.mxu0 %v4952
        %5532 = vmatpush2.bf16.msra.mxu0 %v4951
        %5533 = vmatprep.subr.bf16.mxu0 %v4943
        %5534 = vmatpush2.bf16.msra.mxu0 %v4942
        %5535 = vmatprep.mubr.bf16.mxu0 %v3505
        %5536 = vmatmul.mubr.bf16.gmra.mxu0 %v3504
        %v5537 = vpop.f32.mrf.mxu0
        %v5538 = vadd.f32 %v5497, %v5537
        %v5539 = vpop.f32.mrf.mxu0
        %v5540 = vadd.f32 %v5499, %v5539
        %v5541 = vpop.f32.mrf.mxu0
        %v5542 = vpop.f32.mrf.mxu0
        %5543 = vdwg.mxu0
        %5544 = vmatprep.subr.bf16.mxu0 %v4792
        %5545 = vmatpush1.bf16.msra.mxu0 %v4791
        %5546 = vmatprep.subr.bf16.mxu0 %v4783
        %5547 = vmatpush1.bf16.msra.mxu0 %v4782
        %5548 = vmatprep.subr.bf16.mxu0 %v4774
        %5549 = vmatpush1.bf16.msra.mxu0 %v4773
        %5550 = vmatprep.subr.bf16.mxu0 %v4765
        %5551 = vmatpush1.bf16.msra.mxu0 %v4764
        %5552 = vmatprep.subr.bf16.mxu0 %v4756
        %5553 = vmatpush1.bf16.msra.mxu0 %v4755
        %5554 = vmatprep.subr.bf16.mxu0 %v4747
        %5555 = vmatpush1.bf16.msra.mxu0 %v4746
        %5556 = vmatprep.subr.bf16.mxu0 %v4738
        %5557 = vmatpush1.bf16.msra.mxu0 %v4737
        %5558 = vmatprep.subr.bf16.mxu0 %v4729
        %5559 = vmatpush1.bf16.msra.mxu0 %v4728
        %5560 = vmatprep.subr.bf16.mxu0 %v4864
        %5561 = vmatpush2.bf16.msra.mxu0 %v4863
        %5562 = vmatprep.subr.bf16.mxu0 %v4855
        %5563 = vmatpush2.bf16.msra.mxu0 %v4854
        %5564 = vmatprep.subr.bf16.mxu0 %v4846
        %5565 = vmatpush2.bf16.msra.mxu0 %v4845
        %5566 = vmatprep.subr.bf16.mxu0 %v4837
        %5567 = vmatpush2.bf16.msra.mxu0 %v4836
        %5568 = vmatprep.subr.bf16.mxu0 %v4828
        %5569 = vmatpush2.bf16.msra.mxu0 %v4827
        %5570 = vmatprep.subr.bf16.mxu0 %v4819
        %5571 = vmatpush2.bf16.msra.mxu0 %v4818
        %5572 = vmatprep.subr.bf16.mxu0 %v4810
        %5573 = vmatpush2.bf16.msra.mxu0 %v4809
        %5574 = vmatprep.subr.bf16.mxu0 %v4801
        %5575 = vmatpush2.bf16.msra.mxu0 %v4800
        %5576 = vmatprep.mubr.bf16.mxu0 %v3503
        %5577 = vmatmul.mubr.bf16.gmra.mxu0 %v3502
        %v5578 = vpop.f32.mrf.mxu0
        %v5579 = vadd.f32 0.0, %v5578
        %v5580 = vpop.f32.mrf.mxu0
        %v5581 = vadd.f32 0.0, %v5580
        %v5582 = vpop.f32.mrf.mxu0
        %v5583 = vpop.f32.mrf.mxu0
        %5584 = vdwg.mxu0
        %5585 = vmatprep.subr.bf16.mxu0 %v4936
        %5586 = vmatpush1.bf16.msra.mxu0 %v4935
        %5587 = vmatprep.subr.bf16.mxu0 %v4927
        %5588 = vmatpush1.bf16.msra.mxu0 %v4926
        %5589 = vmatprep.subr.bf16.mxu0 %v4918
        %5590 = vmatpush1.bf16.msra.mxu0 %v4917
        %5591 = vmatprep.subr.bf16.mxu0 %v4909
        %5592 = vmatpush1.bf16.msra.mxu0 %v4908
        %5593 = vmatprep.subr.bf16.mxu0 %v4900
        %5594 = vmatpush1.bf16.msra.mxu0 %v4899
        %5595 = vmatprep.subr.bf16.mxu0 %v4891
        %5596 = vmatpush1.bf16.msra.mxu0 %v4890
        %5597 = vmatprep.subr.bf16.mxu0 %v4882
        %5598 = vmatpush1.bf16.msra.mxu0 %v4881
        %5599 = vmatprep.subr.bf16.mxu0 %v4873
        %5600 = vmatpush1.bf16.msra.mxu0 %v4872
        %5601 = vmatprep.subr.bf16.mxu0 %v5008
        %5602 = vmatpush2.bf16.msra.mxu0 %v5007
        %5603 = vmatprep.subr.bf16.mxu0 %v4999
        %5604 = vmatpush2.bf16.msra.mxu0 %v4998
        %5605 = vmatprep.subr.bf16.mxu0 %v4990
        %5606 = vmatpush2.bf16.msra.mxu0 %v4989
        %5607 = vmatprep.subr.bf16.mxu0 %v4981
        %5608 = vmatpush2.bf16.msra.mxu0 %v4980
        %5609 = vmatprep.subr.bf16.mxu0 %v4972
        %5610 = vmatpush2.bf16.msra.mxu0 %v4971
        %5611 = vmatprep.subr.bf16.mxu0 %v4963
        %5612 = vmatpush2.bf16.msra.mxu0 %v4962
        %5613 = vmatprep.subr.bf16.mxu0 %v4954
        %5614 = vmatpush2.bf16.msra.mxu0 %v4953
        %5615 = vmatprep.subr.bf16.mxu0 %v4945
        %5616 = vmatpush2.bf16.msra.mxu0 %v4944
        %5617 = vmatprep.mubr.bf16.mxu0 %v3505
        %5618 = vmatmul.mubr.bf16.gmra.mxu0 %v3504
        %v5619 = vpop.f32.mrf.mxu0
        %v5620 = vadd.f32 %v5579, %v5619
        %v5621 = vpop.f32.mrf.mxu0
        %v5622 = vadd.f32 %v5581, %v5621
        %v5623 = vpop.f32.mrf.mxu0
        %v5624 = vpop.f32.mrf.mxu0
        %5625 = vdwg.mxu0
        %5626 = vmatprep.subr.bf16.mxu0 0
        %5627 = vmatpush1.bf16.msra.mxu0 %v4793
        %5628 = vmatprep.subr.bf16.mxu0 0
        %5629 = vmatpush1.bf16.msra.mxu0 %v4784
        %5630 = vmatprep.subr.bf16.mxu0 0
        %5631 = vmatpush1.bf16.msra.mxu0 %v4775
        %5632 = vmatprep.subr.bf16.mxu0 0
        %5633 = vmatpush1.bf16.msra.mxu0 %v4766
        %5634 = vmatprep.subr.bf16.mxu0 0
        %5635 = vmatpush1.bf16.msra.mxu0 %v4757
        %5636 = vmatprep.subr.bf16.mxu0 0
        %5637 = vmatpush1.bf16.msra.mxu0 %v4748
        %5638 = vmatprep.subr.bf16.mxu0 0
        %5639 = vmatpush1.bf16.msra.mxu0 %v4739
        %5640 = vmatprep.subr.bf16.mxu0 0
        %5641 = vmatpush1.bf16.msra.mxu0 %v4730
        %5642 = vmatprep.subr.bf16.mxu0 0
        %5643 = vmatpush2.bf16.msra.mxu0 %v4865
        %5644 = vmatprep.subr.bf16.mxu0 0
        %5645 = vmatpush2.bf16.msra.mxu0 %v4856
        %5646 = vmatprep.subr.bf16.mxu0 0
        %5647 = vmatpush2.bf16.msra.mxu0 %v4847
        %5648 = vmatprep.subr.bf16.mxu0 0
        %5649 = vmatpush2.bf16.msra.mxu0 %v4838
        %5650 = vmatprep.subr.bf16.mxu0 0
        %5651 = vmatpush2.bf16.msra.mxu0 %v4829
        %5652 = vmatprep.subr.bf16.mxu0 0
        %5653 = vmatpush2.bf16.msra.mxu0 %v4820
        %5654 = vmatprep.subr.bf16.mxu0 0
        %5655 = vmatpush2.bf16.msra.mxu0 %v4811
        %5656 = vmatprep.subr.bf16.mxu0 0
        %5657 = vmatpush2.bf16.msra.mxu0 %v4802
        %5658 = vmatprep.mubr.bf16.mxu0 %v3503
        %5659 = vmatmul.mubr.bf16.gmra.mxu0 %v3502
        %v5660 = vpop.f32.mrf.mxu0
        %v5661 = vadd.f32 0.0, %v5660
        %v5662 = vpop.f32.mrf.mxu0
        %v5663 = vpop.f32.mrf.mxu0
        %v5664 = vpop.f32.mrf.mxu0
        %5665 = vdwg.mxu0
        %5666 = vmatprep.subr.bf16.mxu0 0
        %5667 = vmatpush1.bf16.msra.mxu0 %v4937
        %5668 = vmatprep.subr.bf16.mxu0 0
        %5669 = vmatpush1.bf16.msra.mxu0 %v4928
        %5670 = vmatprep.subr.bf16.mxu0 0
        %5671 = vmatpush1.bf16.msra.mxu0 %v4919
        %5672 = vmatprep.subr.bf16.mxu0 0
        %5673 = vmatpush1.bf16.msra.mxu0 %v4910
        %5674 = vmatprep.subr.bf16.mxu0 0
        %5675 = vmatpush1.bf16.msra.mxu0 %v4901
        %5676 = vmatprep.subr.bf16.mxu0 0
        %5677 = vmatpush1.bf16.msra.mxu0 %v4892
        %5678 = vmatprep.subr.bf16.mxu0 0
        %5679 = vmatpush1.bf16.msra.mxu0 %v4883
        %5680 = vmatprep.subr.bf16.mxu0 0
        %5681 = vmatpush1.bf16.msra.mxu0 %v4874
        %5682 = vmatprep.subr.bf16.mxu0 0
        %5683 = vmatpush2.bf16.msra.mxu0 %v5009
        %5684 = vmatprep.subr.bf16.mxu0 0
        %5685 = vmatpush2.bf16.msra.mxu0 %v5000
        %5686 = vmatprep.subr.bf16.mxu0 0
        %5687 = vmatpush2.bf16.msra.mxu0 %v4991
        %5688 = vmatprep.subr.bf16.mxu0 0
        %5689 = vmatpush2.bf16.msra.mxu0 %v4982
        %5690 = vmatprep.subr.bf16.mxu0 0
        %5691 = vmatpush2.bf16.msra.mxu0 %v4973
        %5692 = vmatprep.subr.bf16.mxu0 0
        %5693 = vmatpush2.bf16.msra.mxu0 %v4964
        %5694 = vmatprep.subr.bf16.mxu0 0
        %5695 = vmatpush2.bf16.msra.mxu0 %v4955
        %5696 = vmatprep.subr.bf16.mxu0 0
        %5697 = vmatpush2.bf16.msra.mxu0 %v4946
        %5698 = vmatprep.mubr.bf16.mxu0 %v3505
        %5699 = vmatmul.mubr.bf16.gmra.mxu0 %v3504
        %v5700 = vpop.f32.mrf.mxu0
        %v5701 = vadd.f32 %v5661, %v5700
        %v5702 = vpop.f32.mrf.mxu0
        %v5703 = vpop.f32.mrf.mxu0
        %v5704 = vpop.f32.mrf.mxu0
        %5705 = vdwg.mxu0
        %v5706 = vld [vmem:[#allocation14] sm:$0xff]
        %v5707 = vld [vmem:[#allocation14 + $0x8] sm:$0x1]
        %v5710 = vlaneseq
        %v5711 = vshrl.u32 %v5710, 7
        %v5712 = vsub.s32 0, %v5711
        %v5713 = vrot.slane %v5706, %v5712
        %v5714 = vlaneseq
        %v5715 = vshrl.u32 %v5714, 7
        %v5716 = vsub.s32 1, %v5715
        %v5717 = vrot.slane %v5706, %v5716
        %v5718 = vlaneseq
        %v5719 = vshrl.u32 %v5718, 7
        %v5720 = vsub.s32 2, %v5719
        %v5721 = vrot.slane %v5706, %v5720
        %v5722 = vlaneseq
        %v5723 = vshrl.u32 %v5722, 7
        %v5724 = vsub.s32 3, %v5723
        %v5725 = vrot.slane %v5706, %v5724
        %v5726 = vlaneseq
        %v5727 = vshrl.u32 %v5726, 7
        %v5728 = vsub.s32 4, %v5727
        %v5729 = vrot.slane %v5706, %v5728
        %v5730 = vlaneseq
        %v5731 = vshrl.u32 %v5730, 7
        %v5732 = vsub.s32 5, %v5731
        %v5733 = vrot.slane %v5706, %v5732
        %v5734 = vlaneseq
        %v5735 = vshrl.u32 %v5734, 7
        %v5736 = vsub.s32 6, %v5735
        %v5737 = vrot.slane %v5706, %v5736
        %v5738 = vlaneseq
        %v5739 = vshrl.u32 %v5738, 7
        %v5740 = vsub.s32 7, %v5739
        %v5741 = vrot.slane %v5706, %v5740
        %v5742 = vlaneseq
        %v5743 = vshrl.u32 %v5742, 7
        %v5744 = vsub.s32 0, %v5743
        %v5745 = vrot.slane %v5707, %v5744
        %v5755 = vmul.f32 %v5374, %v5713
        %v5756 = vmul.f32 %v5376, %v5717
        %v5757 = vmul.f32 %v5456, %v5721
        %v5758 = vmul.f32 %v5458, %v5725
        %v5759 = vmul.f32 %v5538, %v5729
        %v5760 = vmul.f32 %v5540, %v5733
        %v5761 = vmul.f32 %v5620, %v5737
        %v5762 = vmul.f32 %v5622, %v5741
        %v5763 = vmul.f32 %v5701, %v5745
        %v5764 = vld [vmem:[#allocation16] sm:$0xff]
        %v5765 = vld [vmem:[#allocation16 + $0x8] sm:$0x1]
        %v5768 = vlaneseq
        %v5769 = vshrl.u32 %v5768, 7
        %v5770 = vsub.s32 0, %v5769
        %v5771 = vrot.slane %v5764, %v5770
        %v5772 = vlaneseq
        %v5773 = vshrl.u32 %v5772, 7
        %v5774 = vsub.s32 1, %v5773
        %v5775 = vrot.slane %v5764, %v5774
        %v5776 = vlaneseq
        %v5777 = vshrl.u32 %v5776, 7
        %v5778 = vsub.s32 2, %v5777
        %v5779 = vrot.slane %v5764, %v5778
        %v5780 = vlaneseq
        %v5781 = vshrl.u32 %v5780, 7
        %v5782 = vsub.s32 3, %v5781
        %v5783 = vrot.slane %v5764, %v5782
        %v5784 = vlaneseq
        %v5785 = vshrl.u32 %v5784, 7
        %v5786 = vsub.s32 4, %v5785
        %v5787 = vrot.slane %v5764, %v5786
        %v5788 = vlaneseq
        %v5789 = vshrl.u32 %v5788, 7
        %v5790 = vsub.s32 5, %v5789
        %v5791 = vrot.slane %v5764, %v5790
        %v5792 = vlaneseq
        %v5793 = vshrl.u32 %v5792, 7
        %v5794 = vsub.s32 6, %v5793
        %v5795 = vrot.slane %v5764, %v5794
        %v5796 = vlaneseq
        %v5797 = vshrl.u32 %v5796, 7
        %v5798 = vsub.s32 7, %v5797
        %v5799 = vrot.slane %v5764, %v5798
        %v5800 = vlaneseq
        %v5801 = vshrl.u32 %v5800, 7
        %v5802 = vsub.s32 0, %v5801
        %v5803 = vrot.slane %v5765, %v5802
        %v5813 = vadd.f32 %v5755, %v5771
        %v5814 = vadd.f32 %v5756, %v5775
        %v5815 = vadd.f32 %v5757, %v5779
        %v5816 = vadd.f32 %v5758, %v5783
        %v5817 = vadd.f32 %v5759, %v5787
        %v5818 = vadd.f32 %v5760, %v5791
        %v5819 = vadd.f32 %v5761, %v5795
        %v5820 = vadd.f32 %v5762, %v5799
        %v5821 = vadd.f32 %v5763, %v5803
        %v5822 = vmax.f32 %v5813, 0.0
        %v5823 = vmax.f32 %v5814, 0.0
        %v5824 = vmax.f32 %v5815, 0.0
        %v5825 = vmax.f32 %v5816, 0.0
        %v5826 = vmax.f32 %v5817, 0.0
        %v5827 = vmax.f32 %v5818, 0.0
        %v5828 = vmax.f32 %v5819, 0.0
        %v5829 = vmax.f32 %v5820, 0.0
        %v5830 = vmax.f32 %v5821, 0.0
        %5831 = vst [vmem:[%s544] sm:$0xff] %v5822
        %5832 = vst [vmem:[%s544 + $0x8] sm:$0xff] %v5823
        %5833 = vst [vmem:[%s544 + $0x10] sm:$0xff] %v5824
        %5834 = vst [vmem:[%s544 + $0x18] sm:$0xff] %v5825
        %5835 = vst [vmem:[%s544 + $0x20] sm:$0xff] %v5826
        %5836 = vst [vmem:[%s544 + $0x28] sm:$0xff] %v5827
        %5837 = vst [vmem:[%s544 + $0x30] sm:$0xff] %v5828
        %5838 = vst [vmem:[%s544 + $0x38] sm:$0xff] %v5829
        %5839 = vst [vmem:[%s544 + $0x40] sm:$0xff] %v5830
        %v5840 = vpack.c.bf16 %v5822, %v5822
        %v5841 = vpack.c.bf16 %v5823, %v5823
        %v5842 = vpack.c.bf16 %v5824, %v5824
        %v5843 = vpack.c.bf16 %v5825, %v5825
        %v5844 = vpack.c.bf16 %v5826, %v5826
        %v5845 = vpack.c.bf16 %v5827, %v5827
        %v5846 = vpack.c.bf16 %v5828, %v5828
        %v5847 = vpack.c.bf16 %v5829, %v5829
        %v5848 = vpack.c.bf16 %v5830, %v5830
        %v5849 = vld [vmem:[#allocation17] sm:$0xff]
        %v5850 = vld [vmem:[#allocation17 + $0x8] sm:$0xff]
        %v5851 = vld [vmem:[#allocation17 + $0x10] sm:$0xff]
        %v5852 = vld [vmem:[#allocation17 + $0x18] sm:$0xff]
        %v5853 = vld [vmem:[#allocation17 + $0x20] sm:$0xf]
        %v5854 = vld [vmem:[#allocation17 + $0x24] sm:$0xff]
        %v5855 = vld [vmem:[#allocation17 + $0x2c] sm:$0xff]
        %v5856 = vld [vmem:[#allocation17 + $0x34] sm:$0xff]
        %v5857 = vld [vmem:[#allocation17 + $0x3c] sm:$0xff]
        %v5858 = vld [vmem:[#allocation17 + $0x44] sm:$0xf]
        %v5859 = vld [vmem:[#allocation17 + $0x48] sm:$0xff]
        %v5860 = vld [vmem:[#allocation17 + $0x50] sm:$0xff]
        %v5861 = vld [vmem:[#allocation17 + $0x58] sm:$0xff]
        %v5862 = vld [vmem:[#allocation17 + $0x60] sm:$0xff]
        %v5863 = vld [vmem:[#allocation17 + $0x68] sm:$0xf]
        %v5864 = vld [vmem:[#allocation17 + $0x6c] sm:$0xff]
        %v5865 = vld [vmem:[#allocation17 + $0x74] sm:$0xff]
        %v5866 = vld [vmem:[#allocation17 + $0x7c] sm:$0xff]
        %v5867 = vld [vmem:[#allocation17 + $0x84] sm:$0xff]
        %v5868 = vld [vmem:[#allocation17 + $0x8c] sm:$0xf]
        %v5869 = vld [vmem:[#allocation17 + $0x90] sm:$0xff]
        %v5870 = vld [vmem:[#allocation17 + $0x98] sm:$0xff]
        %v5871 = vld [vmem:[#allocation17 + $0xa0] sm:$0xff]
        %v5872 = vld [vmem:[#allocation17 + $0xa8] sm:$0xff]
        %v5873 = vld [vmem:[#allocation17 + $0xb0] sm:$0xf]
        %v5874 = vld [vmem:[#allocation17 + $0xb4] sm:$0xff]
        %v5875 = vld [vmem:[#allocation17 + $0xbc] sm:$0xff]
        %v5876 = vld [vmem:[#allocation17 + $0xc4] sm:$0xff]
        %v5877 = vld [vmem:[#allocation17 + $0xcc] sm:$0xff]
        %v5878 = vld [vmem:[#allocation17 + $0xd4] sm:$0xf]
        %v5879 = vld [vmem:[#allocation17 + $0xd8] sm:$0xff]
        %v5880 = vld [vmem:[#allocation17 + $0xe0] sm:$0xff]
        %v5881 = vld [vmem:[#allocation17 + $0xe8] sm:$0xff]
        %v5882 = vld [vmem:[#allocation17 + $0xf0] sm:$0xff]
        %v5883 = vld [vmem:[#allocation17 + $0xf8] sm:$0xf]
        %v5884 = vld [vmem:[#allocation17 + $0xfc] sm:$0xff]
        %v5885 = vld [vmem:[#allocation17 + $0x104] sm:$0xff]
        %v5886 = vld [vmem:[#allocation17 + $0x10c] sm:$0xff]
        %v5887 = vld [vmem:[#allocation17 + $0x114] sm:$0xff]
        %v5888 = vld [vmem:[#allocation17 + $0x11c] sm:$0xf]
        %v5889 = vld [vmem:[#allocation17 + $0x120] sm:$0xff]
        %v5890 = vld [vmem:[#allocation17 + $0x128] sm:$0xff]
        %v5891 = vld [vmem:[#allocation17 + $0x130] sm:$0xff]
        %v5892 = vld [vmem:[#allocation17 + $0x138] sm:$0xff]
        %v5893 = vld [vmem:[#allocation17 + $0x140] sm:$0xf]
        %v5894 = vld [vmem:[#allocation17 + $0x144] sm:$0xff]
        %v5895 = vld [vmem:[#allocation17 + $0x14c] sm:$0xff]
        %v5896 = vld [vmem:[#allocation17 + $0x154] sm:$0xff]
        %v5897 = vld [vmem:[#allocation17 + $0x15c] sm:$0xff]
        %v5898 = vld [vmem:[#allocation17 + $0x164] sm:$0xf]
        %v5899 = vld [vmem:[#allocation17 + $0x168] sm:$0xff]
        %v5900 = vld [vmem:[#allocation17 + $0x170] sm:$0xff]
        %v5901 = vld [vmem:[#allocation17 + $0x178] sm:$0xff]
        %v5902 = vld [vmem:[#allocation17 + $0x180] sm:$0xff]
        %v5903 = vld [vmem:[#allocation17 + $0x188] sm:$0xf]
        %v5904 = vld [vmem:[#allocation17 + $0x18c] sm:$0xff]
        %v5905 = vld [vmem:[#allocation17 + $0x194] sm:$0xff]
        %v5906 = vld [vmem:[#allocation17 + $0x19c] sm:$0xff]
        %v5907 = vld [vmem:[#allocation17 + $0x1a4] sm:$0xff]
        %v5908 = vld [vmem:[#allocation17 + $0x1ac] sm:$0xf]
        %v5909 = vld [vmem:[#allocation17 + $0x1b0] sm:$0xff]
        %v5910 = vld [vmem:[#allocation17 + $0x1b8] sm:$0xff]
        %v5911 = vld [vmem:[#allocation17 + $0x1c0] sm:$0xff]
        %v5912 = vld [vmem:[#allocation17 + $0x1c8] sm:$0xff]
        %v5913 = vld [vmem:[#allocation17 + $0x1d0] sm:$0xf]
        %v5914 = vld [vmem:[#allocation17 + $0x1d4] sm:$0xff]
        %v5915 = vld [vmem:[#allocation17 + $0x1dc] sm:$0xff]
        %v5916 = vld [vmem:[#allocation17 + $0x1e4] sm:$0xff]
        %v5917 = vld [vmem:[#allocation17 + $0x1ec] sm:$0xff]
        %v5918 = vld [vmem:[#allocation17 + $0x1f4] sm:$0xf]
        %v5919 = vld [vmem:[#allocation17 + $0x1f8] sm:$0xff]
        %v5920 = vld [vmem:[#allocation17 + $0x200] sm:$0xff]
        %v5921 = vld [vmem:[#allocation17 + $0x208] sm:$0xff]
        %v5922 = vld [vmem:[#allocation17 + $0x210] sm:$0xff]
        %v5923 = vld [vmem:[#allocation17 + $0x218] sm:$0xf]
        %v5924 = vld [vmem:[#allocation17 + $0x21c] sm:$0xff]
        %v5925 = vld [vmem:[#allocation17 + $0x224] sm:$0xff]
        %v5926 = vld [vmem:[#allocation17 + $0x22c] sm:$0xff]
        %v5927 = vld [vmem:[#allocation17 + $0x234] sm:$0xff]
        %v5928 = vld [vmem:[#allocation17 + $0x23c] sm:$0xf]
        %v5929 = vld [vmem:[#allocation17 + $0x240] sm:$0xff]
        %v5930 = vld [vmem:[#allocation17 + $0x248] sm:$0xff]
        %v5931 = vld [vmem:[#allocation17 + $0x250] sm:$0xff]
        %v5932 = vld [vmem:[#allocation17 + $0x258] sm:$0xff]
        %v5933 = vld [vmem:[#allocation17 + $0x260] sm:$0xf]
        %v5934 = vld [vmem:[#allocation17 + $0x264] sm:$0xff]
        %v5935 = vld [vmem:[#allocation17 + $0x26c] sm:$0xff]
        %v5936 = vld [vmem:[#allocation17 + $0x274] sm:$0xff]
        %v5937 = vld [vmem:[#allocation17 + $0x27c] sm:$0xff]
        %v5938 = vld [vmem:[#allocation17 + $0x284] sm:$0xf]
        %v5939 = vld [vmem:[#allocation17 + $0x288] sm:$0xff]
        %v5940 = vld [vmem:[#allocation17 + $0x290] sm:$0xff]
        %v5941 = vld [vmem:[#allocation17 + $0x298] sm:$0xff]
        %v5942 = vld [vmem:[#allocation17 + $0x2a0] sm:$0xff]
        %v5943 = vld [vmem:[#allocation17 + $0x2a8] sm:$0xf]
        %v5944 = vld [vmem:[#allocation17 + $0x2ac] sm:$0xff]
        %v5945 = vld [vmem:[#allocation17 + $0x2b4] sm:$0xff]
        %v5946 = vld [vmem:[#allocation17 + $0x2bc] sm:$0xff]
        %v5947 = vld [vmem:[#allocation17 + $0x2c4] sm:$0xff]
        %v5948 = vld [vmem:[#allocation17 + $0x2cc] sm:$0xf]
        %v5949 = vld [vmem:[#allocation17 + $0x2d0] sm:$0xff]
        %v5950 = vld [vmem:[#allocation17 + $0x2d8] sm:$0xff]
        %v5951 = vld [vmem:[#allocation17 + $0x2e0] sm:$0xff]
        %v5952 = vld [vmem:[#allocation17 + $0x2e8] sm:$0xff]
        %v5953 = vld [vmem:[#allocation17 + $0x2f0] sm:$0xf]
        %v5954 = vld [vmem:[#allocation17 + $0x2f4] sm:$0xff]
        %v5955 = vld [vmem:[#allocation17 + $0x2fc] sm:$0xff]
        %v5956 = vld [vmem:[#allocation17 + $0x304] sm:$0xff]
        %v5957 = vld [vmem:[#allocation17 + $0x30c] sm:$0xff]
        %v5958 = vld [vmem:[#allocation17 + $0x314] sm:$0xf]
        %v5959 = vld [vmem:[#allocation17 + $0x318] sm:$0xff]
        %v5960 = vld [vmem:[#allocation17 + $0x320] sm:$0xff]
        %v5961 = vld [vmem:[#allocation17 + $0x328] sm:$0xff]
        %v5962 = vld [vmem:[#allocation17 + $0x330] sm:$0xff]
        %v5963 = vld [vmem:[#allocation17 + $0x338] sm:$0xf]
        %v5964 = vld [vmem:[#allocation17 + $0x33c] sm:$0xff]
        %v5965 = vld [vmem:[#allocation17 + $0x344] sm:$0xff]
        %v5966 = vld [vmem:[#allocation17 + $0x34c] sm:$0xff]
        %v5967 = vld [vmem:[#allocation17 + $0x354] sm:$0xff]
        %v5968 = vld [vmem:[#allocation17 + $0x35c] sm:$0xf]
        %v5969 = vld [vmem:[#allocation17 + $0x360] sm:$0xff]
        %v5970 = vld [vmem:[#allocation17 + $0x368] sm:$0xff]
        %v5971 = vld [vmem:[#allocation17 + $0x370] sm:$0xff]
        %v5972 = vld [vmem:[#allocation17 + $0x378] sm:$0xff]
        %v5973 = vld [vmem:[#allocation17 + $0x380] sm:$0xf]
        %v5974 = vld [vmem:[#allocation17 + $0x384] sm:$0xff]
        %v5975 = vld [vmem:[#allocation17 + $0x38c] sm:$0xff]
        %v5976 = vld [vmem:[#allocation17 + $0x394] sm:$0xff]
        %v5977 = vld [vmem:[#allocation17 + $0x39c] sm:$0xff]
        %v5978 = vld [vmem:[#allocation17 + $0x3a4] sm:$0xf]
        %v5979 = vld [vmem:[#allocation17 + $0x3a8] sm:$0xff]
        %v5980 = vld [vmem:[#allocation17 + $0x3b0] sm:$0xff]
        %v5981 = vld [vmem:[#allocation17 + $0x3b8] sm:$0xff]
        %v5982 = vld [vmem:[#allocation17 + $0x3c0] sm:$0xff]
        %v5983 = vld [vmem:[#allocation17 + $0x3c8] sm:$0xf]
        %v5984 = vld [vmem:[#allocation17 + $0x3cc] sm:$0xff]
        %v5985 = vld [vmem:[#allocation17 + $0x3d4] sm:$0xff]
        %v5986 = vld [vmem:[#allocation17 + $0x3dc] sm:$0xff]
        %v5987 = vld [vmem:[#allocation17 + $0x3e4] sm:$0xff]
        %v5988 = vld [vmem:[#allocation17 + $0x3ec] sm:$0xf]
        %v5989 = vld [vmem:[#allocation17 + $0x3f0] sm:$0xff]
        %v5990 = vld [vmem:[#allocation17 + $0x3f8] sm:$0xff]
        %v5991 = vld [vmem:[#allocation17 + $0x400] sm:$0xff]
        %v5992 = vld [vmem:[#allocation17 + $0x408] sm:$0xff]
        %v5993 = vld [vmem:[#allocation17 + $0x410] sm:$0xf]
        %v5994 = vld [vmem:[#allocation17 + $0x414] sm:$0xff]
        %v5995 = vld [vmem:[#allocation17 + $0x41c] sm:$0xff]
        %v5996 = vld [vmem:[#allocation17 + $0x424] sm:$0xff]
        %v5997 = vld [vmem:[#allocation17 + $0x42c] sm:$0xff]
        %v5998 = vld [vmem:[#allocation17 + $0x434] sm:$0xf]
        %v5999 = vld [vmem:[#allocation17 + $0x438] sm:$0xff]
        %v6000 = vld [vmem:[#allocation17 + $0x440] sm:$0xff]
        %v6001 = vld [vmem:[#allocation17 + $0x448] sm:$0xff]
        %v6002 = vld [vmem:[#allocation17 + $0x450] sm:$0xff]
        %v6003 = vld [vmem:[#allocation17 + $0x458] sm:$0xf]
        %v6004 = vld [vmem:[#allocation17 + $0x45c] sm:$0xff]
        %v6005 = vld [vmem:[#allocation17 + $0x464] sm:$0xff]
        %v6006 = vld [vmem:[#allocation17 + $0x46c] sm:$0xff]
        %v6007 = vld [vmem:[#allocation17 + $0x474] sm:$0xff]
        %v6008 = vld [vmem:[#allocation17 + $0x47c] sm:$0xf]
        %v6009 = vld [vmem:[#allocation17 + $0x480] sm:$0xff]
        %v6010 = vld [vmem:[#allocation17 + $0x488] sm:$0xff]
        %v6011 = vld [vmem:[#allocation17 + $0x490] sm:$0xff]
        %v6012 = vld [vmem:[#allocation17 + $0x498] sm:$0xff]
        %v6013 = vld [vmem:[#allocation17 + $0x4a0] sm:$0xf]
        %v6014 = vld [vmem:[#allocation17 + $0x4a4] sm:$0xff]
        %v6015 = vld [vmem:[#allocation17 + $0x4ac] sm:$0xff]
        %v6016 = vld [vmem:[#allocation17 + $0x4b4] sm:$0xff]
        %v6017 = vld [vmem:[#allocation17 + $0x4bc] sm:$0xff]
        %v6018 = vld [vmem:[#allocation17 + $0x4c4] sm:$0xf]
        %v6019 = vld [vmem:[#allocation17 + $0x4c8] sm:$0xff]
        %v6020 = vld [vmem:[#allocation17 + $0x4d0] sm:$0xff]
        %v6021 = vld [vmem:[#allocation17 + $0x4d8] sm:$0xff]
        %v6022 = vld [vmem:[#allocation17 + $0x4e0] sm:$0xff]
        %v6023 = vld [vmem:[#allocation17 + $0x4e8] sm:$0xf]
        %v6024 = vld [vmem:[#allocation17 + $0x4ec] sm:$0xff]
        %v6025 = vld [vmem:[#allocation17 + $0x4f4] sm:$0xff]
        %v6026 = vld [vmem:[#allocation17 + $0x4fc] sm:$0xff]
        %v6027 = vld [vmem:[#allocation17 + $0x504] sm:$0xff]
        %v6028 = vld [vmem:[#allocation17 + $0x50c] sm:$0xf]
        %v6029 = vld [vmem:[#allocation17 + $0x510] sm:$0xff]
        %v6030 = vld [vmem:[#allocation17 + $0x518] sm:$0xff]
        %v6031 = vld [vmem:[#allocation17 + $0x520] sm:$0xff]
        %v6032 = vld [vmem:[#allocation17 + $0x528] sm:$0xff]
        %v6033 = vld [vmem:[#allocation17 + $0x530] sm:$0xf]
        %v6034 = vld [vmem:[#allocation17 + $0x534] sm:$0xff]
        %v6035 = vld [vmem:[#allocation17 + $0x53c] sm:$0xff]
        %v6036 = vld [vmem:[#allocation17 + $0x544] sm:$0xff]
        %v6037 = vld [vmem:[#allocation17 + $0x54c] sm:$0xff]
        %v6038 = vld [vmem:[#allocation17 + $0x554] sm:$0xf]
        %v6039 = vld [vmem:[#allocation17 + $0x558] sm:$0xff]
        %v6040 = vld [vmem:[#allocation17 + $0x560] sm:$0xff]
        %v6041 = vld [vmem:[#allocation17 + $0x568] sm:$0xff]
        %v6042 = vld [vmem:[#allocation17 + $0x570] sm:$0xff]
        %v6043 = vld [vmem:[#allocation17 + $0x578] sm:$0xf]
        %v6044 = vld [vmem:[#allocation17 + $0x57c] sm:$0xff]
        %v6045 = vld [vmem:[#allocation17 + $0x584] sm:$0xff]
        %v6046 = vld [vmem:[#allocation17 + $0x58c] sm:$0xff]
        %v6047 = vld [vmem:[#allocation17 + $0x594] sm:$0xff]
        %v6048 = vld [vmem:[#allocation17 + $0x59c] sm:$0xf]
        %v6049 = vld [vmem:[#allocation17 + $0x5a0] sm:$0xff]
        %v6050 = vld [vmem:[#allocation17 + $0x5a8] sm:$0xff]
        %v6051 = vld [vmem:[#allocation17 + $0x5b0] sm:$0xff]
        %v6052 = vld [vmem:[#allocation17 + $0x5b8] sm:$0xff]
        %v6053 = vld [vmem:[#allocation17 + $0x5c0] sm:$0xf]
        %v6054 = vld [vmem:[#allocation17 + $0x5c4] sm:$0xff]
        %v6055 = vld [vmem:[#allocation17 + $0x5cc] sm:$0xff]
        %v6056 = vld [vmem:[#allocation17 + $0x5d4] sm:$0xff]
        %v6057 = vld [vmem:[#allocation17 + $0x5dc] sm:$0xff]
        %v6058 = vld [vmem:[#allocation17 + $0x5e4] sm:$0xf]
        %v6059 = vld [vmem:[#allocation17 + $0x5e8] sm:$0xff]
        %v6060 = vld [vmem:[#allocation17 + $0x5f0] sm:$0xff]
        %v6061 = vld [vmem:[#allocation17 + $0x5f8] sm:$0xff]
        %v6062 = vld [vmem:[#allocation17 + $0x600] sm:$0xff]
        %v6063 = vld [vmem:[#allocation17 + $0x608] sm:$0xf]
        %v6064 = vld [vmem:[#allocation17 + $0x60c] sm:$0xff]
        %v6065 = vld [vmem:[#allocation17 + $0x614] sm:$0xff]
        %v6066 = vld [vmem:[#allocation17 + $0x61c] sm:$0xff]
        %v6067 = vld [vmem:[#allocation17 + $0x624] sm:$0xff]
        %v6068 = vld [vmem:[#allocation17 + $0x62c] sm:$0xf]
        %v6069 = vld [vmem:[#allocation17 + $0x630] sm:$0xff]
        %v6070 = vld [vmem:[#allocation17 + $0x638] sm:$0xff]
        %v6071 = vld [vmem:[#allocation17 + $0x640] sm:$0xff]
        %v6072 = vld [vmem:[#allocation17 + $0x648] sm:$0xff]
        %v6073 = vld [vmem:[#allocation17 + $0x650] sm:$0xf]
        %v6074 = vld [vmem:[#allocation17 + $0x654] sm:$0xff]
        %v6075 = vld [vmem:[#allocation17 + $0x65c] sm:$0xff]
        %v6076 = vld [vmem:[#allocation17 + $0x664] sm:$0xff]
        %v6077 = vld [vmem:[#allocation17 + $0x66c] sm:$0xff]
        %v6078 = vld [vmem:[#allocation17 + $0x674] sm:$0xf]
        %v6079 = vld [vmem:[#allocation17 + $0x678] sm:$0xff]
        %v6080 = vld [vmem:[#allocation17 + $0x680] sm:$0xff]
        %v6081 = vld [vmem:[#allocation17 + $0x688] sm:$0xff]
        %v6082 = vld [vmem:[#allocation17 + $0x690] sm:$0xff]
        %v6083 = vld [vmem:[#allocation17 + $0x698] sm:$0xf]
        %v6084 = vld [vmem:[#allocation17 + $0x69c] sm:$0xff]
        %v6085 = vld [vmem:[#allocation17 + $0x6a4] sm:$0xff]
        %v6086 = vld [vmem:[#allocation17 + $0x6ac] sm:$0xff]
        %v6087 = vld [vmem:[#allocation17 + $0x6b4] sm:$0xff]
        %v6088 = vld [vmem:[#allocation17 + $0x6bc] sm:$0xf]
        %v6089 = vld [vmem:[#allocation17 + $0x6c0] sm:$0xff]
        %v6090 = vld [vmem:[#allocation17 + $0x6c8] sm:$0xff]
        %v6091 = vld [vmem:[#allocation17 + $0x6d0] sm:$0xff]
        %v6092 = vld [vmem:[#allocation17 + $0x6d8] sm:$0xff]
        %v6093 = vld [vmem:[#allocation17 + $0x6e0] sm:$0xf]
        %v6094 = vld [vmem:[#allocation17 + $0x6e4] sm:$0xff]
        %v6095 = vld [vmem:[#allocation17 + $0x6ec] sm:$0xff]
        %v6096 = vld [vmem:[#allocation17 + $0x6f4] sm:$0xff]
        %v6097 = vld [vmem:[#allocation17 + $0x6fc] sm:$0xff]
        %v6098 = vld [vmem:[#allocation17 + $0x704] sm:$0xf]
        %v6099 = vld [vmem:[#allocation17 + $0x708] sm:$0xff]
        %v6100 = vld [vmem:[#allocation17 + $0x710] sm:$0xff]
        %v6101 = vld [vmem:[#allocation17 + $0x718] sm:$0xff]
        %v6102 = vld [vmem:[#allocation17 + $0x720] sm:$0xff]
        %v6103 = vld [vmem:[#allocation17 + $0x728] sm:$0xf]
        %v6104 = vld [vmem:[#allocation17 + $0x72c] sm:$0xff]
        %v6105 = vld [vmem:[#allocation17 + $0x734] sm:$0xff]
        %v6106 = vld [vmem:[#allocation17 + $0x73c] sm:$0xff]
        %v6107 = vld [vmem:[#allocation17 + $0x744] sm:$0xff]
        %v6108 = vld [vmem:[#allocation17 + $0x74c] sm:$0xf]
        %v6109 = vld [vmem:[#allocation17 + $0x750] sm:$0xff]
        %v6110 = vld [vmem:[#allocation17 + $0x758] sm:$0xff]
        %v6111 = vld [vmem:[#allocation17 + $0x760] sm:$0xff]
        %v6112 = vld [vmem:[#allocation17 + $0x768] sm:$0xff]
        %v6113 = vld [vmem:[#allocation17 + $0x770] sm:$0xf]
        %v6114 = vld [vmem:[#allocation17 + $0x774] sm:$0xff]
        %v6115 = vld [vmem:[#allocation17 + $0x77c] sm:$0xff]
        %v6116 = vld [vmem:[#allocation17 + $0x784] sm:$0xff]
        %v6117 = vld [vmem:[#allocation17 + $0x78c] sm:$0xff]
        %v6118 = vld [vmem:[#allocation17 + $0x794] sm:$0xf]
        %v6119 = vld [vmem:[#allocation17 + $0x798] sm:$0xff]
        %v6120 = vld [vmem:[#allocation17 + $0x7a0] sm:$0xff]
        %v6121 = vld [vmem:[#allocation17 + $0x7a8] sm:$0xff]
        %v6122 = vld [vmem:[#allocation17 + $0x7b0] sm:$0xff]
        %v6123 = vld [vmem:[#allocation17 + $0x7b8] sm:$0xf]
        %v6124 = vld [vmem:[#allocation17 + $0x7bc] sm:$0xff]
        %v6125 = vld [vmem:[#allocation17 + $0x7c4] sm:$0xff]
        %v6126 = vld [vmem:[#allocation17 + $0x7cc] sm:$0xff]
        %v6127 = vld [vmem:[#allocation17 + $0x7d4] sm:$0xff]
        %v6128 = vld [vmem:[#allocation17 + $0x7dc] sm:$0xf]
        %v6129 = vld [vmem:[#allocation17 + $0x7e0] sm:$0xff]
        %v6130 = vld [vmem:[#allocation17 + $0x7e8] sm:$0xff]
        %v6131 = vld [vmem:[#allocation17 + $0x7f0] sm:$0xff]
        %v6132 = vld [vmem:[#allocation17 + $0x7f8] sm:$0xff]
        %v6133 = vld [vmem:[#allocation17 + $0x800] sm:$0xf]
        %v6134 = vld [vmem:[#allocation17 + $0x804] sm:$0xff]
        %v6135 = vld [vmem:[#allocation17 + $0x80c] sm:$0xff]
        %v6136 = vld [vmem:[#allocation17 + $0x814] sm:$0xff]
        %v6137 = vld [vmem:[#allocation17 + $0x81c] sm:$0xff]
        %v6138 = vld [vmem:[#allocation17 + $0x824] sm:$0xf]
        %v6139 = vld [vmem:[#allocation17 + $0x828] sm:$0xff]
        %v6140 = vld [vmem:[#allocation17 + $0x830] sm:$0xff]
        %v6141 = vld [vmem:[#allocation17 + $0x838] sm:$0xff]
        %v6142 = vld [vmem:[#allocation17 + $0x840] sm:$0xff]
        %v6143 = vld [vmem:[#allocation17 + $0x848] sm:$0xf]
        %v6144 = vld [vmem:[#allocation17 + $0x84c] sm:$0xff]
        %v6145 = vld [vmem:[#allocation17 + $0x854] sm:$0xff]
        %v6146 = vld [vmem:[#allocation17 + $0x85c] sm:$0xff]
        %v6147 = vld [vmem:[#allocation17 + $0x864] sm:$0xff]
        %v6148 = vld [vmem:[#allocation17 + $0x86c] sm:$0xf]
        %v6149 = vld [vmem:[#allocation17 + $0x870] sm:$0xff]
        %v6150 = vld [vmem:[#allocation17 + $0x878] sm:$0xff]
        %v6151 = vld [vmem:[#allocation17 + $0x880] sm:$0xff]
        %v6152 = vld [vmem:[#allocation17 + $0x888] sm:$0xff]
        %v6153 = vld [vmem:[#allocation17 + $0x890] sm:$0xf]
        %v6154 = vld [vmem:[#allocation17 + $0x894] sm:$0xff]
        %v6155 = vld [vmem:[#allocation17 + $0x89c] sm:$0xff]
        %v6156 = vld [vmem:[#allocation17 + $0x8a4] sm:$0xff]
        %v6157 = vld [vmem:[#allocation17 + $0x8ac] sm:$0xff]
        %v6158 = vld [vmem:[#allocation17 + $0x8b4] sm:$0xf]
        %v6159 = vld [vmem:[#allocation17 + $0x8b8] sm:$0xff]
        %v6160 = vld [vmem:[#allocation17 + $0x8c0] sm:$0xff]
        %v6161 = vld [vmem:[#allocation17 + $0x8c8] sm:$0xff]
        %v6162 = vld [vmem:[#allocation17 + $0x8d0] sm:$0xff]
        %v6163 = vld [vmem:[#allocation17 + $0x8d8] sm:$0xf]
        %v6164 = vld [vmem:[#allocation17 + $0x8dc] sm:$0xff]
        %v6165 = vld [vmem:[#allocation17 + $0x8e4] sm:$0xff]
        %v6166 = vld [vmem:[#allocation17 + $0x8ec] sm:$0xff]
        %v6167 = vld [vmem:[#allocation17 + $0x8f4] sm:$0xff]
        %v6168 = vld [vmem:[#allocation17 + $0x8fc] sm:$0xf]
        %v6169 = vld [vmem:[#allocation17 + $0x900] sm:$0xff]
        %v6170 = vld [vmem:[#allocation17 + $0x908] sm:$0xff]
        %v6171 = vld [vmem:[#allocation17 + $0x910] sm:$0xff]
        %v6172 = vld [vmem:[#allocation17 + $0x918] sm:$0xff]
        %v6173 = vld [vmem:[#allocation17 + $0x920] sm:$0xf]
        %v6174 = vld [vmem:[#allocation17 + $0x924] sm:$0xff]
        %v6175 = vld [vmem:[#allocation17 + $0x92c] sm:$0xff]
        %v6176 = vld [vmem:[#allocation17 + $0x934] sm:$0xff]
        %v6177 = vld [vmem:[#allocation17 + $0x93c] sm:$0xff]
        %v6178 = vld [vmem:[#allocation17 + $0x944] sm:$0xf]
        %v6179 = vld [vmem:[#allocation17 + $0x948] sm:$0xff]
        %v6180 = vld [vmem:[#allocation17 + $0x950] sm:$0xff]
        %v6181 = vld [vmem:[#allocation17 + $0x958] sm:$0xff]
        %v6182 = vld [vmem:[#allocation17 + $0x960] sm:$0xff]
        %v6183 = vld [vmem:[#allocation17 + $0x968] sm:$0xf]
        %v6184 = vld [vmem:[#allocation17 + $0x96c] sm:$0xff]
        %v6185 = vld [vmem:[#allocation17 + $0x974] sm:$0xff]
        %v6186 = vld [vmem:[#allocation17 + $0x97c] sm:$0xff]
        %v6187 = vld [vmem:[#allocation17 + $0x984] sm:$0xff]
        %v6188 = vld [vmem:[#allocation17 + $0x98c] sm:$0xf]
        %v6189 = vld [vmem:[#allocation17 + $0x990] sm:$0xff]
        %v6190 = vld [vmem:[#allocation17 + $0x998] sm:$0xff]
        %v6191 = vld [vmem:[#allocation17 + $0x9a0] sm:$0xff]
        %v6192 = vld [vmem:[#allocation17 + $0x9a8] sm:$0xff]
        %v6193 = vld [vmem:[#allocation17 + $0x9b0] sm:$0xf]
        %v6194 = vld [vmem:[#allocation17 + $0x9b4] sm:$0xff]
        %v6195 = vld [vmem:[#allocation17 + $0x9bc] sm:$0xff]
        %v6196 = vld [vmem:[#allocation17 + $0x9c4] sm:$0xff]
        %v6197 = vld [vmem:[#allocation17 + $0x9cc] sm:$0xff]
        %v6198 = vld [vmem:[#allocation17 + $0x9d4] sm:$0xf]
        %v6199 = vld [vmem:[#allocation17 + $0x9d8] sm:$0xff]
        %v6200 = vld [vmem:[#allocation17 + $0x9e0] sm:$0xff]
        %v6201 = vld [vmem:[#allocation17 + $0x9e8] sm:$0xff]
        %v6202 = vld [vmem:[#allocation17 + $0x9f0] sm:$0xff]
        %v6203 = vld [vmem:[#allocation17 + $0x9f8] sm:$0xf]
        %v6204 = vld [vmem:[#allocation17 + $0x9fc] sm:$0xff]
        %v6205 = vld [vmem:[#allocation17 + $0xa04] sm:$0xff]
        %v6206 = vld [vmem:[#allocation17 + $0xa0c] sm:$0xff]
        %v6207 = vld [vmem:[#allocation17 + $0xa14] sm:$0xff]
        %v6208 = vld [vmem:[#allocation17 + $0xa1c] sm:$0xf]
        %v6209 = vld [vmem:[#allocation17 + $0xa20] sm:$0xff]
        %v6210 = vld [vmem:[#allocation17 + $0xa28] sm:$0xff]
        %v6211 = vld [vmem:[#allocation17 + $0xa30] sm:$0xff]
        %v6212 = vld [vmem:[#allocation17 + $0xa38] sm:$0xff]
        %v6213 = vld [vmem:[#allocation17 + $0xa40] sm:$0xf]
        %v6214 = vld [vmem:[#allocation17 + $0xa44] sm:$0xff]
        %v6215 = vld [vmem:[#allocation17 + $0xa4c] sm:$0xff]
        %v6216 = vld [vmem:[#allocation17 + $0xa54] sm:$0xff]
        %v6217 = vld [vmem:[#allocation17 + $0xa5c] sm:$0xff]
        %v6218 = vld [vmem:[#allocation17 + $0xa64] sm:$0xf]
        %v6219 = vld [vmem:[#allocation17 + $0xa68] sm:$0xff]
        %v6220 = vld [vmem:[#allocation17 + $0xa70] sm:$0xff]
        %v6221 = vld [vmem:[#allocation17 + $0xa78] sm:$0xff]
        %v6222 = vld [vmem:[#allocation17 + $0xa80] sm:$0xff]
        %v6223 = vld [vmem:[#allocation17 + $0xa88] sm:$0xf]
        %v6224 = vld [vmem:[#allocation17 + $0xa8c] sm:$0xff]
        %v6225 = vld [vmem:[#allocation17 + $0xa94] sm:$0xff]
        %v6226 = vld [vmem:[#allocation17 + $0xa9c] sm:$0xff]
        %v6227 = vld [vmem:[#allocation17 + $0xaa4] sm:$0xff]
        %v6228 = vld [vmem:[#allocation17 + $0xaac] sm:$0xf]
        %v6229 = vld [vmem:[#allocation17 + $0xab0] sm:$0xff]
        %v6230 = vld [vmem:[#allocation17 + $0xab8] sm:$0xff]
        %v6231 = vld [vmem:[#allocation17 + $0xac0] sm:$0xff]
        %v6232 = vld [vmem:[#allocation17 + $0xac8] sm:$0xff]
        %v6233 = vld [vmem:[#allocation17 + $0xad0] sm:$0xf]
        %v6234 = vld [vmem:[#allocation17 + $0xad4] sm:$0xff]
        %v6235 = vld [vmem:[#allocation17 + $0xadc] sm:$0xff]
        %v6236 = vld [vmem:[#allocation17 + $0xae4] sm:$0xff]
        %v6237 = vld [vmem:[#allocation17 + $0xaec] sm:$0xff]
        %v6238 = vld [vmem:[#allocation17 + $0xaf4] sm:$0xf]
        %v6239 = vld [vmem:[#allocation17 + $0xaf8] sm:$0xff]
        %v6240 = vld [vmem:[#allocation17 + $0xb00] sm:$0xff]
        %v6241 = vld [vmem:[#allocation17 + $0xb08] sm:$0xff]
        %v6242 = vld [vmem:[#allocation17 + $0xb10] sm:$0xff]
        %v6243 = vld [vmem:[#allocation17 + $0xb18] sm:$0xf]
        %v6244 = vld [vmem:[#allocation17 + $0xb1c] sm:$0xff]
        %v6245 = vld [vmem:[#allocation17 + $0xb24] sm:$0xff]
        %v6246 = vld [vmem:[#allocation17 + $0xb2c] sm:$0xff]
        %v6247 = vld [vmem:[#allocation17 + $0xb34] sm:$0xff]
        %v6248 = vld [vmem:[#allocation17 + $0xb3c] sm:$0xf]
        %v6249 = vld [vmem:[#allocation17 + $0xb40] sm:$0xff]
        %v6250 = vld [vmem:[#allocation17 + $0xb48] sm:$0xff]
        %v6251 = vld [vmem:[#allocation17 + $0xb50] sm:$0xff]
        %v6252 = vld [vmem:[#allocation17 + $0xb58] sm:$0xff]
        %v6253 = vld [vmem:[#allocation17 + $0xb60] sm:$0xf]
        %v6254 = vld [vmem:[#allocation17 + $0xb64] sm:$0xff]
        %v6255 = vld [vmem:[#allocation17 + $0xb6c] sm:$0xff]
        %v6256 = vld [vmem:[#allocation17 + $0xb74] sm:$0xff]
        %v6257 = vld [vmem:[#allocation17 + $0xb7c] sm:$0xff]
        %v6258 = vld [vmem:[#allocation17 + $0xb84] sm:$0xf]
        %v6259 = vld [vmem:[#allocation17 + $0xb88] sm:$0xff]
        %v6260 = vld [vmem:[#allocation17 + $0xb90] sm:$0xff]
        %v6261 = vld [vmem:[#allocation17 + $0xb98] sm:$0xff]
        %v6262 = vld [vmem:[#allocation17 + $0xba0] sm:$0xff]
        %v6263 = vld [vmem:[#allocation17 + $0xba8] sm:$0xf]
        %v6264 = vld [vmem:[#allocation17 + $0xbac] sm:$0xff]
        %v6265 = vld [vmem:[#allocation17 + $0xbb4] sm:$0xff]
        %v6266 = vld [vmem:[#allocation17 + $0xbbc] sm:$0xff]
        %v6267 = vld [vmem:[#allocation17 + $0xbc4] sm:$0xff]
        %v6268 = vld [vmem:[#allocation17 + $0xbcc] sm:$0xf]
        %v6269 = vld [vmem:[#allocation17 + $0xbd0] sm:$0xff]
        %v6270 = vld [vmem:[#allocation17 + $0xbd8] sm:$0xff]
        %v6271 = vld [vmem:[#allocation17 + $0xbe0] sm:$0xff]
        %v6272 = vld [vmem:[#allocation17 + $0xbe8] sm:$0xff]
        %v6273 = vld [vmem:[#allocation17 + $0xbf0] sm:$0xf]
        %v6274 = vld [vmem:[#allocation17 + $0xbf4] sm:$0xff]
        %v6275 = vld [vmem:[#allocation17 + $0xbfc] sm:$0xff]
        %v6276 = vld [vmem:[#allocation17 + $0xc04] sm:$0xff]
        %v6277 = vld [vmem:[#allocation17 + $0xc0c] sm:$0xff]
        %v6278 = vld [vmem:[#allocation17 + $0xc14] sm:$0xf]
        %v6279 = vld [vmem:[#allocation17 + $0xc18] sm:$0xff]
        %v6280 = vld [vmem:[#allocation17 + $0xc20] sm:$0xff]
        %v6281 = vld [vmem:[#allocation17 + $0xc28] sm:$0xff]
        %v6282 = vld [vmem:[#allocation17 + $0xc30] sm:$0xff]
        %v6283 = vld [vmem:[#allocation17 + $0xc38] sm:$0xf]
        %v6284 = vld [vmem:[#allocation17 + $0xc3c] sm:$0xff]
        %v6285 = vld [vmem:[#allocation17 + $0xc44] sm:$0xff]
        %v6286 = vld [vmem:[#allocation17 + $0xc4c] sm:$0xff]
        %v6287 = vld [vmem:[#allocation17 + $0xc54] sm:$0xff]
        %v6288 = vld [vmem:[#allocation17 + $0xc5c] sm:$0xf]
        %v6289 = vld [vmem:[#allocation17 + $0xc60] sm:$0xff]
        %v6290 = vld [vmem:[#allocation17 + $0xc68] sm:$0xff]
        %v6291 = vld [vmem:[#allocation17 + $0xc70] sm:$0xff]
        %v6292 = vld [vmem:[#allocation17 + $0xc78] sm:$0xff]
        %v6293 = vld [vmem:[#allocation17 + $0xc80] sm:$0xf]
        %v6294 = vld [vmem:[#allocation17 + $0xc84] sm:$0xff]
        %v6295 = vld [vmem:[#allocation17 + $0xc8c] sm:$0xff]
        %v6296 = vld [vmem:[#allocation17 + $0xc94] sm:$0xff]
        %v6297 = vld [vmem:[#allocation17 + $0xc9c] sm:$0xff]
        %v6298 = vld [vmem:[#allocation17 + $0xca4] sm:$0xf]
        %v6299 = vld [vmem:[#allocation17 + $0xca8] sm:$0xff]
        %v6300 = vld [vmem:[#allocation17 + $0xcb0] sm:$0xff]
        %v6301 = vld [vmem:[#allocation17 + $0xcb8] sm:$0xff]
        %v6302 = vld [vmem:[#allocation17 + $0xcc0] sm:$0xff]
        %v6303 = vld [vmem:[#allocation17 + $0xcc8] sm:$0xf]
        %v6304 = vld [vmem:[#allocation17 + $0xccc] sm:$0xff]
        %v6305 = vld [vmem:[#allocation17 + $0xcd4] sm:$0xff]
        %v6306 = vld [vmem:[#allocation17 + $0xcdc] sm:$0xff]
        %v6307 = vld [vmem:[#allocation17 + $0xce4] sm:$0xff]
        %v6308 = vld [vmem:[#allocation17 + $0xcec] sm:$0xf]
        %v6309 = vld [vmem:[#allocation17 + $0xcf0] sm:$0xff]
        %v6310 = vld [vmem:[#allocation17 + $0xcf8] sm:$0xff]
        %v6311 = vld [vmem:[#allocation17 + $0xd00] sm:$0xff]
        %v6312 = vld [vmem:[#allocation17 + $0xd08] sm:$0xff]
        %v6313 = vld [vmem:[#allocation17 + $0xd10] sm:$0xf]
        %v6314 = vld [vmem:[#allocation17 + $0xd14] sm:$0xff]
        %v6315 = vld [vmem:[#allocation17 + $0xd1c] sm:$0xff]
        %v6316 = vld [vmem:[#allocation17 + $0xd24] sm:$0xff]
        %v6317 = vld [vmem:[#allocation17 + $0xd2c] sm:$0xff]
        %v6318 = vld [vmem:[#allocation17 + $0xd34] sm:$0xf]
        %v6319 = vld [vmem:[#allocation17 + $0xd38] sm:$0xff]
        %v6320 = vld [vmem:[#allocation17 + $0xd40] sm:$0xff]
        %v6321 = vld [vmem:[#allocation17 + $0xd48] sm:$0xff]
        %v6322 = vld [vmem:[#allocation17 + $0xd50] sm:$0xff]
        %v6323 = vld [vmem:[#allocation17 + $0xd58] sm:$0xf]
        %v6324 = vld [vmem:[#allocation17 + $0xd5c] sm:$0xff]
        %v6325 = vld [vmem:[#allocation17 + $0xd64] sm:$0xff]
        %v6326 = vld [vmem:[#allocation17 + $0xd6c] sm:$0xff]
        %v6327 = vld [vmem:[#allocation17 + $0xd74] sm:$0xff]
        %v6328 = vld [vmem:[#allocation17 + $0xd7c] sm:$0xf]
        %v6329 = vld [vmem:[#allocation17 + $0xd80] sm:$0xff]
        %v6330 = vld [vmem:[#allocation17 + $0xd88] sm:$0xff]
        %v6331 = vld [vmem:[#allocation17 + $0xd90] sm:$0xff]
        %v6332 = vld [vmem:[#allocation17 + $0xd98] sm:$0xff]
        %v6333 = vld [vmem:[#allocation17 + $0xda0] sm:$0xf]
        %v6334 = vld [vmem:[#allocation17 + $0xda4] sm:$0xff]
        %v6335 = vld [vmem:[#allocation17 + $0xdac] sm:$0xff]
        %v6336 = vld [vmem:[#allocation17 + $0xdb4] sm:$0xff]
        %v6337 = vld [vmem:[#allocation17 + $0xdbc] sm:$0xff]
        %v6338 = vld [vmem:[#allocation17 + $0xdc4] sm:$0xf]
        %v6339 = vld [vmem:[#allocation17 + $0xdc8] sm:$0xff]
        %v6340 = vld [vmem:[#allocation17 + $0xdd0] sm:$0xff]
        %v6341 = vld [vmem:[#allocation17 + $0xdd8] sm:$0xff]
        %v6342 = vld [vmem:[#allocation17 + $0xde0] sm:$0xff]
        %v6343 = vld [vmem:[#allocation17 + $0xde8] sm:$0xf]
        %v6344 = vld [vmem:[#allocation17 + $0xdec] sm:$0xff]
        %v6345 = vld [vmem:[#allocation17 + $0xdf4] sm:$0xff]
        %v6346 = vld [vmem:[#allocation17 + $0xdfc] sm:$0xff]
        %v6347 = vld [vmem:[#allocation17 + $0xe04] sm:$0xff]
        %v6348 = vld [vmem:[#allocation17 + $0xe0c] sm:$0xf]
        %v6349 = vld [vmem:[#allocation17 + $0xe10] sm:$0xff]
        %v6350 = vld [vmem:[#allocation17 + $0xe18] sm:$0xff]
        %v6351 = vld [vmem:[#allocation17 + $0xe20] sm:$0xff]
        %v6352 = vld [vmem:[#allocation17 + $0xe28] sm:$0xff]
        %v6353 = vld [vmem:[#allocation17 + $0xe30] sm:$0xf]
        %v6354 = vld [vmem:[#allocation17 + $0xe34] sm:$0xff]
        %v6355 = vld [vmem:[#allocation17 + $0xe3c] sm:$0xff]
        %v6356 = vld [vmem:[#allocation17 + $0xe44] sm:$0xff]
        %v6357 = vld [vmem:[#allocation17 + $0xe4c] sm:$0xff]
        %v6358 = vld [vmem:[#allocation17 + $0xe54] sm:$0xf]
        %v6359 = vld [vmem:[#allocation17 + $0xe58] sm:$0xff]
        %v6360 = vld [vmem:[#allocation17 + $0xe60] sm:$0xff]
        %v6361 = vld [vmem:[#allocation17 + $0xe68] sm:$0xff]
        %v6362 = vld [vmem:[#allocation17 + $0xe70] sm:$0xff]
        %v6363 = vld [vmem:[#allocation17 + $0xe78] sm:$0xf]
        %v6364 = vld [vmem:[#allocation17 + $0xe7c] sm:$0xff]
        %v6365 = vld [vmem:[#allocation17 + $0xe84] sm:$0xff]
        %v6366 = vld [vmem:[#allocation17 + $0xe8c] sm:$0xff]
        %v6367 = vld [vmem:[#allocation17 + $0xe94] sm:$0xff]
        %v6368 = vld [vmem:[#allocation17 + $0xe9c] sm:$0xf]
        %v6369 = vld [vmem:[#allocation17 + $0xea0] sm:$0xff]
        %v6370 = vld [vmem:[#allocation17 + $0xea8] sm:$0xff]
        %v6371 = vld [vmem:[#allocation17 + $0xeb0] sm:$0xff]
        %v6372 = vld [vmem:[#allocation17 + $0xeb8] sm:$0xff]
        %v6373 = vld [vmem:[#allocation17 + $0xec0] sm:$0xf]
        %v6374 = vld [vmem:[#allocation17 + $0xec4] sm:$0xff]
        %v6375 = vld [vmem:[#allocation17 + $0xecc] sm:$0xff]
        %v6376 = vld [vmem:[#allocation17 + $0xed4] sm:$0xff]
        %v6377 = vld [vmem:[#allocation17 + $0xedc] sm:$0xff]
        %v6378 = vld [vmem:[#allocation17 + $0xee4] sm:$0xf]
        %v6379 = vld [vmem:[#allocation17 + $0xee8] sm:$0xff]
        %v6380 = vld [vmem:[#allocation17 + $0xef0] sm:$0xff]
        %v6381 = vld [vmem:[#allocation17 + $0xef8] sm:$0xff]
        %v6382 = vld [vmem:[#allocation17 + $0xf00] sm:$0xff]
        %v6383 = vld [vmem:[#allocation17 + $0xf08] sm:$0xf]
        %v6384 = vld [vmem:[#allocation17 + $0xf0c] sm:$0xff]
        %v6385 = vld [vmem:[#allocation17 + $0xf14] sm:$0xff]
        %v6386 = vld [vmem:[#allocation17 + $0xf1c] sm:$0xff]
        %v6387 = vld [vmem:[#allocation17 + $0xf24] sm:$0xff]
        %v6388 = vld [vmem:[#allocation17 + $0xf2c] sm:$0xf]
        %v6389 = vld [vmem:[#allocation17 + $0xf30] sm:$0xff]
        %v6390 = vld [vmem:[#allocation17 + $0xf38] sm:$0xff]
        %v6391 = vld [vmem:[#allocation17 + $0xf40] sm:$0xff]
        %v6392 = vld [vmem:[#allocation17 + $0xf48] sm:$0xff]
        %v6393 = vld [vmem:[#allocation17 + $0xf50] sm:$0xf]
        %v6394 = vld [vmem:[#allocation17 + $0xf54] sm:$0xff]
        %v6395 = vld [vmem:[#allocation17 + $0xf5c] sm:$0xff]
        %v6396 = vld [vmem:[#allocation17 + $0xf64] sm:$0xff]
        %v6397 = vld [vmem:[#allocation17 + $0xf6c] sm:$0xff]
        %v6398 = vld [vmem:[#allocation17 + $0xf74] sm:$0xf]
        %v6399 = vld [vmem:[#allocation17 + $0xf78] sm:$0xff]
        %v6400 = vld [vmem:[#allocation17 + $0xf80] sm:$0xff]
        %v6401 = vld [vmem:[#allocation17 + $0xf88] sm:$0xff]
        %v6402 = vld [vmem:[#allocation17 + $0xf90] sm:$0xff]
        %v6403 = vld [vmem:[#allocation17 + $0xf98] sm:$0xf]
        %v6404 = vld [vmem:[#allocation17 + $0xf9c] sm:$0xff]
        %v6405 = vld [vmem:[#allocation17 + $0xfa4] sm:$0xff]
        %v6406 = vld [vmem:[#allocation17 + $0xfac] sm:$0xff]
        %v6407 = vld [vmem:[#allocation17 + $0xfb4] sm:$0xff]
        %v6408 = vld [vmem:[#allocation17 + $0xfbc] sm:$0xf]
        %v6409 = vld [vmem:[#allocation17 + $0xfc0] sm:$0xff]
        %v6410 = vld [vmem:[#allocation17 + $0xfc8] sm:$0xff]
        %v6411 = vld [vmem:[#allocation17 + $0xfd0] sm:$0xff]
        %v6412 = vld [vmem:[#allocation17 + $0xfd8] sm:$0xff]
        %v6413 = vld [vmem:[#allocation17 + $0xfe0] sm:$0xf]
        %v6414 = vld [vmem:[#allocation17 + $0xfe4] sm:$0xff]
        %v6415 = vld [vmem:[#allocation17 + $0xfec] sm:$0xff]
        %v6416 = vld [vmem:[#allocation17 + $0xff4] sm:$0xff]
        %v6417 = vld [vmem:[#allocation17 + $0xffc] sm:$0xff]
        %v6418 = vld [vmem:[#allocation17 + $0x1004] sm:$0xf]
        %v6419 = vld [vmem:[#allocation17 + $0x1008] sm:$0xff]
        %v6420 = vld [vmem:[#allocation17 + $0x1010] sm:$0xff]
        %v6421 = vld [vmem:[#allocation17 + $0x1018] sm:$0xff]
        %v6422 = vld [vmem:[#allocation17 + $0x1020] sm:$0xff]
        %v6423 = vld [vmem:[#allocation17 + $0x1028] sm:$0xf]
        %v6424 = vld [vmem:[#allocation17 + $0x102c] sm:$0xff]
        %v6425 = vld [vmem:[#allocation17 + $0x1034] sm:$0xff]
        %v6426 = vld [vmem:[#allocation17 + $0x103c] sm:$0xff]
        %v6427 = vld [vmem:[#allocation17 + $0x1044] sm:$0xff]
        %v6428 = vld [vmem:[#allocation17 + $0x104c] sm:$0xf]
        %v6429 = vld [vmem:[#allocation17 + $0x1050] sm:$0xff]
        %v6430 = vld [vmem:[#allocation17 + $0x1058] sm:$0xff]
        %v6431 = vld [vmem:[#allocation17 + $0x1060] sm:$0xff]
        %v6432 = vld [vmem:[#allocation17 + $0x1068] sm:$0xff]
        %v6433 = vld [vmem:[#allocation17 + $0x1070] sm:$0xf]
        %v6434 = vld [vmem:[#allocation17 + $0x1074] sm:$0xff]
        %v6435 = vld [vmem:[#allocation17 + $0x107c] sm:$0xff]
        %v6436 = vld [vmem:[#allocation17 + $0x1084] sm:$0xff]
        %v6437 = vld [vmem:[#allocation17 + $0x108c] sm:$0xff]
        %v6438 = vld [vmem:[#allocation17 + $0x1094] sm:$0xf]
        %v6439 = vld [vmem:[#allocation17 + $0x1098] sm:$0xff]
        %v6440 = vld [vmem:[#allocation17 + $0x10a0] sm:$0xff]
        %v6441 = vld [vmem:[#allocation17 + $0x10a8] sm:$0xff]
        %v6442 = vld [vmem:[#allocation17 + $0x10b0] sm:$0xff]
        %v6443 = vld [vmem:[#allocation17 + $0x10b8] sm:$0xf]
        %v6444 = vld [vmem:[#allocation17 + $0x10bc] sm:$0xff]
        %v6445 = vld [vmem:[#allocation17 + $0x10c4] sm:$0xff]
        %v6446 = vld [vmem:[#allocation17 + $0x10cc] sm:$0xff]
        %v6447 = vld [vmem:[#allocation17 + $0x10d4] sm:$0xff]
        %v6448 = vld [vmem:[#allocation17 + $0x10dc] sm:$0xf]
        %v6449 = vld [vmem:[#allocation17 + $0x10e0] sm:$0xff]
        %v6450 = vld [vmem:[#allocation17 + $0x10e8] sm:$0xff]
        %v6451 = vld [vmem:[#allocation17 + $0x10f0] sm:$0xff]
        %v6452 = vld [vmem:[#allocation17 + $0x10f8] sm:$0xff]
        %v6453 = vld [vmem:[#allocation17 + $0x1100] sm:$0xf]
        %v6454 = vld [vmem:[#allocation17 + $0x1104] sm:$0xff]
        %v6455 = vld [vmem:[#allocation17 + $0x110c] sm:$0xff]
        %v6456 = vld [vmem:[#allocation17 + $0x1114] sm:$0xff]
        %v6457 = vld [vmem:[#allocation17 + $0x111c] sm:$0xff]
        %v6458 = vld [vmem:[#allocation17 + $0x1124] sm:$0xf]
        %v6459 = vld [vmem:[#allocation17 + $0x1128] sm:$0xff]
        %v6460 = vld [vmem:[#allocation17 + $0x1130] sm:$0xff]
        %v6461 = vld [vmem:[#allocation17 + $0x1138] sm:$0xff]
        %v6462 = vld [vmem:[#allocation17 + $0x1140] sm:$0xff]
        %v6463 = vld [vmem:[#allocation17 + $0x1148] sm:$0xf]
        %v6464 = vld [vmem:[#allocation17 + $0x114c] sm:$0xff]
        %v6465 = vld [vmem:[#allocation17 + $0x1154] sm:$0xff]
        %v6466 = vld [vmem:[#allocation17 + $0x115c] sm:$0xff]
        %v6467 = vld [vmem:[#allocation17 + $0x1164] sm:$0xff]
        %v6468 = vld [vmem:[#allocation17 + $0x116c] sm:$0xf]
        %v6469 = vld [vmem:[#allocation17 + $0x1170] sm:$0xff]
        %v6470 = vld [vmem:[#allocation17 + $0x1178] sm:$0xff]
        %v6471 = vld [vmem:[#allocation17 + $0x1180] sm:$0xff]
        %v6472 = vld [vmem:[#allocation17 + $0x1188] sm:$0xff]
        %v6473 = vld [vmem:[#allocation17 + $0x1190] sm:$0xf]
        %v6474 = vld [vmem:[#allocation17 + $0x1194] sm:$0xff]
        %v6475 = vld [vmem:[#allocation17 + $0x119c] sm:$0xff]
        %v6476 = vld [vmem:[#allocation17 + $0x11a4] sm:$0xff]
        %v6477 = vld [vmem:[#allocation17 + $0x11ac] sm:$0xff]
        %v6478 = vld [vmem:[#allocation17 + $0x11b4] sm:$0xf]
        %v6479 = vld [vmem:[#allocation17 + $0x11b8] sm:$0xff]
        %v6480 = vld [vmem:[#allocation17 + $0x11c0] sm:$0xff]
        %v6481 = vld [vmem:[#allocation17 + $0x11c8] sm:$0xff]
        %v6482 = vld [vmem:[#allocation17 + $0x11d0] sm:$0xff]
        %v6483 = vld [vmem:[#allocation17 + $0x11d8] sm:$0xf]
        %v6484 = vld [vmem:[#allocation17 + $0x11dc] sm:$0xff]
        %v6485 = vld [vmem:[#allocation17 + $0x11e4] sm:$0xff]
        %v6486 = vld [vmem:[#allocation17 + $0x11ec] sm:$0xff]
        %v6487 = vld [vmem:[#allocation17 + $0x11f4] sm:$0xff]
        %v6488 = vld [vmem:[#allocation17 + $0x11fc] sm:$0xf]
        %v6489 = vld [vmem:[#allocation17 + $0x1200] sm:$0xff]
        %v6490 = vld [vmem:[#allocation17 + $0x1208] sm:$0xff]
        %v6491 = vld [vmem:[#allocation17 + $0x1210] sm:$0xff]
        %v6492 = vld [vmem:[#allocation17 + $0x1218] sm:$0xff]
        %v6493 = vld [vmem:[#allocation17 + $0x1220] sm:$0xf]
        %v6494 = vld [vmem:[#allocation17 + $0x1224] sm:$0xff]
        %v6495 = vld [vmem:[#allocation17 + $0x122c] sm:$0xff]
        %v6496 = vld [vmem:[#allocation17 + $0x1234] sm:$0xff]
        %v6497 = vld [vmem:[#allocation17 + $0x123c] sm:$0xff]
        %v6498 = vld [vmem:[#allocation17 + $0x1244] sm:$0xf]
        %v6499 = vld [vmem:[#allocation17 + $0x1248] sm:$0xff]
        %v6500 = vld [vmem:[#allocation17 + $0x1250] sm:$0xff]
        %v6501 = vld [vmem:[#allocation17 + $0x1258] sm:$0xff]
        %v6502 = vld [vmem:[#allocation17 + $0x1260] sm:$0xff]
        %v6503 = vld [vmem:[#allocation17 + $0x1268] sm:$0xf]
        %v6504 = vld [vmem:[#allocation17 + $0x126c] sm:$0xff]
        %v6505 = vld [vmem:[#allocation17 + $0x1274] sm:$0xff]
        %v6506 = vld [vmem:[#allocation17 + $0x127c] sm:$0xff]
        %v6507 = vld [vmem:[#allocation17 + $0x1284] sm:$0xff]
        %v6508 = vld [vmem:[#allocation17 + $0x128c] sm:$0xf]
        %v6509 = vld [vmem:[#allocation17 + $0x1290] sm:$0xff]
        %v6510 = vld [vmem:[#allocation17 + $0x1298] sm:$0xff]
        %v6511 = vld [vmem:[#allocation17 + $0x12a0] sm:$0xff]
        %v6512 = vld [vmem:[#allocation17 + $0x12a8] sm:$0xff]
        %v6513 = vld [vmem:[#allocation17 + $0x12b0] sm:$0xf]
        %v6514 = vld [vmem:[#allocation17 + $0x12b4] sm:$0xff]
        %v6515 = vld [vmem:[#allocation17 + $0x12bc] sm:$0xff]
        %v6516 = vld [vmem:[#allocation17 + $0x12c4] sm:$0xff]
        %v6517 = vld [vmem:[#allocation17 + $0x12cc] sm:$0xff]
        %v6518 = vld [vmem:[#allocation17 + $0x12d4] sm:$0xf]
        %v6519 = vld [vmem:[#allocation17 + $0x12d8] sm:$0xff]
        %v6520 = vld [vmem:[#allocation17 + $0x12e0] sm:$0xff]
        %v6521 = vld [vmem:[#allocation17 + $0x12e8] sm:$0xff]
        %v6522 = vld [vmem:[#allocation17 + $0x12f0] sm:$0xff]
        %v6523 = vld [vmem:[#allocation17 + $0x12f8] sm:$0xf]
        %v6524 = vld [vmem:[#allocation17 + $0x12fc] sm:$0xff]
        %v6525 = vld [vmem:[#allocation17 + $0x1304] sm:$0xff]
        %v6526 = vld [vmem:[#allocation17 + $0x130c] sm:$0xff]
        %v6527 = vld [vmem:[#allocation17 + $0x1314] sm:$0xff]
        %v6528 = vld [vmem:[#allocation17 + $0x131c] sm:$0xf]
        %v6529 = vld [vmem:[#allocation17 + $0x1320] sm:$0xff]
        %v6530 = vld [vmem:[#allocation17 + $0x1328] sm:$0xff]
        %v6531 = vld [vmem:[#allocation17 + $0x1330] sm:$0xff]
        %v6532 = vld [vmem:[#allocation17 + $0x1338] sm:$0xff]
        %v6533 = vld [vmem:[#allocation17 + $0x1340] sm:$0xf]
        %v6534 = vld [vmem:[#allocation17 + $0x1344] sm:$0xff]
        %v6535 = vld [vmem:[#allocation17 + $0x134c] sm:$0xff]
        %v6536 = vld [vmem:[#allocation17 + $0x1354] sm:$0xff]
        %v6537 = vld [vmem:[#allocation17 + $0x135c] sm:$0xff]
        %v6538 = vld [vmem:[#allocation17 + $0x1364] sm:$0xf]
        %v6539 = vld [vmem:[#allocation17 + $0x1368] sm:$0xff]
        %v6540 = vld [vmem:[#allocation17 + $0x1370] sm:$0xff]
        %v6541 = vld [vmem:[#allocation17 + $0x1378] sm:$0xff]
        %v6542 = vld [vmem:[#allocation17 + $0x1380] sm:$0xff]
        %v6543 = vld [vmem:[#allocation17 + $0x1388] sm:$0xf]
        %v6544 = vld [vmem:[#allocation17 + $0x138c] sm:$0xff]
        %v6545 = vld [vmem:[#allocation17 + $0x1394] sm:$0xff]
        %v6546 = vld [vmem:[#allocation17 + $0x139c] sm:$0xff]
        %v6547 = vld [vmem:[#allocation17 + $0x13a4] sm:$0xff]
        %v6548 = vld [vmem:[#allocation17 + $0x13ac] sm:$0xf]
        %v6549 = vld [vmem:[#allocation17 + $0x13b0] sm:$0xff]
        %v6550 = vld [vmem:[#allocation17 + $0x13b8] sm:$0xff]
        %v6551 = vld [vmem:[#allocation17 + $0x13c0] sm:$0xff]
        %v6552 = vld [vmem:[#allocation17 + $0x13c8] sm:$0xff]
        %v6553 = vld [vmem:[#allocation17 + $0x13d0] sm:$0xf]
        %v6554 = vld [vmem:[#allocation17 + $0x13d4] sm:$0xff]
        %v6555 = vld [vmem:[#allocation17 + $0x13dc] sm:$0xff]
        %v6556 = vld [vmem:[#allocation17 + $0x13e4] sm:$0xff]
        %v6557 = vld [vmem:[#allocation17 + $0x13ec] sm:$0xff]
        %v6558 = vld [vmem:[#allocation17 + $0x13f4] sm:$0xf]
        %v6559 = vld [vmem:[#allocation17 + $0x13f8] sm:$0xff]
        %v6560 = vld [vmem:[#allocation17 + $0x1400] sm:$0xff]
        %v6561 = vld [vmem:[#allocation17 + $0x1408] sm:$0xff]
        %v6562 = vld [vmem:[#allocation17 + $0x1410] sm:$0xff]
        %v6563 = vld [vmem:[#allocation17 + $0x1418] sm:$0xf]
        %v6564 = vld [vmem:[#allocation17 + $0x141c] sm:$0xff]
        %v6565 = vld [vmem:[#allocation17 + $0x1424] sm:$0xff]
        %v6566 = vld [vmem:[#allocation17 + $0x142c] sm:$0xff]
        %v6567 = vld [vmem:[#allocation17 + $0x1434] sm:$0xff]
        %v6568 = vld [vmem:[#allocation17 + $0x143c] sm:$0xf]
        %v7289 = vunpack.c.l.b16 %v5849
        %v7290 = vunpack.c.h.b16 %v5849
        %v7291 = vunpack.c.l.b16 %v5850
        %v7292 = vunpack.c.h.b16 %v5850
        %v7293 = vunpack.c.l.b16 %v5851
        %v7294 = vunpack.c.h.b16 %v5851
        %v7295 = vunpack.c.l.b16 %v5852
        %v7296 = vunpack.c.h.b16 %v5852
        %v7297 = vunpack.c.l.b16 %v5853
        %v7298 = vunpack.c.l.b16 %v5854
        %v7299 = vunpack.c.h.b16 %v5854
        %v7300 = vunpack.c.l.b16 %v5855
        %v7301 = vunpack.c.h.b16 %v5855
        %v7302 = vunpack.c.l.b16 %v5856
        %v7303 = vunpack.c.h.b16 %v5856
        %v7304 = vunpack.c.l.b16 %v5857
        %v7305 = vunpack.c.h.b16 %v5857
        %v7306 = vunpack.c.l.b16 %v5858
        %v7307 = vunpack.c.l.b16 %v5859
        %v7308 = vunpack.c.h.b16 %v5859
        %v7309 = vunpack.c.l.b16 %v5860
        %v7310 = vunpack.c.h.b16 %v5860
        %v7311 = vunpack.c.l.b16 %v5861
        %v7312 = vunpack.c.h.b16 %v5861
        %v7313 = vunpack.c.l.b16 %v5862
        %v7314 = vunpack.c.h.b16 %v5862
        %v7315 = vunpack.c.l.b16 %v5863
        %v7316 = vunpack.c.l.b16 %v5864
        %v7317 = vunpack.c.h.b16 %v5864
        %v7318 = vunpack.c.l.b16 %v5865
        %v7319 = vunpack.c.h.b16 %v5865
        %v7320 = vunpack.c.l.b16 %v5866
        %v7321 = vunpack.c.h.b16 %v5866
        %v7322 = vunpack.c.l.b16 %v5867
        %v7323 = vunpack.c.h.b16 %v5867
        %v7324 = vunpack.c.l.b16 %v5868
        %v7325 = vunpack.c.l.b16 %v5869
        %v7326 = vunpack.c.h.b16 %v5869
        %v7327 = vunpack.c.l.b16 %v5870
        %v7328 = vunpack.c.h.b16 %v5870
        %v7329 = vunpack.c.l.b16 %v5871
        %v7330 = vunpack.c.h.b16 %v5871
        %v7331 = vunpack.c.l.b16 %v5872
        %v7332 = vunpack.c.h.b16 %v5872
        %v7333 = vunpack.c.l.b16 %v5873
        %v7334 = vunpack.c.l.b16 %v5874
        %v7335 = vunpack.c.h.b16 %v5874
        %v7336 = vunpack.c.l.b16 %v5875
        %v7337 = vunpack.c.h.b16 %v5875
        %v7338 = vunpack.c.l.b16 %v5876
        %v7339 = vunpack.c.h.b16 %v5876
        %v7340 = vunpack.c.l.b16 %v5877
        %v7341 = vunpack.c.h.b16 %v5877
        %v7342 = vunpack.c.l.b16 %v5878
        %v7343 = vunpack.c.l.b16 %v5879
        %v7344 = vunpack.c.h.b16 %v5879
        %v7345 = vunpack.c.l.b16 %v5880
        %v7346 = vunpack.c.h.b16 %v5880
        %v7347 = vunpack.c.l.b16 %v5881
        %v7348 = vunpack.c.h.b16 %v5881
        %v7349 = vunpack.c.l.b16 %v5882
        %v7350 = vunpack.c.h.b16 %v5882
        %v7351 = vunpack.c.l.b16 %v5883
        %v7352 = vunpack.c.l.b16 %v5884
        %v7353 = vunpack.c.h.b16 %v5884
        %v7354 = vunpack.c.l.b16 %v5885
        %v7355 = vunpack.c.h.b16 %v5885
        %v7356 = vunpack.c.l.b16 %v5886
        %v7357 = vunpack.c.h.b16 %v5886
        %v7358 = vunpack.c.l.b16 %v5887
        %v7359 = vunpack.c.h.b16 %v5887
        %v7360 = vunpack.c.l.b16 %v5888
        %v7361 = vunpack.c.l.b16 %v5889
        %v7362 = vunpack.c.h.b16 %v5889
        %v7363 = vunpack.c.l.b16 %v5890
        %v7364 = vunpack.c.h.b16 %v5890
        %v7365 = vunpack.c.l.b16 %v5891
        %v7366 = vunpack.c.h.b16 %v5891
        %v7367 = vunpack.c.l.b16 %v5892
        %v7368 = vunpack.c.h.b16 %v5892
        %v7369 = vunpack.c.l.b16 %v5893
        %v7370 = vunpack.c.l.b16 %v5894
        %v7371 = vunpack.c.h.b16 %v5894
        %v7372 = vunpack.c.l.b16 %v5895
        %v7373 = vunpack.c.h.b16 %v5895
        %v7374 = vunpack.c.l.b16 %v5896
        %v7375 = vunpack.c.h.b16 %v5896
        %v7376 = vunpack.c.l.b16 %v5897
        %v7377 = vunpack.c.h.b16 %v5897
        %v7378 = vunpack.c.l.b16 %v5898
        %v7379 = vunpack.c.l.b16 %v5899
        %v7380 = vunpack.c.h.b16 %v5899
        %v7381 = vunpack.c.l.b16 %v5900
        %v7382 = vunpack.c.h.b16 %v5900
        %v7383 = vunpack.c.l.b16 %v5901
        %v7384 = vunpack.c.h.b16 %v5901
        %v7385 = vunpack.c.l.b16 %v5902
        %v7386 = vunpack.c.h.b16 %v5902
        %v7387 = vunpack.c.l.b16 %v5903
        %v7388 = vunpack.c.l.b16 %v5904
        %v7389 = vunpack.c.h.b16 %v5904
        %v7390 = vunpack.c.l.b16 %v5905
        %v7391 = vunpack.c.h.b16 %v5905
        %v7392 = vunpack.c.l.b16 %v5906
        %v7393 = vunpack.c.h.b16 %v5906
        %v7394 = vunpack.c.l.b16 %v5907
        %v7395 = vunpack.c.h.b16 %v5907
        %v7396 = vunpack.c.l.b16 %v5908
        %v7397 = vunpack.c.l.b16 %v5909
        %v7398 = vunpack.c.h.b16 %v5909
        %v7399 = vunpack.c.l.b16 %v5910
        %v7400 = vunpack.c.h.b16 %v5910
        %v7401 = vunpack.c.l.b16 %v5911
        %v7402 = vunpack.c.h.b16 %v5911
        %v7403 = vunpack.c.l.b16 %v5912
        %v7404 = vunpack.c.h.b16 %v5912
        %v7405 = vunpack.c.l.b16 %v5913
        %v7406 = vunpack.c.l.b16 %v5914
        %v7407 = vunpack.c.h.b16 %v5914
        %v7408 = vunpack.c.l.b16 %v5915
        %v7409 = vunpack.c.h.b16 %v5915
        %v7410 = vunpack.c.l.b16 %v5916
        %v7411 = vunpack.c.h.b16 %v5916
        %v7412 = vunpack.c.l.b16 %v5917
        %v7413 = vunpack.c.h.b16 %v5917
        %v7414 = vunpack.c.l.b16 %v5918
        %v7415 = vunpack.c.l.b16 %v5919
        %v7416 = vunpack.c.h.b16 %v5919
        %v7417 = vunpack.c.l.b16 %v5920
        %v7418 = vunpack.c.h.b16 %v5920
        %v7419 = vunpack.c.l.b16 %v5921
        %v7420 = vunpack.c.h.b16 %v5921
        %v7421 = vunpack.c.l.b16 %v5922
        %v7422 = vunpack.c.h.b16 %v5922
        %v7423 = vunpack.c.l.b16 %v5923
        %v7424 = vunpack.c.l.b16 %v5924
        %v7425 = vunpack.c.h.b16 %v5924
        %v7426 = vunpack.c.l.b16 %v5925
        %v7427 = vunpack.c.h.b16 %v5925
        %v7428 = vunpack.c.l.b16 %v5926
        %v7429 = vunpack.c.h.b16 %v5926
        %v7430 = vunpack.c.l.b16 %v5927
        %v7431 = vunpack.c.h.b16 %v5927
        %v7432 = vunpack.c.l.b16 %v5928
        %v7433 = vunpack.c.l.b16 %v5929
        %v7434 = vunpack.c.h.b16 %v5929
        %v7435 = vunpack.c.l.b16 %v5930
        %v7436 = vunpack.c.h.b16 %v5930
        %v7437 = vunpack.c.l.b16 %v5931
        %v7438 = vunpack.c.h.b16 %v5931
        %v7439 = vunpack.c.l.b16 %v5932
        %v7440 = vunpack.c.h.b16 %v5932
        %v7441 = vunpack.c.l.b16 %v5933
        %v7442 = vunpack.c.l.b16 %v5934
        %v7443 = vunpack.c.h.b16 %v5934
        %v7444 = vunpack.c.l.b16 %v5935
        %v7445 = vunpack.c.h.b16 %v5935
        %v7446 = vunpack.c.l.b16 %v5936
        %v7447 = vunpack.c.h.b16 %v5936
        %v7448 = vunpack.c.l.b16 %v5937
        %v7449 = vunpack.c.h.b16 %v5937
        %v7450 = vunpack.c.l.b16 %v5938
        %v7451 = vunpack.c.l.b16 %v5939
        %v7452 = vunpack.c.h.b16 %v5939
        %v7453 = vunpack.c.l.b16 %v5940
        %v7454 = vunpack.c.h.b16 %v5940
        %v7455 = vunpack.c.l.b16 %v5941
        %v7456 = vunpack.c.h.b16 %v5941
        %v7457 = vunpack.c.l.b16 %v5942
        %v7458 = vunpack.c.h.b16 %v5942
        %v7459 = vunpack.c.l.b16 %v5943
        %v7460 = vunpack.c.l.b16 %v5944
        %v7461 = vunpack.c.h.b16 %v5944
        %v7462 = vunpack.c.l.b16 %v5945
        %v7463 = vunpack.c.h.b16 %v5945
        %v7464 = vunpack.c.l.b16 %v5946
        %v7465 = vunpack.c.h.b16 %v5946
        %v7466 = vunpack.c.l.b16 %v5947
        %v7467 = vunpack.c.h.b16 %v5947
        %v7468 = vunpack.c.l.b16 %v5948
        %v7469 = vunpack.c.l.b16 %v5949
        %v7470 = vunpack.c.h.b16 %v5949
        %v7471 = vunpack.c.l.b16 %v5950
        %v7472 = vunpack.c.h.b16 %v5950
        %v7473 = vunpack.c.l.b16 %v5951
        %v7474 = vunpack.c.h.b16 %v5951
        %v7475 = vunpack.c.l.b16 %v5952
        %v7476 = vunpack.c.h.b16 %v5952
        %v7477 = vunpack.c.l.b16 %v5953
        %v7478 = vunpack.c.l.b16 %v5954
        %v7479 = vunpack.c.h.b16 %v5954
        %v7480 = vunpack.c.l.b16 %v5955
        %v7481 = vunpack.c.h.b16 %v5955
        %v7482 = vunpack.c.l.b16 %v5956
        %v7483 = vunpack.c.h.b16 %v5956
        %v7484 = vunpack.c.l.b16 %v5957
        %v7485 = vunpack.c.h.b16 %v5957
        %v7486 = vunpack.c.l.b16 %v5958
        %v7487 = vunpack.c.l.b16 %v5959
        %v7488 = vunpack.c.h.b16 %v5959
        %v7489 = vunpack.c.l.b16 %v5960
        %v7490 = vunpack.c.h.b16 %v5960
        %v7491 = vunpack.c.l.b16 %v5961
        %v7492 = vunpack.c.h.b16 %v5961
        %v7493 = vunpack.c.l.b16 %v5962
        %v7494 = vunpack.c.h.b16 %v5962
        %v7495 = vunpack.c.l.b16 %v5963
        %v7496 = vunpack.c.l.b16 %v5964
        %v7497 = vunpack.c.h.b16 %v5964
        %v7498 = vunpack.c.l.b16 %v5965
        %v7499 = vunpack.c.h.b16 %v5965
        %v7500 = vunpack.c.l.b16 %v5966
        %v7501 = vunpack.c.h.b16 %v5966
        %v7502 = vunpack.c.l.b16 %v5967
        %v7503 = vunpack.c.h.b16 %v5967
        %v7504 = vunpack.c.l.b16 %v5968
        %v7505 = vunpack.c.l.b16 %v5969
        %v7506 = vunpack.c.h.b16 %v5969
        %v7507 = vunpack.c.l.b16 %v5970
        %v7508 = vunpack.c.h.b16 %v5970
        %v7509 = vunpack.c.l.b16 %v5971
        %v7510 = vunpack.c.h.b16 %v5971
        %v7511 = vunpack.c.l.b16 %v5972
        %v7512 = vunpack.c.h.b16 %v5972
        %v7513 = vunpack.c.l.b16 %v5973
        %v7514 = vunpack.c.l.b16 %v5974
        %v7515 = vunpack.c.h.b16 %v5974
        %v7516 = vunpack.c.l.b16 %v5975
        %v7517 = vunpack.c.h.b16 %v5975
        %v7518 = vunpack.c.l.b16 %v5976
        %v7519 = vunpack.c.h.b16 %v5976
        %v7520 = vunpack.c.l.b16 %v5977
        %v7521 = vunpack.c.h.b16 %v5977
        %v7522 = vunpack.c.l.b16 %v5978
        %v7523 = vunpack.c.l.b16 %v5979
        %v7524 = vunpack.c.h.b16 %v5979
        %v7525 = vunpack.c.l.b16 %v5980
        %v7526 = vunpack.c.h.b16 %v5980
        %v7527 = vunpack.c.l.b16 %v5981
        %v7528 = vunpack.c.h.b16 %v5981
        %v7529 = vunpack.c.l.b16 %v5982
        %v7530 = vunpack.c.h.b16 %v5982
        %v7531 = vunpack.c.l.b16 %v5983
        %v7532 = vunpack.c.l.b16 %v5984
        %v7533 = vunpack.c.h.b16 %v5984
        %v7534 = vunpack.c.l.b16 %v5985
        %v7535 = vunpack.c.h.b16 %v5985
        %v7536 = vunpack.c.l.b16 %v5986
        %v7537 = vunpack.c.h.b16 %v5986
        %v7538 = vunpack.c.l.b16 %v5987
        %v7539 = vunpack.c.h.b16 %v5987
        %v7540 = vunpack.c.l.b16 %v5988
        %v7541 = vunpack.c.l.b16 %v5989
        %v7542 = vunpack.c.h.b16 %v5989
        %v7543 = vunpack.c.l.b16 %v5990
        %v7544 = vunpack.c.h.b16 %v5990
        %v7545 = vunpack.c.l.b16 %v5991
        %v7546 = vunpack.c.h.b16 %v5991
        %v7547 = vunpack.c.l.b16 %v5992
        %v7548 = vunpack.c.h.b16 %v5992
        %v7549 = vunpack.c.l.b16 %v5993
        %v7550 = vunpack.c.l.b16 %v5994
        %v7551 = vunpack.c.h.b16 %v5994
        %v7552 = vunpack.c.l.b16 %v5995
        %v7553 = vunpack.c.h.b16 %v5995
        %v7554 = vunpack.c.l.b16 %v5996
        %v7555 = vunpack.c.h.b16 %v5996
        %v7556 = vunpack.c.l.b16 %v5997
        %v7557 = vunpack.c.h.b16 %v5997
        %v7558 = vunpack.c.l.b16 %v5998
        %v7559 = vunpack.c.l.b16 %v5999
        %v7560 = vunpack.c.h.b16 %v5999
        %v7561 = vunpack.c.l.b16 %v6000
        %v7562 = vunpack.c.h.b16 %v6000
        %v7563 = vunpack.c.l.b16 %v6001
        %v7564 = vunpack.c.h.b16 %v6001
        %v7565 = vunpack.c.l.b16 %v6002
        %v7566 = vunpack.c.h.b16 %v6002
        %v7567 = vunpack.c.l.b16 %v6003
        %v7568 = vunpack.c.l.b16 %v6004
        %v7569 = vunpack.c.h.b16 %v6004
        %v7570 = vunpack.c.l.b16 %v6005
        %v7571 = vunpack.c.h.b16 %v6005
        %v7572 = vunpack.c.l.b16 %v6006
        %v7573 = vunpack.c.h.b16 %v6006
        %v7574 = vunpack.c.l.b16 %v6007
        %v7575 = vunpack.c.h.b16 %v6007
        %v7576 = vunpack.c.l.b16 %v6008
        %v7577 = vunpack.c.l.b16 %v6009
        %v7578 = vunpack.c.h.b16 %v6009
        %v7579 = vunpack.c.l.b16 %v6010
        %v7580 = vunpack.c.h.b16 %v6010
        %v7581 = vunpack.c.l.b16 %v6011
        %v7582 = vunpack.c.h.b16 %v6011
        %v7583 = vunpack.c.l.b16 %v6012
        %v7584 = vunpack.c.h.b16 %v6012
        %v7585 = vunpack.c.l.b16 %v6013
        %v7586 = vunpack.c.l.b16 %v6014
        %v7587 = vunpack.c.h.b16 %v6014
        %v7588 = vunpack.c.l.b16 %v6015
        %v7589 = vunpack.c.h.b16 %v6015
        %v7590 = vunpack.c.l.b16 %v6016
        %v7591 = vunpack.c.h.b16 %v6016
        %v7592 = vunpack.c.l.b16 %v6017
        %v7593 = vunpack.c.h.b16 %v6017
        %v7594 = vunpack.c.l.b16 %v6018
        %v7595 = vunpack.c.l.b16 %v6019
        %v7596 = vunpack.c.h.b16 %v6019
        %v7597 = vunpack.c.l.b16 %v6020
        %v7598 = vunpack.c.h.b16 %v6020
        %v7599 = vunpack.c.l.b16 %v6021
        %v7600 = vunpack.c.h.b16 %v6021
        %v7601 = vunpack.c.l.b16 %v6022
        %v7602 = vunpack.c.h.b16 %v6022
        %v7603 = vunpack.c.l.b16 %v6023
        %v7604 = vunpack.c.l.b16 %v6024
        %v7605 = vunpack.c.h.b16 %v6024
        %v7606 = vunpack.c.l.b16 %v6025
        %v7607 = vunpack.c.h.b16 %v6025
        %v7608 = vunpack.c.l.b16 %v6026
        %v7609 = vunpack.c.h.b16 %v6026
        %v7610 = vunpack.c.l.b16 %v6027
        %v7611 = vunpack.c.h.b16 %v6027
        %v7612 = vunpack.c.l.b16 %v6028
        %v7613 = vunpack.c.l.b16 %v6029
        %v7614 = vunpack.c.h.b16 %v6029
        %v7615 = vunpack.c.l.b16 %v6030
        %v7616 = vunpack.c.h.b16 %v6030
        %v7617 = vunpack.c.l.b16 %v6031
        %v7618 = vunpack.c.h.b16 %v6031
        %v7619 = vunpack.c.l.b16 %v6032
        %v7620 = vunpack.c.h.b16 %v6032
        %v7621 = vunpack.c.l.b16 %v6033
        %v7622 = vunpack.c.l.b16 %v6034
        %v7623 = vunpack.c.h.b16 %v6034
        %v7624 = vunpack.c.l.b16 %v6035
        %v7625 = vunpack.c.h.b16 %v6035
        %v7626 = vunpack.c.l.b16 %v6036
        %v7627 = vunpack.c.h.b16 %v6036
        %v7628 = vunpack.c.l.b16 %v6037
        %v7629 = vunpack.c.h.b16 %v6037
        %v7630 = vunpack.c.l.b16 %v6038
        %v7631 = vunpack.c.l.b16 %v6039
        %v7632 = vunpack.c.h.b16 %v6039
        %v7633 = vunpack.c.l.b16 %v6040
        %v7634 = vunpack.c.h.b16 %v6040
        %v7635 = vunpack.c.l.b16 %v6041
        %v7636 = vunpack.c.h.b16 %v6041
        %v7637 = vunpack.c.l.b16 %v6042
        %v7638 = vunpack.c.h.b16 %v6042
        %v7639 = vunpack.c.l.b16 %v6043
        %v7640 = vunpack.c.l.b16 %v6044
        %v7641 = vunpack.c.h.b16 %v6044
        %v7642 = vunpack.c.l.b16 %v6045
        %v7643 = vunpack.c.h.b16 %v6045
        %v7644 = vunpack.c.l.b16 %v6046
        %v7645 = vunpack.c.h.b16 %v6046
        %v7646 = vunpack.c.l.b16 %v6047
        %v7647 = vunpack.c.h.b16 %v6047
        %v7648 = vunpack.c.l.b16 %v6048
        %v7649 = vunpack.c.l.b16 %v6049
        %v7650 = vunpack.c.h.b16 %v6049
        %v7651 = vunpack.c.l.b16 %v6050
        %v7652 = vunpack.c.h.b16 %v6050
        %v7653 = vunpack.c.l.b16 %v6051
        %v7654 = vunpack.c.h.b16 %v6051
        %v7655 = vunpack.c.l.b16 %v6052
        %v7656 = vunpack.c.h.b16 %v6052
        %v7657 = vunpack.c.l.b16 %v6053
        %v7658 = vunpack.c.l.b16 %v6054
        %v7659 = vunpack.c.h.b16 %v6054
        %v7660 = vunpack.c.l.b16 %v6055
        %v7661 = vunpack.c.h.b16 %v6055
        %v7662 = vunpack.c.l.b16 %v6056
        %v7663 = vunpack.c.h.b16 %v6056
        %v7664 = vunpack.c.l.b16 %v6057
        %v7665 = vunpack.c.h.b16 %v6057
        %v7666 = vunpack.c.l.b16 %v6058
        %v7667 = vunpack.c.l.b16 %v6059
        %v7668 = vunpack.c.h.b16 %v6059
        %v7669 = vunpack.c.l.b16 %v6060
        %v7670 = vunpack.c.h.b16 %v6060
        %v7671 = vunpack.c.l.b16 %v6061
        %v7672 = vunpack.c.h.b16 %v6061
        %v7673 = vunpack.c.l.b16 %v6062
        %v7674 = vunpack.c.h.b16 %v6062
        %v7675 = vunpack.c.l.b16 %v6063
        %v7676 = vunpack.c.l.b16 %v6064
        %v7677 = vunpack.c.h.b16 %v6064
        %v7678 = vunpack.c.l.b16 %v6065
        %v7679 = vunpack.c.h.b16 %v6065
        %v7680 = vunpack.c.l.b16 %v6066
        %v7681 = vunpack.c.h.b16 %v6066
        %v7682 = vunpack.c.l.b16 %v6067
        %v7683 = vunpack.c.h.b16 %v6067
        %v7684 = vunpack.c.l.b16 %v6068
        %v7685 = vunpack.c.l.b16 %v6069
        %v7686 = vunpack.c.h.b16 %v6069
        %v7687 = vunpack.c.l.b16 %v6070
        %v7688 = vunpack.c.h.b16 %v6070
        %v7689 = vunpack.c.l.b16 %v6071
        %v7690 = vunpack.c.h.b16 %v6071
        %v7691 = vunpack.c.l.b16 %v6072
        %v7692 = vunpack.c.h.b16 %v6072
        %v7693 = vunpack.c.l.b16 %v6073
        %v7694 = vunpack.c.l.b16 %v6074
        %v7695 = vunpack.c.h.b16 %v6074
        %v7696 = vunpack.c.l.b16 %v6075
        %v7697 = vunpack.c.h.b16 %v6075
        %v7698 = vunpack.c.l.b16 %v6076
        %v7699 = vunpack.c.h.b16 %v6076
        %v7700 = vunpack.c.l.b16 %v6077
        %v7701 = vunpack.c.h.b16 %v6077
        %v7702 = vunpack.c.l.b16 %v6078
        %v7703 = vunpack.c.l.b16 %v6079
        %v7704 = vunpack.c.h.b16 %v6079
        %v7705 = vunpack.c.l.b16 %v6080
        %v7706 = vunpack.c.h.b16 %v6080
        %v7707 = vunpack.c.l.b16 %v6081
        %v7708 = vunpack.c.h.b16 %v6081
        %v7709 = vunpack.c.l.b16 %v6082
        %v7710 = vunpack.c.h.b16 %v6082
        %v7711 = vunpack.c.l.b16 %v6083
        %v7712 = vunpack.c.l.b16 %v6084
        %v7713 = vunpack.c.h.b16 %v6084
        %v7714 = vunpack.c.l.b16 %v6085
        %v7715 = vunpack.c.h.b16 %v6085
        %v7716 = vunpack.c.l.b16 %v6086
        %v7717 = vunpack.c.h.b16 %v6086
        %v7718 = vunpack.c.l.b16 %v6087
        %v7719 = vunpack.c.h.b16 %v6087
        %v7720 = vunpack.c.l.b16 %v6088
        %v7721 = vunpack.c.l.b16 %v6089
        %v7722 = vunpack.c.h.b16 %v6089
        %v7723 = vunpack.c.l.b16 %v6090
        %v7724 = vunpack.c.h.b16 %v6090
        %v7725 = vunpack.c.l.b16 %v6091
        %v7726 = vunpack.c.h.b16 %v6091
        %v7727 = vunpack.c.l.b16 %v6092
        %v7728 = vunpack.c.h.b16 %v6092
        %v7729 = vunpack.c.l.b16 %v6093
        %v7730 = vunpack.c.l.b16 %v6094
        %v7731 = vunpack.c.h.b16 %v6094
        %v7732 = vunpack.c.l.b16 %v6095
        %v7733 = vunpack.c.h.b16 %v6095
        %v7734 = vunpack.c.l.b16 %v6096
        %v7735 = vunpack.c.h.b16 %v6096
        %v7736 = vunpack.c.l.b16 %v6097
        %v7737 = vunpack.c.h.b16 %v6097
        %v7738 = vunpack.c.l.b16 %v6098
        %v7739 = vunpack.c.l.b16 %v6099
        %v7740 = vunpack.c.h.b16 %v6099
        %v7741 = vunpack.c.l.b16 %v6100
        %v7742 = vunpack.c.h.b16 %v6100
        %v7743 = vunpack.c.l.b16 %v6101
        %v7744 = vunpack.c.h.b16 %v6101
        %v7745 = vunpack.c.l.b16 %v6102
        %v7746 = vunpack.c.h.b16 %v6102
        %v7747 = vunpack.c.l.b16 %v6103
        %v7748 = vunpack.c.l.b16 %v6104
        %v7749 = vunpack.c.h.b16 %v6104
        %v7750 = vunpack.c.l.b16 %v6105
        %v7751 = vunpack.c.h.b16 %v6105
        %v7752 = vunpack.c.l.b16 %v6106
        %v7753 = vunpack.c.h.b16 %v6106
        %v7754 = vunpack.c.l.b16 %v6107
        %v7755 = vunpack.c.h.b16 %v6107
        %v7756 = vunpack.c.l.b16 %v6108
        %v7757 = vunpack.c.l.b16 %v6109
        %v7758 = vunpack.c.h.b16 %v6109
        %v7759 = vunpack.c.l.b16 %v6110
        %v7760 = vunpack.c.h.b16 %v6110
        %v7761 = vunpack.c.l.b16 %v6111
        %v7762 = vunpack.c.h.b16 %v6111
        %v7763 = vunpack.c.l.b16 %v6112
        %v7764 = vunpack.c.h.b16 %v6112
        %v7765 = vunpack.c.l.b16 %v6113
        %v7766 = vunpack.c.l.b16 %v6114
        %v7767 = vunpack.c.h.b16 %v6114
        %v7768 = vunpack.c.l.b16 %v6115
        %v7769 = vunpack.c.h.b16 %v6115
        %v7770 = vunpack.c.l.b16 %v6116
        %v7771 = vunpack.c.h.b16 %v6116
        %v7772 = vunpack.c.l.b16 %v6117
        %v7773 = vunpack.c.h.b16 %v6117
        %v7774 = vunpack.c.l.b16 %v6118
        %v7775 = vunpack.c.l.b16 %v6119
        %v7776 = vunpack.c.h.b16 %v6119
        %v7777 = vunpack.c.l.b16 %v6120
        %v7778 = vunpack.c.h.b16 %v6120
        %v7779 = vunpack.c.l.b16 %v6121
        %v7780 = vunpack.c.h.b16 %v6121
        %v7781 = vunpack.c.l.b16 %v6122
        %v7782 = vunpack.c.h.b16 %v6122
        %v7783 = vunpack.c.l.b16 %v6123
        %v7784 = vunpack.c.l.b16 %v6124
        %v7785 = vunpack.c.h.b16 %v6124
        %v7786 = vunpack.c.l.b16 %v6125
        %v7787 = vunpack.c.h.b16 %v6125
        %v7788 = vunpack.c.l.b16 %v6126
        %v7789 = vunpack.c.h.b16 %v6126
        %v7790 = vunpack.c.l.b16 %v6127
        %v7791 = vunpack.c.h.b16 %v6127
        %v7792 = vunpack.c.l.b16 %v6128
        %v7793 = vunpack.c.l.b16 %v6129
        %v7794 = vunpack.c.h.b16 %v6129
        %v7795 = vunpack.c.l.b16 %v6130
        %v7796 = vunpack.c.h.b16 %v6130
        %v7797 = vunpack.c.l.b16 %v6131
        %v7798 = vunpack.c.h.b16 %v6131
        %v7799 = vunpack.c.l.b16 %v6132
        %v7800 = vunpack.c.h.b16 %v6132
        %v7801 = vunpack.c.l.b16 %v6133
        %v7802 = vunpack.c.l.b16 %v6134
        %v7803 = vunpack.c.h.b16 %v6134
        %v7804 = vunpack.c.l.b16 %v6135
        %v7805 = vunpack.c.h.b16 %v6135
        %v7806 = vunpack.c.l.b16 %v6136
        %v7807 = vunpack.c.h.b16 %v6136
        %v7808 = vunpack.c.l.b16 %v6137
        %v7809 = vunpack.c.h.b16 %v6137
        %v7810 = vunpack.c.l.b16 %v6138
        %v7811 = vunpack.c.l.b16 %v6139
        %v7812 = vunpack.c.h.b16 %v6139
        %v7813 = vunpack.c.l.b16 %v6140
        %v7814 = vunpack.c.h.b16 %v6140
        %v7815 = vunpack.c.l.b16 %v6141
        %v7816 = vunpack.c.h.b16 %v6141
        %v7817 = vunpack.c.l.b16 %v6142
        %v7818 = vunpack.c.h.b16 %v6142
        %v7819 = vunpack.c.l.b16 %v6143
        %v7820 = vunpack.c.l.b16 %v6144
        %v7821 = vunpack.c.h.b16 %v6144
        %v7822 = vunpack.c.l.b16 %v6145
        %v7823 = vunpack.c.h.b16 %v6145
        %v7824 = vunpack.c.l.b16 %v6146
        %v7825 = vunpack.c.h.b16 %v6146
        %v7826 = vunpack.c.l.b16 %v6147
        %v7827 = vunpack.c.h.b16 %v6147
        %v7828 = vunpack.c.l.b16 %v6148
        %v7829 = vunpack.c.l.b16 %v6149
        %v7830 = vunpack.c.h.b16 %v6149
        %v7831 = vunpack.c.l.b16 %v6150
        %v7832 = vunpack.c.h.b16 %v6150
        %v7833 = vunpack.c.l.b16 %v6151
        %v7834 = vunpack.c.h.b16 %v6151
        %v7835 = vunpack.c.l.b16 %v6152
        %v7836 = vunpack.c.h.b16 %v6152
        %v7837 = vunpack.c.l.b16 %v6153
        %v7838 = vunpack.c.l.b16 %v6154
        %v7839 = vunpack.c.h.b16 %v6154
        %v7840 = vunpack.c.l.b16 %v6155
        %v7841 = vunpack.c.h.b16 %v6155
        %v7842 = vunpack.c.l.b16 %v6156
        %v7843 = vunpack.c.h.b16 %v6156
        %v7844 = vunpack.c.l.b16 %v6157
        %v7845 = vunpack.c.h.b16 %v6157
        %v7846 = vunpack.c.l.b16 %v6158
        %v7847 = vunpack.c.l.b16 %v6159
        %v7848 = vunpack.c.h.b16 %v6159
        %v7849 = vunpack.c.l.b16 %v6160
        %v7850 = vunpack.c.h.b16 %v6160
        %v7851 = vunpack.c.l.b16 %v6161
        %v7852 = vunpack.c.h.b16 %v6161
        %v7853 = vunpack.c.l.b16 %v6162
        %v7854 = vunpack.c.h.b16 %v6162
        %v7855 = vunpack.c.l.b16 %v6163
        %v7856 = vunpack.c.l.b16 %v6164
        %v7857 = vunpack.c.h.b16 %v6164
        %v7858 = vunpack.c.l.b16 %v6165
        %v7859 = vunpack.c.h.b16 %v6165
        %v7860 = vunpack.c.l.b16 %v6166
        %v7861 = vunpack.c.h.b16 %v6166
        %v7862 = vunpack.c.l.b16 %v6167
        %v7863 = vunpack.c.h.b16 %v6167
        %v7864 = vunpack.c.l.b16 %v6168
        %v7865 = vunpack.c.l.b16 %v6169
        %v7866 = vunpack.c.h.b16 %v6169
        %v7867 = vunpack.c.l.b16 %v6170
        %v7868 = vunpack.c.h.b16 %v6170
        %v7869 = vunpack.c.l.b16 %v6171
        %v7870 = vunpack.c.h.b16 %v6171
        %v7871 = vunpack.c.l.b16 %v6172
        %v7872 = vunpack.c.h.b16 %v6172
        %v7873 = vunpack.c.l.b16 %v6173
        %v7874 = vunpack.c.l.b16 %v6174
        %v7875 = vunpack.c.h.b16 %v6174
        %v7876 = vunpack.c.l.b16 %v6175
        %v7877 = vunpack.c.h.b16 %v6175
        %v7878 = vunpack.c.l.b16 %v6176
        %v7879 = vunpack.c.h.b16 %v6176
        %v7880 = vunpack.c.l.b16 %v6177
        %v7881 = vunpack.c.h.b16 %v6177
        %v7882 = vunpack.c.l.b16 %v6178
        %v7883 = vunpack.c.l.b16 %v6179
        %v7884 = vunpack.c.h.b16 %v6179
        %v7885 = vunpack.c.l.b16 %v6180
        %v7886 = vunpack.c.h.b16 %v6180
        %v7887 = vunpack.c.l.b16 %v6181
        %v7888 = vunpack.c.h.b16 %v6181
        %v7889 = vunpack.c.l.b16 %v6182
        %v7890 = vunpack.c.h.b16 %v6182
        %v7891 = vunpack.c.l.b16 %v6183
        %v7892 = vunpack.c.l.b16 %v6184
        %v7893 = vunpack.c.h.b16 %v6184
        %v7894 = vunpack.c.l.b16 %v6185
        %v7895 = vunpack.c.h.b16 %v6185
        %v7896 = vunpack.c.l.b16 %v6186
        %v7897 = vunpack.c.h.b16 %v6186
        %v7898 = vunpack.c.l.b16 %v6187
        %v7899 = vunpack.c.h.b16 %v6187
        %v7900 = vunpack.c.l.b16 %v6188
        %v7901 = vunpack.c.l.b16 %v6189
        %v7902 = vunpack.c.h.b16 %v6189
        %v7903 = vunpack.c.l.b16 %v6190
        %v7904 = vunpack.c.h.b16 %v6190
        %v7905 = vunpack.c.l.b16 %v6191
        %v7906 = vunpack.c.h.b16 %v6191
        %v7907 = vunpack.c.l.b16 %v6192
        %v7908 = vunpack.c.h.b16 %v6192
        %v7909 = vunpack.c.l.b16 %v6193
        %v7910 = vunpack.c.l.b16 %v6194
        %v7911 = vunpack.c.h.b16 %v6194
        %v7912 = vunpack.c.l.b16 %v6195
        %v7913 = vunpack.c.h.b16 %v6195
        %v7914 = vunpack.c.l.b16 %v6196
        %v7915 = vunpack.c.h.b16 %v6196
        %v7916 = vunpack.c.l.b16 %v6197
        %v7917 = vunpack.c.h.b16 %v6197
        %v7918 = vunpack.c.l.b16 %v6198
        %v7919 = vunpack.c.l.b16 %v6199
        %v7920 = vunpack.c.h.b16 %v6199
        %v7921 = vunpack.c.l.b16 %v6200
        %v7922 = vunpack.c.h.b16 %v6200
        %v7923 = vunpack.c.l.b16 %v6201
        %v7924 = vunpack.c.h.b16 %v6201
        %v7925 = vunpack.c.l.b16 %v6202
        %v7926 = vunpack.c.h.b16 %v6202
        %v7927 = vunpack.c.l.b16 %v6203
        %v7928 = vunpack.c.l.b16 %v6204
        %v7929 = vunpack.c.h.b16 %v6204
        %v7930 = vunpack.c.l.b16 %v6205
        %v7931 = vunpack.c.h.b16 %v6205
        %v7932 = vunpack.c.l.b16 %v6206
        %v7933 = vunpack.c.h.b16 %v6206
        %v7934 = vunpack.c.l.b16 %v6207
        %v7935 = vunpack.c.h.b16 %v6207
        %v7936 = vunpack.c.l.b16 %v6208
        %v7937 = vunpack.c.l.b16 %v6209
        %v7938 = vunpack.c.h.b16 %v6209
        %v7939 = vunpack.c.l.b16 %v6210
        %v7940 = vunpack.c.h.b16 %v6210
        %v7941 = vunpack.c.l.b16 %v6211
        %v7942 = vunpack.c.h.b16 %v6211
        %v7943 = vunpack.c.l.b16 %v6212
        %v7944 = vunpack.c.h.b16 %v6212
        %v7945 = vunpack.c.l.b16 %v6213
        %v7946 = vunpack.c.l.b16 %v6214
        %v7947 = vunpack.c.h.b16 %v6214
        %v7948 = vunpack.c.l.b16 %v6215
        %v7949 = vunpack.c.h.b16 %v6215
        %v7950 = vunpack.c.l.b16 %v6216
        %v7951 = vunpack.c.h.b16 %v6216
        %v7952 = vunpack.c.l.b16 %v6217
        %v7953 = vunpack.c.h.b16 %v6217
        %v7954 = vunpack.c.l.b16 %v6218
        %v7955 = vunpack.c.l.b16 %v6219
        %v7956 = vunpack.c.h.b16 %v6219
        %v7957 = vunpack.c.l.b16 %v6220
        %v7958 = vunpack.c.h.b16 %v6220
        %v7959 = vunpack.c.l.b16 %v6221
        %v7960 = vunpack.c.h.b16 %v6221
        %v7961 = vunpack.c.l.b16 %v6222
        %v7962 = vunpack.c.h.b16 %v6222
        %v7963 = vunpack.c.l.b16 %v6223
        %v7964 = vunpack.c.l.b16 %v6224
        %v7965 = vunpack.c.h.b16 %v6224
        %v7966 = vunpack.c.l.b16 %v6225
        %v7967 = vunpack.c.h.b16 %v6225
        %v7968 = vunpack.c.l.b16 %v6226
        %v7969 = vunpack.c.h.b16 %v6226
        %v7970 = vunpack.c.l.b16 %v6227
        %v7971 = vunpack.c.h.b16 %v6227
        %v7972 = vunpack.c.l.b16 %v6228
        %v7973 = vunpack.c.l.b16 %v6229
        %v7974 = vunpack.c.h.b16 %v6229
        %v7975 = vunpack.c.l.b16 %v6230
        %v7976 = vunpack.c.h.b16 %v6230
        %v7977 = vunpack.c.l.b16 %v6231
        %v7978 = vunpack.c.h.b16 %v6231
        %v7979 = vunpack.c.l.b16 %v6232
        %v7980 = vunpack.c.h.b16 %v6232
        %v7981 = vunpack.c.l.b16 %v6233
        %v7982 = vunpack.c.l.b16 %v6234
        %v7983 = vunpack.c.h.b16 %v6234
        %v7984 = vunpack.c.l.b16 %v6235
        %v7985 = vunpack.c.h.b16 %v6235
        %v7986 = vunpack.c.l.b16 %v6236
        %v7987 = vunpack.c.h.b16 %v6236
        %v7988 = vunpack.c.l.b16 %v6237
        %v7989 = vunpack.c.h.b16 %v6237
        %v7990 = vunpack.c.l.b16 %v6238
        %v7991 = vunpack.c.l.b16 %v6239
        %v7992 = vunpack.c.h.b16 %v6239
        %v7993 = vunpack.c.l.b16 %v6240
        %v7994 = vunpack.c.h.b16 %v6240
        %v7995 = vunpack.c.l.b16 %v6241
        %v7996 = vunpack.c.h.b16 %v6241
        %v7997 = vunpack.c.l.b16 %v6242
        %v7998 = vunpack.c.h.b16 %v6242
        %v7999 = vunpack.c.l.b16 %v6243
        %v8000 = vunpack.c.l.b16 %v6244
        %v8001 = vunpack.c.h.b16 %v6244
        %v8002 = vunpack.c.l.b16 %v6245
        %v8003 = vunpack.c.h.b16 %v6245
        %v8004 = vunpack.c.l.b16 %v6246
        %v8005 = vunpack.c.h.b16 %v6246
        %v8006 = vunpack.c.l.b16 %v6247
        %v8007 = vunpack.c.h.b16 %v6247
        %v8008 = vunpack.c.l.b16 %v6248
        %v8009 = vunpack.c.l.b16 %v6249
        %v8010 = vunpack.c.h.b16 %v6249
        %v8011 = vunpack.c.l.b16 %v6250
        %v8012 = vunpack.c.h.b16 %v6250
        %v8013 = vunpack.c.l.b16 %v6251
        %v8014 = vunpack.c.h.b16 %v6251
        %v8015 = vunpack.c.l.b16 %v6252
        %v8016 = vunpack.c.h.b16 %v6252
        %v8017 = vunpack.c.l.b16 %v6253
        %v8018 = vunpack.c.l.b16 %v6254
        %v8019 = vunpack.c.h.b16 %v6254
        %v8020 = vunpack.c.l.b16 %v6255
        %v8021 = vunpack.c.h.b16 %v6255
        %v8022 = vunpack.c.l.b16 %v6256
        %v8023 = vunpack.c.h.b16 %v6256
        %v8024 = vunpack.c.l.b16 %v6257
        %v8025 = vunpack.c.h.b16 %v6257
        %v8026 = vunpack.c.l.b16 %v6258
        %v8027 = vunpack.c.l.b16 %v6259
        %v8028 = vunpack.c.h.b16 %v6259
        %v8029 = vunpack.c.l.b16 %v6260
        %v8030 = vunpack.c.h.b16 %v6260
        %v8031 = vunpack.c.l.b16 %v6261
        %v8032 = vunpack.c.h.b16 %v6261
        %v8033 = vunpack.c.l.b16 %v6262
        %v8034 = vunpack.c.h.b16 %v6262
        %v8035 = vunpack.c.l.b16 %v6263
        %v8036 = vunpack.c.l.b16 %v6264
        %v8037 = vunpack.c.h.b16 %v6264
        %v8038 = vunpack.c.l.b16 %v6265
        %v8039 = vunpack.c.h.b16 %v6265
        %v8040 = vunpack.c.l.b16 %v6266
        %v8041 = vunpack.c.h.b16 %v6266
        %v8042 = vunpack.c.l.b16 %v6267
        %v8043 = vunpack.c.h.b16 %v6267
        %v8044 = vunpack.c.l.b16 %v6268
        %v8045 = vunpack.c.l.b16 %v6269
        %v8046 = vunpack.c.h.b16 %v6269
        %v8047 = vunpack.c.l.b16 %v6270
        %v8048 = vunpack.c.h.b16 %v6270
        %v8049 = vunpack.c.l.b16 %v6271
        %v8050 = vunpack.c.h.b16 %v6271
        %v8051 = vunpack.c.l.b16 %v6272
        %v8052 = vunpack.c.h.b16 %v6272
        %v8053 = vunpack.c.l.b16 %v6273
        %v8054 = vunpack.c.l.b16 %v6274
        %v8055 = vunpack.c.h.b16 %v6274
        %v8056 = vunpack.c.l.b16 %v6275
        %v8057 = vunpack.c.h.b16 %v6275
        %v8058 = vunpack.c.l.b16 %v6276
        %v8059 = vunpack.c.h.b16 %v6276
        %v8060 = vunpack.c.l.b16 %v6277
        %v8061 = vunpack.c.h.b16 %v6277
        %v8062 = vunpack.c.l.b16 %v6278
        %v8063 = vunpack.c.l.b16 %v6279
        %v8064 = vunpack.c.h.b16 %v6279
        %v8065 = vunpack.c.l.b16 %v6280
        %v8066 = vunpack.c.h.b16 %v6280
        %v8067 = vunpack.c.l.b16 %v6281
        %v8068 = vunpack.c.h.b16 %v6281
        %v8069 = vunpack.c.l.b16 %v6282
        %v8070 = vunpack.c.h.b16 %v6282
        %v8071 = vunpack.c.l.b16 %v6283
        %v8072 = vunpack.c.l.b16 %v6284
        %v8073 = vunpack.c.h.b16 %v6284
        %v8074 = vunpack.c.l.b16 %v6285
        %v8075 = vunpack.c.h.b16 %v6285
        %v8076 = vunpack.c.l.b16 %v6286
        %v8077 = vunpack.c.h.b16 %v6286
        %v8078 = vunpack.c.l.b16 %v6287
        %v8079 = vunpack.c.h.b16 %v6287
        %v8080 = vunpack.c.l.b16 %v6288
        %v8081 = vunpack.c.l.b16 %v6289
        %v8082 = vunpack.c.h.b16 %v6289
        %v8083 = vunpack.c.l.b16 %v6290
        %v8084 = vunpack.c.h.b16 %v6290
        %v8085 = vunpack.c.l.b16 %v6291
        %v8086 = vunpack.c.h.b16 %v6291
        %v8087 = vunpack.c.l.b16 %v6292
        %v8088 = vunpack.c.h.b16 %v6292
        %v8089 = vunpack.c.l.b16 %v6293
        %v8090 = vunpack.c.l.b16 %v6294
        %v8091 = vunpack.c.h.b16 %v6294
        %v8092 = vunpack.c.l.b16 %v6295
        %v8093 = vunpack.c.h.b16 %v6295
        %v8094 = vunpack.c.l.b16 %v6296
        %v8095 = vunpack.c.h.b16 %v6296
        %v8096 = vunpack.c.l.b16 %v6297
        %v8097 = vunpack.c.h.b16 %v6297
        %v8098 = vunpack.c.l.b16 %v6298
        %v8099 = vunpack.c.l.b16 %v6299
        %v8100 = vunpack.c.h.b16 %v6299
        %v8101 = vunpack.c.l.b16 %v6300
        %v8102 = vunpack.c.h.b16 %v6300
        %v8103 = vunpack.c.l.b16 %v6301
        %v8104 = vunpack.c.h.b16 %v6301
        %v8105 = vunpack.c.l.b16 %v6302
        %v8106 = vunpack.c.h.b16 %v6302
        %v8107 = vunpack.c.l.b16 %v6303
        %v8108 = vunpack.c.l.b16 %v6304
        %v8109 = vunpack.c.h.b16 %v6304
        %v8110 = vunpack.c.l.b16 %v6305
        %v8111 = vunpack.c.h.b16 %v6305
        %v8112 = vunpack.c.l.b16 %v6306
        %v8113 = vunpack.c.h.b16 %v6306
        %v8114 = vunpack.c.l.b16 %v6307
        %v8115 = vunpack.c.h.b16 %v6307
        %v8116 = vunpack.c.l.b16 %v6308
        %v8117 = vunpack.c.l.b16 %v6309
        %v8118 = vunpack.c.h.b16 %v6309
        %v8119 = vunpack.c.l.b16 %v6310
        %v8120 = vunpack.c.h.b16 %v6310
        %v8121 = vunpack.c.l.b16 %v6311
        %v8122 = vunpack.c.h.b16 %v6311
        %v8123 = vunpack.c.l.b16 %v6312
        %v8124 = vunpack.c.h.b16 %v6312
        %v8125 = vunpack.c.l.b16 %v6313
        %v8126 = vunpack.c.l.b16 %v6314
        %v8127 = vunpack.c.h.b16 %v6314
        %v8128 = vunpack.c.l.b16 %v6315
        %v8129 = vunpack.c.h.b16 %v6315
        %v8130 = vunpack.c.l.b16 %v6316
        %v8131 = vunpack.c.h.b16 %v6316
        %v8132 = vunpack.c.l.b16 %v6317
        %v8133 = vunpack.c.h.b16 %v6317
        %v8134 = vunpack.c.l.b16 %v6318
        %v8135 = vunpack.c.l.b16 %v6319
        %v8136 = vunpack.c.h.b16 %v6319
        %v8137 = vunpack.c.l.b16 %v6320
        %v8138 = vunpack.c.h.b16 %v6320
        %v8139 = vunpack.c.l.b16 %v6321
        %v8140 = vunpack.c.h.b16 %v6321
        %v8141 = vunpack.c.l.b16 %v6322
        %v8142 = vunpack.c.h.b16 %v6322
        %v8143 = vunpack.c.l.b16 %v6323
        %v8144 = vunpack.c.l.b16 %v6324
        %v8145 = vunpack.c.h.b16 %v6324
        %v8146 = vunpack.c.l.b16 %v6325
        %v8147 = vunpack.c.h.b16 %v6325
        %v8148 = vunpack.c.l.b16 %v6326
        %v8149 = vunpack.c.h.b16 %v6326
        %v8150 = vunpack.c.l.b16 %v6327
        %v8151 = vunpack.c.h.b16 %v6327
        %v8152 = vunpack.c.l.b16 %v6328
        %v8153 = vunpack.c.l.b16 %v6329
        %v8154 = vunpack.c.h.b16 %v6329
        %v8155 = vunpack.c.l.b16 %v6330
        %v8156 = vunpack.c.h.b16 %v6330
        %v8157 = vunpack.c.l.b16 %v6331
        %v8158 = vunpack.c.h.b16 %v6331
        %v8159 = vunpack.c.l.b16 %v6332
        %v8160 = vunpack.c.h.b16 %v6332
        %v8161 = vunpack.c.l.b16 %v6333
        %v8162 = vunpack.c.l.b16 %v6334
        %v8163 = vunpack.c.h.b16 %v6334
        %v8164 = vunpack.c.l.b16 %v6335
        %v8165 = vunpack.c.h.b16 %v6335
        %v8166 = vunpack.c.l.b16 %v6336
        %v8167 = vunpack.c.h.b16 %v6336
        %v8168 = vunpack.c.l.b16 %v6337
        %v8169 = vunpack.c.h.b16 %v6337
        %v8170 = vunpack.c.l.b16 %v6338
        %v8171 = vunpack.c.l.b16 %v6339
        %v8172 = vunpack.c.h.b16 %v6339
        %v8173 = vunpack.c.l.b16 %v6340
        %v8174 = vunpack.c.h.b16 %v6340
        %v8175 = vunpack.c.l.b16 %v6341
        %v8176 = vunpack.c.h.b16 %v6341
        %v8177 = vunpack.c.l.b16 %v6342
        %v8178 = vunpack.c.h.b16 %v6342
        %v8179 = vunpack.c.l.b16 %v6343
        %v8180 = vunpack.c.l.b16 %v6344
        %v8181 = vunpack.c.h.b16 %v6344
        %v8182 = vunpack.c.l.b16 %v6345
        %v8183 = vunpack.c.h.b16 %v6345
        %v8184 = vunpack.c.l.b16 %v6346
        %v8185 = vunpack.c.h.b16 %v6346
        %v8186 = vunpack.c.l.b16 %v6347
        %v8187 = vunpack.c.h.b16 %v6347
        %v8188 = vunpack.c.l.b16 %v6348
        %v8189 = vunpack.c.l.b16 %v6349
        %v8190 = vunpack.c.h.b16 %v6349
        %v8191 = vunpack.c.l.b16 %v6350
        %v8192 = vunpack.c.h.b16 %v6350
        %v8193 = vunpack.c.l.b16 %v6351
        %v8194 = vunpack.c.h.b16 %v6351
        %v8195 = vunpack.c.l.b16 %v6352
        %v8196 = vunpack.c.h.b16 %v6352
        %v8197 = vunpack.c.l.b16 %v6353
        %v8198 = vunpack.c.l.b16 %v6354
        %v8199 = vunpack.c.h.b16 %v6354
        %v8200 = vunpack.c.l.b16 %v6355
        %v8201 = vunpack.c.h.b16 %v6355
        %v8202 = vunpack.c.l.b16 %v6356
        %v8203 = vunpack.c.h.b16 %v6356
        %v8204 = vunpack.c.l.b16 %v6357
        %v8205 = vunpack.c.h.b16 %v6357
        %v8206 = vunpack.c.l.b16 %v6358
        %v8207 = vunpack.c.l.b16 %v6359
        %v8208 = vunpack.c.h.b16 %v6359
        %v8209 = vunpack.c.l.b16 %v6360
        %v8210 = vunpack.c.h.b16 %v6360
        %v8211 = vunpack.c.l.b16 %v6361
        %v8212 = vunpack.c.h.b16 %v6361
        %v8213 = vunpack.c.l.b16 %v6362
        %v8214 = vunpack.c.h.b16 %v6362
        %v8215 = vunpack.c.l.b16 %v6363
        %v8216 = vunpack.c.l.b16 %v6364
        %v8217 = vunpack.c.h.b16 %v6364
        %v8218 = vunpack.c.l.b16 %v6365
        %v8219 = vunpack.c.h.b16 %v6365
        %v8220 = vunpack.c.l.b16 %v6366
        %v8221 = vunpack.c.h.b16 %v6366
        %v8222 = vunpack.c.l.b16 %v6367
        %v8223 = vunpack.c.h.b16 %v6367
        %v8224 = vunpack.c.l.b16 %v6368
        %v8225 = vunpack.c.l.b16 %v6369
        %v8226 = vunpack.c.h.b16 %v6369
        %v8227 = vunpack.c.l.b16 %v6370
        %v8228 = vunpack.c.h.b16 %v6370
        %v8229 = vunpack.c.l.b16 %v6371
        %v8230 = vunpack.c.h.b16 %v6371
        %v8231 = vunpack.c.l.b16 %v6372
        %v8232 = vunpack.c.h.b16 %v6372
        %v8233 = vunpack.c.l.b16 %v6373
        %v8234 = vunpack.c.l.b16 %v6374
        %v8235 = vunpack.c.h.b16 %v6374
        %v8236 = vunpack.c.l.b16 %v6375
        %v8237 = vunpack.c.h.b16 %v6375
        %v8238 = vunpack.c.l.b16 %v6376
        %v8239 = vunpack.c.h.b16 %v6376
        %v8240 = vunpack.c.l.b16 %v6377
        %v8241 = vunpack.c.h.b16 %v6377
        %v8242 = vunpack.c.l.b16 %v6378
        %v8243 = vunpack.c.l.b16 %v6379
        %v8244 = vunpack.c.h.b16 %v6379
        %v8245 = vunpack.c.l.b16 %v6380
        %v8246 = vunpack.c.h.b16 %v6380
        %v8247 = vunpack.c.l.b16 %v6381
        %v8248 = vunpack.c.h.b16 %v6381
        %v8249 = vunpack.c.l.b16 %v6382
        %v8250 = vunpack.c.h.b16 %v6382
        %v8251 = vunpack.c.l.b16 %v6383
        %v8252 = vunpack.c.l.b16 %v6384
        %v8253 = vunpack.c.h.b16 %v6384
        %v8254 = vunpack.c.l.b16 %v6385
        %v8255 = vunpack.c.h.b16 %v6385
        %v8256 = vunpack.c.l.b16 %v6386
        %v8257 = vunpack.c.h.b16 %v6386
        %v8258 = vunpack.c.l.b16 %v6387
        %v8259 = vunpack.c.h.b16 %v6387
        %v8260 = vunpack.c.l.b16 %v6388
        %v8261 = vunpack.c.l.b16 %v6389
        %v8262 = vunpack.c.h.b16 %v6389
        %v8263 = vunpack.c.l.b16 %v6390
        %v8264 = vunpack.c.h.b16 %v6390
        %v8265 = vunpack.c.l.b16 %v6391
        %v8266 = vunpack.c.h.b16 %v6391
        %v8267 = vunpack.c.l.b16 %v6392
        %v8268 = vunpack.c.h.b16 %v6392
        %v8269 = vunpack.c.l.b16 %v6393
        %v8270 = vunpack.c.l.b16 %v6394
        %v8271 = vunpack.c.h.b16 %v6394
        %v8272 = vunpack.c.l.b16 %v6395
        %v8273 = vunpack.c.h.b16 %v6395
        %v8274 = vunpack.c.l.b16 %v6396
        %v8275 = vunpack.c.h.b16 %v6396
        %v8276 = vunpack.c.l.b16 %v6397
        %v8277 = vunpack.c.h.b16 %v6397
        %v8278 = vunpack.c.l.b16 %v6398
        %v8279 = vunpack.c.l.b16 %v6399
        %v8280 = vunpack.c.h.b16 %v6399
        %v8281 = vunpack.c.l.b16 %v6400
        %v8282 = vunpack.c.h.b16 %v6400
        %v8283 = vunpack.c.l.b16 %v6401
        %v8284 = vunpack.c.h.b16 %v6401
        %v8285 = vunpack.c.l.b16 %v6402
        %v8286 = vunpack.c.h.b16 %v6402
        %v8287 = vunpack.c.l.b16 %v6403
        %v8288 = vunpack.c.l.b16 %v6404
        %v8289 = vunpack.c.h.b16 %v6404
        %v8290 = vunpack.c.l.b16 %v6405
        %v8291 = vunpack.c.h.b16 %v6405
        %v8292 = vunpack.c.l.b16 %v6406
        %v8293 = vunpack.c.h.b16 %v6406
        %v8294 = vunpack.c.l.b16 %v6407
        %v8295 = vunpack.c.h.b16 %v6407
        %v8296 = vunpack.c.l.b16 %v6408
        %v8297 = vunpack.c.l.b16 %v6409
        %v8298 = vunpack.c.h.b16 %v6409
        %v8299 = vunpack.c.l.b16 %v6410
        %v8300 = vunpack.c.h.b16 %v6410
        %v8301 = vunpack.c.l.b16 %v6411
        %v8302 = vunpack.c.h.b16 %v6411
        %v8303 = vunpack.c.l.b16 %v6412
        %v8304 = vunpack.c.h.b16 %v6412
        %v8305 = vunpack.c.l.b16 %v6413
        %v8306 = vunpack.c.l.b16 %v6414
        %v8307 = vunpack.c.h.b16 %v6414
        %v8308 = vunpack.c.l.b16 %v6415
        %v8309 = vunpack.c.h.b16 %v6415
        %v8310 = vunpack.c.l.b16 %v6416
        %v8311 = vunpack.c.h.b16 %v6416
        %v8312 = vunpack.c.l.b16 %v6417
        %v8313 = vunpack.c.h.b16 %v6417
        %v8314 = vunpack.c.l.b16 %v6418
        %v8315 = vunpack.c.l.b16 %v6419
        %v8316 = vunpack.c.h.b16 %v6419
        %v8317 = vunpack.c.l.b16 %v6420
        %v8318 = vunpack.c.h.b16 %v6420
        %v8319 = vunpack.c.l.b16 %v6421
        %v8320 = vunpack.c.h.b16 %v6421
        %v8321 = vunpack.c.l.b16 %v6422
        %v8322 = vunpack.c.h.b16 %v6422
        %v8323 = vunpack.c.l.b16 %v6423
        %v8324 = vunpack.c.l.b16 %v6424
        %v8325 = vunpack.c.h.b16 %v6424
        %v8326 = vunpack.c.l.b16 %v6425
        %v8327 = vunpack.c.h.b16 %v6425
        %v8328 = vunpack.c.l.b16 %v6426
        %v8329 = vunpack.c.h.b16 %v6426
        %v8330 = vunpack.c.l.b16 %v6427
        %v8331 = vunpack.c.h.b16 %v6427
        %v8332 = vunpack.c.l.b16 %v6428
        %v8333 = vunpack.c.l.b16 %v6429
        %v8334 = vunpack.c.h.b16 %v6429
        %v8335 = vunpack.c.l.b16 %v6430
        %v8336 = vunpack.c.h.b16 %v6430
        %v8337 = vunpack.c.l.b16 %v6431
        %v8338 = vunpack.c.h.b16 %v6431
        %v8339 = vunpack.c.l.b16 %v6432
        %v8340 = vunpack.c.h.b16 %v6432
        %v8341 = vunpack.c.l.b16 %v6433
        %v8342 = vunpack.c.l.b16 %v6434
        %v8343 = vunpack.c.h.b16 %v6434
        %v8344 = vunpack.c.l.b16 %v6435
        %v8345 = vunpack.c.h.b16 %v6435
        %v8346 = vunpack.c.l.b16 %v6436
        %v8347 = vunpack.c.h.b16 %v6436
        %v8348 = vunpack.c.l.b16 %v6437
        %v8349 = vunpack.c.h.b16 %v6437
        %v8350 = vunpack.c.l.b16 %v6438
        %v8351 = vunpack.c.l.b16 %v6439
        %v8352 = vunpack.c.h.b16 %v6439
        %v8353 = vunpack.c.l.b16 %v6440
        %v8354 = vunpack.c.h.b16 %v6440
        %v8355 = vunpack.c.l.b16 %v6441
        %v8356 = vunpack.c.h.b16 %v6441
        %v8357 = vunpack.c.l.b16 %v6442
        %v8358 = vunpack.c.h.b16 %v6442
        %v8359 = vunpack.c.l.b16 %v6443
        %v8360 = vunpack.c.l.b16 %v6444
        %v8361 = vunpack.c.h.b16 %v6444
        %v8362 = vunpack.c.l.b16 %v6445
        %v8363 = vunpack.c.h.b16 %v6445
        %v8364 = vunpack.c.l.b16 %v6446
        %v8365 = vunpack.c.h.b16 %v6446
        %v8366 = vunpack.c.l.b16 %v6447
        %v8367 = vunpack.c.h.b16 %v6447
        %v8368 = vunpack.c.l.b16 %v6448
        %v8369 = vunpack.c.l.b16 %v6449
        %v8370 = vunpack.c.h.b16 %v6449
        %v8371 = vunpack.c.l.b16 %v6450
        %v8372 = vunpack.c.h.b16 %v6450
        %v8373 = vunpack.c.l.b16 %v6451
        %v8374 = vunpack.c.h.b16 %v6451
        %v8375 = vunpack.c.l.b16 %v6452
        %v8376 = vunpack.c.h.b16 %v6452
        %v8377 = vunpack.c.l.b16 %v6453
        %v8378 = vunpack.c.l.b16 %v6454
        %v8379 = vunpack.c.h.b16 %v6454
        %v8380 = vunpack.c.l.b16 %v6455
        %v8381 = vunpack.c.h.b16 %v6455
        %v8382 = vunpack.c.l.b16 %v6456
        %v8383 = vunpack.c.h.b16 %v6456
        %v8384 = vunpack.c.l.b16 %v6457
        %v8385 = vunpack.c.h.b16 %v6457
        %v8386 = vunpack.c.l.b16 %v6458
        %v8387 = vunpack.c.l.b16 %v6459
        %v8388 = vunpack.c.h.b16 %v6459
        %v8389 = vunpack.c.l.b16 %v6460
        %v8390 = vunpack.c.h.b16 %v6460
        %v8391 = vunpack.c.l.b16 %v6461
        %v8392 = vunpack.c.h.b16 %v6461
        %v8393 = vunpack.c.l.b16 %v6462
        %v8394 = vunpack.c.h.b16 %v6462
        %v8395 = vunpack.c.l.b16 %v6463
        %v8396 = vunpack.c.l.b16 %v6464
        %v8397 = vunpack.c.h.b16 %v6464
        %v8398 = vunpack.c.l.b16 %v6465
        %v8399 = vunpack.c.h.b16 %v6465
        %v8400 = vunpack.c.l.b16 %v6466
        %v8401 = vunpack.c.h.b16 %v6466
        %v8402 = vunpack.c.l.b16 %v6467
        %v8403 = vunpack.c.h.b16 %v6467
        %v8404 = vunpack.c.l.b16 %v6468
        %v8405 = vunpack.c.l.b16 %v6469
        %v8406 = vunpack.c.h.b16 %v6469
        %v8407 = vunpack.c.l.b16 %v6470
        %v8408 = vunpack.c.h.b16 %v6470
        %v8409 = vunpack.c.l.b16 %v6471
        %v8410 = vunpack.c.h.b16 %v6471
        %v8411 = vunpack.c.l.b16 %v6472
        %v8412 = vunpack.c.h.b16 %v6472
        %v8413 = vunpack.c.l.b16 %v6473
        %v8414 = vunpack.c.l.b16 %v6474
        %v8415 = vunpack.c.h.b16 %v6474
        %v8416 = vunpack.c.l.b16 %v6475
        %v8417 = vunpack.c.h.b16 %v6475
        %v8418 = vunpack.c.l.b16 %v6476
        %v8419 = vunpack.c.h.b16 %v6476
        %v8420 = vunpack.c.l.b16 %v6477
        %v8421 = vunpack.c.h.b16 %v6477
        %v8422 = vunpack.c.l.b16 %v6478
        %v8423 = vunpack.c.l.b16 %v6479
        %v8424 = vunpack.c.h.b16 %v6479
        %v8425 = vunpack.c.l.b16 %v6480
        %v8426 = vunpack.c.h.b16 %v6480
        %v8427 = vunpack.c.l.b16 %v6481
        %v8428 = vunpack.c.h.b16 %v6481
        %v8429 = vunpack.c.l.b16 %v6482
        %v8430 = vunpack.c.h.b16 %v6482
        %v8431 = vunpack.c.l.b16 %v6483
        %v8432 = vunpack.c.l.b16 %v6484
        %v8433 = vunpack.c.h.b16 %v6484
        %v8434 = vunpack.c.l.b16 %v6485
        %v8435 = vunpack.c.h.b16 %v6485
        %v8436 = vunpack.c.l.b16 %v6486
        %v8437 = vunpack.c.h.b16 %v6486
        %v8438 = vunpack.c.l.b16 %v6487
        %v8439 = vunpack.c.h.b16 %v6487
        %v8440 = vunpack.c.l.b16 %v6488
        %v8441 = vunpack.c.l.b16 %v6489
        %v8442 = vunpack.c.h.b16 %v6489
        %v8443 = vunpack.c.l.b16 %v6490
        %v8444 = vunpack.c.h.b16 %v6490
        %v8445 = vunpack.c.l.b16 %v6491
        %v8446 = vunpack.c.h.b16 %v6491
        %v8447 = vunpack.c.l.b16 %v6492
        %v8448 = vunpack.c.h.b16 %v6492
        %v8449 = vunpack.c.l.b16 %v6493
        %v8450 = vunpack.c.l.b16 %v6494
        %v8451 = vunpack.c.h.b16 %v6494
        %v8452 = vunpack.c.l.b16 %v6495
        %v8453 = vunpack.c.h.b16 %v6495
        %v8454 = vunpack.c.l.b16 %v6496
        %v8455 = vunpack.c.h.b16 %v6496
        %v8456 = vunpack.c.l.b16 %v6497
        %v8457 = vunpack.c.h.b16 %v6497
        %v8458 = vunpack.c.l.b16 %v6498
        %v8459 = vunpack.c.l.b16 %v6499
        %v8460 = vunpack.c.h.b16 %v6499
        %v8461 = vunpack.c.l.b16 %v6500
        %v8462 = vunpack.c.h.b16 %v6500
        %v8463 = vunpack.c.l.b16 %v6501
        %v8464 = vunpack.c.h.b16 %v6501
        %v8465 = vunpack.c.l.b16 %v6502
        %v8466 = vunpack.c.h.b16 %v6502
        %v8467 = vunpack.c.l.b16 %v6503
        %v8468 = vunpack.c.l.b16 %v6504
        %v8469 = vunpack.c.h.b16 %v6504
        %v8470 = vunpack.c.l.b16 %v6505
        %v8471 = vunpack.c.h.b16 %v6505
        %v8472 = vunpack.c.l.b16 %v6506
        %v8473 = vunpack.c.h.b16 %v6506
        %v8474 = vunpack.c.l.b16 %v6507
        %v8475 = vunpack.c.h.b16 %v6507
        %v8476 = vunpack.c.l.b16 %v6508
        %v8477 = vunpack.c.l.b16 %v6509
        %v8478 = vunpack.c.h.b16 %v6509
        %v8479 = vunpack.c.l.b16 %v6510
        %v8480 = vunpack.c.h.b16 %v6510
        %v8481 = vunpack.c.l.b16 %v6511
        %v8482 = vunpack.c.h.b16 %v6511
        %v8483 = vunpack.c.l.b16 %v6512
        %v8484 = vunpack.c.h.b16 %v6512
        %v8485 = vunpack.c.l.b16 %v6513
        %v8486 = vunpack.c.l.b16 %v6514
        %v8487 = vunpack.c.h.b16 %v6514
        %v8488 = vunpack.c.l.b16 %v6515
        %v8489 = vunpack.c.h.b16 %v6515
        %v8490 = vunpack.c.l.b16 %v6516
        %v8491 = vunpack.c.h.b16 %v6516
        %v8492 = vunpack.c.l.b16 %v6517
        %v8493 = vunpack.c.h.b16 %v6517
        %v8494 = vunpack.c.l.b16 %v6518
        %v8495 = vunpack.c.l.b16 %v6519
        %v8496 = vunpack.c.h.b16 %v6519
        %v8497 = vunpack.c.l.b16 %v6520
        %v8498 = vunpack.c.h.b16 %v6520
        %v8499 = vunpack.c.l.b16 %v6521
        %v8500 = vunpack.c.h.b16 %v6521
        %v8501 = vunpack.c.l.b16 %v6522
        %v8502 = vunpack.c.h.b16 %v6522
        %v8503 = vunpack.c.l.b16 %v6523
        %v8504 = vunpack.c.l.b16 %v6524
        %v8505 = vunpack.c.h.b16 %v6524
        %v8506 = vunpack.c.l.b16 %v6525
        %v8507 = vunpack.c.h.b16 %v6525
        %v8508 = vunpack.c.l.b16 %v6526
        %v8509 = vunpack.c.h.b16 %v6526
        %v8510 = vunpack.c.l.b16 %v6527
        %v8511 = vunpack.c.h.b16 %v6527
        %v8512 = vunpack.c.l.b16 %v6528
        %v8513 = vunpack.c.l.b16 %v6529
        %v8514 = vunpack.c.h.b16 %v6529
        %v8515 = vunpack.c.l.b16 %v6530
        %v8516 = vunpack.c.h.b16 %v6530
        %v8517 = vunpack.c.l.b16 %v6531
        %v8518 = vunpack.c.h.b16 %v6531
        %v8519 = vunpack.c.l.b16 %v6532
        %v8520 = vunpack.c.h.b16 %v6532
        %v8521 = vunpack.c.l.b16 %v6533
        %v8522 = vunpack.c.l.b16 %v6534
        %v8523 = vunpack.c.h.b16 %v6534
        %v8524 = vunpack.c.l.b16 %v6535
        %v8525 = vunpack.c.h.b16 %v6535
        %v8526 = vunpack.c.l.b16 %v6536
        %v8527 = vunpack.c.h.b16 %v6536
        %v8528 = vunpack.c.l.b16 %v6537
        %v8529 = vunpack.c.h.b16 %v6537
        %v8530 = vunpack.c.l.b16 %v6538
        %v8531 = vunpack.c.l.b16 %v6539
        %v8532 = vunpack.c.h.b16 %v6539
        %v8533 = vunpack.c.l.b16 %v6540
        %v8534 = vunpack.c.h.b16 %v6540
        %v8535 = vunpack.c.l.b16 %v6541
        %v8536 = vunpack.c.h.b16 %v6541
        %v8537 = vunpack.c.l.b16 %v6542
        %v8538 = vunpack.c.h.b16 %v6542
        %v8539 = vunpack.c.l.b16 %v6543
        %v8540 = vunpack.c.l.b16 %v6544
        %v8541 = vunpack.c.h.b16 %v6544
        %v8542 = vunpack.c.l.b16 %v6545
        %v8543 = vunpack.c.h.b16 %v6545
        %v8544 = vunpack.c.l.b16 %v6546
        %v8545 = vunpack.c.h.b16 %v6546
        %v8546 = vunpack.c.l.b16 %v6547
        %v8547 = vunpack.c.h.b16 %v6547
        %v8548 = vunpack.c.l.b16 %v6548
        %v8549 = vunpack.c.l.b16 %v6549
        %v8550 = vunpack.c.h.b16 %v6549
        %v8551 = vunpack.c.l.b16 %v6550
        %v8552 = vunpack.c.h.b16 %v6550
        %v8553 = vunpack.c.l.b16 %v6551
        %v8554 = vunpack.c.h.b16 %v6551
        %v8555 = vunpack.c.l.b16 %v6552
        %v8556 = vunpack.c.h.b16 %v6552
        %v8557 = vunpack.c.l.b16 %v6553
        %v8558 = vunpack.c.l.b16 %v6554
        %v8559 = vunpack.c.h.b16 %v6554
        %v8560 = vunpack.c.l.b16 %v6555
        %v8561 = vunpack.c.h.b16 %v6555
        %v8562 = vunpack.c.l.b16 %v6556
        %v8563 = vunpack.c.h.b16 %v6556
        %v8564 = vunpack.c.l.b16 %v6557
        %v8565 = vunpack.c.h.b16 %v6557
        %v8566 = vunpack.c.l.b16 %v6558
        %v8567 = vunpack.c.l.b16 %v6559
        %v8568 = vunpack.c.h.b16 %v6559
        %v8569 = vunpack.c.l.b16 %v6560
        %v8570 = vunpack.c.h.b16 %v6560
        %v8571 = vunpack.c.l.b16 %v6561
        %v8572 = vunpack.c.h.b16 %v6561
        %v8573 = vunpack.c.l.b16 %v6562
        %v8574 = vunpack.c.h.b16 %v6562
        %v8575 = vunpack.c.l.b16 %v6563
        %v8576 = vunpack.c.l.b16 %v6564
        %v8577 = vunpack.c.h.b16 %v6564
        %v8578 = vunpack.c.l.b16 %v6565
        %v8579 = vunpack.c.h.b16 %v6565
        %v8580 = vunpack.c.l.b16 %v6566
        %v8581 = vunpack.c.h.b16 %v6566
        %v8582 = vunpack.c.l.b16 %v6567
        %v8583 = vunpack.c.h.b16 %v6567
        %v8584 = vunpack.c.l.b16 %v6568
        %v8585 = vpack.c.b16 %v7298, %v7289
        %v8586 = vpack.c.b16 %v7299, %v7290
        %v8587 = vpack.c.b16 %v7300, %v7291
        %v8588 = vpack.c.b16 %v7301, %v7292
        %v8589 = vpack.c.b16 %v7302, %v7293
        %v8590 = vpack.c.b16 %v7303, %v7294
        %v8591 = vpack.c.b16 %v7304, %v7295
        %v8592 = vpack.c.b16 %v7305, %v7296
        %v8593 = vpack.c.b16 %v7306, %v7297
        %v8594 = vpack.c.b16 %v7316, %v7307
        %v8595 = vpack.c.b16 %v7317, %v7308
        %v8596 = vpack.c.b16 %v7318, %v7309
        %v8597 = vpack.c.b16 %v7319, %v7310
        %v8598 = vpack.c.b16 %v7320, %v7311
        %v8599 = vpack.c.b16 %v7321, %v7312
        %v8600 = vpack.c.b16 %v7322, %v7313
        %v8601 = vpack.c.b16 %v7323, %v7314
        %v8602 = vpack.c.b16 %v7324, %v7315
        %v8603 = vpack.c.b16 %v7334, %v7325
        %v8604 = vpack.c.b16 %v7335, %v7326
        %v8605 = vpack.c.b16 %v7336, %v7327
        %v8606 = vpack.c.b16 %v7337, %v7328
        %v8607 = vpack.c.b16 %v7338, %v7329
        %v8608 = vpack.c.b16 %v7339, %v7330
        %v8609 = vpack.c.b16 %v7340, %v7331
        %v8610 = vpack.c.b16 %v7341, %v7332
        %v8611 = vpack.c.b16 %v7342, %v7333
        %v8612 = vpack.c.b16 %v7352, %v7343
        %v8613 = vpack.c.b16 %v7353, %v7344
        %v8614 = vpack.c.b16 %v7354, %v7345
        %v8615 = vpack.c.b16 %v7355, %v7346
        %v8616 = vpack.c.b16 %v7356, %v7347
        %v8617 = vpack.c.b16 %v7357, %v7348
        %v8618 = vpack.c.b16 %v7358, %v7349
        %v8619 = vpack.c.b16 %v7359, %v7350
        %v8620 = vpack.c.b16 %v7360, %v7351
        %v8621 = vpack.c.b16 %v7370, %v7361
        %v8622 = vpack.c.b16 %v7371, %v7362
        %v8623 = vpack.c.b16 %v7372, %v7363
        %v8624 = vpack.c.b16 %v7373, %v7364
        %v8625 = vpack.c.b16 %v7374, %v7365
        %v8626 = vpack.c.b16 %v7375, %v7366
        %v8627 = vpack.c.b16 %v7376, %v7367
        %v8628 = vpack.c.b16 %v7377, %v7368
        %v8629 = vpack.c.b16 %v7378, %v7369
        %v8630 = vpack.c.b16 %v7388, %v7379
        %v8631 = vpack.c.b16 %v7389, %v7380
        %v8632 = vpack.c.b16 %v7390, %v7381
        %v8633 = vpack.c.b16 %v7391, %v7382
        %v8634 = vpack.c.b16 %v7392, %v7383
        %v8635 = vpack.c.b16 %v7393, %v7384
        %v8636 = vpack.c.b16 %v7394, %v7385
        %v8637 = vpack.c.b16 %v7395, %v7386
        %v8638 = vpack.c.b16 %v7396, %v7387
        %v8639 = vpack.c.b16 %v7406, %v7397
        %v8640 = vpack.c.b16 %v7407, %v7398
        %v8641 = vpack.c.b16 %v7408, %v7399
        %v8642 = vpack.c.b16 %v7409, %v7400
        %v8643 = vpack.c.b16 %v7410, %v7401
        %v8644 = vpack.c.b16 %v7411, %v7402
        %v8645 = vpack.c.b16 %v7412, %v7403
        %v8646 = vpack.c.b16 %v7413, %v7404
        %v8647 = vpack.c.b16 %v7414, %v7405
        %v8648 = vpack.c.b16 %v7424, %v7415
        %v8649 = vpack.c.b16 %v7425, %v7416
        %v8650 = vpack.c.b16 %v7426, %v7417
        %v8651 = vpack.c.b16 %v7427, %v7418
        %v8652 = vpack.c.b16 %v7428, %v7419
        %v8653 = vpack.c.b16 %v7429, %v7420
        %v8654 = vpack.c.b16 %v7430, %v7421
        %v8655 = vpack.c.b16 %v7431, %v7422
        %v8656 = vpack.c.b16 %v7432, %v7423
        %v8657 = vpack.c.b16 %v7442, %v7433
        %v8658 = vpack.c.b16 %v7443, %v7434
        %v8659 = vpack.c.b16 %v7444, %v7435
        %v8660 = vpack.c.b16 %v7445, %v7436
        %v8661 = vpack.c.b16 %v7446, %v7437
        %v8662 = vpack.c.b16 %v7447, %v7438
        %v8663 = vpack.c.b16 %v7448, %v7439
        %v8664 = vpack.c.b16 %v7449, %v7440
        %v8665 = vpack.c.b16 %v7450, %v7441
        %v8666 = vpack.c.b16 %v7460, %v7451
        %v8667 = vpack.c.b16 %v7461, %v7452
        %v8668 = vpack.c.b16 %v7462, %v7453
        %v8669 = vpack.c.b16 %v7463, %v7454
        %v8670 = vpack.c.b16 %v7464, %v7455
        %v8671 = vpack.c.b16 %v7465, %v7456
        %v8672 = vpack.c.b16 %v7466, %v7457
        %v8673 = vpack.c.b16 %v7467, %v7458
        %v8674 = vpack.c.b16 %v7468, %v7459
        %v8675 = vpack.c.b16 %v7478, %v7469
        %v8676 = vpack.c.b16 %v7479, %v7470
        %v8677 = vpack.c.b16 %v7480, %v7471
        %v8678 = vpack.c.b16 %v7481, %v7472
        %v8679 = vpack.c.b16 %v7482, %v7473
        %v8680 = vpack.c.b16 %v7483, %v7474
        %v8681 = vpack.c.b16 %v7484, %v7475
        %v8682 = vpack.c.b16 %v7485, %v7476
        %v8683 = vpack.c.b16 %v7486, %v7477
        %v8684 = vpack.c.b16 %v7496, %v7487
        %v8685 = vpack.c.b16 %v7497, %v7488
        %v8686 = vpack.c.b16 %v7498, %v7489
        %v8687 = vpack.c.b16 %v7499, %v7490
        %v8688 = vpack.c.b16 %v7500, %v7491
        %v8689 = vpack.c.b16 %v7501, %v7492
        %v8690 = vpack.c.b16 %v7502, %v7493
        %v8691 = vpack.c.b16 %v7503, %v7494
        %v8692 = vpack.c.b16 %v7504, %v7495
        %v8693 = vpack.c.b16 %v7514, %v7505
        %v8694 = vpack.c.b16 %v7515, %v7506
        %v8695 = vpack.c.b16 %v7516, %v7507
        %v8696 = vpack.c.b16 %v7517, %v7508
        %v8697 = vpack.c.b16 %v7518, %v7509
        %v8698 = vpack.c.b16 %v7519, %v7510
        %v8699 = vpack.c.b16 %v7520, %v7511
        %v8700 = vpack.c.b16 %v7521, %v7512
        %v8701 = vpack.c.b16 %v7522, %v7513
        %v8702 = vpack.c.b16 %v7532, %v7523
        %v8703 = vpack.c.b16 %v7533, %v7524
        %v8704 = vpack.c.b16 %v7534, %v7525
        %v8705 = vpack.c.b16 %v7535, %v7526
        %v8706 = vpack.c.b16 %v7536, %v7527
        %v8707 = vpack.c.b16 %v7537, %v7528
        %v8708 = vpack.c.b16 %v7538, %v7529
        %v8709 = vpack.c.b16 %v7539, %v7530
        %v8710 = vpack.c.b16 %v7540, %v7531
        %v8711 = vpack.c.b16 %v7550, %v7541
        %v8712 = vpack.c.b16 %v7551, %v7542
        %v8713 = vpack.c.b16 %v7552, %v7543
        %v8714 = vpack.c.b16 %v7553, %v7544
        %v8715 = vpack.c.b16 %v7554, %v7545
        %v8716 = vpack.c.b16 %v7555, %v7546
        %v8717 = vpack.c.b16 %v7556, %v7547
        %v8718 = vpack.c.b16 %v7557, %v7548
        %v8719 = vpack.c.b16 %v7558, %v7549
        %v8720 = vpack.c.b16 %v7568, %v7559
        %v8721 = vpack.c.b16 %v7569, %v7560
        %v8722 = vpack.c.b16 %v7570, %v7561
        %v8723 = vpack.c.b16 %v7571, %v7562
        %v8724 = vpack.c.b16 %v7572, %v7563
        %v8725 = vpack.c.b16 %v7573, %v7564
        %v8726 = vpack.c.b16 %v7574, %v7565
        %v8727 = vpack.c.b16 %v7575, %v7566
        %v8728 = vpack.c.b16 %v7576, %v7567
        %v8729 = vpack.c.b16 %v7586, %v7577
        %v8730 = vpack.c.b16 %v7587, %v7578
        %v8731 = vpack.c.b16 %v7588, %v7579
        %v8732 = vpack.c.b16 %v7589, %v7580
        %v8733 = vpack.c.b16 %v7590, %v7581
        %v8734 = vpack.c.b16 %v7591, %v7582
        %v8735 = vpack.c.b16 %v7592, %v7583
        %v8736 = vpack.c.b16 %v7593, %v7584
        %v8737 = vpack.c.b16 %v7594, %v7585
        %v8738 = vpack.c.b16 %v7604, %v7595
        %v8739 = vpack.c.b16 %v7605, %v7596
        %v8740 = vpack.c.b16 %v7606, %v7597
        %v8741 = vpack.c.b16 %v7607, %v7598
        %v8742 = vpack.c.b16 %v7608, %v7599
        %v8743 = vpack.c.b16 %v7609, %v7600
        %v8744 = vpack.c.b16 %v7610, %v7601
        %v8745 = vpack.c.b16 %v7611, %v7602
        %v8746 = vpack.c.b16 %v7612, %v7603
        %v8747 = vpack.c.b16 %v7622, %v7613
        %v8748 = vpack.c.b16 %v7623, %v7614
        %v8749 = vpack.c.b16 %v7624, %v7615
        %v8750 = vpack.c.b16 %v7625, %v7616
        %v8751 = vpack.c.b16 %v7626, %v7617
        %v8752 = vpack.c.b16 %v7627, %v7618
        %v8753 = vpack.c.b16 %v7628, %v7619
        %v8754 = vpack.c.b16 %v7629, %v7620
        %v8755 = vpack.c.b16 %v7630, %v7621
        %v8756 = vpack.c.b16 %v7640, %v7631
        %v8757 = vpack.c.b16 %v7641, %v7632
        %v8758 = vpack.c.b16 %v7642, %v7633
        %v8759 = vpack.c.b16 %v7643, %v7634
        %v8760 = vpack.c.b16 %v7644, %v7635
        %v8761 = vpack.c.b16 %v7645, %v7636
        %v8762 = vpack.c.b16 %v7646, %v7637
        %v8763 = vpack.c.b16 %v7647, %v7638
        %v8764 = vpack.c.b16 %v7648, %v7639
        %v8765 = vpack.c.b16 %v7658, %v7649
        %v8766 = vpack.c.b16 %v7659, %v7650
        %v8767 = vpack.c.b16 %v7660, %v7651
        %v8768 = vpack.c.b16 %v7661, %v7652
        %v8769 = vpack.c.b16 %v7662, %v7653
        %v8770 = vpack.c.b16 %v7663, %v7654
        %v8771 = vpack.c.b16 %v7664, %v7655
        %v8772 = vpack.c.b16 %v7665, %v7656
        %v8773 = vpack.c.b16 %v7666, %v7657
        %v8774 = vpack.c.b16 %v7676, %v7667
        %v8775 = vpack.c.b16 %v7677, %v7668
        %v8776 = vpack.c.b16 %v7678, %v7669
        %v8777 = vpack.c.b16 %v7679, %v7670
        %v8778 = vpack.c.b16 %v7680, %v7671
        %v8779 = vpack.c.b16 %v7681, %v7672
        %v8780 = vpack.c.b16 %v7682, %v7673
        %v8781 = vpack.c.b16 %v7683, %v7674
        %v8782 = vpack.c.b16 %v7684, %v7675
        %v8783 = vpack.c.b16 %v7694, %v7685
        %v8784 = vpack.c.b16 %v7695, %v7686
        %v8785 = vpack.c.b16 %v7696, %v7687
        %v8786 = vpack.c.b16 %v7697, %v7688
        %v8787 = vpack.c.b16 %v7698, %v7689
        %v8788 = vpack.c.b16 %v7699, %v7690
        %v8789 = vpack.c.b16 %v7700, %v7691
        %v8790 = vpack.c.b16 %v7701, %v7692
        %v8791 = vpack.c.b16 %v7702, %v7693
        %v8792 = vpack.c.b16 %v7712, %v7703
        %v8793 = vpack.c.b16 %v7713, %v7704
        %v8794 = vpack.c.b16 %v7714, %v7705
        %v8795 = vpack.c.b16 %v7715, %v7706
        %v8796 = vpack.c.b16 %v7716, %v7707
        %v8797 = vpack.c.b16 %v7717, %v7708
        %v8798 = vpack.c.b16 %v7718, %v7709
        %v8799 = vpack.c.b16 %v7719, %v7710
        %v8800 = vpack.c.b16 %v7720, %v7711
        %v8801 = vpack.c.b16 %v7730, %v7721
        %v8802 = vpack.c.b16 %v7731, %v7722
        %v8803 = vpack.c.b16 %v7732, %v7723
        %v8804 = vpack.c.b16 %v7733, %v7724
        %v8805 = vpack.c.b16 %v7734, %v7725
        %v8806 = vpack.c.b16 %v7735, %v7726
        %v8807 = vpack.c.b16 %v7736, %v7727
        %v8808 = vpack.c.b16 %v7737, %v7728
        %v8809 = vpack.c.b16 %v7738, %v7729
        %v8810 = vpack.c.b16 %v7748, %v7739
        %v8811 = vpack.c.b16 %v7749, %v7740
        %v8812 = vpack.c.b16 %v7750, %v7741
        %v8813 = vpack.c.b16 %v7751, %v7742
        %v8814 = vpack.c.b16 %v7752, %v7743
        %v8815 = vpack.c.b16 %v7753, %v7744
        %v8816 = vpack.c.b16 %v7754, %v7745
        %v8817 = vpack.c.b16 %v7755, %v7746
        %v8818 = vpack.c.b16 %v7756, %v7747
        %v8819 = vpack.c.b16 %v7766, %v7757
        %v8820 = vpack.c.b16 %v7767, %v7758
        %v8821 = vpack.c.b16 %v7768, %v7759
        %v8822 = vpack.c.b16 %v7769, %v7760
        %v8823 = vpack.c.b16 %v7770, %v7761
        %v8824 = vpack.c.b16 %v7771, %v7762
        %v8825 = vpack.c.b16 %v7772, %v7763
        %v8826 = vpack.c.b16 %v7773, %v7764
        %v8827 = vpack.c.b16 %v7774, %v7765
        %v8828 = vpack.c.b16 %v7784, %v7775
        %v8829 = vpack.c.b16 %v7785, %v7776
        %v8830 = vpack.c.b16 %v7786, %v7777
        %v8831 = vpack.c.b16 %v7787, %v7778
        %v8832 = vpack.c.b16 %v7788, %v7779
        %v8833 = vpack.c.b16 %v7789, %v7780
        %v8834 = vpack.c.b16 %v7790, %v7781
        %v8835 = vpack.c.b16 %v7791, %v7782
        %v8836 = vpack.c.b16 %v7792, %v7783
        %v8837 = vpack.c.b16 %v7802, %v7793
        %v8838 = vpack.c.b16 %v7803, %v7794
        %v8839 = vpack.c.b16 %v7804, %v7795
        %v8840 = vpack.c.b16 %v7805, %v7796
        %v8841 = vpack.c.b16 %v7806, %v7797
        %v8842 = vpack.c.b16 %v7807, %v7798
        %v8843 = vpack.c.b16 %v7808, %v7799
        %v8844 = vpack.c.b16 %v7809, %v7800
        %v8845 = vpack.c.b16 %v7810, %v7801
        %v8846 = vpack.c.b16 %v7820, %v7811
        %v8847 = vpack.c.b16 %v7821, %v7812
        %v8848 = vpack.c.b16 %v7822, %v7813
        %v8849 = vpack.c.b16 %v7823, %v7814
        %v8850 = vpack.c.b16 %v7824, %v7815
        %v8851 = vpack.c.b16 %v7825, %v7816
        %v8852 = vpack.c.b16 %v7826, %v7817
        %v8853 = vpack.c.b16 %v7827, %v7818
        %v8854 = vpack.c.b16 %v7828, %v7819
        %v8855 = vpack.c.b16 %v7838, %v7829
        %v8856 = vpack.c.b16 %v7839, %v7830
        %v8857 = vpack.c.b16 %v7840, %v7831
        %v8858 = vpack.c.b16 %v7841, %v7832
        %v8859 = vpack.c.b16 %v7842, %v7833
        %v8860 = vpack.c.b16 %v7843, %v7834
        %v8861 = vpack.c.b16 %v7844, %v7835
        %v8862 = vpack.c.b16 %v7845, %v7836
        %v8863 = vpack.c.b16 %v7846, %v7837
        %v8864 = vpack.c.b16 %v7856, %v7847
        %v8865 = vpack.c.b16 %v7857, %v7848
        %v8866 = vpack.c.b16 %v7858, %v7849
        %v8867 = vpack.c.b16 %v7859, %v7850
        %v8868 = vpack.c.b16 %v7860, %v7851
        %v8869 = vpack.c.b16 %v7861, %v7852
        %v8870 = vpack.c.b16 %v7862, %v7853
        %v8871 = vpack.c.b16 %v7863, %v7854
        %v8872 = vpack.c.b16 %v7864, %v7855
        %v8873 = vpack.c.b16 %v7874, %v7865
        %v8874 = vpack.c.b16 %v7875, %v7866
        %v8875 = vpack.c.b16 %v7876, %v7867
        %v8876 = vpack.c.b16 %v7877, %v7868
        %v8877 = vpack.c.b16 %v7878, %v7869
        %v8878 = vpack.c.b16 %v7879, %v7870
        %v8879 = vpack.c.b16 %v7880, %v7871
        %v8880 = vpack.c.b16 %v7881, %v7872
        %v8881 = vpack.c.b16 %v7882, %v7873
        %v8882 = vpack.c.b16 %v7892, %v7883
        %v8883 = vpack.c.b16 %v7893, %v7884
        %v8884 = vpack.c.b16 %v7894, %v7885
        %v8885 = vpack.c.b16 %v7895, %v7886
        %v8886 = vpack.c.b16 %v7896, %v7887
        %v8887 = vpack.c.b16 %v7897, %v7888
        %v8888 = vpack.c.b16 %v7898, %v7889
        %v8889 = vpack.c.b16 %v7899, %v7890
        %v8890 = vpack.c.b16 %v7900, %v7891
        %v8891 = vpack.c.b16 %v7910, %v7901
        %v8892 = vpack.c.b16 %v7911, %v7902
        %v8893 = vpack.c.b16 %v7912, %v7903
        %v8894 = vpack.c.b16 %v7913, %v7904
        %v8895 = vpack.c.b16 %v7914, %v7905
        %v8896 = vpack.c.b16 %v7915, %v7906
        %v8897 = vpack.c.b16 %v7916, %v7907
        %v8898 = vpack.c.b16 %v7917, %v7908
        %v8899 = vpack.c.b16 %v7918, %v7909
        %v8900 = vpack.c.b16 %v7928, %v7919
        %v8901 = vpack.c.b16 %v7929, %v7920
        %v8902 = vpack.c.b16 %v7930, %v7921
        %v8903 = vpack.c.b16 %v7931, %v7922
        %v8904 = vpack.c.b16 %v7932, %v7923
        %v8905 = vpack.c.b16 %v7933, %v7924
        %v8906 = vpack.c.b16 %v7934, %v7925
        %v8907 = vpack.c.b16 %v7935, %v7926
        %v8908 = vpack.c.b16 %v7936, %v7927
        %v8909 = vpack.c.b16 %v7946, %v7937
        %v8910 = vpack.c.b16 %v7947, %v7938
        %v8911 = vpack.c.b16 %v7948, %v7939
        %v8912 = vpack.c.b16 %v7949, %v7940
        %v8913 = vpack.c.b16 %v7950, %v7941
        %v8914 = vpack.c.b16 %v7951, %v7942
        %v8915 = vpack.c.b16 %v7952, %v7943
        %v8916 = vpack.c.b16 %v7953, %v7944
        %v8917 = vpack.c.b16 %v7954, %v7945
        %v8918 = vpack.c.b16 %v7964, %v7955
        %v8919 = vpack.c.b16 %v7965, %v7956
        %v8920 = vpack.c.b16 %v7966, %v7957
        %v8921 = vpack.c.b16 %v7967, %v7958
        %v8922 = vpack.c.b16 %v7968, %v7959
        %v8923 = vpack.c.b16 %v7969, %v7960
        %v8924 = vpack.c.b16 %v7970, %v7961
        %v8925 = vpack.c.b16 %v7971, %v7962
        %v8926 = vpack.c.b16 %v7972, %v7963
        %v8927 = vpack.c.b16 %v7982, %v7973
        %v8928 = vpack.c.b16 %v7983, %v7974
        %v8929 = vpack.c.b16 %v7984, %v7975
        %v8930 = vpack.c.b16 %v7985, %v7976
        %v8931 = vpack.c.b16 %v7986, %v7977
        %v8932 = vpack.c.b16 %v7987, %v7978
        %v8933 = vpack.c.b16 %v7988, %v7979
        %v8934 = vpack.c.b16 %v7989, %v7980
        %v8935 = vpack.c.b16 %v7990, %v7981
        %v8936 = vpack.c.b16 %v8000, %v7991
        %v8937 = vpack.c.b16 %v8001, %v7992
        %v8938 = vpack.c.b16 %v8002, %v7993
        %v8939 = vpack.c.b16 %v8003, %v7994
        %v8940 = vpack.c.b16 %v8004, %v7995
        %v8941 = vpack.c.b16 %v8005, %v7996
        %v8942 = vpack.c.b16 %v8006, %v7997
        %v8943 = vpack.c.b16 %v8007, %v7998
        %v8944 = vpack.c.b16 %v8008, %v7999
        %v8945 = vpack.c.b16 %v8018, %v8009
        %v8946 = vpack.c.b16 %v8019, %v8010
        %v8947 = vpack.c.b16 %v8020, %v8011
        %v8948 = vpack.c.b16 %v8021, %v8012
        %v8949 = vpack.c.b16 %v8022, %v8013
        %v8950 = vpack.c.b16 %v8023, %v8014
        %v8951 = vpack.c.b16 %v8024, %v8015
        %v8952 = vpack.c.b16 %v8025, %v8016
        %v8953 = vpack.c.b16 %v8026, %v8017
        %v8954 = vpack.c.b16 %v8036, %v8027
        %v8955 = vpack.c.b16 %v8037, %v8028
        %v8956 = vpack.c.b16 %v8038, %v8029
        %v8957 = vpack.c.b16 %v8039, %v8030
        %v8958 = vpack.c.b16 %v8040, %v8031
        %v8959 = vpack.c.b16 %v8041, %v8032
        %v8960 = vpack.c.b16 %v8042, %v8033
        %v8961 = vpack.c.b16 %v8043, %v8034
        %v8962 = vpack.c.b16 %v8044, %v8035
        %v8963 = vpack.c.b16 %v8054, %v8045
        %v8964 = vpack.c.b16 %v8055, %v8046
        %v8965 = vpack.c.b16 %v8056, %v8047
        %v8966 = vpack.c.b16 %v8057, %v8048
        %v8967 = vpack.c.b16 %v8058, %v8049
        %v8968 = vpack.c.b16 %v8059, %v8050
        %v8969 = vpack.c.b16 %v8060, %v8051
        %v8970 = vpack.c.b16 %v8061, %v8052
        %v8971 = vpack.c.b16 %v8062, %v8053
        %v8972 = vpack.c.b16 %v8072, %v8063
        %v8973 = vpack.c.b16 %v8073, %v8064
        %v8974 = vpack.c.b16 %v8074, %v8065
        %v8975 = vpack.c.b16 %v8075, %v8066
        %v8976 = vpack.c.b16 %v8076, %v8067
        %v8977 = vpack.c.b16 %v8077, %v8068
        %v8978 = vpack.c.b16 %v8078, %v8069
        %v8979 = vpack.c.b16 %v8079, %v8070
        %v8980 = vpack.c.b16 %v8080, %v8071
        %v8981 = vpack.c.b16 %v8090, %v8081
        %v8982 = vpack.c.b16 %v8091, %v8082
        %v8983 = vpack.c.b16 %v8092, %v8083
        %v8984 = vpack.c.b16 %v8093, %v8084
        %v8985 = vpack.c.b16 %v8094, %v8085
        %v8986 = vpack.c.b16 %v8095, %v8086
        %v8987 = vpack.c.b16 %v8096, %v8087
        %v8988 = vpack.c.b16 %v8097, %v8088
        %v8989 = vpack.c.b16 %v8098, %v8089
        %v8990 = vpack.c.b16 %v8108, %v8099
        %v8991 = vpack.c.b16 %v8109, %v8100
        %v8992 = vpack.c.b16 %v8110, %v8101
        %v8993 = vpack.c.b16 %v8111, %v8102
        %v8994 = vpack.c.b16 %v8112, %v8103
        %v8995 = vpack.c.b16 %v8113, %v8104
        %v8996 = vpack.c.b16 %v8114, %v8105
        %v8997 = vpack.c.b16 %v8115, %v8106
        %v8998 = vpack.c.b16 %v8116, %v8107
        %v8999 = vpack.c.b16 %v8126, %v8117
        %v9000 = vpack.c.b16 %v8127, %v8118
        %v9001 = vpack.c.b16 %v8128, %v8119
        %v9002 = vpack.c.b16 %v8129, %v8120
        %v9003 = vpack.c.b16 %v8130, %v8121
        %v9004 = vpack.c.b16 %v8131, %v8122
        %v9005 = vpack.c.b16 %v8132, %v8123
        %v9006 = vpack.c.b16 %v8133, %v8124
        %v9007 = vpack.c.b16 %v8134, %v8125
        %v9008 = vpack.c.b16 %v8144, %v8135
        %v9009 = vpack.c.b16 %v8145, %v8136
        %v9010 = vpack.c.b16 %v8146, %v8137
        %v9011 = vpack.c.b16 %v8147, %v8138
        %v9012 = vpack.c.b16 %v8148, %v8139
        %v9013 = vpack.c.b16 %v8149, %v8140
        %v9014 = vpack.c.b16 %v8150, %v8141
        %v9015 = vpack.c.b16 %v8151, %v8142
        %v9016 = vpack.c.b16 %v8152, %v8143
        %v9017 = vpack.c.b16 %v8162, %v8153
        %v9018 = vpack.c.b16 %v8163, %v8154
        %v9019 = vpack.c.b16 %v8164, %v8155
        %v9020 = vpack.c.b16 %v8165, %v8156
        %v9021 = vpack.c.b16 %v8166, %v8157
        %v9022 = vpack.c.b16 %v8167, %v8158
        %v9023 = vpack.c.b16 %v8168, %v8159
        %v9024 = vpack.c.b16 %v8169, %v8160
        %v9025 = vpack.c.b16 %v8170, %v8161
        %v9026 = vpack.c.b16 %v8180, %v8171
        %v9027 = vpack.c.b16 %v8181, %v8172
        %v9028 = vpack.c.b16 %v8182, %v8173
        %v9029 = vpack.c.b16 %v8183, %v8174
        %v9030 = vpack.c.b16 %v8184, %v8175
        %v9031 = vpack.c.b16 %v8185, %v8176
        %v9032 = vpack.c.b16 %v8186, %v8177
        %v9033 = vpack.c.b16 %v8187, %v8178
        %v9034 = vpack.c.b16 %v8188, %v8179
        %v9035 = vpack.c.b16 %v8198, %v8189
        %v9036 = vpack.c.b16 %v8199, %v8190
        %v9037 = vpack.c.b16 %v8200, %v8191
        %v9038 = vpack.c.b16 %v8201, %v8192
        %v9039 = vpack.c.b16 %v8202, %v8193
        %v9040 = vpack.c.b16 %v8203, %v8194
        %v9041 = vpack.c.b16 %v8204, %v8195
        %v9042 = vpack.c.b16 %v8205, %v8196
        %v9043 = vpack.c.b16 %v8206, %v8197
        %v9044 = vpack.c.b16 %v8216, %v8207
        %v9045 = vpack.c.b16 %v8217, %v8208
        %v9046 = vpack.c.b16 %v8218, %v8209
        %v9047 = vpack.c.b16 %v8219, %v8210
        %v9048 = vpack.c.b16 %v8220, %v8211
        %v9049 = vpack.c.b16 %v8221, %v8212
        %v9050 = vpack.c.b16 %v8222, %v8213
        %v9051 = vpack.c.b16 %v8223, %v8214
        %v9052 = vpack.c.b16 %v8224, %v8215
        %v9053 = vpack.c.b16 %v8234, %v8225
        %v9054 = vpack.c.b16 %v8235, %v8226
        %v9055 = vpack.c.b16 %v8236, %v8227
        %v9056 = vpack.c.b16 %v8237, %v8228
        %v9057 = vpack.c.b16 %v8238, %v8229
        %v9058 = vpack.c.b16 %v8239, %v8230
        %v9059 = vpack.c.b16 %v8240, %v8231
        %v9060 = vpack.c.b16 %v8241, %v8232
        %v9061 = vpack.c.b16 %v8242, %v8233
        %v9062 = vpack.c.b16 %v8252, %v8243
        %v9063 = vpack.c.b16 %v8253, %v8244
        %v9064 = vpack.c.b16 %v8254, %v8245
        %v9065 = vpack.c.b16 %v8255, %v8246
        %v9066 = vpack.c.b16 %v8256, %v8247
        %v9067 = vpack.c.b16 %v8257, %v8248
        %v9068 = vpack.c.b16 %v8258, %v8249
        %v9069 = vpack.c.b16 %v8259, %v8250
        %v9070 = vpack.c.b16 %v8260, %v8251
        %v9071 = vpack.c.b16 %v8270, %v8261
        %v9072 = vpack.c.b16 %v8271, %v8262
        %v9073 = vpack.c.b16 %v8272, %v8263
        %v9074 = vpack.c.b16 %v8273, %v8264
        %v9075 = vpack.c.b16 %v8274, %v8265
        %v9076 = vpack.c.b16 %v8275, %v8266
        %v9077 = vpack.c.b16 %v8276, %v8267
        %v9078 = vpack.c.b16 %v8277, %v8268
        %v9079 = vpack.c.b16 %v8278, %v8269
        %v9080 = vpack.c.b16 %v8288, %v8279
        %v9081 = vpack.c.b16 %v8289, %v8280
        %v9082 = vpack.c.b16 %v8290, %v8281
        %v9083 = vpack.c.b16 %v8291, %v8282
        %v9084 = vpack.c.b16 %v8292, %v8283
        %v9085 = vpack.c.b16 %v8293, %v8284
        %v9086 = vpack.c.b16 %v8294, %v8285
        %v9087 = vpack.c.b16 %v8295, %v8286
        %v9088 = vpack.c.b16 %v8296, %v8287
        %v9089 = vpack.c.b16 %v8306, %v8297
        %v9090 = vpack.c.b16 %v8307, %v8298
        %v9091 = vpack.c.b16 %v8308, %v8299
        %v9092 = vpack.c.b16 %v8309, %v8300
        %v9093 = vpack.c.b16 %v8310, %v8301
        %v9094 = vpack.c.b16 %v8311, %v8302
        %v9095 = vpack.c.b16 %v8312, %v8303
        %v9096 = vpack.c.b16 %v8313, %v8304
        %v9097 = vpack.c.b16 %v8314, %v8305
        %v9098 = vpack.c.b16 %v8324, %v8315
        %v9099 = vpack.c.b16 %v8325, %v8316
        %v9100 = vpack.c.b16 %v8326, %v8317
        %v9101 = vpack.c.b16 %v8327, %v8318
        %v9102 = vpack.c.b16 %v8328, %v8319
        %v9103 = vpack.c.b16 %v8329, %v8320
        %v9104 = vpack.c.b16 %v8330, %v8321
        %v9105 = vpack.c.b16 %v8331, %v8322
        %v9106 = vpack.c.b16 %v8332, %v8323
        %v9107 = vpack.c.b16 %v8342, %v8333
        %v9108 = vpack.c.b16 %v8343, %v8334
        %v9109 = vpack.c.b16 %v8344, %v8335
        %v9110 = vpack.c.b16 %v8345, %v8336
        %v9111 = vpack.c.b16 %v8346, %v8337
        %v9112 = vpack.c.b16 %v8347, %v8338
        %v9113 = vpack.c.b16 %v8348, %v8339
        %v9114 = vpack.c.b16 %v8349, %v8340
        %v9115 = vpack.c.b16 %v8350, %v8341
        %v9116 = vpack.c.b16 %v8360, %v8351
        %v9117 = vpack.c.b16 %v8361, %v8352
        %v9118 = vpack.c.b16 %v8362, %v8353
        %v9119 = vpack.c.b16 %v8363, %v8354
        %v9120 = vpack.c.b16 %v8364, %v8355
        %v9121 = vpack.c.b16 %v8365, %v8356
        %v9122 = vpack.c.b16 %v8366, %v8357
        %v9123 = vpack.c.b16 %v8367, %v8358
        %v9124 = vpack.c.b16 %v8368, %v8359
        %v9125 = vpack.c.b16 %v8378, %v8369
        %v9126 = vpack.c.b16 %v8379, %v8370
        %v9127 = vpack.c.b16 %v8380, %v8371
        %v9128 = vpack.c.b16 %v8381, %v8372
        %v9129 = vpack.c.b16 %v8382, %v8373
        %v9130 = vpack.c.b16 %v8383, %v8374
        %v9131 = vpack.c.b16 %v8384, %v8375
        %v9132 = vpack.c.b16 %v8385, %v8376
        %v9133 = vpack.c.b16 %v8386, %v8377
        %v9134 = vpack.c.b16 %v8396, %v8387
        %v9135 = vpack.c.b16 %v8397, %v8388
        %v9136 = vpack.c.b16 %v8398, %v8389
        %v9137 = vpack.c.b16 %v8399, %v8390
        %v9138 = vpack.c.b16 %v8400, %v8391
        %v9139 = vpack.c.b16 %v8401, %v8392
        %v9140 = vpack.c.b16 %v8402, %v8393
        %v9141 = vpack.c.b16 %v8403, %v8394
        %v9142 = vpack.c.b16 %v8404, %v8395
        %v9143 = vpack.c.b16 %v8414, %v8405
        %v9144 = vpack.c.b16 %v8415, %v8406
        %v9145 = vpack.c.b16 %v8416, %v8407
        %v9146 = vpack.c.b16 %v8417, %v8408
        %v9147 = vpack.c.b16 %v8418, %v8409
        %v9148 = vpack.c.b16 %v8419, %v8410
        %v9149 = vpack.c.b16 %v8420, %v8411
        %v9150 = vpack.c.b16 %v8421, %v8412
        %v9151 = vpack.c.b16 %v8422, %v8413
        %v9152 = vpack.c.b16 %v8432, %v8423
        %v9153 = vpack.c.b16 %v8433, %v8424
        %v9154 = vpack.c.b16 %v8434, %v8425
        %v9155 = vpack.c.b16 %v8435, %v8426
        %v9156 = vpack.c.b16 %v8436, %v8427
        %v9157 = vpack.c.b16 %v8437, %v8428
        %v9158 = vpack.c.b16 %v8438, %v8429
        %v9159 = vpack.c.b16 %v8439, %v8430
        %v9160 = vpack.c.b16 %v8440, %v8431
        %v9161 = vpack.c.b16 %v8450, %v8441
        %v9162 = vpack.c.b16 %v8451, %v8442
        %v9163 = vpack.c.b16 %v8452, %v8443
        %v9164 = vpack.c.b16 %v8453, %v8444
        %v9165 = vpack.c.b16 %v8454, %v8445
        %v9166 = vpack.c.b16 %v8455, %v8446
        %v9167 = vpack.c.b16 %v8456, %v8447
        %v9168 = vpack.c.b16 %v8457, %v8448
        %v9169 = vpack.c.b16 %v8458, %v8449
        %v9170 = vpack.c.b16 %v8468, %v8459
        %v9171 = vpack.c.b16 %v8469, %v8460
        %v9172 = vpack.c.b16 %v8470, %v8461
        %v9173 = vpack.c.b16 %v8471, %v8462
        %v9174 = vpack.c.b16 %v8472, %v8463
        %v9175 = vpack.c.b16 %v8473, %v8464
        %v9176 = vpack.c.b16 %v8474, %v8465
        %v9177 = vpack.c.b16 %v8475, %v8466
        %v9178 = vpack.c.b16 %v8476, %v8467
        %v9179 = vpack.c.b16 %v8486, %v8477
        %v9180 = vpack.c.b16 %v8487, %v8478
        %v9181 = vpack.c.b16 %v8488, %v8479
        %v9182 = vpack.c.b16 %v8489, %v8480
        %v9183 = vpack.c.b16 %v8490, %v8481
        %v9184 = vpack.c.b16 %v8491, %v8482
        %v9185 = vpack.c.b16 %v8492, %v8483
        %v9186 = vpack.c.b16 %v8493, %v8484
        %v9187 = vpack.c.b16 %v8494, %v8485
        %v9188 = vpack.c.b16 %v8504, %v8495
        %v9189 = vpack.c.b16 %v8505, %v8496
        %v9190 = vpack.c.b16 %v8506, %v8497
        %v9191 = vpack.c.b16 %v8507, %v8498
        %v9192 = vpack.c.b16 %v8508, %v8499
        %v9193 = vpack.c.b16 %v8509, %v8500
        %v9194 = vpack.c.b16 %v8510, %v8501
        %v9195 = vpack.c.b16 %v8511, %v8502
        %v9196 = vpack.c.b16 %v8512, %v8503
        %v9197 = vpack.c.b16 %v8522, %v8513
        %v9198 = vpack.c.b16 %v8523, %v8514
        %v9199 = vpack.c.b16 %v8524, %v8515
        %v9200 = vpack.c.b16 %v8525, %v8516
        %v9201 = vpack.c.b16 %v8526, %v8517
        %v9202 = vpack.c.b16 %v8527, %v8518
        %v9203 = vpack.c.b16 %v8528, %v8519
        %v9204 = vpack.c.b16 %v8529, %v8520
        %v9205 = vpack.c.b16 %v8530, %v8521
        %v9206 = vpack.c.b16 %v8540, %v8531
        %v9207 = vpack.c.b16 %v8541, %v8532
        %v9208 = vpack.c.b16 %v8542, %v8533
        %v9209 = vpack.c.b16 %v8543, %v8534
        %v9210 = vpack.c.b16 %v8544, %v8535
        %v9211 = vpack.c.b16 %v8545, %v8536
        %v9212 = vpack.c.b16 %v8546, %v8537
        %v9213 = vpack.c.b16 %v8547, %v8538
        %v9214 = vpack.c.b16 %v8548, %v8539
        %v9215 = vpack.c.b16 %v8558, %v8549
        %v9216 = vpack.c.b16 %v8559, %v8550
        %v9217 = vpack.c.b16 %v8560, %v8551
        %v9218 = vpack.c.b16 %v8561, %v8552
        %v9219 = vpack.c.b16 %v8562, %v8553
        %v9220 = vpack.c.b16 %v8563, %v8554
        %v9221 = vpack.c.b16 %v8564, %v8555
        %v9222 = vpack.c.b16 %v8565, %v8556
        %v9223 = vpack.c.b16 %v8566, %v8557
        %v9224 = vpack.c.b16 %v8576, %v8567
        %v9225 = vpack.c.b16 %v8577, %v8568
        %v9226 = vpack.c.b16 %v8578, %v8569
        %v9227 = vpack.c.b16 %v8579, %v8570
        %v9228 = vpack.c.b16 %v8580, %v8571
        %v9229 = vpack.c.b16 %v8581, %v8572
        %v9230 = vpack.c.b16 %v8582, %v8573
        %v9231 = vpack.c.b16 %v8583, %v8574
        %v9232 = vpack.c.b16 %v8584, %v8575
        %9881 = vmatprep.subr.bf16.mxu0 %v8649
        %9882 = vmatpush1.bf16.msra.mxu0 %v8648
        %9883 = vmatprep.subr.bf16.mxu0 %v8640
        %9884 = vmatpush1.bf16.msra.mxu0 %v8639
        %9885 = vmatprep.subr.bf16.mxu0 %v8631
        %9886 = vmatpush1.bf16.msra.mxu0 %v8630
        %9887 = vmatprep.subr.bf16.mxu0 %v8622
        %9888 = vmatpush1.bf16.msra.mxu0 %v8621
        %9889 = vmatprep.subr.bf16.mxu0 %v8613
        %9890 = vmatpush1.bf16.msra.mxu0 %v8612
        %9891 = vmatprep.subr.bf16.mxu0 %v8604
        %9892 = vmatpush1.bf16.msra.mxu0 %v8603
        %9893 = vmatprep.subr.bf16.mxu0 %v8595
        %9894 = vmatpush1.bf16.msra.mxu0 %v8594
        %9895 = vmatprep.subr.bf16.mxu0 %v8586
        %9896 = vmatpush1.bf16.msra.mxu0 %v8585
        %9897 = vmatprep.subr.bf16.mxu0 %v8721
        %9898 = vmatpush2.bf16.msra.mxu0 %v8720
        %9899 = vmatprep.subr.bf16.mxu0 %v8712
        %9900 = vmatpush2.bf16.msra.mxu0 %v8711
        %9901 = vmatprep.subr.bf16.mxu0 %v8703
        %9902 = vmatpush2.bf16.msra.mxu0 %v8702
        %9903 = vmatprep.subr.bf16.mxu0 %v8694
        %9904 = vmatpush2.bf16.msra.mxu0 %v8693
        %9905 = vmatprep.subr.bf16.mxu0 %v8685
        %9906 = vmatpush2.bf16.msra.mxu0 %v8684
        %9907 = vmatprep.subr.bf16.mxu0 %v8676
        %9908 = vmatpush2.bf16.msra.mxu0 %v8675
        %9909 = vmatprep.subr.bf16.mxu0 %v8667
        %9910 = vmatpush2.bf16.msra.mxu0 %v8666
        %9911 = vmatprep.subr.bf16.mxu0 %v8658
        %9912 = vmatpush2.bf16.msra.mxu0 %v8657
        %9913 = vmatprep.mubr.bf16.mxu0 %v5841
        %9914 = vmatmul.mubr.bf16.gmra.mxu0 %v5840
        %v9915 = vpop.f32.mrf.mxu0
        %v9916 = vadd.f32 0.0, %v9915
        %v9917 = vpop.f32.mrf.mxu0
        %v9918 = vadd.f32 0.0, %v9917
        %v9919 = vpop.f32.mrf.mxu0
        %v9920 = vpop.f32.mrf.mxu0
        %9921 = vdwg.mxu0
        %9922 = vmatprep.subr.bf16.mxu0 %v8793
        %9923 = vmatpush1.bf16.msra.mxu0 %v8792
        %9924 = vmatprep.subr.bf16.mxu0 %v8784
        %9925 = vmatpush1.bf16.msra.mxu0 %v8783
        %9926 = vmatprep.subr.bf16.mxu0 %v8775
        %9927 = vmatpush1.bf16.msra.mxu0 %v8774
        %9928 = vmatprep.subr.bf16.mxu0 %v8766
        %9929 = vmatpush1.bf16.msra.mxu0 %v8765
        %9930 = vmatprep.subr.bf16.mxu0 %v8757
        %9931 = vmatpush1.bf16.msra.mxu0 %v8756
        %9932 = vmatprep.subr.bf16.mxu0 %v8748
        %9933 = vmatpush1.bf16.msra.mxu0 %v8747
        %9934 = vmatprep.subr.bf16.mxu0 %v8739
        %9935 = vmatpush1.bf16.msra.mxu0 %v8738
        %9936 = vmatprep.subr.bf16.mxu0 %v8730
        %9937 = vmatpush1.bf16.msra.mxu0 %v8729
        %9938 = vmatprep.subr.bf16.mxu0 %v8865
        %9939 = vmatpush2.bf16.msra.mxu0 %v8864
        %9940 = vmatprep.subr.bf16.mxu0 %v8856
        %9941 = vmatpush2.bf16.msra.mxu0 %v8855
        %9942 = vmatprep.subr.bf16.mxu0 %v8847
        %9943 = vmatpush2.bf16.msra.mxu0 %v8846
        %9944 = vmatprep.subr.bf16.mxu0 %v8838
        %9945 = vmatpush2.bf16.msra.mxu0 %v8837
        %9946 = vmatprep.subr.bf16.mxu0 %v8829
        %9947 = vmatpush2.bf16.msra.mxu0 %v8828
        %9948 = vmatprep.subr.bf16.mxu0 %v8820
        %9949 = vmatpush2.bf16.msra.mxu0 %v8819
        %9950 = vmatprep.subr.bf16.mxu0 %v8811
        %9951 = vmatpush2.bf16.msra.mxu0 %v8810
        %9952 = vmatprep.subr.bf16.mxu0 %v8802
        %9953 = vmatpush2.bf16.msra.mxu0 %v8801
        %9954 = vmatprep.mubr.bf16.mxu0 %v5843
        %9955 = vmatmul.mubr.bf16.gmra.mxu0 %v5842
        %v9956 = vpop.f32.mrf.mxu0
        %v9957 = vadd.f32 %v9916, %v9956
        %v9958 = vpop.f32.mrf.mxu0
        %v9959 = vadd.f32 %v9918, %v9958
        %v9960 = vpop.f32.mrf.mxu0
        %v9961 = vpop.f32.mrf.mxu0
        %9962 = vdwg.mxu0
        %9963 = vmatprep.subr.bf16.mxu0 %v8937
        %9964 = vmatpush1.bf16.msra.mxu0 %v8936
        %9965 = vmatprep.subr.bf16.mxu0 %v8928
        %9966 = vmatpush1.bf16.msra.mxu0 %v8927
        %9967 = vmatprep.subr.bf16.mxu0 %v8919
        %9968 = vmatpush1.bf16.msra.mxu0 %v8918
        %9969 = vmatprep.subr.bf16.mxu0 %v8910
        %9970 = vmatpush1.bf16.msra.mxu0 %v8909
        %9971 = vmatprep.subr.bf16.mxu0 %v8901
        %9972 = vmatpush1.bf16.msra.mxu0 %v8900
        %9973 = vmatprep.subr.bf16.mxu0 %v8892
        %9974 = vmatpush1.bf16.msra.mxu0 %v8891
        %9975 = vmatprep.subr.bf16.mxu0 %v8883
        %9976 = vmatpush1.bf16.msra.mxu0 %v8882
        %9977 = vmatprep.subr.bf16.mxu0 %v8874
        %9978 = vmatpush1.bf16.msra.mxu0 %v8873
        %9979 = vmatprep.subr.bf16.mxu0 %v9009
        %9980 = vmatpush2.bf16.msra.mxu0 %v9008
        %9981 = vmatprep.subr.bf16.mxu0 %v9000
        %9982 = vmatpush2.bf16.msra.mxu0 %v8999
        %9983 = vmatprep.subr.bf16.mxu0 %v8991
        %9984 = vmatpush2.bf16.msra.mxu0 %v8990
        %9985 = vmatprep.subr.bf16.mxu0 %v8982
        %9986 = vmatpush2.bf16.msra.mxu0 %v8981
        %9987 = vmatprep.subr.bf16.mxu0 %v8973
        %9988 = vmatpush2.bf16.msra.mxu0 %v8972
        %9989 = vmatprep.subr.bf16.mxu0 %v8964
        %9990 = vmatpush2.bf16.msra.mxu0 %v8963
        %9991 = vmatprep.subr.bf16.mxu0 %v8955
        %9992 = vmatpush2.bf16.msra.mxu0 %v8954
        %9993 = vmatprep.subr.bf16.mxu0 %v8946
        %9994 = vmatpush2.bf16.msra.mxu0 %v8945
        %9995 = vmatprep.mubr.bf16.mxu0 %v5845
        %9996 = vmatmul.mubr.bf16.gmra.mxu0 %v5844
        %v9997 = vpop.f32.mrf.mxu0
        %v9998 = vadd.f32 %v9957, %v9997
        %v9999 = vpop.f32.mrf.mxu0
        %v10000 = vadd.f32 %v9959, %v9999
        %v10001 = vpop.f32.mrf.mxu0
        %v10002 = vpop.f32.mrf.mxu0
        %10003 = vdwg.mxu0
        %10004 = vmatprep.subr.bf16.mxu0 %v9081
        %10005 = vmatpush1.bf16.msra.mxu0 %v9080
        %10006 = vmatprep.subr.bf16.mxu0 %v9072
        %10007 = vmatpush1.bf16.msra.mxu0 %v9071
        %10008 = vmatprep.subr.bf16.mxu0 %v9063
        %10009 = vmatpush1.bf16.msra.mxu0 %v9062
        %10010 = vmatprep.subr.bf16.mxu0 %v9054
        %10011 = vmatpush1.bf16.msra.mxu0 %v9053
        %10012 = vmatprep.subr.bf16.mxu0 %v9045
        %10013 = vmatpush1.bf16.msra.mxu0 %v9044
        %10014 = vmatprep.subr.bf16.mxu0 %v9036
        %10015 = vmatpush1.bf16.msra.mxu0 %v9035
        %10016 = vmatprep.subr.bf16.mxu0 %v9027
        %10017 = vmatpush1.bf16.msra.mxu0 %v9026
        %10018 = vmatprep.subr.bf16.mxu0 %v9018
        %10019 = vmatpush1.bf16.msra.mxu0 %v9017
        %10020 = vmatprep.subr.bf16.mxu0 %v9153
        %10021 = vmatpush2.bf16.msra.mxu0 %v9152
        %10022 = vmatprep.subr.bf16.mxu0 %v9144
        %10023 = vmatpush2.bf16.msra.mxu0 %v9143
        %10024 = vmatprep.subr.bf16.mxu0 %v9135
        %10025 = vmatpush2.bf16.msra.mxu0 %v9134
        %10026 = vmatprep.subr.bf16.mxu0 %v9126
        %10027 = vmatpush2.bf16.msra.mxu0 %v9125
        %10028 = vmatprep.subr.bf16.mxu0 %v9117
        %10029 = vmatpush2.bf16.msra.mxu0 %v9116
        %10030 = vmatprep.subr.bf16.mxu0 %v9108
        %10031 = vmatpush2.bf16.msra.mxu0 %v9107
        %10032 = vmatprep.subr.bf16.mxu0 %v9099
        %10033 = vmatpush2.bf16.msra.mxu0 %v9098
        %10034 = vmatprep.subr.bf16.mxu0 %v9090
        %10035 = vmatpush2.bf16.msra.mxu0 %v9089
        %10036 = vmatprep.mubr.bf16.mxu0 %v5847
        %10037 = vmatmul.mubr.bf16.gmra.mxu0 %v5846
        %v10038 = vpop.f32.mrf.mxu0
        %v10039 = vadd.f32 %v9998, %v10038
        %v10040 = vpop.f32.mrf.mxu0
        %v10041 = vadd.f32 %v10000, %v10040
        %v10042 = vpop.f32.mrf.mxu0
        %v10043 = vpop.f32.mrf.mxu0
        %10044 = vdwg.mxu0
        %10045 = vmatprep.subr.bf16.mxu0 %v9225
        %10046 = vmatpush1.bf16.msra.mxu0 %v9224
        %10047 = vmatprep.subr.bf16.mxu0 %v9216
        %10048 = vmatpush1.bf16.msra.mxu0 %v9215
        %10049 = vmatprep.subr.bf16.mxu0 %v9207
        %10050 = vmatpush1.bf16.msra.mxu0 %v9206
        %10051 = vmatprep.subr.bf16.mxu0 %v9198
        %10052 = vmatpush1.bf16.msra.mxu0 %v9197
        %10053 = vmatprep.subr.bf16.mxu0 %v9189
        %10054 = vmatpush1.bf16.msra.mxu0 %v9188
        %10055 = vmatprep.subr.bf16.mxu0 %v9180
        %10056 = vmatpush1.bf16.msra.mxu0 %v9179
        %10057 = vmatprep.subr.bf16.mxu0 %v9171
        %10058 = vmatpush1.bf16.msra.mxu0 %v9170
        %10059 = vmatprep.subr.bf16.mxu0 %v9162
        %10060 = vmatpush1.bf16.msra.mxu0 %v9161
        %10061 = vmatprep.subr.bf16.mxu0 0
        %10062 = vmatpush2.bf16.msra.mxu0 0
        %10063 = vmatprep.subr.bf16.mxu0 0
        %10064 = vmatpush2.bf16.msra.mxu0 0
        %10065 = vmatprep.subr.bf16.mxu0 0
        %10066 = vmatpush2.bf16.msra.mxu0 0
        %10067 = vmatprep.subr.bf16.mxu0 0
        %10068 = vmatpush2.bf16.msra.mxu0 0
        %10069 = vmatprep.subr.bf16.mxu0 0
        %10070 = vmatpush2.bf16.msra.mxu0 0
        %10071 = vmatprep.subr.bf16.mxu0 0
        %10072 = vmatpush2.bf16.msra.mxu0 0
        %10073 = vmatprep.subr.bf16.mxu0 0
        %10074 = vmatpush2.bf16.msra.mxu0 0
        %10075 = vmatprep.subr.bf16.mxu0 0
        %10076 = vmatpush2.bf16.msra.mxu0 0
        %10077 = vmatprep.mubr.bf16.mxu0 0
        %10078 = vmatmul.mubr.bf16.gmra.mxu0 %v5848
        %v10079 = vpop.f32.mrf.mxu0
        %v10080 = vadd.f32 %v10039, %v10079
        %v10081 = vpop.f32.mrf.mxu0
        %v10082 = vadd.f32 %v10041, %v10081
        %v10083 = vpop.f32.mrf.mxu0
        %v10084 = vpop.f32.mrf.mxu0
        %10085 = vdwg.mxu0
        %10086 = vmatprep.subr.bf16.mxu0 %v8651
        %10087 = vmatpush1.bf16.msra.mxu0 %v8650
        %10088 = vmatprep.subr.bf16.mxu0 %v8642
        %10089 = vmatpush1.bf16.msra.mxu0 %v8641
        %10090 = vmatprep.subr.bf16.mxu0 %v8633
        %10091 = vmatpush1.bf16.msra.mxu0 %v8632
        %10092 = vmatprep.subr.bf16.mxu0 %v8624
        %10093 = vmatpush1.bf16.msra.mxu0 %v8623
        %10094 = vmatprep.subr.bf16.mxu0 %v8615
        %10095 = vmatpush1.bf16.msra.mxu0 %v8614
        %10096 = vmatprep.subr.bf16.mxu0 %v8606
        %10097 = vmatpush1.bf16.msra.mxu0 %v8605
        %10098 = vmatprep.subr.bf16.mxu0 %v8597
        %10099 = vmatpush1.bf16.msra.mxu0 %v8596
        %10100 = vmatprep.subr.bf16.mxu0 %v8588
        %10101 = vmatpush1.bf16.msra.mxu0 %v8587
        %10102 = vmatprep.subr.bf16.mxu0 %v8723
        %10103 = vmatpush2.bf16.msra.mxu0 %v8722
        %10104 = vmatprep.subr.bf16.mxu0 %v8714
        %10105 = vmatpush2.bf16.msra.mxu0 %v8713
        %10106 = vmatprep.subr.bf16.mxu0 %v8705
        %10107 = vmatpush2.bf16.msra.mxu0 %v8704
        %10108 = vmatprep.subr.bf16.mxu0 %v8696
        %10109 = vmatpush2.bf16.msra.mxu0 %v8695
        %10110 = vmatprep.subr.bf16.mxu0 %v8687
        %10111 = vmatpush2.bf16.msra.mxu0 %v8686
        %10112 = vmatprep.subr.bf16.mxu0 %v8678
        %10113 = vmatpush2.bf16.msra.mxu0 %v8677
        %10114 = vmatprep.subr.bf16.mxu0 %v8669
        %10115 = vmatpush2.bf16.msra.mxu0 %v8668
        %10116 = vmatprep.subr.bf16.mxu0 %v8660
        %10117 = vmatpush2.bf16.msra.mxu0 %v8659
        %10118 = vmatprep.mubr.bf16.mxu0 %v5841
        %10119 = vmatmul.mubr.bf16.gmra.mxu0 %v5840
        %v10120 = vpop.f32.mrf.mxu0
        %v10121 = vadd.f32 0.0, %v10120
        %v10122 = vpop.f32.mrf.mxu0
        %v10123 = vadd.f32 0.0, %v10122
        %v10124 = vpop.f32.mrf.mxu0
        %v10125 = vpop.f32.mrf.mxu0
        %10126 = vdwg.mxu0
        %10127 = vmatprep.subr.bf16.mxu0 %v8795
        %10128 = vmatpush1.bf16.msra.mxu0 %v8794
        %10129 = vmatprep.subr.bf16.mxu0 %v8786
        %10130 = vmatpush1.bf16.msra.mxu0 %v8785
        %10131 = vmatprep.subr.bf16.mxu0 %v8777
        %10132 = vmatpush1.bf16.msra.mxu0 %v8776
        %10133 = vmatprep.subr.bf16.mxu0 %v8768
        %10134 = vmatpush1.bf16.msra.mxu0 %v8767
        %10135 = vmatprep.subr.bf16.mxu0 %v8759
        %10136 = vmatpush1.bf16.msra.mxu0 %v8758
        %10137 = vmatprep.subr.bf16.mxu0 %v8750
        %10138 = vmatpush1.bf16.msra.mxu0 %v8749
        %10139 = vmatprep.subr.bf16.mxu0 %v8741
        %10140 = vmatpush1.bf16.msra.mxu0 %v8740
        %10141 = vmatprep.subr.bf16.mxu0 %v8732
        %10142 = vmatpush1.bf16.msra.mxu0 %v8731
        %10143 = vmatprep.subr.bf16.mxu0 %v8867
        %10144 = vmatpush2.bf16.msra.mxu0 %v8866
        %10145 = vmatprep.subr.bf16.mxu0 %v8858
        %10146 = vmatpush2.bf16.msra.mxu0 %v8857
        %10147 = vmatprep.subr.bf16.mxu0 %v8849
        %10148 = vmatpush2.bf16.msra.mxu0 %v8848
        %10149 = vmatprep.subr.bf16.mxu0 %v8840
        %10150 = vmatpush2.bf16.msra.mxu0 %v8839
        %10151 = vmatprep.subr.bf16.mxu0 %v8831
        %10152 = vmatpush2.bf16.msra.mxu0 %v8830
        %10153 = vmatprep.subr.bf16.mxu0 %v8822
        %10154 = vmatpush2.bf16.msra.mxu0 %v8821
        %10155 = vmatprep.subr.bf16.mxu0 %v8813
        %10156 = vmatpush2.bf16.msra.mxu0 %v8812
        %10157 = vmatprep.subr.bf16.mxu0 %v8804
        %10158 = vmatpush2.bf16.msra.mxu0 %v8803
        %10159 = vmatprep.mubr.bf16.mxu0 %v5843
        %10160 = vmatmul.mubr.bf16.gmra.mxu0 %v5842
        %v10161 = vpop.f32.mrf.mxu0
        %v10162 = vadd.f32 %v10121, %v10161
        %v10163 = vpop.f32.mrf.mxu0
        %v10164 = vadd.f32 %v10123, %v10163
        %v10165 = vpop.f32.mrf.mxu0
        %v10166 = vpop.f32.mrf.mxu0
        %10167 = vdwg.mxu0
        %10168 = vmatprep.subr.bf16.mxu0 %v8939
        %10169 = vmatpush1.bf16.msra.mxu0 %v8938
        %10170 = vmatprep.subr.bf16.mxu0 %v8930
        %10171 = vmatpush1.bf16.msra.mxu0 %v8929
        %10172 = vmatprep.subr.bf16.mxu0 %v8921
        %10173 = vmatpush1.bf16.msra.mxu0 %v8920
        %10174 = vmatprep.subr.bf16.mxu0 %v8912
        %10175 = vmatpush1.bf16.msra.mxu0 %v8911
        %10176 = vmatprep.subr.bf16.mxu0 %v8903
        %10177 = vmatpush1.bf16.msra.mxu0 %v8902
        %10178 = vmatprep.subr.bf16.mxu0 %v8894
        %10179 = vmatpush1.bf16.msra.mxu0 %v8893
        %10180 = vmatprep.subr.bf16.mxu0 %v8885
        %10181 = vmatpush1.bf16.msra.mxu0 %v8884
        %10182 = vmatprep.subr.bf16.mxu0 %v8876
        %10183 = vmatpush1.bf16.msra.mxu0 %v8875
        %10184 = vmatprep.subr.bf16.mxu0 %v9011
        %10185 = vmatpush2.bf16.msra.mxu0 %v9010
        %10186 = vmatprep.subr.bf16.mxu0 %v9002
        %10187 = vmatpush2.bf16.msra.mxu0 %v9001
        %10188 = vmatprep.subr.bf16.mxu0 %v8993
        %10189 = vmatpush2.bf16.msra.mxu0 %v8992
        %10190 = vmatprep.subr.bf16.mxu0 %v8984
        %10191 = vmatpush2.bf16.msra.mxu0 %v8983
        %10192 = vmatprep.subr.bf16.mxu0 %v8975
        %10193 = vmatpush2.bf16.msra.mxu0 %v8974
        %10194 = vmatprep.subr.bf16.mxu0 %v8966
        %10195 = vmatpush2.bf16.msra.mxu0 %v8965
        %10196 = vmatprep.subr.bf16.mxu0 %v8957
        %10197 = vmatpush2.bf16.msra.mxu0 %v8956
        %10198 = vmatprep.subr.bf16.mxu0 %v8948
        %10199 = vmatpush2.bf16.msra.mxu0 %v8947
        %10200 = vmatprep.mubr.bf16.mxu0 %v5845
        %10201 = vmatmul.mubr.bf16.gmra.mxu0 %v5844
        %v10202 = vpop.f32.mrf.mxu0
        %v10203 = vadd.f32 %v10162, %v10202
        %v10204 = vpop.f32.mrf.mxu0
        %v10205 = vadd.f32 %v10164, %v10204
        %v10206 = vpop.f32.mrf.mxu0
        %v10207 = vpop.f32.mrf.mxu0
        %10208 = vdwg.mxu0
        %10209 = vmatprep.subr.bf16.mxu0 %v9083
        %10210 = vmatpush1.bf16.msra.mxu0 %v9082
        %10211 = vmatprep.subr.bf16.mxu0 %v9074
        %10212 = vmatpush1.bf16.msra.mxu0 %v9073
        %10213 = vmatprep.subr.bf16.mxu0 %v9065
        %10214 = vmatpush1.bf16.msra.mxu0 %v9064
        %10215 = vmatprep.subr.bf16.mxu0 %v9056
        %10216 = vmatpush1.bf16.msra.mxu0 %v9055
        %10217 = vmatprep.subr.bf16.mxu0 %v9047
        %10218 = vmatpush1.bf16.msra.mxu0 %v9046
        %10219 = vmatprep.subr.bf16.mxu0 %v9038
        %10220 = vmatpush1.bf16.msra.mxu0 %v9037
        %10221 = vmatprep.subr.bf16.mxu0 %v9029
        %10222 = vmatpush1.bf16.msra.mxu0 %v9028
        %10223 = vmatprep.subr.bf16.mxu0 %v9020
        %10224 = vmatpush1.bf16.msra.mxu0 %v9019
        %10225 = vmatprep.subr.bf16.mxu0 %v9155
        %10226 = vmatpush2.bf16.msra.mxu0 %v9154
        %10227 = vmatprep.subr.bf16.mxu0 %v9146
        %10228 = vmatpush2.bf16.msra.mxu0 %v9145
        %10229 = vmatprep.subr.bf16.mxu0 %v9137
        %10230 = vmatpush2.bf16.msra.mxu0 %v9136
        %10231 = vmatprep.subr.bf16.mxu0 %v9128
        %10232 = vmatpush2.bf16.msra.mxu0 %v9127
        %10233 = vmatprep.subr.bf16.mxu0 %v9119
        %10234 = vmatpush2.bf16.msra.mxu0 %v9118
        %10235 = vmatprep.subr.bf16.mxu0 %v9110
        %10236 = vmatpush2.bf16.msra.mxu0 %v9109
        %10237 = vmatprep.subr.bf16.mxu0 %v9101
        %10238 = vmatpush2.bf16.msra.mxu0 %v9100
        %10239 = vmatprep.subr.bf16.mxu0 %v9092
        %10240 = vmatpush2.bf16.msra.mxu0 %v9091
        %10241 = vmatprep.mubr.bf16.mxu0 %v5847
        %10242 = vmatmul.mubr.bf16.gmra.mxu0 %v5846
        %v10243 = vpop.f32.mrf.mxu0
        %v10244 = vadd.f32 %v10203, %v10243
        %v10245 = vpop.f32.mrf.mxu0
        %v10246 = vadd.f32 %v10205, %v10245
        %v10247 = vpop.f32.mrf.mxu0
        %v10248 = vpop.f32.mrf.mxu0
        %10249 = vdwg.mxu0
        %10250 = vmatprep.subr.bf16.mxu0 %v9227
        %10251 = vmatpush1.bf16.msra.mxu0 %v9226
        %10252 = vmatprep.subr.bf16.mxu0 %v9218
        %10253 = vmatpush1.bf16.msra.mxu0 %v9217
        %10254 = vmatprep.subr.bf16.mxu0 %v9209
        %10255 = vmatpush1.bf16.msra.mxu0 %v9208
        %10256 = vmatprep.subr.bf16.mxu0 %v9200
        %10257 = vmatpush1.bf16.msra.mxu0 %v9199
        %10258 = vmatprep.subr.bf16.mxu0 %v9191
        %10259 = vmatpush1.bf16.msra.mxu0 %v9190
        %10260 = vmatprep.subr.bf16.mxu0 %v9182
        %10261 = vmatpush1.bf16.msra.mxu0 %v9181
        %10262 = vmatprep.subr.bf16.mxu0 %v9173
        %10263 = vmatpush1.bf16.msra.mxu0 %v9172
        %10264 = vmatprep.subr.bf16.mxu0 %v9164
        %10265 = vmatpush1.bf16.msra.mxu0 %v9163
        %10266 = vmatprep.subr.bf16.mxu0 0
        %10267 = vmatpush2.bf16.msra.mxu0 0
        %10268 = vmatprep.subr.bf16.mxu0 0
        %10269 = vmatpush2.bf16.msra.mxu0 0
        %10270 = vmatprep.subr.bf16.mxu0 0
        %10271 = vmatpush2.bf16.msra.mxu0 0
        %10272 = vmatprep.subr.bf16.mxu0 0
        %10273 = vmatpush2.bf16.msra.mxu0 0
        %10274 = vmatprep.subr.bf16.mxu0 0
        %10275 = vmatpush2.bf16.msra.mxu0 0
        %10276 = vmatprep.subr.bf16.mxu0 0
        %10277 = vmatpush2.bf16.msra.mxu0 0
        %10278 = vmatprep.subr.bf16.mxu0 0
        %10279 = vmatpush2.bf16.msra.mxu0 0
        %10280 = vmatprep.subr.bf16.mxu0 0
        %10281 = vmatpush2.bf16.msra.mxu0 0
        %10282 = vmatprep.mubr.bf16.mxu0 0
        %10283 = vmatmul.mubr.bf16.gmra.mxu0 %v5848
        %v10284 = vpop.f32.mrf.mxu0
        %v10285 = vadd.f32 %v10244, %v10284
        %v10286 = vpop.f32.mrf.mxu0
        %v10287 = vadd.f32 %v10246, %v10286
        %v10288 = vpop.f32.mrf.mxu0
        %v10289 = vpop.f32.mrf.mxu0
        %10290 = vdwg.mxu0
        %10291 = vmatprep.subr.bf16.mxu0 %v8653
        %10292 = vmatpush1.bf16.msra.mxu0 %v8652
        %10293 = vmatprep.subr.bf16.mxu0 %v8644
        %10294 = vmatpush1.bf16.msra.mxu0 %v8643
        %10295 = vmatprep.subr.bf16.mxu0 %v8635
        %10296 = vmatpush1.bf16.msra.mxu0 %v8634
        %10297 = vmatprep.subr.bf16.mxu0 %v8626
        %10298 = vmatpush1.bf16.msra.mxu0 %v8625
        %10299 = vmatprep.subr.bf16.mxu0 %v8617
        %10300 = vmatpush1.bf16.msra.mxu0 %v8616
        %10301 = vmatprep.subr.bf16.mxu0 %v8608
        %10302 = vmatpush1.bf16.msra.mxu0 %v8607
        %10303 = vmatprep.subr.bf16.mxu0 %v8599
        %10304 = vmatpush1.bf16.msra.mxu0 %v8598
        %10305 = vmatprep.subr.bf16.mxu0 %v8590
        %10306 = vmatpush1.bf16.msra.mxu0 %v8589
        %10307 = vmatprep.subr.bf16.mxu0 %v8725
        %10308 = vmatpush2.bf16.msra.mxu0 %v8724
        %10309 = vmatprep.subr.bf16.mxu0 %v8716
        %10310 = vmatpush2.bf16.msra.mxu0 %v8715
        %10311 = vmatprep.subr.bf16.mxu0 %v8707
        %10312 = vmatpush2.bf16.msra.mxu0 %v8706
        %10313 = vmatprep.subr.bf16.mxu0 %v8698
        %10314 = vmatpush2.bf16.msra.mxu0 %v8697
        %10315 = vmatprep.subr.bf16.mxu0 %v8689
        %10316 = vmatpush2.bf16.msra.mxu0 %v8688
        %10317 = vmatprep.subr.bf16.mxu0 %v8680
        %10318 = vmatpush2.bf16.msra.mxu0 %v8679
        %10319 = vmatprep.subr.bf16.mxu0 %v8671
        %10320 = vmatpush2.bf16.msra.mxu0 %v8670
        %10321 = vmatprep.subr.bf16.mxu0 %v8662
        %10322 = vmatpush2.bf16.msra.mxu0 %v8661
        %10323 = vmatprep.mubr.bf16.mxu0 %v5841
        %10324 = vmatmul.mubr.bf16.gmra.mxu0 %v5840
        %v10325 = vpop.f32.mrf.mxu0
        %v10326 = vadd.f32 0.0, %v10325
        %v10327 = vpop.f32.mrf.mxu0
        %v10328 = vadd.f32 0.0, %v10327
        %v10329 = vpop.f32.mrf.mxu0
        %v10330 = vpop.f32.mrf.mxu0
        %10331 = vdwg.mxu0
        %10332 = vmatprep.subr.bf16.mxu0 %v8797
        %10333 = vmatpush1.bf16.msra.mxu0 %v8796
        %10334 = vmatprep.subr.bf16.mxu0 %v8788
        %10335 = vmatpush1.bf16.msra.mxu0 %v8787
        %10336 = vmatprep.subr.bf16.mxu0 %v8779
        %10337 = vmatpush1.bf16.msra.mxu0 %v8778
        %10338 = vmatprep.subr.bf16.mxu0 %v8770
        %10339 = vmatpush1.bf16.msra.mxu0 %v8769
        %10340 = vmatprep.subr.bf16.mxu0 %v8761
        %10341 = vmatpush1.bf16.msra.mxu0 %v8760
        %10342 = vmatprep.subr.bf16.mxu0 %v8752
        %10343 = vmatpush1.bf16.msra.mxu0 %v8751
        %10344 = vmatprep.subr.bf16.mxu0 %v8743
        %10345 = vmatpush1.bf16.msra.mxu0 %v8742
        %10346 = vmatprep.subr.bf16.mxu0 %v8734
        %10347 = vmatpush1.bf16.msra.mxu0 %v8733
        %10348 = vmatprep.subr.bf16.mxu0 %v8869
        %10349 = vmatpush2.bf16.msra.mxu0 %v8868
        %10350 = vmatprep.subr.bf16.mxu0 %v8860
        %10351 = vmatpush2.bf16.msra.mxu0 %v8859
        %10352 = vmatprep.subr.bf16.mxu0 %v8851
        %10353 = vmatpush2.bf16.msra.mxu0 %v8850
        %10354 = vmatprep.subr.bf16.mxu0 %v8842
        %10355 = vmatpush2.bf16.msra.mxu0 %v8841
        %10356 = vmatprep.subr.bf16.mxu0 %v8833
        %10357 = vmatpush2.bf16.msra.mxu0 %v8832
        %10358 = vmatprep.subr.bf16.mxu0 %v8824
        %10359 = vmatpush2.bf16.msra.mxu0 %v8823
        %10360 = vmatprep.subr.bf16.mxu0 %v8815
        %10361 = vmatpush2.bf16.msra.mxu0 %v8814
        %10362 = vmatprep.subr.bf16.mxu0 %v8806
        %10363 = vmatpush2.bf16.msra.mxu0 %v8805
        %10364 = vmatprep.mubr.bf16.mxu0 %v5843
        %10365 = vmatmul.mubr.bf16.gmra.mxu0 %v5842
        %v10366 = vpop.f32.mrf.mxu0
        %v10367 = vadd.f32 %v10326, %v10366
        %v10368 = vpop.f32.mrf.mxu0
        %v10369 = vadd.f32 %v10328, %v10368
        %v10370 = vpop.f32.mrf.mxu0
        %v10371 = vpop.f32.mrf.mxu0
        %10372 = vdwg.mxu0
        %10373 = vmatprep.subr.bf16.mxu0 %v8941
        %10374 = vmatpush1.bf16.msra.mxu0 %v8940
        %10375 = vmatprep.subr.bf16.mxu0 %v8932
        %10376 = vmatpush1.bf16.msra.mxu0 %v8931
        %10377 = vmatprep.subr.bf16.mxu0 %v8923
        %10378 = vmatpush1.bf16.msra.mxu0 %v8922
        %10379 = vmatprep.subr.bf16.mxu0 %v8914
        %10380 = vmatpush1.bf16.msra.mxu0 %v8913
        %10381 = vmatprep.subr.bf16.mxu0 %v8905
        %10382 = vmatpush1.bf16.msra.mxu0 %v8904
        %10383 = vmatprep.subr.bf16.mxu0 %v8896
        %10384 = vmatpush1.bf16.msra.mxu0 %v8895
        %10385 = vmatprep.subr.bf16.mxu0 %v8887
        %10386 = vmatpush1.bf16.msra.mxu0 %v8886
        %10387 = vmatprep.subr.bf16.mxu0 %v8878
        %10388 = vmatpush1.bf16.msra.mxu0 %v8877
        %10389 = vmatprep.subr.bf16.mxu0 %v9013
        %10390 = vmatpush2.bf16.msra.mxu0 %v9012
        %10391 = vmatprep.subr.bf16.mxu0 %v9004
        %10392 = vmatpush2.bf16.msra.mxu0 %v9003
        %10393 = vmatprep.subr.bf16.mxu0 %v8995
        %10394 = vmatpush2.bf16.msra.mxu0 %v8994
        %10395 = vmatprep.subr.bf16.mxu0 %v8986
        %10396 = vmatpush2.bf16.msra.mxu0 %v8985
        %10397 = vmatprep.subr.bf16.mxu0 %v8977
        %10398 = vmatpush2.bf16.msra.mxu0 %v8976
        %10399 = vmatprep.subr.bf16.mxu0 %v8968
        %10400 = vmatpush2.bf16.msra.mxu0 %v8967
        %10401 = vmatprep.subr.bf16.mxu0 %v8959
        %10402 = vmatpush2.bf16.msra.mxu0 %v8958
        %10403 = vmatprep.subr.bf16.mxu0 %v8950
        %10404 = vmatpush2.bf16.msra.mxu0 %v8949
        %10405 = vmatprep.mubr.bf16.mxu0 %v5845
        %10406 = vmatmul.mubr.bf16.gmra.mxu0 %v5844
        %v10407 = vpop.f32.mrf.mxu0
        %v10408 = vadd.f32 %v10367, %v10407
        %v10409 = vpop.f32.mrf.mxu0
        %v10410 = vadd.f32 %v10369, %v10409
        %v10411 = vpop.f32.mrf.mxu0
        %v10412 = vpop.f32.mrf.mxu0
        %10413 = vdwg.mxu0
        %10414 = vmatprep.subr.bf16.mxu0 %v9085
        %10415 = vmatpush1.bf16.msra.mxu0 %v9084
        %10416 = vmatprep.subr.bf16.mxu0 %v9076
        %10417 = vmatpush1.bf16.msra.mxu0 %v9075
        %10418 = vmatprep.subr.bf16.mxu0 %v9067
        %10419 = vmatpush1.bf16.msra.mxu0 %v9066
        %10420 = vmatprep.subr.bf16.mxu0 %v9058
        %10421 = vmatpush1.bf16.msra.mxu0 %v9057
        %10422 = vmatprep.subr.bf16.mxu0 %v9049
        %10423 = vmatpush1.bf16.msra.mxu0 %v9048
        %10424 = vmatprep.subr.bf16.mxu0 %v9040
        %10425 = vmatpush1.bf16.msra.mxu0 %v9039
        %10426 = vmatprep.subr.bf16.mxu0 %v9031
        %10427 = vmatpush1.bf16.msra.mxu0 %v9030
        %10428 = vmatprep.subr.bf16.mxu0 %v9022
        %10429 = vmatpush1.bf16.msra.mxu0 %v9021
        %10430 = vmatprep.subr.bf16.mxu0 %v9157
        %10431 = vmatpush2.bf16.msra.mxu0 %v9156
        %10432 = vmatprep.subr.bf16.mxu0 %v9148
        %10433 = vmatpush2.bf16.msra.mxu0 %v9147
        %10434 = vmatprep.subr.bf16.mxu0 %v9139
        %10435 = vmatpush2.bf16.msra.mxu0 %v9138
        %10436 = vmatprep.subr.bf16.mxu0 %v9130
        %10437 = vmatpush2.bf16.msra.mxu0 %v9129
        %10438 = vmatprep.subr.bf16.mxu0 %v9121
        %10439 = vmatpush2.bf16.msra.mxu0 %v9120
        %10440 = vmatprep.subr.bf16.mxu0 %v9112
        %10441 = vmatpush2.bf16.msra.mxu0 %v9111
        %10442 = vmatprep.subr.bf16.mxu0 %v9103
        %10443 = vmatpush2.bf16.msra.mxu0 %v9102
        %10444 = vmatprep.subr.bf16.mxu0 %v9094
        %10445 = vmatpush2.bf16.msra.mxu0 %v9093
        %10446 = vmatprep.mubr.bf16.mxu0 %v5847
        %10447 = vmatmul.mubr.bf16.gmra.mxu0 %v5846
        %v10448 = vpop.f32.mrf.mxu0
        %v10449 = vadd.f32 %v10408, %v10448
        %v10450 = vpop.f32.mrf.mxu0
        %v10451 = vadd.f32 %v10410, %v10450
        %v10452 = vpop.f32.mrf.mxu0
        %v10453 = vpop.f32.mrf.mxu0
        %10454 = vdwg.mxu0
        %10455 = vmatprep.subr.bf16.mxu0 %v9229
        %10456 = vmatpush1.bf16.msra.mxu0 %v9228
        %10457 = vmatprep.subr.bf16.mxu0 %v9220
        %10458 = vmatpush1.bf16.msra.mxu0 %v9219
        %10459 = vmatprep.subr.bf16.mxu0 %v9211
        %10460 = vmatpush1.bf16.msra.mxu0 %v9210
        %10461 = vmatprep.subr.bf16.mxu0 %v9202
        %10462 = vmatpush1.bf16.msra.mxu0 %v9201
        %10463 = vmatprep.subr.bf16.mxu0 %v9193
        %10464 = vmatpush1.bf16.msra.mxu0 %v9192
        %10465 = vmatprep.subr.bf16.mxu0 %v9184
        %10466 = vmatpush1.bf16.msra.mxu0 %v9183
        %10467 = vmatprep.subr.bf16.mxu0 %v9175
        %10468 = vmatpush1.bf16.msra.mxu0 %v9174
        %10469 = vmatprep.subr.bf16.mxu0 %v9166
        %10470 = vmatpush1.bf16.msra.mxu0 %v9165
        %10471 = vmatprep.subr.bf16.mxu0 0
        %10472 = vmatpush2.bf16.msra.mxu0 0
        %10473 = vmatprep.subr.bf16.mxu0 0
        %10474 = vmatpush2.bf16.msra.mxu0 0
        %10475 = vmatprep.subr.bf16.mxu0 0
        %10476 = vmatpush2.bf16.msra.mxu0 0
        %10477 = vmatprep.subr.bf16.mxu0 0
        %10478 = vmatpush2.bf16.msra.mxu0 0
        %10479 = vmatprep.subr.bf16.mxu0 0
        %10480 = vmatpush2.bf16.msra.mxu0 0
        %10481 = vmatprep.subr.bf16.mxu0 0
        %10482 = vmatpush2.bf16.msra.mxu0 0
        %10483 = vmatprep.subr.bf16.mxu0 0
        %10484 = vmatpush2.bf16.msra.mxu0 0
        %10485 = vmatprep.subr.bf16.mxu0 0
        %10486 = vmatpush2.bf16.msra.mxu0 0
        %10487 = vmatprep.mubr.bf16.mxu0 0
        %10488 = vmatmul.mubr.bf16.gmra.mxu0 %v5848
        %v10489 = vpop.f32.mrf.mxu0
        %v10490 = vadd.f32 %v10449, %v10489
        %v10491 = vpop.f32.mrf.mxu0
        %v10492 = vadd.f32 %v10451, %v10491
        %v10493 = vpop.f32.mrf.mxu0
        %v10494 = vpop.f32.mrf.mxu0
        %10495 = vdwg.mxu0
        %10496 = vmatprep.subr.bf16.mxu0 %v8655
        %10497 = vmatpush1.bf16.msra.mxu0 %v8654
        %10498 = vmatprep.subr.bf16.mxu0 %v8646
        %10499 = vmatpush1.bf16.msra.mxu0 %v8645
        %10500 = vmatprep.subr.bf16.mxu0 %v8637
        %10501 = vmatpush1.bf16.msra.mxu0 %v8636
        %10502 = vmatprep.subr.bf16.mxu0 %v8628
        %10503 = vmatpush1.bf16.msra.mxu0 %v8627
        %10504 = vmatprep.subr.bf16.mxu0 %v8619
        %10505 = vmatpush1.bf16.msra.mxu0 %v8618
        %10506 = vmatprep.subr.bf16.mxu0 %v8610
        %10507 = vmatpush1.bf16.msra.mxu0 %v8609
        %10508 = vmatprep.subr.bf16.mxu0 %v8601
        %10509 = vmatpush1.bf16.msra.mxu0 %v8600
        %10510 = vmatprep.subr.bf16.mxu0 %v8592
        %10511 = vmatpush1.bf16.msra.mxu0 %v8591
        %10512 = vmatprep.subr.bf16.mxu0 %v8727
        %10513 = vmatpush2.bf16.msra.mxu0 %v8726
        %10514 = vmatprep.subr.bf16.mxu0 %v8718
        %10515 = vmatpush2.bf16.msra.mxu0 %v8717
        %10516 = vmatprep.subr.bf16.mxu0 %v8709
        %10517 = vmatpush2.bf16.msra.mxu0 %v8708
        %10518 = vmatprep.subr.bf16.mxu0 %v8700
        %10519 = vmatpush2.bf16.msra.mxu0 %v8699
        %10520 = vmatprep.subr.bf16.mxu0 %v8691
        %10521 = vmatpush2.bf16.msra.mxu0 %v8690
        %10522 = vmatprep.subr.bf16.mxu0 %v8682
        %10523 = vmatpush2.bf16.msra.mxu0 %v8681
        %10524 = vmatprep.subr.bf16.mxu0 %v8673
        %10525 = vmatpush2.bf16.msra.mxu0 %v8672
        %10526 = vmatprep.subr.bf16.mxu0 %v8664
        %10527 = vmatpush2.bf16.msra.mxu0 %v8663
        %10528 = vmatprep.mubr.bf16.mxu0 %v5841
        %10529 = vmatmul.mubr.bf16.gmra.mxu0 %v5840
        %v10530 = vpop.f32.mrf.mxu0
        %v10531 = vadd.f32 0.0, %v10530
        %v10532 = vpop.f32.mrf.mxu0
        %v10533 = vadd.f32 0.0, %v10532
        %v10534 = vpop.f32.mrf.mxu0
        %v10535 = vpop.f32.mrf.mxu0
        %10536 = vdwg.mxu0
        %10537 = vmatprep.subr.bf16.mxu0 %v8799
        %10538 = vmatpush1.bf16.msra.mxu0 %v8798
        %10539 = vmatprep.subr.bf16.mxu0 %v8790
        %10540 = vmatpush1.bf16.msra.mxu0 %v8789
        %10541 = vmatprep.subr.bf16.mxu0 %v8781
        %10542 = vmatpush1.bf16.msra.mxu0 %v8780
        %10543 = vmatprep.subr.bf16.mxu0 %v8772
        %10544 = vmatpush1.bf16.msra.mxu0 %v8771
        %10545 = vmatprep.subr.bf16.mxu0 %v8763
        %10546 = vmatpush1.bf16.msra.mxu0 %v8762
        %10547 = vmatprep.subr.bf16.mxu0 %v8754
        %10548 = vmatpush1.bf16.msra.mxu0 %v8753
        %10549 = vmatprep.subr.bf16.mxu0 %v8745
        %10550 = vmatpush1.bf16.msra.mxu0 %v8744
        %10551 = vmatprep.subr.bf16.mxu0 %v8736
        %10552 = vmatpush1.bf16.msra.mxu0 %v8735
        %10553 = vmatprep.subr.bf16.mxu0 %v8871
        %10554 = vmatpush2.bf16.msra.mxu0 %v8870
        %10555 = vmatprep.subr.bf16.mxu0 %v8862
        %10556 = vmatpush2.bf16.msra.mxu0 %v8861
        %10557 = vmatprep.subr.bf16.mxu0 %v8853
        %10558 = vmatpush2.bf16.msra.mxu0 %v8852
        %10559 = vmatprep.subr.bf16.mxu0 %v8844
        %10560 = vmatpush2.bf16.msra.mxu0 %v8843
        %10561 = vmatprep.subr.bf16.mxu0 %v8835
        %10562 = vmatpush2.bf16.msra.mxu0 %v8834
        %10563 = vmatprep.subr.bf16.mxu0 %v8826
        %10564 = vmatpush2.bf16.msra.mxu0 %v8825
        %10565 = vmatprep.subr.bf16.mxu0 %v8817
        %10566 = vmatpush2.bf16.msra.mxu0 %v8816
        %10567 = vmatprep.subr.bf16.mxu0 %v8808
        %10568 = vmatpush2.bf16.msra.mxu0 %v8807
        %10569 = vmatprep.mubr.bf16.mxu0 %v5843
        %10570 = vmatmul.mubr.bf16.gmra.mxu0 %v5842
        %v10571 = vpop.f32.mrf.mxu0
        %v10572 = vadd.f32 %v10531, %v10571
        %v10573 = vpop.f32.mrf.mxu0
        %v10574 = vadd.f32 %v10533, %v10573
        %v10575 = vpop.f32.mrf.mxu0
        %v10576 = vpop.f32.mrf.mxu0
        %10577 = vdwg.mxu0
        %10578 = vmatprep.subr.bf16.mxu0 %v8943
        %10579 = vmatpush1.bf16.msra.mxu0 %v8942
        %10580 = vmatprep.subr.bf16.mxu0 %v8934
        %10581 = vmatpush1.bf16.msra.mxu0 %v8933
        %10582 = vmatprep.subr.bf16.mxu0 %v8925
        %10583 = vmatpush1.bf16.msra.mxu0 %v8924
        %10584 = vmatprep.subr.bf16.mxu0 %v8916
        %10585 = vmatpush1.bf16.msra.mxu0 %v8915
        %10586 = vmatprep.subr.bf16.mxu0 %v8907
        %10587 = vmatpush1.bf16.msra.mxu0 %v8906
        %10588 = vmatprep.subr.bf16.mxu0 %v8898
        %10589 = vmatpush1.bf16.msra.mxu0 %v8897
        %10590 = vmatprep.subr.bf16.mxu0 %v8889
        %10591 = vmatpush1.bf16.msra.mxu0 %v8888
        %10592 = vmatprep.subr.bf16.mxu0 %v8880
        %10593 = vmatpush1.bf16.msra.mxu0 %v8879
        %10594 = vmatprep.subr.bf16.mxu0 %v9015
        %10595 = vmatpush2.bf16.msra.mxu0 %v9014
        %10596 = vmatprep.subr.bf16.mxu0 %v9006
        %10597 = vmatpush2.bf16.msra.mxu0 %v9005
        %10598 = vmatprep.subr.bf16.mxu0 %v8997
        %10599 = vmatpush2.bf16.msra.mxu0 %v8996
        %10600 = vmatprep.subr.bf16.mxu0 %v8988
        %10601 = vmatpush2.bf16.msra.mxu0 %v8987
        %10602 = vmatprep.subr.bf16.mxu0 %v8979
        %10603 = vmatpush2.bf16.msra.mxu0 %v8978
        %10604 = vmatprep.subr.bf16.mxu0 %v8970
        %10605 = vmatpush2.bf16.msra.mxu0 %v8969
        %10606 = vmatprep.subr.bf16.mxu0 %v8961
        %10607 = vmatpush2.bf16.msra.mxu0 %v8960
        %10608 = vmatprep.subr.bf16.mxu0 %v8952
        %10609 = vmatpush2.bf16.msra.mxu0 %v8951
        %10610 = vmatprep.mubr.bf16.mxu0 %v5845
        %10611 = vmatmul.mubr.bf16.gmra.mxu0 %v5844
        %v10612 = vpop.f32.mrf.mxu0
        %v10613 = vadd.f32 %v10572, %v10612
        %v10614 = vpop.f32.mrf.mxu0
        %v10615 = vadd.f32 %v10574, %v10614
        %v10616 = vpop.f32.mrf.mxu0
        %v10617 = vpop.f32.mrf.mxu0
        %10618 = vdwg.mxu0
        %10619 = vmatprep.subr.bf16.mxu0 %v9087
        %10620 = vmatpush1.bf16.msra.mxu0 %v9086
        %10621 = vmatprep.subr.bf16.mxu0 %v9078
        %10622 = vmatpush1.bf16.msra.mxu0 %v9077
        %10623 = vmatprep.subr.bf16.mxu0 %v9069
        %10624 = vmatpush1.bf16.msra.mxu0 %v9068
        %10625 = vmatprep.subr.bf16.mxu0 %v9060
        %10626 = vmatpush1.bf16.msra.mxu0 %v9059
        %10627 = vmatprep.subr.bf16.mxu0 %v9051
        %10628 = vmatpush1.bf16.msra.mxu0 %v9050
        %10629 = vmatprep.subr.bf16.mxu0 %v9042
        %10630 = vmatpush1.bf16.msra.mxu0 %v9041
        %10631 = vmatprep.subr.bf16.mxu0 %v9033
        %10632 = vmatpush1.bf16.msra.mxu0 %v9032
        %10633 = vmatprep.subr.bf16.mxu0 %v9024
        %10634 = vmatpush1.bf16.msra.mxu0 %v9023
        %10635 = vmatprep.subr.bf16.mxu0 %v9159
        %10636 = vmatpush2.bf16.msra.mxu0 %v9158
        %10637 = vmatprep.subr.bf16.mxu0 %v9150
        %10638 = vmatpush2.bf16.msra.mxu0 %v9149
        %10639 = vmatprep.subr.bf16.mxu0 %v9141
        %10640 = vmatpush2.bf16.msra.mxu0 %v9140
        %10641 = vmatprep.subr.bf16.mxu0 %v9132
        %10642 = vmatpush2.bf16.msra.mxu0 %v9131
        %10643 = vmatprep.subr.bf16.mxu0 %v9123
        %10644 = vmatpush2.bf16.msra.mxu0 %v9122
        %10645 = vmatprep.subr.bf16.mxu0 %v9114
        %10646 = vmatpush2.bf16.msra.mxu0 %v9113
        %10647 = vmatprep.subr.bf16.mxu0 %v9105
        %10648 = vmatpush2.bf16.msra.mxu0 %v9104
        %10649 = vmatprep.subr.bf16.mxu0 %v9096
        %10650 = vmatpush2.bf16.msra.mxu0 %v9095
        %10651 = vmatprep.mubr.bf16.mxu0 %v5847
        %10652 = vmatmul.mubr.bf16.gmra.mxu0 %v5846
        %v10653 = vpop.f32.mrf.mxu0
        %v10654 = vadd.f32 %v10613, %v10653
        %v10655 = vpop.f32.mrf.mxu0
        %v10656 = vadd.f32 %v10615, %v10655
        %v10657 = vpop.f32.mrf.mxu0
        %v10658 = vpop.f32.mrf.mxu0
        %10659 = vdwg.mxu0
        %10660 = vmatprep.subr.bf16.mxu0 %v9231
        %10661 = vmatpush1.bf16.msra.mxu0 %v9230
        %10662 = vmatprep.subr.bf16.mxu0 %v9222
        %10663 = vmatpush1.bf16.msra.mxu0 %v9221
        %10664 = vmatprep.subr.bf16.mxu0 %v9213
        %10665 = vmatpush1.bf16.msra.mxu0 %v9212
        %10666 = vmatprep.subr.bf16.mxu0 %v9204
        %10667 = vmatpush1.bf16.msra.mxu0 %v9203
        %10668 = vmatprep.subr.bf16.mxu0 %v9195
        %10669 = vmatpush1.bf16.msra.mxu0 %v9194
        %10670 = vmatprep.subr.bf16.mxu0 %v9186
        %10671 = vmatpush1.bf16.msra.mxu0 %v9185
        %10672 = vmatprep.subr.bf16.mxu0 %v9177
        %10673 = vmatpush1.bf16.msra.mxu0 %v9176
        %10674 = vmatprep.subr.bf16.mxu0 %v9168
        %10675 = vmatpush1.bf16.msra.mxu0 %v9167
        %10676 = vmatprep.subr.bf16.mxu0 0
        %10677 = vmatpush2.bf16.msra.mxu0 0
        %10678 = vmatprep.subr.bf16.mxu0 0
        %10679 = vmatpush2.bf16.msra.mxu0 0
        %10680 = vmatprep.subr.bf16.mxu0 0
        %10681 = vmatpush2.bf16.msra.mxu0 0
        %10682 = vmatprep.subr.bf16.mxu0 0
        %10683 = vmatpush2.bf16.msra.mxu0 0
        %10684 = vmatprep.subr.bf16.mxu0 0
        %10685 = vmatpush2.bf16.msra.mxu0 0
        %10686 = vmatprep.subr.bf16.mxu0 0
        %10687 = vmatpush2.bf16.msra.mxu0 0
        %10688 = vmatprep.subr.bf16.mxu0 0
        %10689 = vmatpush2.bf16.msra.mxu0 0
        %10690 = vmatprep.subr.bf16.mxu0 0
        %10691 = vmatpush2.bf16.msra.mxu0 0
        %10692 = vmatprep.mubr.bf16.mxu0 0
        %10693 = vmatmul.mubr.bf16.gmra.mxu0 %v5848
        %v10694 = vpop.f32.mrf.mxu0
        %v10695 = vadd.f32 %v10654, %v10694
        %v10696 = vpop.f32.mrf.mxu0
        %v10697 = vadd.f32 %v10656, %v10696
        %v10698 = vpop.f32.mrf.mxu0
        %v10699 = vpop.f32.mrf.mxu0
        %10700 = vdwg.mxu0
        %10701 = vmatprep.subr.bf16.mxu0 0
        %10702 = vmatpush1.bf16.msra.mxu0 %v8656
        %10703 = vmatprep.subr.bf16.mxu0 0
        %10704 = vmatpush1.bf16.msra.mxu0 %v8647
        %10705 = vmatprep.subr.bf16.mxu0 0
        %10706 = vmatpush1.bf16.msra.mxu0 %v8638
        %10707 = vmatprep.subr.bf16.mxu0 0
        %10708 = vmatpush1.bf16.msra.mxu0 %v8629
        %10709 = vmatprep.subr.bf16.mxu0 0
        %10710 = vmatpush1.bf16.msra.mxu0 %v8620
        %10711 = vmatprep.subr.bf16.mxu0 0
        %10712 = vmatpush1.bf16.msra.mxu0 %v8611
        %10713 = vmatprep.subr.bf16.mxu0 0
        %10714 = vmatpush1.bf16.msra.mxu0 %v8602
        %10715 = vmatprep.subr.bf16.mxu0 0
        %10716 = vmatpush1.bf16.msra.mxu0 %v8593
        %10717 = vmatprep.subr.bf16.mxu0 0
        %10718 = vmatpush2.bf16.msra.mxu0 %v8728
        %10719 = vmatprep.subr.bf16.mxu0 0
        %10720 = vmatpush2.bf16.msra.mxu0 %v8719
        %10721 = vmatprep.subr.bf16.mxu0 0
        %10722 = vmatpush2.bf16.msra.mxu0 %v8710
        %10723 = vmatprep.subr.bf16.mxu0 0
        %10724 = vmatpush2.bf16.msra.mxu0 %v8701
        %10725 = vmatprep.subr.bf16.mxu0 0
        %10726 = vmatpush2.bf16.msra.mxu0 %v8692
        %10727 = vmatprep.subr.bf16.mxu0 0
        %10728 = vmatpush2.bf16.msra.mxu0 %v8683
        %10729 = vmatprep.subr.bf16.mxu0 0
        %10730 = vmatpush2.bf16.msra.mxu0 %v8674
        %10731 = vmatprep.subr.bf16.mxu0 0
        %10732 = vmatpush2.bf16.msra.mxu0 %v8665
        %10733 = vmatprep.mubr.bf16.mxu0 %v5841
        %10734 = vmatmul.mubr.bf16.gmra.mxu0 %v5840
        %v10735 = vpop.f32.mrf.mxu0
        %v10736 = vadd.f32 0.0, %v10735
        %v10737 = vpop.f32.mrf.mxu0
        %v10738 = vpop.f32.mrf.mxu0
        %v10739 = vpop.f32.mrf.mxu0
        %10740 = vdwg.mxu0
        %10741 = vmatprep.subr.bf16.mxu0 0
        %10742 = vmatpush1.bf16.msra.mxu0 %v8800
        %10743 = vmatprep.subr.bf16.mxu0 0
        %10744 = vmatpush1.bf16.msra.mxu0 %v8791
        %10745 = vmatprep.subr.bf16.mxu0 0
        %10746 = vmatpush1.bf16.msra.mxu0 %v8782
        %10747 = vmatprep.subr.bf16.mxu0 0
        %10748 = vmatpush1.bf16.msra.mxu0 %v8773
        %10749 = vmatprep.subr.bf16.mxu0 0
        %10750 = vmatpush1.bf16.msra.mxu0 %v8764
        %10751 = vmatprep.subr.bf16.mxu0 0
        %10752 = vmatpush1.bf16.msra.mxu0 %v8755
        %10753 = vmatprep.subr.bf16.mxu0 0
        %10754 = vmatpush1.bf16.msra.mxu0 %v8746
        %10755 = vmatprep.subr.bf16.mxu0 0
        %10756 = vmatpush1.bf16.msra.mxu0 %v8737
        %10757 = vmatprep.subr.bf16.mxu0 0
        %10758 = vmatpush2.bf16.msra.mxu0 %v8872
        %10759 = vmatprep.subr.bf16.mxu0 0
        %10760 = vmatpush2.bf16.msra.mxu0 %v8863
        %10761 = vmatprep.subr.bf16.mxu0 0
        %10762 = vmatpush2.bf16.msra.mxu0 %v8854
        %10763 = vmatprep.subr.bf16.mxu0 0
        %10764 = vmatpush2.bf16.msra.mxu0 %v8845
        %10765 = vmatprep.subr.bf16.mxu0 0
        %10766 = vmatpush2.bf16.msra.mxu0 %v8836
        %10767 = vmatprep.subr.bf16.mxu0 0
        %10768 = vmatpush2.bf16.msra.mxu0 %v8827
        %10769 = vmatprep.subr.bf16.mxu0 0
        %10770 = vmatpush2.bf16.msra.mxu0 %v8818
        %10771 = vmatprep.subr.bf16.mxu0 0
        %10772 = vmatpush2.bf16.msra.mxu0 %v8809
        %10773 = vmatprep.mubr.bf16.mxu0 %v5843
        %10774 = vmatmul.mubr.bf16.gmra.mxu0 %v5842
        %v10775 = vpop.f32.mrf.mxu0
        %v10776 = vadd.f32 %v10736, %v10775
        %v10777 = vpop.f32.mrf.mxu0
        %v10778 = vpop.f32.mrf.mxu0
        %v10779 = vpop.f32.mrf.mxu0
        %10780 = vdwg.mxu0
        %10781 = vmatprep.subr.bf16.mxu0 0
        %10782 = vmatpush1.bf16.msra.mxu0 %v8944
        %10783 = vmatprep.subr.bf16.mxu0 0
        %10784 = vmatpush1.bf16.msra.mxu0 %v8935
        %10785 = vmatprep.subr.bf16.mxu0 0
        %10786 = vmatpush1.bf16.msra.mxu0 %v8926
        %10787 = vmatprep.subr.bf16.mxu0 0
        %10788 = vmatpush1.bf16.msra.mxu0 %v8917
        %10789 = vmatprep.subr.bf16.mxu0 0
        %10790 = vmatpush1.bf16.msra.mxu0 %v8908
        %10791 = vmatprep.subr.bf16.mxu0 0
        %10792 = vmatpush1.bf16.msra.mxu0 %v8899
        %10793 = vmatprep.subr.bf16.mxu0 0
        %10794 = vmatpush1.bf16.msra.mxu0 %v8890
        %10795 = vmatprep.subr.bf16.mxu0 0
        %10796 = vmatpush1.bf16.msra.mxu0 %v8881
        %10797 = vmatprep.subr.bf16.mxu0 0
        %10798 = vmatpush2.bf16.msra.mxu0 %v9016
        %10799 = vmatprep.subr.bf16.mxu0 0
        %10800 = vmatpush2.bf16.msra.mxu0 %v9007
        %10801 = vmatprep.subr.bf16.mxu0 0
        %10802 = vmatpush2.bf16.msra.mxu0 %v8998
        %10803 = vmatprep.subr.bf16.mxu0 0
        %10804 = vmatpush2.bf16.msra.mxu0 %v8989
        %10805 = vmatprep.subr.bf16.mxu0 0
        %10806 = vmatpush2.bf16.msra.mxu0 %v8980
        %10807 = vmatprep.subr.bf16.mxu0 0
        %10808 = vmatpush2.bf16.msra.mxu0 %v8971
        %10809 = vmatprep.subr.bf16.mxu0 0
        %10810 = vmatpush2.bf16.msra.mxu0 %v8962
        %10811 = vmatprep.subr.bf16.mxu0 0
        %10812 = vmatpush2.bf16.msra.mxu0 %v8953
        %10813 = vmatprep.mubr.bf16.mxu0 %v5845
        %10814 = vmatmul.mubr.bf16.gmra.mxu0 %v5844
        %v10815 = vpop.f32.mrf.mxu0
        %v10816 = vadd.f32 %v10776, %v10815
        %v10817 = vpop.f32.mrf.mxu0
        %v10818 = vpop.f32.mrf.mxu0
        %v10819 = vpop.f32.mrf.mxu0
        %10820 = vdwg.mxu0
        %10821 = vmatprep.subr.bf16.mxu0 0
        %10822 = vmatpush1.bf16.msra.mxu0 %v9088
        %10823 = vmatprep.subr.bf16.mxu0 0
        %10824 = vmatpush1.bf16.msra.mxu0 %v9079
        %10825 = vmatprep.subr.bf16.mxu0 0
        %10826 = vmatpush1.bf16.msra.mxu0 %v9070
        %10827 = vmatprep.subr.bf16.mxu0 0
        %10828 = vmatpush1.bf16.msra.mxu0 %v9061
        %10829 = vmatprep.subr.bf16.mxu0 0
        %10830 = vmatpush1.bf16.msra.mxu0 %v9052
        %10831 = vmatprep.subr.bf16.mxu0 0
        %10832 = vmatpush1.bf16.msra.mxu0 %v9043
        %10833 = vmatprep.subr.bf16.mxu0 0
        %10834 = vmatpush1.bf16.msra.mxu0 %v9034
        %10835 = vmatprep.subr.bf16.mxu0 0
        %10836 = vmatpush1.bf16.msra.mxu0 %v9025
        %10837 = vmatprep.subr.bf16.mxu0 0
        %10838 = vmatpush2.bf16.msra.mxu0 %v9160
        %10839 = vmatprep.subr.bf16.mxu0 0
        %10840 = vmatpush2.bf16.msra.mxu0 %v9151
        %10841 = vmatprep.subr.bf16.mxu0 0
        %10842 = vmatpush2.bf16.msra.mxu0 %v9142
        %10843 = vmatprep.subr.bf16.mxu0 0
        %10844 = vmatpush2.bf16.msra.mxu0 %v9133
        %10845 = vmatprep.subr.bf16.mxu0 0
        %10846 = vmatpush2.bf16.msra.mxu0 %v9124
        %10847 = vmatprep.subr.bf16.mxu0 0
        %10848 = vmatpush2.bf16.msra.mxu0 %v9115
        %10849 = vmatprep.subr.bf16.mxu0 0
        %10850 = vmatpush2.bf16.msra.mxu0 %v9106
        %10851 = vmatprep.subr.bf16.mxu0 0
        %10852 = vmatpush2.bf16.msra.mxu0 %v9097
        %10853 = vmatprep.mubr.bf16.mxu0 %v5847
        %10854 = vmatmul.mubr.bf16.gmra.mxu0 %v5846
        %v10855 = vpop.f32.mrf.mxu0
        %v10856 = vadd.f32 %v10816, %v10855
        %v10857 = vpop.f32.mrf.mxu0
        %v10858 = vpop.f32.mrf.mxu0
        %v10859 = vpop.f32.mrf.mxu0
        %10860 = vdwg.mxu0
        %10861 = vmatprep.subr.bf16.mxu0 0
        %10862 = vmatpush1.bf16.msra.mxu0 %v9232
        %10863 = vmatprep.subr.bf16.mxu0 0
        %10864 = vmatpush1.bf16.msra.mxu0 %v9223
        %10865 = vmatprep.subr.bf16.mxu0 0
        %10866 = vmatpush1.bf16.msra.mxu0 %v9214
        %10867 = vmatprep.subr.bf16.mxu0 0
        %10868 = vmatpush1.bf16.msra.mxu0 %v9205
        %10869 = vmatprep.subr.bf16.mxu0 0
        %10870 = vmatpush1.bf16.msra.mxu0 %v9196
        %10871 = vmatprep.subr.bf16.mxu0 0
        %10872 = vmatpush1.bf16.msra.mxu0 %v9187
        %10873 = vmatprep.subr.bf16.mxu0 0
        %10874 = vmatpush1.bf16.msra.mxu0 %v9178
        %10875 = vmatprep.subr.bf16.mxu0 0
        %10876 = vmatpush1.bf16.msra.mxu0 %v9169
        %10877 = vmatprep.subr.bf16.mxu0 0
        %10878 = vmatpush2.bf16.msra.mxu0 0
        %10879 = vmatprep.subr.bf16.mxu0 0
        %10880 = vmatpush2.bf16.msra.mxu0 0
        %10881 = vmatprep.subr.bf16.mxu0 0
        %10882 = vmatpush2.bf16.msra.mxu0 0
        %10883 = vmatprep.subr.bf16.mxu0 0
        %10884 = vmatpush2.bf16.msra.mxu0 0
        %10885 = vmatprep.subr.bf16.mxu0 0
        %10886 = vmatpush2.bf16.msra.mxu0 0
        %10887 = vmatprep.subr.bf16.mxu0 0
        %10888 = vmatpush2.bf16.msra.mxu0 0
        %10889 = vmatprep.subr.bf16.mxu0 0
        %10890 = vmatpush2.bf16.msra.mxu0 0
        %10891 = vmatprep.subr.bf16.mxu0 0
        %10892 = vmatpush2.bf16.msra.mxu0 0
        %10893 = vmatprep.mubr.bf16.mxu0 0
        %10894 = vmatmul.mubr.bf16.gmra.mxu0 %v5848
        %v10895 = vpop.f32.mrf.mxu0
        %v10896 = vadd.f32 %v10856, %v10895
        %v10897 = vpop.f32.mrf.mxu0
        %v10898 = vpop.f32.mrf.mxu0
        %v10899 = vpop.f32.mrf.mxu0
        %10900 = vdwg.mxu0
        %10901 = vst [vmem:[%s551] sm:$0xff] %v10080
        %10902 = vst [vmem:[%s551 + $0x8] sm:$0xff] %v10082
        %10903 = vst [vmem:[%s551 + $0x10] sm:$0xff] %v10285
        %10904 = vst [vmem:[%s551 + $0x18] sm:$0xff] %v10287
        %10905 = vst [vmem:[%s551 + $0x20] sm:$0xff] %v10490
        %10906 = vst [vmem:[%s551 + $0x28] sm:$0xff] %v10492
        %10907 = vst [vmem:[%s551 + $0x30] sm:$0xff] %v10695
        %10908 = vst [vmem:[%s551 + $0x38] sm:$0xff] %v10697
        %10909 = vst [vmem:[%s551 + $0x40] sm:$0xff] %v10896
        %s10910 = sand.u32 %s280, 1
        %s10911 = scalar_lea.sflag [#allocation4], %s10910
        %s10912 = sand.u32 %s280, 1
        %s10913 = smul.addr %s10912, 72
        %s10914 = scalar_lea.vmem [#allocation19], %s10913
        %s10915 = sand.u32 %s306, 1
        %s10916 = scalar_lea.sflag [#allocation21], %s10915
        %s10917 = sand.u32 %s306, 1
        %s10918 = smul.addr %s10917, 72
        %s10919 = scalar_lea.vmem [#allocation20], %s10918
        // Predicated region
        $region105: #{_lambda_.1} parent=63 // pred_check
          %p10920 = pneg %p290
        $region106: #{_lambda_.1} parent=63 // pred_check_branch
          %10922 = sbr.rel (%p10920) target = $region108
        $region107: #{_lambda_.1} parent=63 // pred_region
          %s10924 = ssub.s32 1152, 1152
          %10925 = vsyncadd %s10911, %s10924
          %s10926 = smul.addr %s36, 9
          %s10927 = smul.addr %s10926, 128
          %s10928 = scalar_lea.hbm %s11, %s10927
          %s10930 = sshll.u32 %s10914, 4
          %s10931 = int_to_ptr.vmem [resolvable:$true] %s10930
          %10933 = dma.vmem_to_hbm [thread:$0]  %s10931, 1152, %s10928, %s10911
        $region108: #{_lambda_.1} parent=63 // pred_fallthru
          _
        // Predicated region
        $region109: #{_lambda_.1} parent=63 // pred_check
          %p10934 = pneg %p316
        $region110: #{_lambda_.1} parent=63 // pred_check_branch
          %10936 = sbr.rel (%p10934) target = $region112
        $region111: #{_lambda_.1} parent=63 // pred_region
          %s10938 = ssub.s32 1152, 1152
          %10939 = vsyncadd %s10916, %s10938
          %s10940 = smul.addr %s36, 9
          %s10941 = smul.addr %s10940, 128
          %s10942 = scalar_lea.hbm %s12, %s10941
          %s10944 = sshll.u32 %s10919, 4
          %s10945 = int_to_ptr.vmem [resolvable:$true] %s10944
          %10947 = dma.vmem_to_hbm [thread:$0]  %s10945, 1152, %s10942, %s10916
        $region112: #{_lambda_.1} parent=63 // pred_fallthru
          _
      $region64: #{_lambda_.1} parent=5 // pred_fallthru
        _
      %p10948 = scmp.le.s32.totalorder 2, %s31
      // Predicated region
      $region113: #{_lambda_.1} parent=5 // pred_check
        %p10949 = pneg %p10948
      $region114: #{_lambda_.1} parent=5 // pred_check_branch
        %10951 = sbr.rel (%p10949) target = $region116
      $region115: #{_lambda_.1} parent=5 // pred_region
        %s10952 = ssub.s32 %s31, 2
        // Predicated region
        $region117: #{_lambda_.1} parent=115 // pred_check
          %p10953 = pneg %p296
        $region118: #{_lambda_.1} parent=115 // pred_check_branch
          %10955 = sbr.rel (%p10953) target = $region120
        $region119: #{_lambda_.1} parent=115 // pred_region
          %s10956 = sand.u32 %s281, 1
          %s10957 = scalar_lea.sflag [#allocation4], %s10956
          %s10958 = sand.u32 %s281, 1
          %s10959 = smul.addr %s10958, 72
          %s10960 = scalar_lea.vmem [#allocation19], %s10959
          %10961 = dma.done %s10957, 1152
        $region120: #{_lambda_.1} parent=115 // pred_fallthru
          _
        // Predicated region
        $region121: #{_lambda_.1} parent=115 // pred_check
          %p10962 = pneg %p322
        $region122: #{_lambda_.1} parent=115 // pred_check_branch
          %10964 = sbr.rel (%p10962) target = $region124
        $region123: #{_lambda_.1} parent=115 // pred_region
          %s10965 = sand.u32 %s307, 1
          %s10966 = scalar_lea.sflag [#allocation21], %s10965
          %s10967 = sand.u32 %s307, 1
          %s10968 = smul.addr %s10967, 72
          %s10969 = scalar_lea.vmem [#allocation20], %s10968
          %10970 = dma.done %s10966, 1152
        $region124: #{_lambda_.1} parent=115 // pred_fallthru
          _
      $region116: #{_lambda_.1} parent=5 // pred_fallthru
        _
    $region6: #{_lambda_.1} parent=1 // loop_footer
      %s35 = sadd.s32 1, %s31
    $region7: #{_lambda_.1} parent=1 // loop_footer_branch
      %30 = sbr.rel target = $region3
    $region8: #{_lambda_.1} parent=1 // loop_exit
      _
    %10971 = vsyncpa [#allocation3], 1
    %s10972 = scalar_lea.sflag [#allocation3], 1
    %10973 = vsyncpa %s10972, 1
    %10974 = vsyncpa [#allocation6], 1
    %10975 = vsyncpa [#allocation9], 1
    %10976 = vsyncpa [#allocation12], 1
    %10977 = vsyncpa [#allocation15], 1
    %10978 = vsyncpa [#allocation18], 1
    %10979 = vsyncpa [#allocation4], 1
    %s10980 = scalar_lea.sflag [#allocation4], 1
    %10981 = vsyncpa %s10980, 1
    %10982 = vsyncpa [#allocation21], 1
    %s10983 = scalar_lea.sflag [#allocation21], 1
    %10984 = vsyncpa %s10983, 1

</llo_original>
